<compile_context>
chip_gen: v6e
topology: v6e:2x2x1
jax: 0.10.0
libtpu: 0.0.40
codegen_flags: <defaults>
</compile_context>

<pallas_src>
import functools

import numpy as np
import jax
import jax.numpy as jnp
from jax import lax
from jax.experimental import pallas as pl
from jax.experimental.pallas import tpu as pltpu


# ----------------------------------------------------------------------------------
# Demo config (small shapes consistent with the module).
# ----------------------------------------------------------------------------------
IMG = 64            # input image size -> 16x16 tokens after the stride-4 patch embed
IN_CH = 3
EMBED = 128         # embed_dims (keeps every linear output lane-dense)
HEADS = 2
MLP_RATIO = 4
SR = 8              # sr_ratio
LAYERS = 2
PATCH = 7
STRIDE = 4
LN_EPS = 1e-5

_VMEM_LIMIT = 32 * 1024 * 1024

# rows of the packed per-block (NUM_VEC, C) parameter table
_V_N1G, _V_N1B, _V_QB, _V_SRB, _V_SRNG, _V_SRNB, _V_PROJB, _V_N2G, _V_N2B = range(9)
NUM_VEC = 9


def _round_up(x, m):
    return (x + m - 1) // m * m


def _cparams(sem):
    return pltpu.CompilerParams(dimension_semantics=sem, vmem_limit_bytes=_VMEM_LIMIT)


def _ln(y, g, b):
    mu = jnp.mean(y, axis=-1, keepdims=True)
    yc = y - mu
    var = jnp.mean(yc * yc, axis=-1, keepdims=True)
    return yc * lax.rsqrt(var + LN_EPS) * g + b


# ----------------------------------------------------------------------------------
# Pallas kernels
# ----------------------------------------------------------------------------------
def _patch_embed_kernel(x_ref, w_ref, b_ref, g_ref, bt_ref, o_ref):
    # x: (TN, CKKp) token-major im2col patches; w: (CKKp, E).  Natural (M,K)x(K,N) dot
    # fused with Conv bias + LayerNorm.
    y = jnp.dot(x_ref[...], w_ref[...], preferred_element_type=jnp.float32) + b_ref[...]
    o_ref[...] = _ln(y, g_ref[...], bt_ref[...]).astype(o_ref.dtype)


def _attn_ffn1_kernel(x_ref, pool_ref, vec_ref, qw_ref, kvw_ref, kvb_ref,
                      srw_ref, projw_ref, fc1w_ref, fc1b_ref,
                      x1_ref, h_ref, *, num_heads):
    # One batch element, everything VMEM-resident:
    #   x1 = x + proj(attn(LN1(x)))           (256,128)
    #   h  = fc1(LN2(x1)) + b                 (256,512)
    f32 = jnp.float32
    x = x_ref[...].astype(f32)                                     # (N, C)
    C = x.shape[-1]
    d = C // num_heads

    xn = _ln(x, vec_ref[_V_N1G:_V_N1G + 1, :], vec_ref[_V_N1B:_V_N1B + 1, :])

    # q projection (softmax scale pre-folded into q weights/bias by the wrapper)
    q = jnp.dot(xn, qw_ref[...], preferred_element_type=f32) + vec_ref[_V_QB:_V_QB + 1, :]

    # spatial reduction: AdaptiveAvgPool2d expressed as a (Nkv, N) matmul, then the
    # 1x1 conv (a Linear over channels) + LayerNorm.
    pooled = jnp.dot(pool_ref[...], xn, preferred_element_type=f32)            # (Nkv, C)
    xk = jnp.dot(pooled, srw_ref[...], preferred_element_type=f32) + vec_ref[_V_SRB:_V_SRB + 1, :]
    xk = _ln(xk, vec_ref[_V_SRNG:_V_SRNG + 1, :], vec_ref[_V_SRNB:_V_SRNB + 1, :])

    kv = jnp.dot(xk, kvw_ref[...], preferred_element_type=f32) + kvb_ref[...]  # (Nkv, 2C)

    # per-head attention; heads are contiguous 64-channel slices, output is rebuilt
    # head-major so the store is lane-dense (N, C=128).
    heads_out = []
    for hh in range(num_heads):                                    # static unroll
        qh = q[:, hh * d:(hh + 1) * d]                             # (N, d)
        kh = kv[:, hh * d:(hh + 1) * d]                            # (Nkv, d)
        vh = kv[:, C + hh * d:C + (hh + 1) * d]                    # (Nkv, d)
        s = lax.dot_general(qh, kh, (((1,), (1,)), ((), ())),
                            preferred_element_type=f32)            # (N, Nkv)
        s = s - jnp.max(s, axis=-1, keepdims=True)
        p = jnp.exp(s)
        p = p / jnp.sum(p, axis=-1, keepdims=True)
        heads_out.append(jnp.dot(p, vh, preferred_element_type=f32))
    o = jnp.concatenate(heads_out, axis=-1)                        # (N, C)

    x1 = x + jnp.dot(o, projw_ref[...], preferred_element_type=f32) \
           + vec_ref[_V_PROJB:_V_PROJB + 1, :]
    x1_ref[...] = x1.astype(x1_ref.dtype)

    # MixFFN front half fused into the same kernel: LN2 + fc1.
    x2n = _ln(x1, vec_ref[_V_N2G:_V_N2G + 1, :], vec_ref[_V_N2B:_V_N2B + 1, :])
    h_ref[...] = (jnp.dot(x2n, fc1w_ref[...], preferred_element_type=f32)
                  + fc1b_ref[...]).astype(h_ref.dtype)


def _fc2_residual_kernel(h_ref, r_ref, w_ref, b_ref, o_ref):
    # out = residual + GELU'd-hidden @ fc2_wT + b   (GELU applied in XLA, fused with the
    # depthwise conv that produced h).
    y = jnp.dot(h_ref[...].astype(jnp.float32), w_ref[...],
                preferred_element_type=jnp.float32) + b_ref[...]
    o_ref[...] = (r_ref[...].astype(jnp.float32) + y).astype(o_ref.dtype)


# ----------------------------------------------------------------------------------
# Pallas wrappers
# ----------------------------------------------------------------------------------
def patch_embed_pallas(patches, w_t, proj_b, norm_g, norm_b):
    """patches: (B, N, CKKp) token-major; w_t: (CKKp, E).  Returns (B, N, E)."""
    B, N, CKKp = patches.shape
    E = w_t.shape[1]
    TN = 128 if N % 128 == 0 else N
    isz = 4
    return pl.pallas_call(
        _patch_embed_kernel,
        out_shape=jax.ShapeDtypeStruct((B, N, E), patches.dtype),
        grid_spec=pltpu.PrefetchScalarGridSpec(
            num_scalar_prefetch=0,
            grid=(B, N // TN),
            in_specs=[
                pl.BlockSpec((None, TN, CKKp), lambda b, n: (b, n, 0)),
                pl.BlockSpec((CKKp, E), lambda b, n: (0, 0)),
                pl.BlockSpec((1, E), lambda b, n: (0, 0)),
                pl.BlockSpec((1, E), lambda b, n: (0, 0)),
                pl.BlockSpec((1, E), lambda b, n: (0, 0)),
            ],
            out_specs=pl.BlockSpec((None, TN, E), lambda b, n: (b, n, 0)),
        ),
        compiler_params=_cparams(("parallel", "parallel")),
        cost_estimate=pl.CostEstimate(
            flops=2 * B * N * CKKp * E, transcendentals=B * N,
            bytes_accessed=isz * (B * N * CKKp + CKKp * E + B * N * E + 3 * E)),
    )(patches, w_t, proj_b.reshape(1, E), norm_g.reshape(1, E), norm_b.reshape(1, E))


def attn_ffn1_pallas(x, pool_mat, vecs, q_wt, kv_wt, kv_b, sr_wt, proj_wt,
                     fc1_wt, fc1_b, num_heads):
    """Fused attention half + LN2/fc1.  x: (B, N, C) -> (x1 (B,N,C), h (B,N,hidden))."""
    B, N, C = x.shape
    Nkv = pool_mat.shape[0]
    hidden = fc1_wt.shape[1]
    d = C // num_heads
    isz = 4
    flops = 2 * B * (2 * N * C * C + Nkv * N * C + 3 * Nkv * C * C
                     + 2 * num_heads * N * Nkv * d + N * C * hidden)
    return pl.pallas_call(
        functools.partial(_attn_ffn1_kernel, num_heads=num_heads),
        out_shape=(jax.ShapeDtypeStruct((B, N, C), x.dtype),
                   jax.ShapeDtypeStruct((B, N, hidden), x.dtype)),
        grid_spec=pltpu.PrefetchScalarGridSpec(
            num_scalar_prefetch=0,
            grid=(B,),
            in_specs=[
                pl.BlockSpec((None, N, C), lambda b: (b, 0, 0)),       # tokens
                pl.BlockSpec((Nkv, N), lambda b: (0, 0)),              # pool matrix
                pl.BlockSpec((NUM_VEC, C), lambda b: (0, 0)),          # packed vectors
                pl.BlockSpec((C, C), lambda b: (0, 0)),                # q_wT (scaled)
                pl.BlockSpec((C, 2 * C), lambda b: (0, 0)),            # kv_wT
                pl.BlockSpec((1, 2 * C), lambda b: (0, 0)),            # kv_b
                pl.BlockSpec((C, C), lambda b: (0, 0)),                # sr_wT
                pl.BlockSpec((C, C), lambda b: (0, 0)),                # proj_wT
                pl.BlockSpec((C, hidden), lambda b: (0, 0)),           # fc1_wT
                pl.BlockSpec((1, hidden), lambda b: (0, 0)),           # fc1_b
            ],
            out_specs=[
                pl.BlockSpec((None, N, C), lambda b: (b, 0, 0)),
                pl.BlockSpec((None, N, hidden), lambda b: (b, 0, 0)),
            ],
        ),
        compiler_params=_cparams(("parallel",)),
        cost_estimate=pl.CostEstimate(
            flops=flops,
            transcendentals=B * (num_heads * N * Nkv + 4 * N + 2 * Nkv),
            bytes_accessed=isz * (2 * B * N * C + B * N * hidden + Nkv * N
                                  + 4 * C * C + C * hidden + NUM_VEC * C
                                  + hidden + 2 * C)),
    )(x, pool_mat, vecs, q_wt, kv_wt, kv_b, sr_wt, proj_wt, fc1_wt, fc1_b)


def fc2_residual_pallas(h2d, res2d, w_t, b):
    """out = res + h2d @ w_t + b.  h2d: (M, hidden); res2d: (M, C); w_t: (hidden, C)."""
    M, hidden = h2d.shape
    C = w_t.shape[1]
    TM = min(256, _round_up(M, 8))
    Mp = _round_up(M, TM)
    if Mp != M:
        h2d = jnp.pad(h2d, ((0, Mp - M), (0, 0)))
        res2d = jnp.pad(res2d, ((0, Mp - M), (0, 0)))
    isz = 4
    out = pl.pallas_call(
        _fc2_residual_kernel,
        out_shape=jax.ShapeDtypeStruct((Mp, C), h2d.dtype),
        grid_spec=pltpu.PrefetchScalarGridSpec(
            num_scalar_prefetch=0,
            grid=(Mp // TM,),
            in_specs=[
                pl.BlockSpec((TM, hidden), lambda i: (i, 0)),
                pl.BlockSpec((TM, C), lambda i: (i, 0)),
                pl.BlockSpec((hidden, C), lambda i: (0, 0)),
                pl.BlockSpec((1, C), lambda i: (0, 0)),
            ],
            out_specs=pl.BlockSpec((TM, C), lambda i: (i, 0)),
        ),
        compiler_params=_cparams(("parallel",)),
        cost_estimate=pl.CostEstimate(
            flops=2 * Mp * hidden * C, transcendentals=0,
            bytes_accessed=isz * (Mp * hidden + 2 * Mp * C + hidden * C + C)),
    )(h2d, res2d, w_t, b.reshape(1, C))
    return out[:M] if Mp != M else out


# ----------------------------------------------------------------------------------
# XLA glue (no clean Pallas equivalent; negligible cost at these sizes)
# ----------------------------------------------------------------------------------
def _im2col_tokens(x, k, stride, pad):
    """Token-major k x k patches (B, N, C*k*k); feature index = c*k*k + ki*k + kj
    (matches torch Conv2d weight.reshape(E, C*k*k))."""
    B, C, H, W = x.shape
    Ho = (H + 2 * pad - k) // stride + 1
    Wo = (W + 2 * pad - k) // stride + 1
    xp = jnp.pad(x, ((0, 0), (0, 0), (pad, pad), (pad, pad)))
    cols = []
    for ki in range(k):
        for kj in range(k):
            cols.append(lax.slice(
                xp, (0, 0, ki, kj),
                (B, C, ki + (Ho - 1) * stride + 1, kj + (Wo - 1) * stride + 1),
                (1, 1, stride, stride)))                       # (B, C, Ho, Wo)
    patches = jnp.stack(cols, axis=2)                          # (B, C, kk, Ho, Wo)
    patches = jnp.transpose(patches, (0, 3, 4, 1, 2))          # (B, Ho, Wo, C, kk)
    return patches.reshape(B, Ho * Wo, C * k * k), Ho, Wo


def _build_pool_matrix(H, W, sr):
    """AdaptiveAvgPool2d(sr) over row-major tokens as a (sr*sr, H*W) matrix (trace time)."""
    def bounds(n, o):
        return [(i * n // o, -((-(i + 1) * n) // o)) for i in range(o)]

    P = np.zeros((sr * sr, H * W), dtype=np.float32)
    for oi, (rs, re) in enumerate(bounds(H, sr)):
        for oj, (cs, ce) in enumerate(bounds(W, sr)):
            w = 1.0 / ((re - rs) * (ce - cs))
            for i in range(rs, re):
                P[oi * sr + oj, i * W + cs:i * W + ce] = w
    return jnp.asarray(P)


def _dwconv_gelu_nhwc(x_nhwc, w, b):
    """Depthwise 3x3 (pad 1) + exact-erf GELU in NHWC.  w: (C,1,3,3) torch layout."""
    # TODO(synk): depthwise conv + exact-erf GELU kept in XLA (no guaranteed erf lowering
    # in Mosaic); under jit they fuse into one op so there is no extra HBM round trip.
    C = x_nhwc.shape[-1]
    kern = jnp.transpose(w, (2, 3, 1, 0))                       # (3, 3, 1, C) HWIO
    y = lax.conv_general_dilated(
        x_nhwc, kern, window_strides=(1, 1), padding=((1, 1), (1, 1)),
        dimension_numbers=("NHWC", "HWIO", "NHWC"), feature_group_count=C,
        precision=lax.Precision.HIGHEST)
    return jax.nn.gelu(y + b, approximate=False)


# ----------------------------------------------------------------------------------
# SegFormerEncoder forward (kernel path)
# ----------------------------------------------------------------------------------
def transformer_block(x, H, W, bp, pool_mat, num_heads, sr_ratio):
    B, N, C = x.shape
    d = C // num_heads
    scale = float(d) ** -0.5
    # TODO(synk): only the sr_ratio > 1 path (module default sr_ratios=8) is fused here.
    assert sr_ratio > 1

    # Kernel-ready parameters: weights pre-transposed to (Cin, Cout), softmax scale
    # folded into q, small per-block vectors packed into one (NUM_VEC, C) table.
    vecs = jnp.stack([bp["n1_g"], bp["n1_b"], bp["q_b"] * scale, bp["sr_b"],
                      bp["srn_g"], bp["srn_b"], bp["proj_b"], bp["n2_g"], bp["n2_b"]],
                     axis=0)
    q_wt = (bp["q_w"] * scale).T
    kv_wt = bp["kv_w"].T
    sr_wt = bp["sr_w"].reshape(C, C).T
    proj_wt = bp["proj_w"].T
    fc1_wt = bp["fc1_w"].T
    fc2_wt = bp["fc2_w"].T
    hidden = fc1_wt.shape[1]

    x1, h = attn_ffn1_pallas(x, pool_mat, vecs, q_wt, kv_wt,
                             bp["kv_b"].reshape(1, 2 * C), sr_wt, proj_wt,
                             fc1_wt, bp["fc1_b"].reshape(1, hidden), num_heads)
    h = _dwconv_gelu_nhwc(h.reshape(B, H, W, hidden), bp["dw_w"], bp["dw_b"])
    x2 = fc2_residual_pallas(h.reshape(B * N, hidden), x1.reshape(B * N, C),
                             fc2_wt, bp["fc2_b"])
    return x2.reshape(B, N, C)


def segformer_encoder_forward(x_nchw, params, *, num_heads=HEADS, sr_ratio=SR):
    B = x_nchw.shape[0]
    E = params["proj_w"].shape[0]
    patches, H, W = _im2col_tokens(x_nchw, PATCH, STRIDE, PATCH // 2)    # (B, N, CKK)
    CKK = patches.shape[-1]
    CKKp = _round_up(CKK, 8)
    if CKKp != CKK:
        patches = jnp.pad(patches, ((0, 0), (0, 0), (0, CKKp - CKK)))
    w_t = params["proj_w"].reshape(E, CKK).T                             # (CKK, E)
    if CKKp != CKK:
        w_t = jnp.pad(w_t, ((0, CKKp - CKK), (0, 0)))
    tokens = patch_embed_pallas(patches, w_t, params["proj_b"],
                                params["norm_g"], params["norm_b"])      # (B, N, E)
    pool_mat = _build_pool_matrix(H, W, sr_ratio)
    for bp in params["blocks"]:
        tokens = transformer_block(tokens, H, W, bp, pool_mat, num_heads, sr_ratio)
    return jnp.transpose(tokens.reshape(B, H, W, E), (0, 3, 1, 2))       # (B, E, H, W)


# ----------------------------------------------------------------------------------
# Parameters (deterministic init mimicking nn.Linear / nn.Conv2d defaults)
# ----------------------------------------------------------------------------------
def _uinit(key, shape, fan_in):
    bound = 1.0 / (fan_in ** 0.5)
    return jax.random.uniform(key, shape, minval=-bound, maxval=bound, dtype=jnp.float32)


def init_params(key):
    keys = iter(jax.random.split(key, 64))
    p = {}
    fan = IN_CH * PATCH * PATCH
    p["proj_w"] = _uinit(next(keys), (EMBED, IN_CH, PATCH, PATCH), fan)
    p["proj_b"] = _uinit(next(keys), (EMBED,), fan)
    p["norm_g"] = jnp.ones((EMBED,), jnp.float32)
    p["norm_b"] = jnp.zeros((EMBED,), jnp.float32)
    hidden = EMBED * MLP_RATIO
    blocks = []
    for _ in range(LAYERS):
        b = {}
        b["n1_g"] = 1.0 + 0.05 * jax.random.normal(next(keys), (EMBED,), jnp.float32)
        b["n1_b"] = 0.05 * jax.random.normal(next(keys), (EMBED,), jnp.float32)
        b["q_w"] = _uinit(next(keys), (EMBED, EMBED), EMBED)
        b["q_b"] = _uinit(next(keys), (EMBED,), EMBED)
        b["kv_w"] = _uinit(next(keys), (2 * EMBED, EMBED), EMBED)
        b["kv_b"] = _uinit(next(keys), (2 * EMBED,), EMBED)
        b["sr_w"] = _uinit(next(keys), (EMBED, EMBED, 1, 1), EMBED)
        b["sr_b"] = _uinit(next(keys), (EMBED,), EMBED)
        b["srn_g"] = 1.0 + 0.05 * jax.random.normal(next(keys), (EMBED,), jnp.float32)
        b["srn_b"] = 0.05 * jax.random.normal(next(keys), (EMBED,), jnp.float32)
        b["proj_w"] = _uinit(next(keys), (EMBED, EMBED), EMBED)
        b["proj_b"] = _uinit(next(keys), (EMBED,), EMBED)
        b["n2_g"] = 1.0 + 0.05 * jax.random.normal(next(keys), (EMBED,), jnp.float32)
        b["n2_b"] = 0.05 * jax.random.normal(next(keys), (EMBED,), jnp.float32)
        b["fc1_w"] = _uinit(next(keys), (hidden, EMBED), EMBED)
        b["fc1_b"] = _uinit(next(keys), (hidden,), EMBED)
        b["dw_w"] = _uinit(next(keys), (hidden, 1, 3, 3), 9)
        b["dw_b"] = _uinit(next(keys), (hidden,), 9)
        b["fc2_w"] = _uinit(next(keys), (EMBED, hidden), hidden)
        b["fc2_b"] = _uinit(next(keys), (EMBED,), hidden)
        blocks.append(b)
    p["blocks"] = blocks
    return p


# ----------------------------------------------------------------------------------
# Pure-JAX reference (literal transcription of the PyTorch forward)
# ----------------------------------------------------------------------------------
_HI = lax.Precision.HIGHEST


def _lin_ref(x, w, b):
    return jnp.dot(x, w.T, precision=_HI) + b


def _ln_ref(x, g, b):
    mu = x.mean(axis=-1, keepdims=True)
    var = jnp.mean((x - mu) ** 2, axis=-1, keepdims=True)
    return (x - mu) / jnp.sqrt(var + LN_EPS) * g + b


def _adaptive_avg_pool_hw(x_nhwc, out_size):
    """torch.nn.AdaptiveAvgPool2d semantics over the H, W axes of (B, H, W, C)."""
    B, H, W, C = x_nhwc.shape

    def bounds(n, o):
        return [(i * n // o, -((-(i + 1) * n) // o)) for i in range(o)]

    rows, cols = bounds(H, out_size), bounds(W, out_size)
    return jnp.stack(
        [jnp.stack([x_nhwc[:, rs:re, cs:ce, :].mean(axis=(1, 2)) for cs, ce in cols],
                   axis=1) for rs, re in rows],
        axis=1)                                                 # (B, out, out, C)


def _attn_ref(x, H, W, p, heads, sr):
    B, N, C = x.shape
    d = C // heads
    scale = float(d) ** -0.5
    q = jnp.transpose(_lin_ref(x, p["q_w"], p["q_b"]).reshape(B, N, heads, d), (0, 2, 1, 3))
    if sr > 1:
        x_ = jnp.transpose(x, (0, 2, 1)).reshape(B, C, H, W)
        x_ = _adaptive_avg_pool_hw(jnp.transpose(x_, (0, 2, 3, 1)), sr)
        x_ = jnp.transpose(x_, (0, 3, 1, 2))                     # (B, C, sr, sr)
        x_ = lax.conv_general_dilated(x_, p["sr_w"], (1, 1), "VALID",
                                      dimension_numbers=("NCHW", "OIHW", "NCHW"),
                                      precision=_HI) + p["sr_b"][None, :, None, None]
        x_ = jnp.transpose(x_.reshape(B, C, sr * sr), (0, 2, 1))
        x_ = _ln_ref(x_, p["srn_g"], p["srn_b"])
    else:
        x_ = x
    kv = _lin_ref(x_, p["kv_w"], p["kv_b"]).reshape(B, -1, 2, heads, d)
    kv = jnp.transpose(kv, (2, 0, 3, 1, 4))
    k, v = kv[0], kv[1]
    attn = jax.nn.softmax(jnp.matmul(q, jnp.swapaxes(k, -1, -2), precision=_HI) * scale, axis=-1)
    o = jnp.transpose(jnp.matmul(attn, v, precision=_HI), (0, 2, 1, 3)).reshape(B, N, C)
    return _lin_ref(o, p["proj_w"], p["proj_b"])


def _ffn_ref(x, H, W, p):
    B, N, C = x.shape
    h = _lin_ref(x, p["fc1_w"], p["fc1_b"])
    hidden = h.shape[-1]
    h = jnp.transpose(h, (0, 2, 1)).reshape(B, hidden, H, W)
    h = lax.conv_general_dilated(h, p["dw_w"], (1, 1), ((1, 1), (1, 1)),
                                 dimension_numbers=("NCHW", "OIHW", "NCHW"),
                                 feature_group_count=hidden, precision=_HI)
    h = h + p["dw_b"][None, :, None, None]
    h = jnp.transpose(h.reshape(B, hidden, H * W), (0, 2, 1))
    h = jax.nn.gelu(h, approximate=False)
    return _lin_ref(h, p["fc2_w"], p["fc2_b"])


def reference_forward(x, params, *, num_heads=HEADS, sr_ratio=SR):
    y = lax.conv_general_dilated(x, params["proj_w"], (STRIDE, STRIDE),
                                 ((PATCH // 2, PATCH // 2), (PATCH // 2, PATCH // 2)),
                                 dimension_numbers=("NCHW", "OIHW", "NCHW"),
                                 precision=_HI)
    y = y + params["proj_b"][None, :, None, None]
    B, E, H, W = y.shape
    t = jnp.transpose(y.reshape(B, E, H * W), (0, 2, 1))
    t = _ln_ref(t, params["norm_g"], params["norm_b"])
    for bp in params["blocks"]:
        t = t + _attn_ref(_ln_ref(t, bp["n1_g"], bp["n1_b"]), H, W, bp, num_heads, sr_ratio)
        t = t + _ffn_ref(_ln_ref(t, bp["n2_g"], bp["n2_b"]), H, W, bp)
    return jnp.transpose(t.reshape(B, H, W, E), (0, 3, 1, 2))


# ----------------------------------------------------------------------------------
if __name__ == "__main__":
    key = jax.random.PRNGKey(0)
    kp, kx = jax.random.split(key)
    params = init_params(kp)
    x = jax.random.normal(kx, (2, IN_CH, IMG, IMG), dtype=jnp.float32)

    fwd = jax.jit(lambda xx, pp: segformer_encoder_forward(xx, pp))
    out = jax.block_until_ready(fwd(x, params))

    ref = reference_forward(x, params)
    Ho = (IMG + 2 * (PATCH // 2) - PATCH) // STRIDE + 1
    assert out.shape == (2, EMBED, Ho, Ho), out.shape
    max_diff = float(jnp.max(jnp.abs(out - ref)))
    assert jnp.allclose(out, ref, atol=2e-3, rtol=2e-3), f"mismatch vs reference: {max_diff}"

    print("KERNEL_OK")
</pallas_src>

<mosaic_0001>
module attributes {stable_mosaic.version = 11 : i64} {
  func.func @_patch_embed_kernel(%arg0: i32, %arg1: i32, %arg2: memref<1x128x152xf32, #tpu.memory_space<vmem>>, %arg3: memref<152x128xf32, #tpu.memory_space<vmem>>, %arg4: memref<1x128xf32, #tpu.memory_space<vmem>>, %arg5: memref<1x128xf32, #tpu.memory_space<vmem>>, %arg6: memref<1x128xf32, #tpu.memory_space<vmem>>, %arg7: memref<1x128x128xf32, #tpu.memory_space<vmem>>) attributes {dimension_semantics = [#tpu.dimension_semantics<parallel>, #tpu.dimension_semantics<parallel>], iteration_bounds = array<i64: 2, 2>, scalar_prefetch = 0 : i64, scratch_operands = 0 : i64, tpu.core_type = #tpu.core_type<tc>, window_params = [{transform_indices = @transform_0, window_bounds = array<i64: 1, 128, 152>}, {pipeline_mode = #tpu.pipeline_mode<synchronous>, transform_indices = @transform_1, window_bounds = array<i64: 152, 128>}, {pipeline_mode = #tpu.pipeline_mode<synchronous>, transform_indices = @transform_2, window_bounds = array<i64: 1, 128>}, {pipeline_mode = #tpu.pipeline_mode<synchronous>, transform_indices = @transform_3, window_bounds = array<i64: 1, 128>}, {pipeline_mode = #tpu.pipeline_mode<synchronous>, transform_indices = @transform_4, window_bounds = array<i64: 1, 128>}, {transform_indices = @transform_5, window_bounds = array<i64: 1, 128, 128>}]} {
    %c0 = arith.constant 0 : index
    %c0_0 = arith.constant 0 : index
    %c0_1 = arith.constant 0 : index
    %0 = vector.load %arg2[%c0, %c0_0, %c0_1] : memref<1x128x152xf32, #tpu.memory_space<vmem>>, vector<1x128x152xf32>
    %1 = vector.shape_cast %0 : vector<1x128x152xf32> to vector<128x152xf32>
    %c0_2 = arith.constant 0 : index
    %c0_3 = arith.constant 0 : index
    %2 = vector.load %arg3[%c0_2, %c0_3] : memref<152x128xf32, #tpu.memory_space<vmem>>, vector<152x128xf32>
    %cst = arith.constant dense<0.000000e+00> : vector<128x128xf32>
    %3 = tpu.matmul %1, %2, %cst {dimension_numbers = #tpu.dot_dimension_numbers<[1], [0], [0], [1], [0, 0, 1, 1], [], []>} : vector<128x152xf32>, vector<152x128xf32>, vector<128x128xf32> -> vector<128x128xf32>
    %c0_4 = arith.constant 0 : index
    %c0_5 = arith.constant 0 : index
    %4 = vector.load %arg4[%c0_4, %c0_5] : memref<1x128xf32, #tpu.memory_space<vmem>>, vector<1x128xf32>
    %5 = vector.broadcast %4 : vector<1x128xf32> to vector<128x128xf32>
    %6 = arith.addf %3, %5 : vector<128x128xf32>
    %c0_6 = arith.constant 0 : index
    %c0_7 = arith.constant 0 : index
    %7 = vector.load %arg5[%c0_6, %c0_7] : memref<1x128xf32, #tpu.memory_space<vmem>>, vector<1x128xf32>
    %c0_8 = arith.constant 0 : index
    %c0_9 = arith.constant 0 : index
    %8 = vector.load %arg6[%c0_8, %c0_9] : memref<1x128xf32, #tpu.memory_space<vmem>>, vector<1x128xf32>
    %cst_10 = arith.constant dense<0.000000e+00> : vector<128xf32>
    %9 = vector.multi_reduction <add>, %6, %cst_10 [1] : vector<128x128xf32> to vector<128xf32>
    %10 = vector.shape_cast %9 : vector<128xf32> to vector<128x1xf32>
    %cst_11 = arith.constant 1.280000e+02 : f32
    %11 = vector.broadcast %cst_11 : f32 to vector<128x1xf32>
    %12 = arith.divf %10, %11 : vector<128x1xf32>
    %13 = vector.broadcast %12 : vector<128x1xf32> to vector<128x128xf32>
    %14 = arith.subf %6, %13 : vector<128x128xf32>
    %15 = arith.mulf %14, %14 : vector<128x128xf32>
    %cst_12 = arith.constant dense<0.000000e+00> : vector<128xf32>
    %16 = vector.multi_reduction <add>, %15, %cst_12 [1] : vector<128x128xf32> to vector<128xf32>
    %17 = vector.shape_cast %16 : vector<128xf32> to vector<128x1xf32>
    %cst_13 = arith.constant 1.280000e+02 : f32
    %18 = vector.broadcast %cst_13 : f32 to vector<128x1xf32>
    %19 = arith.divf %17, %18 : vector<128x1xf32>
    %cst_14 = arith.constant 9.99999974E-6 : f32
    %20 = vector.broadcast %cst_14 : f32 to vector<128x1xf32>
    %21 = arith.addf %19, %20 : vector<128x1xf32>
    %22 = math.rsqrt %21 : vector<128x1xf32>
    %23 = vector.broadcast %22 : vector<128x1xf32> to vector<128x128xf32>
    %24 = arith.mulf %14, %23 : vector<128x128xf32>
    %25 = vector.broadcast %7 : vector<1x128xf32> to vector<128x128xf32>
    %26 = arith.mulf %24, %25 : vector<128x128xf32>
    %27 = vector.broadcast %8 : vector<1x128xf32> to vector<128x128xf32>
    %28 = arith.addf %26, %27 : vector<128x128xf32>
    %c0_15 = arith.constant 0 : index
    %c0_16 = arith.constant 0 : index
    %c0_17 = arith.constant 0 : index
    %29 = vector.load %arg7[%c0_15, %c0_16, %c0_17] : memref<1x128x128xf32, #tpu.memory_space<vmem>>, vector<1x128x128xf32>
    %30 = vector.shape_cast %29 : vector<1x128x128xf32> to vector<128x128xf32>
    %31 = vector.shape_cast %28 : vector<128x128xf32> to vector<1x128x128xf32>
    tpu.vector_store %arg7[%c0_15, %c0_16, %c0_17], %31 {strides = array<i32>} : memref<1x128x128xf32, #tpu.memory_space<vmem>>, vector<1x128x128xf32>,
    return
  }
  func.func @transform_0(%arg0: i32, %arg1: i32) -> (i32, i32, i32) {
    %c0_i32 = arith.constant 0 : i32
    %c0_i32_0 = arith.constant 0 : i32
    return %arg0, %arg1, %c0_i32 : i32, i32, i32
  }
  func.func @transform_1(%arg0: i32, %arg1: i32) -> (i32, i32) {
    %c0_i32 = arith.constant 0 : i32
    %c0_i32_0 = arith.constant 0 : i32
    %c0_i32_1 = arith.constant 0 : i32
    return %c0_i32, %c0_i32_0 : i32, i32
  }
  func.func @transform_2(%arg0: i32, %arg1: i32) -> (i32, i32) {
    %c0_i32 = arith.constant 0 : i32
    %c0_i32_0 = arith.constant 0 : i32
    %c0_i32_1 = arith.constant 0 : i32
    return %c0_i32, %c0_i32_0 : i32, i32
  }
  func.func @transform_3(%arg0: i32, %arg1: i32) -> (i32, i32) {
    %c0_i32 = arith.constant 0 : i32
    %c0_i32_0 = arith.constant 0 : i32
    %c0_i32_1 = arith.constant 0 : i32
    return %c0_i32, %c0_i32_0 : i32, i32
  }
  func.func @transform_4(%arg0: i32, %arg1: i32) -> (i32, i32) {
    %c0_i32 = arith.constant 0 : i32
    %c0_i32_0 = arith.constant 0 : i32
    %c0_i32_1 = arith.constant 0 : i32
    return %c0_i32, %c0_i32_0 : i32, i32
  }
  func.func @transform_5(%arg0: i32, %arg1: i32) -> (i32, i32, i32) {
    %c0_i32 = arith.constant 0 : i32
    %c0_i32_0 = arith.constant 0 : i32
    return %arg0, %arg1, %c0_i32 : i32, i32, i32
  }
}

module attributes {stable_mosaic.version = 11 : i64} {
  func.func @_attn_ffn1_kernel(%arg0: i32, %arg1: memref<1x256x128xf32, #tpu.memory_space<vmem>>, %arg2: memref<64x256xf32, #tpu.memory_space<vmem>>, %arg3: memref<9x128xf32, #tpu.memory_space<vmem>>, %arg4: memref<128x128xf32, #tpu.memory_space<vmem>>, %arg5: memref<128x256xf32, #tpu.memory_space<vmem>>, %arg6: memref<1x256xf32, #tpu.memory_space<vmem>>, %arg7: memref<128x128xf32, #tpu.memory_space<vmem>>, %arg8: memref<128x128xf32, #tpu.memory_space<vmem>>, %arg9: memref<128x512xf32, #tpu.memory_space<vmem>>, %arg10: memref<1x512xf32, #tpu.memory_space<vmem>>, %arg11: memref<1x256x128xf32, #tpu.memory_space<vmem>>, %arg12: memref<1x256x512xf32, #tpu.memory_space<vmem>>) attributes {dimension_semantics = [#tpu.dimension_semantics<parallel>], iteration_bounds = array<i64: 2>, scalar_prefetch = 0 : i64, scratch_operands = 0 : i64, tpu.core_type = #tpu.core_type<tc>, window_params = [{transform_indices = @transform_0, window_bounds = array<i64: 1, 256, 128>}, {pipeline_mode = #tpu.pipeline_mode<synchronous>, transform_indices = @transform_1, window_bounds = array<i64: 64, 256>}, {pipeline_mode = #tpu.pipeline_mode<synchronous>, transform_indices = @transform_2, window_bounds = array<i64: 9, 128>}, {pipeline_mode = #tpu.pipeline_mode<synchronous>, transform_indices = @transform_3, window_bounds = array<i64: 128, 128>}, {pipeline_mode = #tpu.pipeline_mode<synchronous>, transform_indices = @transform_4, window_bounds = array<i64: 128, 256>}, {pipeline_mode = #tpu.pipeline_mode<synchronous>, transform_indices = @transform_5, window_bounds = array<i64: 1, 256>}, {pipeline_mode = #tpu.pipeline_mode<synchronous>, transform_indices = @transform_6, window_bounds = array<i64: 128, 128>}, {pipeline_mode = #tpu.pipeline_mode<synchronous>, transform_indices = @transform_7, window_bounds = array<i64: 128, 128>}, {pipeline_mode = #tpu.pipeline_mode<synchronous>, transform_indices = @transform_8, window_bounds = array<i64: 128, 512>}, {pipeline_mode = #tpu.pipeline_mode<synchronous>, transform_indices = @transform_9, window_bounds = array<i64: 1, 512>}, {transform_indices = @transform_10, window_bounds = array<i64: 1, 256, 128>}, {transform_indices = @transform_11, window_bounds = array<i64: 1, 256, 512>}]} {
    %c0 = arith.constant 0 : index
    %c0_0 = arith.constant 0 : index
    %c0_1 = arith.constant 0 : index
    %0 = vector.load %arg1[%c0, %c0_0, %c0_1] : memref<1x256x128xf32, #tpu.memory_space<vmem>>, vector<1x256x128xf32>
    %1 = vector.shape_cast %0 : vector<1x256x128xf32> to vector<256x128xf32>
    %c0_2 = arith.constant 0 : index
    %c0_3 = arith.constant 0 : index
    %2 = vector.load %arg3[%c0_2, %c0_3] : memref<9x128xf32, #tpu.memory_space<vmem>>, vector<1x128xf32>
    %c1 = arith.constant 1 : index
    %c0_4 = arith.constant 0 : index
    %3 = vector.load %arg3[%c1, %c0_4] : memref<9x128xf32, #tpu.memory_space<vmem>>, vector<1x128xf32>
    %cst = arith.constant dense<0.000000e+00> : vector<256xf32>
    %4 = vector.multi_reduction <add>, %1, %cst [1] : vector<256x128xf32> to vector<256xf32>
    %5 = vector.shape_cast %4 : vector<256xf32> to vector<256x1xf32>
    %cst_5 = arith.constant 1.280000e+02 : f32
    %6 = vector.broadcast %cst_5 : f32 to vector<256x1xf32>
    %7 = arith.divf %5, %6 : vector<256x1xf32>
    %8 = vector.broadcast %7 : vector<256x1xf32> to vector<256x128xf32>
    %9 = arith.subf %1, %8 : vector<256x128xf32>
    %10 = arith.mulf %9, %9 : vector<256x128xf32>
    %cst_6 = arith.constant dense<0.000000e+00> : vector<256xf32>
    %11 = vector.multi_reduction <add>, %10, %cst_6 [1] : vector<256x128xf32> to vector<256xf32>
    %12 = vector.shape_cast %11 : vector<256xf32> to vector<256x1xf32>
    %cst_7 = arith.constant 1.280000e+02 : f32
    %13 = vector.broadcast %cst_7 : f32 to vector<256x1xf32>
    %14 = arith.divf %12, %13 : vector<256x1xf32>
    %cst_8 = arith.constant 9.99999974E-6 : f32
    %15 = vector.broadcast %cst_8 : f32 to vector<256x1xf32>
    %16 = arith.addf %14, %15 : vector<256x1xf32>
    %17 = math.rsqrt %16 : vector<256x1xf32>
    %18 = vector.broadcast %17 : vector<256x1xf32> to vector<256x128xf32>
    %19 = arith.mulf %9, %18 : vector<256x128xf32>
    %20 = vector.broadcast %2 : vector<1x128xf32> to vector<256x128xf32>
    %21 = arith.mulf %19, %20 : vector<256x128xf32>
    %22 = vector.broadcast %3 : vector<1x128xf32> to vector<256x128xf32>
    %23 = arith.addf %21, %22 : vector<256x128xf32>
    %c0_9 = arith.constant 0 : index
    %c0_10 = arith.constant 0 : index
    %24 = vector.load %arg4[%c0_9, %c0_10] : memref<128x128xf32, #tpu.memory_space<vmem>>, vector<128x128xf32>
    %cst_11 = arith.constant dense<0.000000e+00> : vector<256x128xf32>
    %25 = tpu.matmul %23, %24, %cst_11 {dimension_numbers = #tpu.dot_dimension_numbers<[1], [0], [0], [1], [0, 0, 1, 1], [], []>} : vector<256x128xf32>, vector<128x128xf32>, vector<256x128xf32> -> vector<256x128xf32>
    %c2 = arith.constant 2 : index
    %c0_12 = arith.constant 0 : index
    %26 = vector.load %arg3[%c2, %c0_12] : memref<9x128xf32, #tpu.memory_space<vmem>>, vector<1x128xf32>
    %27 = vector.broadcast %26 : vector<1x128xf32> to vector<256x128xf32>
    %28 = arith.addf %25, %27 : vector<256x128xf32>
    %c0_13 = arith.constant 0 : index
    %c0_14 = arith.constant 0 : index
    %29 = vector.load %arg2[%c0_13, %c0_14] : memref<64x256xf32, #tpu.memory_space<vmem>>, vector<64x256xf32>
    %cst_15 = arith.constant dense<0.000000e+00> : vector<64x128xf32>
    %30 = tpu.matmul %29, %23, %cst_15 {dimension_numbers = #tpu.dot_dimension_numbers<[1], [0], [0], [1], [0, 0, 1, 1], [], []>} : vector<64x256xf32>, vector<256x128xf32>, vector<64x128xf32> -> vector<64x128xf32>
    %c0_16 = arith.constant 0 : index
    %c0_17 = arith.constant 0 : index
    %31 = vector.load %arg7[%c0_16, %c0_17] : memref<128x128xf32, #tpu.memory_space<vmem>>, vector<128x128xf32>
    %cst_18 = arith.constant dense<0.000000e+00> : vector<64x128xf32>
    %32 = tpu.matmul %30, %31, %cst_18 {dimension_numbers = #tpu.dot_dimension_numbers<[1], [0], [0], [1], [0, 0, 1, 1], [], []>} : vector<64x128xf32>, vector<128x128xf32>, vector<64x128xf32> -> vector<64x128xf32>
    %c3 = arith.constant 3 : index
    %c0_19 = arith.constant 0 : index
    %33 = vector.load %arg3[%c3, %c0_19] : memref<9x128xf32, #tpu.memory_space<vmem>>, vector<1x128xf32>
    %34 = vector.broadcast %33 : vector<1x128xf32> to vector<64x128xf32>
    %35 = arith.addf %32, %34 : vector<64x128xf32>
    %c4 = arith.constant 4 : index
    %c0_20 = arith.constant 0 : index
    %36 = vector.load %arg3[%c4, %c0_20] : memref<9x128xf32, #tpu.memory_space<vmem>>, vector<1x128xf32>
    %c5 = arith.constant 5 : index
    %c0_21 = arith.constant 0 : index
    %37 = vector.load %arg3[%c5, %c0_21] : memref<9x128xf32, #tpu.memory_space<vmem>>, vector<1x128xf32>
    %cst_22 = arith.constant dense<0.000000e+00> : vector<64xf32>
    %38 = vector.multi_reduction <add>, %35, %cst_22 [1] : vector<64x128xf32> to vector<64xf32>
    %39 = vector.shape_cast %38 : vector<64xf32> to vector<64x1xf32>
    %cst_23 = arith.constant 1.280000e+02 : f32
    %40 = vector.broadcast %cst_23 : f32 to vector<64x1xf32>
    %41 = arith.divf %39, %40 : vector<64x1xf32>
    %42 = vector.broadcast %41 : vector<64x1xf32> to vector<64x128xf32>
    %43 = arith.subf %35, %42 : vector<64x128xf32>
    %44 = arith.mulf %43, %43 : vector<64x128xf32>
    %cst_24 = arith.constant dense<0.000000e+00> : vector<64xf32>
    %45 = vector.multi_reduction <add>, %44, %cst_24 [1] : vector<64x128xf32> to vector<64xf32>
    %46 = vector.shape_cast %45 : vector<64xf32> to vector<64x1xf32>
    %cst_25 = arith.constant 1.280000e+02 : f32
    %47 = vector.broadcast %cst_25 : f32 to vector<64x1xf32>
    %48 = arith.divf %46, %47 : vector<64x1xf32>
    %cst_26 = arith.constant 9.99999974E-6 : f32
    %49 = vector.broadcast %cst_26 : f32 to vector<64x1xf32>
    %50 = arith.addf %48, %49 : vector<64x1xf32>
    %51 = math.rsqrt %50 : vector<64x1xf32>
    %52 = vector.broadcast %51 : vector<64x1xf32> to vector<64x128xf32>
    %53 = arith.mulf %43, %52 : vector<64x128xf32>
    %54 = vector.broadcast %36 : vector<1x128xf32> to vector<64x128xf32>
    %55 = arith.mulf %53, %54 : vector<64x128xf32>
    %56 = vector.broadcast %37 : vector<1x128xf32> to vector<64x128xf32>
    %57 = arith.addf %55, %56 : vector<64x128xf32>
    %c0_27 = arith.constant 0 : index
    %c0_28 = arith.constant 0 : index
    %58 = vector.load %arg5[%c0_27, %c0_28] : memref<128x256xf32, #tpu.memory_space<vmem>>, vector<128x256xf32>
    %cst_29 = arith.constant dense<0.000000e+00> : vector<64x256xf32>
    %59 = tpu.matmul %57, %58, %cst_29 {dimension_numbers = #tpu.dot_dimension_numbers<[1], [0], [0], [1], [0, 0, 1, 1], [], []>} : vector<64x128xf32>, vector<128x256xf32>, vector<64x256xf32> -> vector<64x256xf32>
    %c0_30 = arith.constant 0 : index
    %c0_31 = arith.constant 0 : index
    %60 = vector.load %arg6[%c0_30, %c0_31] : memref<1x256xf32, #tpu.memory_space<vmem>>, vector<1x256xf32>
    %61 = vector.broadcast %60 : vector<1x256xf32> to vector<64x256xf32>
    %62 = arith.addf %59, %61 : vector<64x256xf32>
    %63 = vector.extract_strided_slice %28 {offsets = [0, 0], sizes = [256, 64], strides = [1, 1]} : vector<256x128xf32> to vector<256x64xf32>
    %64 = vector.extract_strided_slice %62 {offsets = [0, 0], sizes = [64, 64], strides = [1, 1]} : vector<64x256xf32> to vector<64x64xf32>
    %65 = vector.extract_strided_slice %62 {offsets = [0, 128], sizes = [64, 64], strides = [1, 1]} : vector<64x256xf32> to vector<64x64xf32>
    %cst_32 = arith.constant dense<0.000000e+00> : vector<256x64xf32>
    %66 = tpu.matmul %63, %64, %cst_32 {dimension_numbers = #tpu.dot_dimension_numbers<[1], [1], [0], [0], [0, 0, 1, 0], [], []>} : vector<256x64xf32>, vector<64x64xf32>, vector<256x64xf32> -> vector<256x64xf32>
    %cst_33 = arith.constant dense<0xFF800000> : vector<256xf32>
    %67 = vector.multi_reduction <maximumf>, %66, %cst_33 [1] : vector<256x64xf32> to vector<256xf32>
    %68 = vector.shape_cast %67 : vector<256xf32> to vector<256x1xf32>
    %69 = vector.broadcast %68 : vector<256x1xf32> to vector<256x64xf32>
    %70 = arith.subf %66, %69 : vector<256x64xf32>
    %71 = math.exp %70 : vector<256x64xf32>
    %cst_34 = arith.constant dense<0.000000e+00> : vector<256xf32>
    %72 = vector.multi_reduction <add>, %71, %cst_34 [1] : vector<256x64xf32> to vector<256xf32>
    %73 = vector.shape_cast %72 : vector<256xf32> to vector<256x1xf32>
    %74 = vector.broadcast %73 : vector<256x1xf32> to vector<256x64xf32>
    %75 = arith.divf %71, %74 : vector<256x64xf32>
    %cst_35 = arith.constant dense<0.000000e+00> : vector<256x64xf32>
    %76 = tpu.matmul %75, %65, %cst_35 {dimension_numbers = #tpu.dot_dimension_numbers<[1], [0], [0], [1], [0, 0, 1, 1], [], []>} : vector<256x64xf32>, vector<64x64xf32>, vector<256x64xf32> -> vector<256x64xf32>
    %77 = vector.extract_strided_slice %28 {offsets = [0, 64], sizes = [256, 64], strides = [1, 1]} : vector<256x128xf32> to vector<256x64xf32>
    %78 = vector.extract_strided_slice %62 {offsets = [0, 64], sizes = [64, 64], strides = [1, 1]} : vector<64x256xf32> to vector<64x64xf32>
    %79 = vector.extract_strided_slice %62 {offsets = [0, 192], sizes = [64, 64], strides = [1, 1]} : vector<64x256xf32> to vector<64x64xf32>
    %cst_36 = arith.constant dense<0.000000e+00> : vector<256x64xf32>
    %80 = tpu.matmul %77, %78, %cst_36 {dimension_numbers = #tpu.dot_dimension_numbers<[1], [1], [0], [0], [0, 0, 1, 0], [], []>} : vector<256x64xf32>, vector<64x64xf32>, vector<256x64xf32> -> vector<256x64xf32>
    %cst_37 = arith.constant dense<0xFF800000> : vector<256xf32>
    %81 = vector.multi_reduction <maximumf>, %80, %cst_37 [1] : vector<256x64xf32> to vector<256xf32>
    %82 = vector.shape_cast %81 : vector<256xf32> to vector<256x1xf32>
    %83 = vector.broadcast %82 : vector<256x1xf32> to vector<256x64xf32>
    %84 = arith.subf %80, %83 : vector<256x64xf32>
    %85 = math.exp %84 : vector<256x64xf32>
    %cst_38 = arith.constant dense<0.000000e+00> : vector<256xf32>
    %86 = vector.multi_reduction <add>, %85, %cst_38 [1] : vector<256x64xf32> to vector<256xf32>
    %87 = vector.shape_cast %86 : vector<256xf32> to vector<256x1xf32>
    %88 = vector.broadcast %87 : vector<256x1xf32> to vector<256x64xf32>
    %89 = arith.divf %85, %88 : vector<256x64xf32>
    %cst_39 = arith.constant dense<0.000000e+00> : vector<256x64xf32>
    %90 = tpu.matmul %89, %79, %cst_39 {dimension_numbers = #tpu.dot_dimension_numbers<[1], [0], [0], [1], [0, 0, 1, 1], [], []>} : vector<256x64xf32>, vector<64x64xf32>, vector<256x64xf32> -> vector<256x64xf32>
    %91 = tpu.concatenate %76, %90 in 1 : vector<256x64xf32>, vector<256x64xf32> -> vector<256x128xf32>
    %c0_40 = arith.constant 0 : index
    %c0_41 = arith.constant 0 : index
    %92 = vector.load %arg8[%c0_40, %c0_41] : memref<128x128xf32, #tpu.memory_space<vmem>>, vector<128x128xf32>
    %cst_42 = arith.constant dense<0.000000e+00> : vector<256x128xf32>
    %93 = tpu.matmul %91, %92, %cst_42 {dimension_numbers = #tpu.dot_dimension_numbers<[1], [0], [0], [1], [0, 0, 1, 1], [], []>} : vector<256x128xf32>, vector<128x128xf32>, vector<256x128xf32> -> vector<256x128xf32>
    %94 = arith.addf %1, %93 : vector<256x128xf32>
    %c6 = arith.constant 6 : index
    %c0_43 = arith.constant 0 : index
    %95 = vector.load %arg3[%c6, %c0_43] : memref<9x128xf32, #tpu.memory_space<vmem>>, vector<1x128xf32>
    %96 = vector.broadcast %95 : vector<1x128xf32> to vector<256x128xf32>
    %97 = arith.addf %94, %96 : vector<256x128xf32>
    %c0_44 = arith.constant 0 : index
    %c0_45 = arith.constant 0 : index
    %c0_46 = arith.constant 0 : index
    %98 = vector.load %arg11[%c0_44, %c0_45, %c0_46] : memref<1x256x128xf32, #tpu.memory_space<vmem>>, vector<1x256x128xf32>
    %99 = vector.shape_cast %98 : vector<1x256x128xf32> to vector<256x128xf32>
    %100 = vector.shape_cast %97 : vector<256x128xf32> to vector<1x256x128xf32>
    tpu.vector_store %arg11[%c0_44, %c0_45, %c0_46], %100 {strides = array<i32>} : memref<1x256x128xf32, #tpu.memory_space<vmem>>, vector<1x256x128xf32>,
    %c7 = arith.constant 7 : index
    %c0_47 = arith.constant 0 : index
    %101 = vector.load %arg3[%c7, %c0_47] : memref<9x128xf32, #tpu.memory_space<vmem>>, vector<1x128xf32>
    %c8 = arith.constant 8 : index
    %c0_48 = arith.constant 0 : index
    %102 = vector.load %arg3[%c8, %c0_48] : memref<9x128xf32, #tpu.memory_space<vmem>>, vector<1x128xf32>
    %cst_49 = arith.constant dense<0.000000e+00> : vector<256xf32>
    %103 = vector.multi_reduction <add>, %97, %cst_49 [1] : vector<256x128xf32> to vector<256xf32>
    %104 = vector.shape_cast %103 : vector<256xf32> to vector<256x1xf32>
    %cst_50 = arith.constant 1.280000e+02 : f32
    %105 = vector.broadcast %cst_50 : f32 to vector<256x1xf32>
    %106 = arith.divf %104, %105 : vector<256x1xf32>
    %107 = vector.broadcast %106 : vector<256x1xf32> to vector<256x128xf32>
    %108 = arith.subf %97, %107 : vector<256x128xf32>
    %109 = arith.mulf %108, %108 : vector<256x128xf32>
    %cst_51 = arith.constant dense<0.000000e+00> : vector<256xf32>
    %110 = vector.multi_reduction <add>, %109, %cst_51 [1] : vector<256x128xf32> to vector<256xf32>
    %111 = vector.shape_cast %110 : vector<256xf32> to vector<256x1xf32>
    %cst_52 = arith.constant 1.280000e+02 : f32
    %112 = vector.broadcast %cst_52 : f32 to vector<256x1xf32>
    %113 = arith.divf %111, %112 : vector<256x1xf32>
    %cst_53 = arith.constant 9.99999974E-6 : f32
    %114 = vector.broadcast %cst_53 : f32 to vector<256x1xf32>
    %115 = arith.addf %113, %114 : vector<256x1xf32>
    %116 = math.rsqrt %115 : vector<256x1xf32>
    %117 = vector.broadcast %116 : vector<256x1xf32> to vector<256x128xf32>
    %118 = arith.mulf %108, %117 : vector<256x128xf32>
    %119 = vector.broadcast %101 : vector<1x128xf32> to vector<256x128xf32>
    %120 = arith.mulf %118, %119 : vector<256x128xf32>
    %121 = vector.broadcast %102 : vector<1x128xf32> to vector<256x128xf32>
    %122 = arith.addf %120, %121 : vector<256x128xf32>
    %c0_54 = arith.constant 0 : index
    %c0_55 = arith.constant 0 : index
    %123 = vector.load %arg9[%c0_54, %c0_55] : memref<128x512xf32, #tpu.memory_space<vmem>>, vector<128x512xf32>
    %cst_56 = arith.constant dense<0.000000e+00> : vector<256x512xf32>
    %124 = tpu.matmul %122, %123, %cst_56 {dimension_numbers = #tpu.dot_dimension_numbers<[1], [0], [0], [1], [0, 0, 1, 1], [], []>} : vector<256x128xf32>, vector<128x512xf32>, vector<256x512xf32> -> vector<256x512xf32>
    %c0_57 = arith.constant 0 : index
    %c0_58 = arith.constant 0 : index
    %125 = vector.load %arg10[%c0_57, %c0_58] : memref<1x512xf32, #tpu.memory_space<vmem>>, vector<1x512xf32>
    %126 = vector.broadcast %125 : vector<1x512xf32> to vector<256x512xf32>
    %127 = arith.addf %124, %126 : vector<256x512xf32>
    %c0_59 = arith.constant 0 : index
    %c0_60 = arith.constant 0 : index
    %c0_61 = arith.constant 0 : index
    %128 = vector.load %arg12[%c0_59, %c0_60, %c0_61] : memref<1x256x512xf32, #tpu.memory_space<vmem>>, vector<1x256x512xf32>
    %129 = vector.shape_cast %128 : vector<1x256x512xf32> to vector<256x512xf32>
    %130 = vector.shape_cast %127 : vector<256x512xf32> to vector<1x256x512xf32>
    tpu.vector_store %arg12[%c0_59, %c0_60, %c0_61], %130 {strides = array<i32>} : memref<1x256x512xf32, #tpu.memory_space<vmem>>, vector<1x256x512xf32>,
    return
  }
  func.func @transform_0(%arg0: i32) -> (i32, i32, i32) {
    %c0_i32 = arith.constant 0 : i32
    %c0_i32_0 = arith.constant 0 : i32
    %c0_i32_1 = arith.constant 0 : i32
    return %arg0, %c0_i32, %c0_i32_0 : i32, i32, i32
  }
  func.func @transform_1(%arg0: i32) -> (i32, i32) {
    %c0_i32 = arith.constant 0 : i32
    %c0_i32_0 = arith.constant 0 : i32
    %c0_i32_1 = arith.constant 0 : i32
    return %c0_i32, %c0_i32_0 : i32, i32
  }
  func.func @transform_2(%arg0: i32) -> (i32, i32) {
    %c0_i32 = arith.constant 0 : i32
    %c0_i32_0 = arith.constant 0 : i32
    %c0_i32_1 = arith.constant 0 : i32
    return %c0_i32, %c0_i32_0 : i32, i32
  }
  func.func @transform_3(%arg0: i32) -> (i32, i32) {
    %c0_i32 = arith.constant 0 : i32
    %c0_i32_0 = arith.constant 0 : i32
    %c0_i32_1 = arith.constant 0 : i32
    return %c0_i32, %c0_i32_0 : i32, i32
  }
  func.func @transform_4(%arg0: i32) -> (i32, i32) {
    %c0_i32 = arith.constant 0 : i32
    %c0_i32_0 = arith.constant 0 : i32
    %c0_i32_1 = arith.constant 0 : i32
    return %c0_i32, %c0_i32_0 : i32, i32
  }
  func.func @transform_5(%arg0: i32) -> (i32, i32) {
    %c0_i32 = arith.constant 0 : i32
    %c0_i32_0 = arith.constant 0 : i32
    %c0_i32_1 = arith.constant 0 : i32
    return %c0_i32, %c0_i32_0 : i32, i32
  }
  func.func @transform_6(%arg0: i32) -> (i32, i32) {
    %c0_i32 = arith.constant 0 : i32
    %c0_i32_0 = arith.constant 0 : i32
    %c0_i32_1 = arith.constant 0 : i32
    return %c0_i32, %c0_i32_0 : i32, i32
  }
  func.func @transform_7(%arg0: i32) -> (i32, i32) {
    %c0_i32 = arith.constant 0 : i32
    %c0_i32_0 = arith.constant 0 : i32
    %c0_i32_1 = arith.constant 0 : i32
    return %c0_i32, %c0_i32_0 : i32, i32
  }
  func.func @transform_8(%arg0: i32) -> (i32, i32) {
    %c0_i32 = arith.constant 0 : i32
    %c0_i32_0 = arith.constant 0 : i32
    %c0_i32_1 = arith.constant 0 : i32
    return %c0_i32, %c0_i32_0 : i32, i32
  }
  func.func @transform_9(%arg0: i32) -> (i32, i32) {
    %c0_i32 = arith.constant 0 : i32
    %c0_i32_0 = arith.constant 0 : i32
    %c0_i32_1 = arith.constant 0 : i32
    return %c0_i32, %c0_i32_0 : i32, i32
  }
  func.func @transform_10(%arg0: i32) -> (i32, i32, i32) {
    %c0_i32 = arith.constant 0 : i32
    %c0_i32_0 = arith.constant 0 : i32
    %c0_i32_1 = arith.constant 0 : i32
    return %arg0, %c0_i32, %c0_i32_0 : i32, i32, i32
  }
  func.func @transform_11(%arg0: i32) -> (i32, i32, i32) {
    %c0_i32 = arith.constant 0 : i32
    %c0_i32_0 = arith.constant 0 : i32
    %c0_i32_1 = arith.constant 0 : i32
    return %arg0, %c0_i32, %c0_i32_0 : i32, i32, i32
  }
}

module attributes {stable_mosaic.version = 11 : i64} {
  func.func @_fc2_residual_kernel(%arg0: i32, %arg1: memref<256x512xf32, #tpu.memory_space<vmem>>, %arg2: memref<256x128xf32, #tpu.memory_space<vmem>>, %arg3: memref<512x128xf32, #tpu.memory_space<vmem>>, %arg4: memref<1x128xf32, #tpu.memory_space<vmem>>, %arg5: memref<256x128xf32, #tpu.memory_space<vmem>>) attributes {dimension_semantics = [#tpu.dimension_semantics<parallel>], iteration_bounds = array<i64: 2>, scalar_prefetch = 0 : i64, scratch_operands = 0 : i64, tpu.core_type = #tpu.core_type<tc>, window_params = [{transform_indices = @transform_0, window_bounds = array<i64: 256, 512>}, {transform_indices = @transform_1, window_bounds = array<i64: 256, 128>}, {pipeline_mode = #tpu.pipeline_mode<synchronous>, transform_indices = @transform_2, window_bounds = array<i64: 512, 128>}, {pipeline_mode = #tpu.pipeline_mode<synchronous>, transform_indices = @transform_3, window_bounds = array<i64: 1, 128>}, {transform_indices = @transform_4, window_bounds = array<i64: 256, 128>}]} {
    %c0 = arith.constant 0 : index
    %c0_0 = arith.constant 0 : index
    %0 = vector.load %arg1[%c0, %c0_0] : memref<256x512xf32, #tpu.memory_space<vmem>>, vector<256x512xf32>
    %c0_1 = arith.constant 0 : index
    %c0_2 = arith.constant 0 : index
    %1 = vector.load %arg3[%c0_1, %c0_2] : memref<512x128xf32, #tpu.memory_space<vmem>>, vector<512x128xf32>
    %cst = arith.constant dense<0.000000e+00> : vector<256x128xf32>
    %2 = tpu.matmul %0, %1, %cst {dimension_numbers = #tpu.dot_dimension_numbers<[1], [0], [0], [1], [0, 0, 1, 1], [], []>} : vector<256x512xf32>, vector<512x128xf32>, vector<256x128xf32> -> vector<256x128xf32>
    %c0_3 = arith.constant 0 : index
    %c0_4 = arith.constant 0 : index
    %3 = vector.load %arg4[%c0_3, %c0_4] : memref<1x128xf32, #tpu.memory_space<vmem>>, vector<1x128xf32>
    %4 = vector.broadcast %3 : vector<1x128xf32> to vector<256x128xf32>
    %5 = arith.addf %2, %4 : vector<256x128xf32>
    %c0_5 = arith.constant 0 : index
    %c0_6 = arith.constant 0 : index
    %6 = vector.load %arg2[%c0_5, %c0_6] : memref<256x128xf32, #tpu.memory_space<vmem>>, vector<256x128xf32>
    %7 = arith.addf %6, %5 : vector<256x128xf32>
    %c0_7 = arith.constant 0 : index
    %c0_8 = arith.constant 0 : index
    %8 = vector.load %arg5[%c0_7, %c0_8] : memref<256x128xf32, #tpu.memory_space<vmem>>, vector<256x128xf32>
    tpu.vector_store %arg5[%c0_7, %c0_8], %7 {strides = array<i32>} : memref<256x128xf32, #tpu.memory_space<vmem>>, vector<256x128xf32>,
    return
  }
  func.func @transform_0(%arg0: i32) -> (i32, i32) {
    %c0_i32 = arith.constant 0 : i32
    %c0_i32_0 = arith.constant 0 : i32
    return %arg0, %c0_i32 : i32, i32
  }
  func.func @transform_1(%arg0: i32) -> (i32, i32) {
    %c0_i32 = arith.constant 0 : i32
    %c0_i32_0 = arith.constant 0 : i32
    return %arg0, %c0_i32 : i32, i32
  }
  func.func @transform_2(%arg0: i32) -> (i32, i32) {
    %c0_i32 = arith.constant 0 : i32
    %c0_i32_0 = arith.constant 0 : i32
    %c0_i32_1 = arith.constant 0 : i32
    return %c0_i32, %c0_i32_0 : i32, i32
  }
  func.func @transform_3(%arg0: i32) -> (i32, i32) {
    %c0_i32 = arith.constant 0 : i32
    %c0_i32_0 = arith.constant 0 : i32
    %c0_i32_1 = arith.constant 0 : i32
    return %c0_i32, %c0_i32_0 : i32, i32
  }
  func.func @transform_4(%arg0: i32) -> (i32, i32) {
    %c0_i32 = arith.constant 0 : i32
    %c0_i32_0 = arith.constant 0 : i32
    return %arg0, %c0_i32 : i32, i32
  }
}

module attributes {stable_mosaic.version = 11 : i64} {
  func.func @_fc2_residual_kernel(%arg0: i32, %arg1: memref<256x512xf32, #tpu.memory_space<vmem>>, %arg2: memref<256x128xf32, #tpu.memory_space<vmem>>, %arg3: memref<512x128xf32, #tpu.memory_space<vmem>>, %arg4: memref<1x128xf32, #tpu.memory_space<vmem>>, %arg5: memref<256x128xf32, #tpu.memory_space<vmem>>) attributes {dimension_semantics = [#tpu.dimension_semantics<parallel>], iteration_bounds = array<i64: 2>, scalar_prefetch = 0 : i64, scratch_operands = 0 : i64, tpu.core_type = #tpu.core_type<tc>, window_params = [{transform_indices = @transform_0, window_bounds = array<i64: 256, 512>}, {transform_indices = @transform_1, window_bounds = array<i64: 256, 128>}, {pipeline_mode = #tpu.pipeline_mode<synchronous>, transform_indices = @transform_2, window_bounds = array<i64: 512, 128>}, {pipeline_mode = #tpu.pipeline_mode<synchronous>, transform_indices = @transform_3, window_bounds = array<i64: 1, 128>}, {transform_indices = @transform_4, window_bounds = array<i64: 256, 128>}]} {
    %c0 = arith.constant 0 : index
    %c0_0 = arith.constant 0 : index
    %0 = vector.load %arg1[%c0, %c0_0] : memref<256x512xf32, #tpu.memory_space<vmem>>, vector<256x512xf32>
    %c0_1 = arith.constant 0 : index
    %c0_2 = arith.constant 0 : index
    %1 = vector.load %arg3[%c0_1, %c0_2] : memref<512x128xf32, #tpu.memory_space<vmem>>, vector<512x128xf32>
    %cst = arith.constant dense<0.000000e+00> : vector<256x128xf32>
    %2 = tpu.matmul %0, %1, %cst {dimension_numbers = #tpu.dot_dimension_numbers<[1], [0], [0], [1], [0, 0, 1, 1], [], []>} : vector<256x512xf32>, vector<512x128xf32>, vector<256x128xf32> -> vector<256x128xf32>
    %c0_3 = arith.constant 0 : index
    %c0_4 = arith.constant 0 : index
    %3 = vector.load %arg4[%c0_3, %c0_4] : memref<1x128xf32, #tpu.memory_space<vmem>>, vector<1x128xf32>
    %4 = vector.broadcast %3 : vector<1x128xf32> to vector<256x128xf32>
    %5 = arith.addf %2, %4 : vector<256x128xf32>
    %c0_5 = arith.constant 0 : index
    %c0_6 = arith.constant 0 : index
    %6 = vector.load %arg2[%c0_5, %c0_6] : memref<256x128xf32, #tpu.memory_space<vmem>>, vector<256x128xf32>
    %7 = arith.addf %6, %5 : vector<256x128xf32>
    %c0_7 = arith.constant 0 : index
    %c0_8 = arith.constant 0 : index
    %8 = vector.load %arg5[%c0_7, %c0_8] : memref<256x128xf32, #tpu.memory_space<vmem>>, vector<256x128xf32>
    tpu.vector_store %arg5[%c0_7, %c0_8], %7 {strides = array<i32>} : memref<256x128xf32, #tpu.memory_space<vmem>>, vector<256x128xf32>,
    return
  }
  func.func @transform_0(%arg0: i32) -> (i32, i32) {
    %c0_i32 = arith.constant 0 : i32
    %c0_i32_0 = arith.constant 0 : i32
    return %arg0, %c0_i32 : i32, i32
  }
  func.func @transform_1(%arg0: i32) -> (i32, i32) {
    %c0_i32 = arith.constant 0 : i32
    %c0_i32_0 = arith.constant 0 : i32
    return %arg0, %c0_i32 : i32, i32
  }
  func.func @transform_2(%arg0: i32) -> (i32, i32) {
    %c0_i32 = arith.constant 0 : i32
    %c0_i32_0 = arith.constant 0 : i32
    %c0_i32_1 = arith.constant 0 : i32
    return %c0_i32, %c0_i32_0 : i32, i32
  }
  func.func @transform_3(%arg0: i32) -> (i32, i32) {
    %c0_i32 = arith.constant 0 : i32
    %c0_i32_0 = arith.constant 0 : i32
    %c0_i32_1 = arith.constant 0 : i32
    return %c0_i32, %c0_i32_0 : i32, i32
  }
  func.func @transform_4(%arg0: i32) -> (i32, i32) {
    %c0_i32 = arith.constant 0 : i32
    %c0_i32_0 = arith.constant 0 : i32
    return %arg0, %c0_i32 : i32, i32
  }
}

</mosaic_0001>

<llo_original>
// kernel: _lambda_.5
$region0: #{_lambda_.5}
  #allocation0 [shape = 'u32[]', space=smem, size = 0x4, offset = 0x4, fixed_abs, tag = 'smem constant byte address 0x4 - core index']
  #allocation1 [shape = 'u32[144,128]{1,0:T(1,128)}', space=vmem, size = 0x12000, scoped, tag = 'internal scratch']
  %s0 = inlined_call_operand.vmem [shape: f32[2,256,152], index: 0, kind: input, shape index: {}]
  %s1 = inlined_call_operand.vmem [shape: f32[152,128], index: 1, kind: input, shape index: {}]
  %s2 = inlined_call_operand.vmem [shape: f32[1,128], index: 2, kind: input, shape index: {}]
  %s3 = inlined_call_operand.vmem [shape: f32[1,128], index: 3, kind: input, shape index: {}]
  %s4 = inlined_call_operand.vmem [shape: f32[1,128], index: 4, kind: input, shape index: {}]
  %s5 = inlined_call_operand.vmem [shape: f32[2,256,128], index: 5, kind: output, shape index: {}]
  %s6 = sld [smem:[#allocation0]]
  $region53: #{_lambda_.5} parent=0
    _
  %s8 = ssub.s32 1, %s6
  %s9 = scalar_select 0, %s8, %s6
  loop: start=0, step=1, limit=6
  $region2: #{_lambda_.5} parent=0 // loop_pre_header
    _
  $region3: #{_lambda_.5} parent=0 // loop_header
    %s11 = sphi 0, %s15
    %p12 = scmp.ge.s32.totalorder %s11, 6
    %s18 = sphi 0, %s30
    %s19 = sphi 0, %s26
    %s20 = sphi 0, %s18
    %s21 = sphi 0, %s19
    %s22 = sphi 0, %s20
    %s23 = sphi 0, %s21
    %s35 = sphi 0, %s37
    %s38 = sphi 0, %s35
    %s39 = sphi 0, %s38
    %s55 = sphi 0, %s39
    %s59 = sphi 0, %s59
    %s61 = sphi 0, %s59
    %s62 = sphi 0, %s61
    %s76 = sphi 0, %s62
    %s80 = sphi 0, %s80
    %s82 = sphi 0, %s80
    %s83 = sphi 0, %s82
    %s97 = sphi 0, %s83
    %s101 = sphi 0, %s101
    %s103 = sphi 0, %s101
    %s104 = sphi 0, %s103
    %s118 = sphi 0, %s104
    %s122 = sphi 0, %s122
    %s124 = sphi 0, %s122
    %s125 = sphi 0, %s124
    %s139 = sphi 0, %s125
    %s147 = sphi 0, %s149
    %s150 = sphi 0, %s147
    %s151 = sphi 0, %s150
    %s167 = sphi 0, %s151
  $region4: #{_lambda_.5} parent=0 // loop_header_branch
    %14 = sbr.rel (%p12) target = $region8
  $region5: #{_lambda_.5} parent=0 // loop_body
    %s16 = ssub.s32 %s11, 1
    %s17 = ssub.s32 %s11, 2
    %s24 = sadd.s32 1, %s19
    %p25 = scmp.ge.s32.totalorder %s24, 2
    %s26 = scalar_select %p25, 0, %s24
    %s27 = sadd.s32 1, %s18
    %s28 = scalar_select %p25, %s27, %s18
    %p29 = scmp.ge.s32.totalorder %s28, 2
    %s30 = scalar_select %p29, 0, %s28
    %s31 = ssub.s32 %s18, %s30
    %s32 = ssub.s32 %s19, %s26
    %s33 = sor.u32 %s31, %s32
    %p34 = scmp.eq.s32.totalorder %s33, 0
    %s36 = sadd.s32 %s35, 1
    %s37 = scalar_select %p34, %s35, %s36
    %p40 = pneg %p34
    %p41 = scmp.eq.s32.totalorder %s11, 3
    %p42 = por %p40, %p41
    %p43 = scmp.ne.s32.totalorder %s35, %s38
    %p44 = scmp.eq.s32.totalorder %s11, 0
    %p45 = por %p43, %p44
    %p46 = scmp.ne.s32.totalorder %s35, %s38
    %p47 = scmp.eq.s32.totalorder %s16, 3
    %p48 = por %p46, %p47
    %p49 = scmp.ne.s32.totalorder %s38, %s39
    %p50 = scmp.eq.s32.totalorder %s16, 0
    %p51 = por %p49, %p50
    %p52 = scmp.ne.s32.totalorder %s38, %s39
    %p53 = scmp.eq.s32.totalorder %s17, 3
    %p54 = por %p52, %p53
    %p56 = scmp.ne.s32.totalorder %s39, %s55
    %p57 = scmp.eq.s32.totalorder %s17, 0
    %p58 = por %p56, %p57
    %s60 = sadd.s32 %s59, 1
    %p63 = scmp.eq.s32.totalorder %s11, 3
    %p64 = scmp.ne.s32.totalorder %s59, %s61
    %p65 = scmp.eq.s32.totalorder %s11, 0
    %p66 = por %p64, %p65
    %p67 = scmp.ne.s32.totalorder %s59, %s61
    %p68 = scmp.eq.s32.totalorder %s16, 3
    %p69 = por %p67, %p68
    %p70 = scmp.ne.s32.totalorder %s61, %s62
    %p71 = scmp.eq.s32.totalorder %s16, 0
    %p72 = por %p70, %p71
    %p73 = scmp.ne.s32.totalorder %s61, %s62
    %p74 = scmp.eq.s32.totalorder %s17, 3
    %p75 = por %p73, %p74
    %p77 = scmp.ne.s32.totalorder %s62, %s76
    %p78 = scmp.eq.s32.totalorder %s17, 0
    %p79 = por %p77, %p78
    %s81 = sadd.s32 %s80, 1
    %p84 = scmp.eq.s32.totalorder %s11, 3
    %p85 = scmp.ne.s32.totalorder %s80, %s82
    %p86 = scmp.eq.s32.totalorder %s11, 0
    %p87 = por %p85, %p86
    %p88 = scmp.ne.s32.totalorder %s80, %s82
    %p89 = scmp.eq.s32.totalorder %s16, 3
    %p90 = por %p88, %p89
    %p91 = scmp.ne.s32.totalorder %s82, %s83
    %p92 = scmp.eq.s32.totalorder %s16, 0
    %p93 = por %p91, %p92
    %p94 = scmp.ne.s32.totalorder %s82, %s83
    %p95 = scmp.eq.s32.totalorder %s17, 3
    %p96 = por %p94, %p95
    %p98 = scmp.ne.s32.totalorder %s83, %s97
    %p99 = scmp.eq.s32.totalorder %s17, 0
    %p100 = por %p98, %p99
    %s102 = sadd.s32 %s101, 1
    %p105 = scmp.eq.s32.totalorder %s11, 3
    %p106 = scmp.ne.s32.totalorder %s101, %s103
    %p107 = scmp.eq.s32.totalorder %s11, 0
    %p108 = por %p106, %p107
    %p109 = scmp.ne.s32.totalorder %s101, %s103
    %p110 = scmp.eq.s32.totalorder %s16, 3
    %p111 = por %p109, %p110
    %p112 = scmp.ne.s32.totalorder %s103, %s104
    %p113 = scmp.eq.s32.totalorder %s16, 0
    %p114 = por %p112, %p113
    %p115 = scmp.ne.s32.totalorder %s103, %s104
    %p116 = scmp.eq.s32.totalorder %s17, 3
    %p117 = por %p115, %p116
    %p119 = scmp.ne.s32.totalorder %s104, %s118
    %p120 = scmp.eq.s32.totalorder %s17, 0
    %p121 = por %p119, %p120
    %s123 = sadd.s32 %s122, 1
    %p126 = scmp.eq.s32.totalorder %s11, 3
    %p127 = scmp.ne.s32.totalorder %s122, %s124
    %p128 = scmp.eq.s32.totalorder %s11, 0
    %p129 = por %p127, %p128
    %p130 = scmp.ne.s32.totalorder %s122, %s124
    %p131 = scmp.eq.s32.totalorder %s16, 3
    %p132 = por %p130, %p131
    %p133 = scmp.ne.s32.totalorder %s124, %s125
    %p134 = scmp.eq.s32.totalorder %s16, 0
    %p135 = por %p133, %p134
    %p136 = scmp.ne.s32.totalorder %s124, %s125
    %p137 = scmp.eq.s32.totalorder %s17, 3
    %p138 = por %p136, %p137
    %p140 = scmp.ne.s32.totalorder %s125, %s139
    %p141 = scmp.eq.s32.totalorder %s17, 0
    %p142 = por %p140, %p141
    %s143 = ssub.s32 %s18, %s30
    %s144 = ssub.s32 %s19, %s26
    %s145 = sor.u32 %s143, %s144
    %p146 = scmp.eq.s32.totalorder %s145, 0
    %s148 = sadd.s32 %s147, 1
    %s149 = scalar_select %p146, %s147, %s148
    %p152 = pneg %p146
    %p153 = scmp.eq.s32.totalorder %s11, 3
    %p154 = por %p152, %p153
    %p155 = scmp.ne.s32.totalorder %s147, %s150
    %p156 = scmp.eq.s32.totalorder %s11, 0
    %p157 = por %p155, %p156
    %p158 = scmp.ne.s32.totalorder %s147, %s150
    %p159 = scmp.eq.s32.totalorder %s16, 3
    %p160 = por %p158, %p159
    %p161 = scmp.ne.s32.totalorder %s150, %s151
    %p162 = scmp.eq.s32.totalorder %s16, 0
    %p163 = por %p161, %p162
    %p164 = scmp.ne.s32.totalorder %s150, %s151
    %p165 = scmp.eq.s32.totalorder %s17, 3
    %p166 = por %p164, %p165
    %p168 = scmp.ne.s32.totalorder %s151, %s167
    %p169 = scmp.eq.s32.totalorder %s17, 0
    %p170 = por %p168, %p169
    %p171 = scmp.le.s32.totalorder 1, %s11
    %p172 = scmp.lt.s32.totalorder %s11, 5
    %p173 = pnand %p171, %p172
    %p174 = pneg %p173
    // Predicated region
    $region9: #{_lambda_.5} parent=5 // pred_check
      _
    $region10: #{_lambda_.5} parent=5 // pred_check_branch
      %176 = sbr.rel (%p173) target = $region12
    $region11: #{_lambda_.5} parent=5 // pred_region
      %s177 = ssub.s32 %s11, 1
      // Predicated region
      $region13: #{_lambda_.5} parent=11 // pred_check
        %p178 = pneg %p72
      $region14: #{_lambda_.5} parent=11 // pred_check_branch
        %180 = sbr.rel (%p178) target = $region16
      $region15: #{_lambda_.5} parent=11 // pred_region
        _
      $region16: #{_lambda_.5} parent=11 // pred_fallthru
        _
      // Predicated region
      $region17: #{_lambda_.5} parent=11 // pred_check
        %p181 = pneg %p93
      $region18: #{_lambda_.5} parent=11 // pred_check_branch
        %183 = sbr.rel (%p181) target = $region20
      $region19: #{_lambda_.5} parent=11 // pred_region
        _
      $region20: #{_lambda_.5} parent=11 // pred_fallthru
        _
      // Predicated region
      $region21: #{_lambda_.5} parent=11 // pred_check
        %p184 = pneg %p114
      $region22: #{_lambda_.5} parent=11 // pred_check_branch
        %186 = sbr.rel (%p184) target = $region24
      $region23: #{_lambda_.5} parent=11 // pred_region
        _
      $region24: #{_lambda_.5} parent=11 // pred_fallthru
        _
      // Predicated region
      $region25: #{_lambda_.5} parent=11 // pred_check
        %p187 = pneg %p135
      $region26: #{_lambda_.5} parent=11 // pred_check_branch
        %189 = sbr.rel (%p187) target = $region28
      $region27: #{_lambda_.5} parent=11 // pred_region
        _
      $region28: #{_lambda_.5} parent=11 // pred_fallthru
        _
    $region12: #{_lambda_.5} parent=5 // pred_fallthru
      _
    %p190 = scmp.lt.s32.totalorder %s11, 4
    // Predicated region
    $region29: #{_lambda_.5} parent=5 // pred_check
      %p191 = pneg %p190
    $region30: #{_lambda_.5} parent=5 // pred_check_branch
      %193 = sbr.rel (%p191) target = $region32
    $region31: #{_lambda_.5} parent=5 // pred_region
      // Predicated region
      $region33: #{_lambda_.5} parent=31 // pred_check
        %p194 = pneg %p45
      $region34: #{_lambda_.5} parent=31 // pred_check_branch
        %196 = sbr.rel (%p194) target = $region36
      $region35: #{_lambda_.5} parent=31 // pred_region
        %s197 = smul.u32 16, %s19
        %p198 = scmp.lt.s32.totalorder %s18, 1
        %s199 = scalar_select %p198, %s18, 1
        %p200 = scmp.lt.s32.totalorder %s197, 31
        %s201 = scalar_select %p200, %s197, 31
        %s202 = smul.addr %s201, 2
        %s203 = smul.addr %s199, 64
        %s204 = sadd.s32 %s202, %s203
        %s205 = smul.addr %s204, 8
        %s206 = scalar_lea.vmem %s0, %s205
        %s207 = smul.u32 16, %s19
      $region36: #{_lambda_.5} parent=31 // pred_fallthru
        _
    $region32: #{_lambda_.5} parent=5 // pred_fallthru
      _
    %p208 = scmp.le.s32.totalorder 1, %s11
    %p209 = scmp.lt.s32.totalorder %s11, 5
    %p210 = pnand %p208, %p209
    %p211 = pneg %p210
    // Predicated region
    $region37: #{_lambda_.5} parent=5 // pred_check
      _
    $region38: #{_lambda_.5} parent=5 // pred_check_branch
      %213 = sbr.rel (%p210) target = $region40
    $region39: #{_lambda_.5} parent=5 // pred_region
      %s214 = ssub.s32 %s11, 1
      %s215 = smul.u32 16, %s21
      %p216 = scmp.lt.s32.totalorder %s20, 1
      %s217 = scalar_select %p216, %s20, 1
      %p218 = scmp.lt.s32.totalorder %s215, 31
      %s219 = scalar_select %p218, %s215, 31
      %s220 = smul.addr %s219, 2
      %s221 = smul.addr %s217, 64
      %s222 = sadd.s32 %s220, %s221
      %s223 = smul.addr %s222, 8
      %s224 = scalar_lea.vmem %s0, %s223
      %p225 = pneg %p51
      %p226 = pneg %p48
      %p227 = pneg %p72
      %p228 = pneg %p69
      %p229 = pneg %p93
      %p230 = pneg %p90
      %p231 = pneg %p114
      %p232 = pneg %p111
      %p233 = pneg %p135
      %p234 = pneg %p132
      %p235 = pneg %p163
      %p236 = pneg %p160
      %s237 = smul.u32 16, %s21
      %p238 = scmp.lt.s32.totalorder %s20, 1
      %s239 = scalar_select %p238, %s20, 1
      %p240 = scmp.lt.s32.totalorder %s237, 31
      %s241 = scalar_select %p240, %s237, 31
      %s242 = smul.addr %s239, 32
      %s243 = sadd.s32 %s241, %s242
      %s244 = smul.addr %s243, 8
      %s245 = scalar_lea.vmem %s5, %s244
      %s246 = smul.u32 16, %s21
      %p247 = scmp.lt.s32.totalorder %s20, 1
      %s248 = scalar_select %p247, %s20, 1
      %p249 = scmp.lt.s32.totalorder %s246, 31
      %s250 = scalar_select %p249, %s246, 31
      %s251 = smul.addr %s250, 2
      %s252 = smul.addr %s248, 64
      %s253 = sadd.s32 %s251, %s252
      %s254 = smul.addr %s253, 8
      %s255 = scalar_lea.vmem %s0, %s254
      %s256 = smul.u32 16, %s21
      %s257 = smul.u32 16, %s21
      %p258 = scmp.lt.s32.totalorder %s20, 1
      %s259 = scalar_select %p258, %s20, 1
      %p260 = scmp.lt.s32.totalorder %s257, 31
      %s261 = scalar_select %p260, %s257, 31
      %s262 = smul.addr %s259, 32
      %s263 = sadd.s32 %s261, %s262
      %s264 = smul.addr %s263, 8
      %s265 = scalar_lea.vmem %s5, %s264
      %s266 = smul.u32 16, %s21
      %v267 = vld [vmem:[%s255] sm:$0xff]
      %v268 = vld [vmem:[%s255 + $0x8] sm:$0xff]
      %v269 = vld [vmem:[%s255 + $0x10] sm:$0xff]
      %v270 = vld [vmem:[%s255 + $0x18] sm:$0xff]
      %v271 = vld [vmem:[%s255 + $0x20] sm:$0xff]
      %v272 = vld [vmem:[%s255 + $0x28] sm:$0xff]
      %v273 = vld [vmem:[%s255 + $0x30] sm:$0xff]
      %v274 = vld [vmem:[%s255 + $0x38] sm:$0xff]
      %v275 = vld [vmem:[%s255 + $0x40] sm:$0xff]
      %v276 = vld [vmem:[%s255 + $0x48] sm:$0xff]
      %v277 = vld [vmem:[%s255 + $0x50] sm:$0xff]
      %v278 = vld [vmem:[%s255 + $0x58] sm:$0xff]
      %v279 = vld [vmem:[%s255 + $0x60] sm:$0xff]
      %v280 = vld [vmem:[%s255 + $0x68] sm:$0xff]
      %v281 = vld [vmem:[%s255 + $0x70] sm:$0xff]
      %v282 = vld [vmem:[%s255 + $0x78] sm:$0xff]
      %v283 = vld [vmem:[%s255 + $0x80] sm:$0xff]
      %v284 = vld [vmem:[%s255 + $0x88] sm:$0xff]
      %v285 = vld [vmem:[%s255 + $0x90] sm:$0xff]
      %v286 = vld [vmem:[%s255 + $0x98] sm:$0xff]
      %v287 = vld [vmem:[%s255 + $0xa0] sm:$0xff]
      %v288 = vld [vmem:[%s255 + $0xa8] sm:$0xff]
      %v289 = vld [vmem:[%s255 + $0xb0] sm:$0xff]
      %v290 = vld [vmem:[%s255 + $0xb8] sm:$0xff]
      %v291 = vld [vmem:[%s255 + $0xc0] sm:$0xff]
      %v292 = vld [vmem:[%s255 + $0xc8] sm:$0xff]
      %v293 = vld [vmem:[%s255 + $0xd0] sm:$0xff]
      %v294 = vld [vmem:[%s255 + $0xd8] sm:$0xff]
      %v295 = vld [vmem:[%s255 + $0xe0] sm:$0xff]
      %v296 = vld [vmem:[%s255 + $0xe8] sm:$0xff]
      %v297 = vld [vmem:[%s255 + $0xf0] sm:$0xff]
      %v298 = vld [vmem:[%s255 + $0xf8] sm:$0xff]
      %v299 = vld [vmem:[%s1] sm:$0xff]
      %v300 = vld [vmem:[%s1 + $0x8] sm:$0xff]
      %v301 = vld [vmem:[%s1 + $0x10] sm:$0xff]
      %v302 = vld [vmem:[%s1 + $0x18] sm:$0xff]
      %v303 = vld [vmem:[%s1 + $0x20] sm:$0xff]
      %v304 = vld [vmem:[%s1 + $0x28] sm:$0xff]
      %v305 = vld [vmem:[%s1 + $0x30] sm:$0xff]
      %v306 = vld [vmem:[%s1 + $0x38] sm:$0xff]
      %v307 = vld [vmem:[%s1 + $0x40] sm:$0xff]
      %v308 = vld [vmem:[%s1 + $0x48] sm:$0xff]
      %v309 = vld [vmem:[%s1 + $0x50] sm:$0xff]
      %v310 = vld [vmem:[%s1 + $0x58] sm:$0xff]
      %v311 = vld [vmem:[%s1 + $0x60] sm:$0xff]
      %v312 = vld [vmem:[%s1 + $0x68] sm:$0xff]
      %v313 = vld [vmem:[%s1 + $0x70] sm:$0xff]
      %v314 = vld [vmem:[%s1 + $0x78] sm:$0xff]
      %v315 = vld [vmem:[%s1 + $0x80] sm:$0xff]
      %v316 = vld [vmem:[%s1 + $0x88] sm:$0xff]
      %v317 = vld [vmem:[%s1 + $0x90] sm:$0xff]
      %v318 = vld [vmem:[%s2] sm:$0x1]
      %v320 = vlaneseq
      %v321 = vshrl.u32 %v320, 7
      %v322 = vsub.s32 0, %v321
      %v323 = vrot.slane %v318, %v322
      %vm325 = vcmask 195584
      %v327 = vsel %vm325, %v268, 0
      %v330 = vsel %vm325, %v270, 0
      %v333 = vsel %vm325, %v272, 0
      %v336 = vsel %vm325, %v274, 0
      %v339 = vsel %vm325, %v276, 0
      %v342 = vsel %vm325, %v278, 0
      %v345 = vsel %vm325, %v280, 0
      %v348 = vsel %vm325, %v282, 0
      %v351 = vsel %vm325, %v284, 0
      %v354 = vsel %vm325, %v286, 0
      %v357 = vsel %vm325, %v288, 0
      %v360 = vsel %vm325, %v290, 0
      %v363 = vsel %vm325, %v292, 0
      %v366 = vsel %vm325, %v294, 0
      %v369 = vsel %vm325, %v296, 0
      %v372 = vsel %vm325, %v298, 0
      %374 = vmatprep.subr.mxu0 0.0
      %375 = vmatpush1.msra.mxu0 %v314
      %376 = vmatprep.subr.mxu0 0.0
      %377 = vmatpush1.msra.mxu0 %v313
      %378 = vmatprep.subr.mxu0 0.0
      %379 = vmatpush1.msra.mxu0 %v312
      %380 = vmatprep.subr.mxu0 0.0
      %381 = vmatpush1.msra.mxu0 %v311
      %382 = vmatprep.subr.mxu0 0.0
      %383 = vmatpush1.msra.mxu0 %v310
      %384 = vmatprep.subr.mxu0 0.0
      %385 = vmatpush1.msra.mxu0 %v309
      %386 = vmatprep.subr.mxu0 0.0
      %387 = vmatpush1.msra.mxu0 %v308
      %388 = vmatprep.subr.mxu0 0.0
      %389 = vmatpush1.msra.mxu0 %v307
      %390 = vmatprep.subr.mxu0 0.0
      %391 = vmatpush1.msra.mxu0 %v306
      %392 = vmatprep.subr.mxu0 0.0
      %393 = vmatpush1.msra.mxu0 %v305
      %394 = vmatprep.subr.mxu0 0.0
      %395 = vmatpush1.msra.mxu0 %v304
      %396 = vmatprep.subr.mxu0 0.0
      %397 = vmatpush1.msra.mxu0 %v303
      %398 = vmatprep.subr.mxu0 0.0
      %399 = vmatpush1.msra.mxu0 %v302
      %400 = vmatprep.subr.mxu0 0.0
      %401 = vmatpush1.msra.mxu0 %v301
      %402 = vmatprep.subr.mxu0 0.0
      %403 = vmatpush1.msra.mxu0 %v300
      %404 = vmatprep.subr.mxu0 0.0
      %405 = vmatpush1.msra.mxu0 %v299
      %406 = vmatprep.subr.mxu0 0.0
      %407 = vmatpush2.msra.mxu0 0.0
      %408 = vmatprep.subr.mxu0 0.0
      %409 = vmatpush2.msra.mxu0 0.0
      %410 = vmatprep.subr.mxu0 0.0
      %411 = vmatpush2.msra.mxu0 0.0
      %412 = vmatprep.subr.mxu0 0.0
      %413 = vmatpush2.msra.mxu0 0.0
      %414 = vmatprep.subr.mxu0 0.0
      %415 = vmatpush2.msra.mxu0 0.0
      %416 = vmatprep.subr.mxu0 0.0
      %417 = vmatpush2.msra.mxu0 0.0
      %418 = vmatprep.subr.mxu0 0.0
      %419 = vmatpush2.msra.mxu0 0.0
      %420 = vmatprep.subr.mxu0 0.0
      %421 = vmatpush2.msra.mxu0 0.0
      %422 = vmatprep.subr.mxu0 0.0
      %423 = vmatpush2.msra.mxu0 0.0
      %424 = vmatprep.subr.mxu0 0.0
      %425 = vmatpush2.msra.mxu0 0.0
      %426 = vmatprep.subr.mxu0 0.0
      %427 = vmatpush2.msra.mxu0 0.0
      %428 = vmatprep.subr.mxu0 0.0
      %429 = vmatpush2.msra.mxu0 0.0
      %430 = vmatprep.subr.mxu0 0.0
      %431 = vmatpush2.msra.mxu0 0.0
      %432 = vmatprep.subr.mxu0 0.0
      %433 = vmatpush2.msra.mxu0 %v317
      %434 = vmatprep.subr.mxu0 0.0
      %435 = vmatpush2.msra.mxu0 %v316
      %436 = vmatprep.subr.mxu0 0.0
      %437 = vmatpush2.msra.mxu0 %v315
      %438 = vmatprep.mubr.f32.mxu0 %v327
      %439 = vmatmul.mubr.f32.gmra.mxu0 %v267
      %v440 = vpop.f32.mrf.mxu0
      %v441 = vadd.f32 %v323, %v440
      %v442 = vpop.f32.mrf.mxu0
      %443 = vmatprep.mubr.f32.mxu0 %v330
      %444 = vmatmul.mubr.f32.gmra.mxu0 %v269
      %v445 = vpop.f32.mrf.mxu0
      %v446 = vadd.f32 %v323, %v445
      %v447 = vpop.f32.mrf.mxu0
      %448 = vmatprep.mubr.f32.mxu0 %v333
      %449 = vmatmul.mubr.f32.gmra.mxu0 %v271
      %v450 = vpop.f32.mrf.mxu0
      %v451 = vadd.f32 %v323, %v450
      %v452 = vpop.f32.mrf.mxu0
      %453 = vmatprep.mubr.f32.mxu0 %v336
      %454 = vmatmul.mubr.f32.gmra.mxu0 %v273
      %v455 = vpop.f32.mrf.mxu0
      %v456 = vadd.f32 %v323, %v455
      %v457 = vpop.f32.mrf.mxu0
      %458 = vmatprep.mubr.f32.mxu0 %v339
      %459 = vmatmul.mubr.f32.gmra.mxu0 %v275
      %v460 = vpop.f32.mrf.mxu0
      %v461 = vadd.f32 %v323, %v460
      %v462 = vpop.f32.mrf.mxu0
      %463 = vmatprep.mubr.f32.mxu0 %v342
      %464 = vmatmul.mubr.f32.gmra.mxu0 %v277
      %v465 = vpop.f32.mrf.mxu0
      %v466 = vadd.f32 %v323, %v465
      %v467 = vpop.f32.mrf.mxu0
      %468 = vmatprep.mubr.f32.mxu0 %v345
      %469 = vmatmul.mubr.f32.gmra.mxu0 %v279
      %v470 = vpop.f32.mrf.mxu0
      %v471 = vadd.f32 %v323, %v470
      %v472 = vpop.f32.mrf.mxu0
      %473 = vmatprep.mubr.f32.mxu0 %v348
      %474 = vmatmul.mubr.f32.gmra.mxu0 %v281
      %v475 = vpop.f32.mrf.mxu0
      %v476 = vadd.f32 %v323, %v475
      %v477 = vpop.f32.mrf.mxu0
      %478 = vmatprep.mubr.f32.mxu0 %v351
      %479 = vmatmul.mubr.f32.gmra.mxu0 %v283
      %v480 = vpop.f32.mrf.mxu0
      %v481 = vadd.f32 %v323, %v480
      %v482 = vpop.f32.mrf.mxu0
      %483 = vmatprep.mubr.f32.mxu0 %v354
      %484 = vmatmul.mubr.f32.gmra.mxu0 %v285
      %v485 = vpop.f32.mrf.mxu0
      %v486 = vadd.f32 %v323, %v485
      %v487 = vpop.f32.mrf.mxu0
      %488 = vmatprep.mubr.f32.mxu0 %v357
      %489 = vmatmul.mubr.f32.gmra.mxu0 %v287
      %v490 = vpop.f32.mrf.mxu0
      %v491 = vadd.f32 %v323, %v490
      %v492 = vpop.f32.mrf.mxu0
      %493 = vmatprep.mubr.f32.mxu0 %v360
      %494 = vmatmul.mubr.f32.gmra.mxu0 %v289
      %v495 = vpop.f32.mrf.mxu0
      %v496 = vadd.f32 %v323, %v495
      %v497 = vpop.f32.mrf.mxu0
      %498 = vmatprep.mubr.f32.mxu0 %v363
      %499 = vmatmul.mubr.f32.gmra.mxu0 %v291
      %v500 = vpop.f32.mrf.mxu0
      %v501 = vadd.f32 %v323, %v500
      %v502 = vpop.f32.mrf.mxu0
      %503 = vmatprep.mubr.f32.mxu0 %v366
      %504 = vmatmul.mubr.f32.gmra.mxu0 %v293
      %v505 = vpop.f32.mrf.mxu0
      %v506 = vadd.f32 %v323, %v505
      %v507 = vpop.f32.mrf.mxu0
      %508 = vmatprep.mubr.f32.mxu0 %v369
      %509 = vmatmul.mubr.f32.gmra.mxu0 %v295
      %v510 = vpop.f32.mrf.mxu0
      %v511 = vadd.f32 %v323, %v510
      %v512 = vpop.f32.mrf.mxu0
      %513 = vmatprep.mubr.f32.mxu0 %v372
      %514 = vmatmul.mubr.f32.gmra.mxu0 %v297
      %v515 = vpop.f32.mrf.mxu0
      %v516 = vadd.f32 %v323, %v515
      %v517 = vpop.f32.mrf.mxu0
      %518 = vdwg.mxu0
      %v519 = vld [vmem:[%s3] sm:$0x1]
      %v520 = vld [vmem:[%s4] sm:$0x1]
      %521 = vadd.xlane.f32.xlu0 %v441
      %v522 = vpop.xlane.xlu0 %521
      %523 = vadd.xlane.f32.xlu0 %v446
      %v524 = vpop.xlane.xlu0 %523
      %525 = vadd.xlane.f32.xlu0 %v451
      %v526 = vpop.xlane.xlu0 %525
      %527 = vadd.xlane.f32.xlu0 %v456
      %v528 = vpop.xlane.xlu0 %527
      %529 = vadd.xlane.f32.xlu0 %v461
      %v530 = vpop.xlane.xlu0 %529
      %531 = vadd.xlane.f32.xlu0 %v466
      %v532 = vpop.xlane.xlu0 %531
      %533 = vadd.xlane.f32.xlu0 %v471
      %v534 = vpop.xlane.xlu0 %533
      %535 = vadd.xlane.f32.xlu0 %v476
      %v536 = vpop.xlane.xlu0 %535
      %537 = vadd.xlane.f32.xlu0 %v481
      %v538 = vpop.xlane.xlu0 %537
      %539 = vadd.xlane.f32.xlu0 %v486
      %v540 = vpop.xlane.xlu0 %539
      %541 = vadd.xlane.f32.xlu0 %v491
      %v542 = vpop.xlane.xlu0 %541
      %543 = vadd.xlane.f32.xlu0 %v496
      %v544 = vpop.xlane.xlu0 %543
      %545 = vadd.xlane.f32.xlu0 %v501
      %v546 = vpop.xlane.xlu0 %545
      %547 = vadd.xlane.f32.xlu0 %v506
      %v548 = vpop.xlane.xlu0 %547
      %549 = vadd.xlane.f32.xlu0 %v511
      %v550 = vpop.xlane.xlu0 %549
      %551 = vadd.xlane.f32.xlu0 %v516
      %v552 = vpop.xlane.xlu0 %551
      %v553 = vrcp.pop 128.0
      %v554 = vmul.f32 %v522, %v553
      %v555 = vmul.f32 %v524, %v553
      %v556 = vmul.f32 %v526, %v553
      %v557 = vmul.f32 %v528, %v553
      %v558 = vmul.f32 %v530, %v553
      %v559 = vmul.f32 %v532, %v553
      %v560 = vmul.f32 %v534, %v553
      %v561 = vmul.f32 %v536, %v553
      %v562 = vmul.f32 %v538, %v553
      %v563 = vmul.f32 %v540, %v553
      %v564 = vmul.f32 %v542, %v553
      %v565 = vmul.f32 %v544, %v553
      %v566 = vmul.f32 %v546, %v553
      %v567 = vmul.f32 %v548, %v553
      %v568 = vmul.f32 %v550, %v553
      %v569 = vmul.f32 %v552, %v553
      %v570 = vsub.f32 %v441, %v554
      %v571 = vsub.f32 %v446, %v555
      %v572 = vsub.f32 %v451, %v556
      %v573 = vsub.f32 %v456, %v557
      %v574 = vsub.f32 %v461, %v558
      %v575 = vsub.f32 %v466, %v559
      %v576 = vsub.f32 %v471, %v560
      %v577 = vsub.f32 %v476, %v561
      %v578 = vsub.f32 %v481, %v562
      %v579 = vsub.f32 %v486, %v563
      %v580 = vsub.f32 %v491, %v564
      %v581 = vsub.f32 %v496, %v565
      %v582 = vsub.f32 %v501, %v566
      %v583 = vsub.f32 %v506, %v567
      %v584 = vsub.f32 %v511, %v568
      %v585 = vsub.f32 %v516, %v569
      %v586 = vmul.f32 %v570, %v570
      %v587 = vmul.f32 %v571, %v571
      %v588 = vmul.f32 %v572, %v572
      %v589 = vmul.f32 %v573, %v573
      %v590 = vmul.f32 %v574, %v574
      %v591 = vmul.f32 %v575, %v575
      %v592 = vmul.f32 %v576, %v576
      %v593 = vmul.f32 %v577, %v577
      %v594 = vmul.f32 %v578, %v578
      %v595 = vmul.f32 %v579, %v579
      %v596 = vmul.f32 %v580, %v580
      %v597 = vmul.f32 %v581, %v581
      %v598 = vmul.f32 %v582, %v582
      %v599 = vmul.f32 %v583, %v583
      %v600 = vmul.f32 %v584, %v584
      %v601 = vmul.f32 %v585, %v585
      %602 = vadd.xlane.f32.xlu0 %v586
      %v603 = vpop.xlane.xlu0 %602
      %604 = vadd.xlane.f32.xlu0 %v587
      %v605 = vpop.xlane.xlu0 %604
      %606 = vadd.xlane.f32.xlu0 %v588
      %v607 = vpop.xlane.xlu0 %606
      %608 = vadd.xlane.f32.xlu0 %v589
      %v609 = vpop.xlane.xlu0 %608
      %610 = vadd.xlane.f32.xlu0 %v590
      %v611 = vpop.xlane.xlu0 %610
      %612 = vadd.xlane.f32.xlu0 %v591
      %v613 = vpop.xlane.xlu0 %612
      %614 = vadd.xlane.f32.xlu0 %v592
      %v615 = vpop.xlane.xlu0 %614
      %616 = vadd.xlane.f32.xlu0 %v593
      %v617 = vpop.xlane.xlu0 %616
      %618 = vadd.xlane.f32.xlu0 %v594
      %v619 = vpop.xlane.xlu0 %618
      %620 = vadd.xlane.f32.xlu0 %v595
      %v621 = vpop.xlane.xlu0 %620
      %622 = vadd.xlane.f32.xlu0 %v596
      %v623 = vpop.xlane.xlu0 %622
      %624 = vadd.xlane.f32.xlu0 %v597
      %v625 = vpop.xlane.xlu0 %624
      %626 = vadd.xlane.f32.xlu0 %v598
      %v627 = vpop.xlane.xlu0 %626
      %628 = vadd.xlane.f32.xlu0 %v599
      %v629 = vpop.xlane.xlu0 %628
      %630 = vadd.xlane.f32.xlu0 %v600
      %v631 = vpop.xlane.xlu0 %630
      %632 = vadd.xlane.f32.xlu0 %v601
      %v633 = vpop.xlane.xlu0 %632
      %v634 = vmul.f32 %v603, %v553
      %v635 = vmul.f32 %v605, %v553
      %v636 = vmul.f32 %v607, %v553
      %v637 = vmul.f32 %v609, %v553
      %v638 = vmul.f32 %v611, %v553
      %v639 = vmul.f32 %v613, %v553
      %v640 = vmul.f32 %v615, %v553
      %v641 = vmul.f32 %v617, %v553
      %v642 = vmul.f32 %v619, %v553
      %v643 = vmul.f32 %v621, %v553
      %v644 = vmul.f32 %v623, %v553
      %v645 = vmul.f32 %v625, %v553
      %v646 = vmul.f32 %v627, %v553
      %v647 = vmul.f32 %v629, %v553
      %v648 = vmul.f32 %v631, %v553
      %v649 = vmul.f32 %v633, %v553
      %v650 = vadd.f32 %v634, 1e-05
      %v651 = vadd.f32 %v635, 1e-05
      %v652 = vadd.f32 %v636, 1e-05
      %v653 = vadd.f32 %v637, 1e-05
      %v654 = vadd.f32 %v638, 1e-05
      %v655 = vadd.f32 %v639, 1e-05
      %v656 = vadd.f32 %v640, 1e-05
      %v657 = vadd.f32 %v641, 1e-05
      %v658 = vadd.f32 %v642, 1e-05
      %v659 = vadd.f32 %v643, 1e-05
      %v660 = vadd.f32 %v644, 1e-05
      %v661 = vadd.f32 %v645, 1e-05
      %v662 = vadd.f32 %v646, 1e-05
      %v663 = vadd.f32 %v647, 1e-05
      %v664 = vadd.f32 %v648, 1e-05
      %v665 = vadd.f32 %v649, 1e-05
      %v666 = vrsqrt.pop %v650
      %v667 = vrsqrt.pop %v651
      %v668 = vrsqrt.pop %v652
      %v669 = vrsqrt.pop %v653
      %v670 = vrsqrt.pop %v654
      %v671 = vrsqrt.pop %v655
      %v672 = vrsqrt.pop %v656
      %v673 = vrsqrt.pop %v657
      %v674 = vrsqrt.pop %v658
      %v675 = vrsqrt.pop %v659
      %v676 = vrsqrt.pop %v660
      %v677 = vrsqrt.pop %v661
      %v678 = vrsqrt.pop %v662
      %v679 = vrsqrt.pop %v663
      %v680 = vrsqrt.pop %v664
      %v681 = vrsqrt.pop %v665
      %v682 = vmul.f32 %v570, %v666
      %v683 = vmul.f32 %v571, %v667
      %v684 = vmul.f32 %v572, %v668
      %v685 = vmul.f32 %v573, %v669
      %v686 = vmul.f32 %v574, %v670
      %v687 = vmul.f32 %v575, %v671
      %v688 = vmul.f32 %v576, %v672
      %v689 = vmul.f32 %v577, %v673
      %v690 = vmul.f32 %v578, %v674
      %v691 = vmul.f32 %v579, %v675
      %v692 = vmul.f32 %v580, %v676
      %v693 = vmul.f32 %v581, %v677
      %v694 = vmul.f32 %v582, %v678
      %v695 = vmul.f32 %v583, %v679
      %v696 = vmul.f32 %v584, %v680
      %v697 = vmul.f32 %v585, %v681
      %v699 = vlaneseq
      %v700 = vshrl.u32 %v699, 7
      %v701 = vsub.s32 0, %v700
      %v702 = vrot.slane %v519, %v701
      %v704 = vmul.f32 %v682, %v702
      %v705 = vmul.f32 %v683, %v702
      %v706 = vmul.f32 %v684, %v702
      %v707 = vmul.f32 %v685, %v702
      %v708 = vmul.f32 %v686, %v702
      %v709 = vmul.f32 %v687, %v702
      %v710 = vmul.f32 %v688, %v702
      %v711 = vmul.f32 %v689, %v702
      %v712 = vmul.f32 %v690, %v702
      %v713 = vmul.f32 %v691, %v702
      %v714 = vmul.f32 %v692, %v702
      %v715 = vmul.f32 %v693, %v702
      %v716 = vmul.f32 %v694, %v702
      %v717 = vmul.f32 %v695, %v702
      %v718 = vmul.f32 %v696, %v702
      %v719 = vmul.f32 %v697, %v702
      %v721 = vlaneseq
      %v722 = vshrl.u32 %v721, 7
      %v723 = vsub.s32 0, %v722
      %v724 = vrot.slane %v520, %v723
      %v726 = vadd.f32 %v704, %v724
      %v727 = vadd.f32 %v705, %v724
      %v728 = vadd.f32 %v706, %v724
      %v729 = vadd.f32 %v707, %v724
      %v730 = vadd.f32 %v708, %v724
      %v731 = vadd.f32 %v709, %v724
      %v732 = vadd.f32 %v710, %v724
      %v733 = vadd.f32 %v711, %v724
      %v734 = vadd.f32 %v712, %v724
      %v735 = vadd.f32 %v713, %v724
      %v736 = vadd.f32 %v714, %v724
      %v737 = vadd.f32 %v715, %v724
      %v738 = vadd.f32 %v716, %v724
      %v739 = vadd.f32 %v717, %v724
      %v740 = vadd.f32 %v718, %v724
      %v741 = vadd.f32 %v719, %v724
      %742 = vst [vmem:[%s265] sm:$0xff] %v726
      %743 = vst [vmem:[%s265 + $0x8] sm:$0xff] %v727
      %744 = vst [vmem:[%s265 + $0x10] sm:$0xff] %v728
      %745 = vst [vmem:[%s265 + $0x18] sm:$0xff] %v729
      %746 = vst [vmem:[%s265 + $0x20] sm:$0xff] %v730
      %747 = vst [vmem:[%s265 + $0x28] sm:$0xff] %v731
      %748 = vst [vmem:[%s265 + $0x30] sm:$0xff] %v732
      %749 = vst [vmem:[%s265 + $0x38] sm:$0xff] %v733
      %750 = vst [vmem:[%s265 + $0x40] sm:$0xff] %v734
      %751 = vst [vmem:[%s265 + $0x48] sm:$0xff] %v735
      %752 = vst [vmem:[%s265 + $0x50] sm:$0xff] %v736
      %753 = vst [vmem:[%s265 + $0x58] sm:$0xff] %v737
      %754 = vst [vmem:[%s265 + $0x60] sm:$0xff] %v738
      %755 = vst [vmem:[%s265 + $0x68] sm:$0xff] %v739
      %756 = vst [vmem:[%s265 + $0x70] sm:$0xff] %v740
      %757 = vst [vmem:[%s265 + $0x78] sm:$0xff] %v741
      %s758 = smul.u32 16, %s21
      %p759 = scmp.lt.s32.totalorder %s20, 1
      %s760 = scalar_select %p759, %s20, 1
      %p761 = scmp.lt.s32.totalorder %s758, 31
      %s762 = scalar_select %p761, %s758, 31
      %s763 = smul.addr %s760, 32
      %s764 = sadd.s32 %s762, %s763
      %s765 = smul.addr %s764, 8
      %s766 = scalar_lea.vmem %s5, %s765
      // Predicated region
      $region41: #{_lambda_.5} parent=39 // pred_check
        %p767 = pneg %p160
      $region42: #{_lambda_.5} parent=39 // pred_check_branch
        %769 = sbr.rel (%p767) target = $region44
      $region43: #{_lambda_.5} parent=39 // pred_region
        %s770 = smul.u32 16, %s21
      $region44: #{_lambda_.5} parent=39 // pred_fallthru
        _
    $region40: #{_lambda_.5} parent=5 // pred_fallthru
      _
    %p771 = scmp.le.s32.totalorder 2, %s11
    // Predicated region
    $region45: #{_lambda_.5} parent=5 // pred_check
      %p772 = pneg %p771
    $region46: #{_lambda_.5} parent=5 // pred_check_branch
      %774 = sbr.rel (%p772) target = $region48
    $region47: #{_lambda_.5} parent=5 // pred_region
      %s775 = ssub.s32 %s11, 2
      // Predicated region
      $region49: #{_lambda_.5} parent=47 // pred_check
        %p776 = pneg %p166
      $region50: #{_lambda_.5} parent=47 // pred_check_branch
        %778 = sbr.rel (%p776) target = $region52
      $region51: #{_lambda_.5} parent=47 // pred_region
        %s779 = smul.u32 16, %s23
        %p780 = scmp.lt.s32.totalorder %s22, 1
        %s781 = scalar_select %p780, %s22, 1
        %p782 = scmp.lt.s32.totalorder %s779, 31
        %s783 = scalar_select %p782, %s779, 31
        %s784 = smul.addr %s781, 32
        %s785 = sadd.s32 %s783, %s784
        %s786 = smul.addr %s785, 8
        %s787 = scalar_lea.vmem %s5, %s786
      $region52: #{_lambda_.5} parent=47 // pred_fallthru
        _
    $region48: #{_lambda_.5} parent=5 // pred_fallthru
      _
  $region6: #{_lambda_.5} parent=0 // loop_footer
    %s15 = sadd.s32 1, %s11
  $region7: #{_lambda_.5} parent=0 // loop_footer_branch
    %10 = sbr.rel target = $region3
  $region8: #{_lambda_.5} parent=0 // loop_exit
    _

// kernel: _lambda_.7
$region0: #{_lambda_.7}
  #allocation0 [shape = 'u32[]', space=smem, size = 0x4, offset = 0x4, fixed_abs, tag = 'smem constant byte address 0x4 - core index']
  #allocation1 [shape = 'u32[144,128]{1,0:T(1,128)}', space=vmem, size = 0x12000, scoped, tag = 'internal scratch']
  %s0 = inlined_call_operand.vmem [shape: f32[512,512], index: 0, kind: input, shape index: {}]
  %s1 = inlined_call_operand.vmem [shape: f32[512,128], index: 1, kind: input, shape index: {}]
  %s2 = inlined_call_operand.vmem [shape: f32[512,128], index: 2, kind: input, shape index: {}]
  %s3 = inlined_call_operand.vmem [shape: f32[1,128], index: 3, kind: input, shape index: {}]
  %s4 = inlined_call_operand.vmem [shape: f32[512,128], index: 4, kind: output, shape index: {}]
  %s5 = sld [smem:[#allocation0]]
  $region49: #{_lambda_.7} parent=0
    _
  %s7 = ssub.s32 1, %s5
  %s8 = scalar_select 0, %s7, %s5
  loop: start=0, step=1, limit=4
  $region2: #{_lambda_.7} parent=0 // loop_pre_header
    _
  $region3: #{_lambda_.7} parent=0 // loop_header
    %s10 = sphi 0, %s14
    %p11 = scmp.ge.s32.totalorder %s10, 4
    %s20 = sphi 0, %s22
    %s23 = sphi 0, %s20
    %s24 = sphi 0, %s23
    %s40 = sphi 0, %s24
    %s46 = sphi 0, %s48
    %s49 = sphi 0, %s46
    %s50 = sphi 0, %s49
    %s66 = sphi 0, %s50
    %s70 = sphi 0, %s70
    %s72 = sphi 0, %s70
    %s73 = sphi 0, %s72
    %s87 = sphi 0, %s73
    %s91 = sphi 0, %s91
    %s93 = sphi 0, %s91
    %s94 = sphi 0, %s93
    %s108 = sphi 0, %s94
    %s114 = sphi 0, %s116
    %s117 = sphi 0, %s114
    %s118 = sphi 0, %s117
    %s134 = sphi 0, %s118
  $region4: #{_lambda_.7} parent=0 // loop_header_branch
    %13 = sbr.rel (%p11) target = $region8
  $region5: #{_lambda_.7} parent=0 // loop_body
    %s15 = ssub.s32 %s10, 1
    %s16 = ssub.s32 %s10, 2
    %s17 = sadd.s32 %s10, 1
    %s18 = ssub.s32 %s10, %s17
    %p19 = scmp.eq.s32.totalorder %s18, 0
    %s21 = sadd.s32 %s20, 1
    %s22 = scalar_select %p19, %s20, %s21
    %p25 = pneg %p19
    %p26 = scmp.eq.s32.totalorder %s10, 1
    %p27 = por %p25, %p26
    %p28 = scmp.ne.s32.totalorder %s20, %s23
    %p29 = scmp.eq.s32.totalorder %s10, 0
    %p30 = por %p28, %p29
    %p31 = scmp.ne.s32.totalorder %s20, %s23
    %p32 = scmp.eq.s32.totalorder %s15, 1
    %p33 = por %p31, %p32
    %p34 = scmp.ne.s32.totalorder %s23, %s24
    %p35 = scmp.eq.s32.totalorder %s15, 0
    %p36 = por %p34, %p35
    %p37 = scmp.ne.s32.totalorder %s23, %s24
    %p38 = scmp.eq.s32.totalorder %s16, 1
    %p39 = por %p37, %p38
    %p41 = scmp.ne.s32.totalorder %s24, %s40
    %p42 = scmp.eq.s32.totalorder %s16, 0
    %p43 = por %p41, %p42
    %s44 = ssub.s32 %s10, %s17
    %p45 = scmp.eq.s32.totalorder %s44, 0
    %s47 = sadd.s32 %s46, 1
    %s48 = scalar_select %p45, %s46, %s47
    %p51 = pneg %p45
    %p52 = scmp.eq.s32.totalorder %s10, 1
    %p53 = por %p51, %p52
    %p54 = scmp.ne.s32.totalorder %s46, %s49
    %p55 = scmp.eq.s32.totalorder %s10, 0
    %p56 = por %p54, %p55
    %p57 = scmp.ne.s32.totalorder %s46, %s49
    %p58 = scmp.eq.s32.totalorder %s15, 1
    %p59 = por %p57, %p58
    %p60 = scmp.ne.s32.totalorder %s49, %s50
    %p61 = scmp.eq.s32.totalorder %s15, 0
    %p62 = por %p60, %p61
    %p63 = scmp.ne.s32.totalorder %s49, %s50
    %p64 = scmp.eq.s32.totalorder %s16, 1
    %p65 = por %p63, %p64
    %p67 = scmp.ne.s32.totalorder %s50, %s66
    %p68 = scmp.eq.s32.totalorder %s16, 0
    %p69 = por %p67, %p68
    %s71 = sadd.s32 %s70, 1
    %p74 = scmp.eq.s32.totalorder %s10, 1
    %p75 = scmp.ne.s32.totalorder %s70, %s72
    %p76 = scmp.eq.s32.totalorder %s10, 0
    %p77 = por %p75, %p76
    %p78 = scmp.ne.s32.totalorder %s70, %s72
    %p79 = scmp.eq.s32.totalorder %s15, 1
    %p80 = por %p78, %p79
    %p81 = scmp.ne.s32.totalorder %s72, %s73
    %p82 = scmp.eq.s32.totalorder %s15, 0
    %p83 = por %p81, %p82
    %p84 = scmp.ne.s32.totalorder %s72, %s73
    %p85 = scmp.eq.s32.totalorder %s16, 1
    %p86 = por %p84, %p85
    %p88 = scmp.ne.s32.totalorder %s73, %s87
    %p89 = scmp.eq.s32.totalorder %s16, 0
    %p90 = por %p88, %p89
    %s92 = sadd.s32 %s91, 1
    %p95 = scmp.eq.s32.totalorder %s10, 1
    %p96 = scmp.ne.s32.totalorder %s91, %s93
    %p97 = scmp.eq.s32.totalorder %s10, 0
    %p98 = por %p96, %p97
    %p99 = scmp.ne.s32.totalorder %s91, %s93
    %p100 = scmp.eq.s32.totalorder %s15, 1
    %p101 = por %p99, %p100
    %p102 = scmp.ne.s32.totalorder %s93, %s94
    %p103 = scmp.eq.s32.totalorder %s15, 0
    %p104 = por %p102, %p103
    %p105 = scmp.ne.s32.totalorder %s93, %s94
    %p106 = scmp.eq.s32.totalorder %s16, 1
    %p107 = por %p105, %p106
    %p109 = scmp.ne.s32.totalorder %s94, %s108
    %p110 = scmp.eq.s32.totalorder %s16, 0
    %p111 = por %p109, %p110
    %s112 = ssub.s32 %s10, %s17
    %p113 = scmp.eq.s32.totalorder %s112, 0
    %s115 = sadd.s32 %s114, 1
    %s116 = scalar_select %p113, %s114, %s115
    %p119 = pneg %p113
    %p120 = scmp.eq.s32.totalorder %s10, 1
    %p121 = por %p119, %p120
    %p122 = scmp.ne.s32.totalorder %s114, %s117
    %p123 = scmp.eq.s32.totalorder %s10, 0
    %p124 = por %p122, %p123
    %p125 = scmp.ne.s32.totalorder %s114, %s117
    %p126 = scmp.eq.s32.totalorder %s15, 1
    %p127 = por %p125, %p126
    %p128 = scmp.ne.s32.totalorder %s117, %s118
    %p129 = scmp.eq.s32.totalorder %s15, 0
    %p130 = por %p128, %p129
    %p131 = scmp.ne.s32.totalorder %s117, %s118
    %p132 = scmp.eq.s32.totalorder %s16, 1
    %p133 = por %p131, %p132
    %p135 = scmp.ne.s32.totalorder %s118, %s134
    %p136 = scmp.eq.s32.totalorder %s16, 0
    %p137 = por %p135, %p136
    %p138 = scmp.le.s32.totalorder 1, %s10
    %p139 = scmp.lt.s32.totalorder %s10, 3
    %p140 = pnand %p138, %p139
    %p141 = pneg %p140
    // Predicated region
    $region9: #{_lambda_.7} parent=5 // pred_check
      _
    $region10: #{_lambda_.7} parent=5 // pred_check_branch
      %143 = sbr.rel (%p140) target = $region12
    $region11: #{_lambda_.7} parent=5 // pred_region
      %s144 = ssub.s32 %s10, 1
      // Predicated region
      $region13: #{_lambda_.7} parent=11 // pred_check
        %p145 = pneg %p83
      $region14: #{_lambda_.7} parent=11 // pred_check_branch
        %147 = sbr.rel (%p145) target = $region16
      $region15: #{_lambda_.7} parent=11 // pred_region
        _
      $region16: #{_lambda_.7} parent=11 // pred_fallthru
        _
      // Predicated region
      $region17: #{_lambda_.7} parent=11 // pred_check
        %p148 = pneg %p104
      $region18: #{_lambda_.7} parent=11 // pred_check_branch
        %150 = sbr.rel (%p148) target = $region20
      $region19: #{_lambda_.7} parent=11 // pred_region
        _
      $region20: #{_lambda_.7} parent=11 // pred_fallthru
        _
    $region12: #{_lambda_.7} parent=5 // pred_fallthru
      _
    %p151 = scmp.lt.s32.totalorder %s10, 2
    // Predicated region
    $region21: #{_lambda_.7} parent=5 // pred_check
      %p152 = pneg %p151
    $region22: #{_lambda_.7} parent=5 // pred_check_branch
      %154 = sbr.rel (%p152) target = $region24
    $region23: #{_lambda_.7} parent=5 // pred_region
      // Predicated region
      $region25: #{_lambda_.7} parent=23 // pred_check
        %p155 = pneg %p30
      $region26: #{_lambda_.7} parent=23 // pred_check_branch
        %157 = sbr.rel (%p155) target = $region28
      $region27: #{_lambda_.7} parent=23 // pred_region
        %s158 = smul.u32 32, %s10
        %p159 = scmp.lt.s32.totalorder %s158, 63
        %s160 = scalar_select %p159, %s158, 63
        %s161 = smul.addr %s160, 4
        %s162 = smul.addr %s161, 8
        %s163 = scalar_lea.vmem %s0, %s162
        %s164 = smul.u32 32, %s10
      $region28: #{_lambda_.7} parent=23 // pred_fallthru
        _
      // Predicated region
      $region29: #{_lambda_.7} parent=23 // pred_check
        %p165 = pneg %p56
      $region30: #{_lambda_.7} parent=23 // pred_check_branch
        %167 = sbr.rel (%p165) target = $region32
      $region31: #{_lambda_.7} parent=23 // pred_region
        %s168 = smul.u32 32, %s10
        %p169 = scmp.lt.s32.totalorder %s168, 63
        %s170 = scalar_select %p169, %s168, 63
        %s171 = smul.addr %s170, 8
        %s172 = scalar_lea.vmem %s1, %s171
        %s173 = smul.u32 32, %s10
      $region32: #{_lambda_.7} parent=23 // pred_fallthru
        _
    $region24: #{_lambda_.7} parent=5 // pred_fallthru
      _
    %p174 = scmp.le.s32.totalorder 1, %s10
    %p175 = scmp.lt.s32.totalorder %s10, 3
    %p176 = pnand %p174, %p175
    %p177 = pneg %p176
    // Predicated region
    $region33: #{_lambda_.7} parent=5 // pred_check
      _
    $region34: #{_lambda_.7} parent=5 // pred_check_branch
      %179 = sbr.rel (%p176) target = $region36
    $region35: #{_lambda_.7} parent=5 // pred_region
      %s180 = ssub.s32 %s10, 1
      %s181 = smul.u32 32, %s15
      %p182 = scmp.lt.s32.totalorder %s181, 63
      %s183 = scalar_select %p182, %s181, 63
      %s184 = smul.addr %s183, 4
      %s185 = smul.addr %s184, 8
      %s186 = scalar_lea.vmem %s0, %s185
      %p187 = pneg %p36
      %p188 = pneg %p33
      %s189 = smul.u32 32, %s15
      %p190 = scmp.lt.s32.totalorder %s189, 63
      %s191 = scalar_select %p190, %s189, 63
      %s192 = smul.addr %s191, 8
      %s193 = scalar_lea.vmem %s1, %s192
      %p194 = pneg %p62
      %p195 = pneg %p59
      %p196 = pneg %p83
      %p197 = pneg %p80
      %p198 = pneg %p104
      %p199 = pneg %p101
      %p200 = pneg %p130
      %p201 = pneg %p127
      %s202 = smul.u32 32, %s15
      %p203 = scmp.lt.s32.totalorder %s202, 63
      %s204 = scalar_select %p203, %s202, 63
      %s205 = smul.addr %s204, 8
      %s206 = scalar_lea.vmem %s4, %s205
      %s207 = smul.u32 32, %s15
      %p208 = scmp.lt.s32.totalorder %s207, 63
      %s209 = scalar_select %p208, %s207, 63
      %s210 = smul.addr %s209, 4
      %s211 = smul.addr %s210, 8
      %s212 = scalar_lea.vmem %s0, %s211
      %s213 = smul.u32 32, %s15
      %s214 = smul.u32 32, %s15
      %p215 = scmp.lt.s32.totalorder %s214, 63
      %s216 = scalar_select %p215, %s214, 63
      %s217 = smul.addr %s216, 8
      %s218 = scalar_lea.vmem %s1, %s217
      %s219 = smul.u32 32, %s15
      %s220 = smul.u32 32, %s15
      %p221 = scmp.lt.s32.totalorder %s220, 63
      %s222 = scalar_select %p221, %s220, 63
      %s223 = smul.addr %s222, 8
      %s224 = scalar_lea.vmem %s4, %s223
      %s225 = smul.u32 32, %s15
      %v226 = vld [vmem:[%s212] sm:$0xff]
      %v227 = vld [vmem:[%s212 + $0x8] sm:$0xff]
      %v228 = vld [vmem:[%s212 + $0x10] sm:$0xff]
      %v229 = vld [vmem:[%s212 + $0x18] sm:$0xff]
      %v230 = vld [vmem:[%s212 + $0x20] sm:$0xff]
      %v231 = vld [vmem:[%s212 + $0x28] sm:$0xff]
      %v232 = vld [vmem:[%s212 + $0x30] sm:$0xff]
      %v233 = vld [vmem:[%s212 + $0x38] sm:$0xff]
      %v234 = vld [vmem:[%s212 + $0x40] sm:$0xff]
      %v235 = vld [vmem:[%s212 + $0x48] sm:$0xff]
      %v236 = vld [vmem:[%s212 + $0x50] sm:$0xff]
      %v237 = vld [vmem:[%s212 + $0x58] sm:$0xff]
      %v238 = vld [vmem:[%s212 + $0x60] sm:$0xff]
      %v239 = vld [vmem:[%s212 + $0x68] sm:$0xff]
      %v240 = vld [vmem:[%s212 + $0x70] sm:$0xff]
      %v241 = vld [vmem:[%s212 + $0x78] sm:$0xff]
      %v242 = vld [vmem:[%s212 + $0x80] sm:$0xff]
      %v243 = vld [vmem:[%s212 + $0x88] sm:$0xff]
      %v244 = vld [vmem:[%s212 + $0x90] sm:$0xff]
      %v245 = vld [vmem:[%s212 + $0x98] sm:$0xff]
      %v246 = vld [vmem:[%s212 + $0xa0] sm:$0xff]
      %v247 = vld [vmem:[%s212 + $0xa8] sm:$0xff]
      %v248 = vld [vmem:[%s212 + $0xb0] sm:$0xff]
      %v249 = vld [vmem:[%s212 + $0xb8] sm:$0xff]
      %v250 = vld [vmem:[%s212 + $0xc0] sm:$0xff]
      %v251 = vld [vmem:[%s212 + $0xc8] sm:$0xff]
      %v252 = vld [vmem:[%s212 + $0xd0] sm:$0xff]
      %v253 = vld [vmem:[%s212 + $0xd8] sm:$0xff]
      %v254 = vld [vmem:[%s212 + $0xe0] sm:$0xff]
      %v255 = vld [vmem:[%s212 + $0xe8] sm:$0xff]
      %v256 = vld [vmem:[%s212 + $0xf0] sm:$0xff]
      %v257 = vld [vmem:[%s212 + $0xf8] sm:$0xff]
      %v258 = vld [vmem:[%s212 + $0x100] sm:$0xff]
      %v259 = vld [vmem:[%s212 + $0x108] sm:$0xff]
      %v260 = vld [vmem:[%s212 + $0x110] sm:$0xff]
      %v261 = vld [vmem:[%s212 + $0x118] sm:$0xff]
      %v262 = vld [vmem:[%s212 + $0x120] sm:$0xff]
      %v263 = vld [vmem:[%s212 + $0x128] sm:$0xff]
      %v264 = vld [vmem:[%s212 + $0x130] sm:$0xff]
      %v265 = vld [vmem:[%s212 + $0x138] sm:$0xff]
      %v266 = vld [vmem:[%s212 + $0x140] sm:$0xff]
      %v267 = vld [vmem:[%s212 + $0x148] sm:$0xff]
      %v268 = vld [vmem:[%s212 + $0x150] sm:$0xff]
      %v269 = vld [vmem:[%s212 + $0x158] sm:$0xff]
      %v270 = vld [vmem:[%s212 + $0x160] sm:$0xff]
      %v271 = vld [vmem:[%s212 + $0x168] sm:$0xff]
      %v272 = vld [vmem:[%s212 + $0x170] sm:$0xff]
      %v273 = vld [vmem:[%s212 + $0x178] sm:$0xff]
      %v274 = vld [vmem:[%s212 + $0x180] sm:$0xff]
      %v275 = vld [vmem:[%s212 + $0x188] sm:$0xff]
      %v276 = vld [vmem:[%s212 + $0x190] sm:$0xff]
      %v277 = vld [vmem:[%s212 + $0x198] sm:$0xff]
      %v278 = vld [vmem:[%s212 + $0x1a0] sm:$0xff]
      %v279 = vld [vmem:[%s212 + $0x1a8] sm:$0xff]
      %v280 = vld [vmem:[%s212 + $0x1b0] sm:$0xff]
      %v281 = vld [vmem:[%s212 + $0x1b8] sm:$0xff]
      %v282 = vld [vmem:[%s212 + $0x1c0] sm:$0xff]
      %v283 = vld [vmem:[%s212 + $0x1c8] sm:$0xff]
      %v284 = vld [vmem:[%s212 + $0x1d0] sm:$0xff]
      %v285 = vld [vmem:[%s212 + $0x1d8] sm:$0xff]
      %v286 = vld [vmem:[%s212 + $0x1e0] sm:$0xff]
      %v287 = vld [vmem:[%s212 + $0x1e8] sm:$0xff]
      %v288 = vld [vmem:[%s212 + $0x1f0] sm:$0xff]
      %v289 = vld [vmem:[%s212 + $0x1f8] sm:$0xff]
      %v290 = vld [vmem:[%s212 + $0x200] sm:$0xff]
      %v291 = vld [vmem:[%s212 + $0x208] sm:$0xff]
      %v292 = vld [vmem:[%s212 + $0x210] sm:$0xff]
      %v293 = vld [vmem:[%s212 + $0x218] sm:$0xff]
      %v294 = vld [vmem:[%s212 + $0x220] sm:$0xff]
      %v295 = vld [vmem:[%s212 + $0x228] sm:$0xff]
      %v296 = vld [vmem:[%s212 + $0x230] sm:$0xff]
      %v297 = vld [vmem:[%s212 + $0x238] sm:$0xff]
      %v298 = vld [vmem:[%s212 + $0x240] sm:$0xff]
      %v299 = vld [vmem:[%s212 + $0x248] sm:$0xff]
      %v300 = vld [vmem:[%s212 + $0x250] sm:$0xff]
      %v301 = vld [vmem:[%s212 + $0x258] sm:$0xff]
      %v302 = vld [vmem:[%s212 + $0x260] sm:$0xff]
      %v303 = vld [vmem:[%s212 + $0x268] sm:$0xff]
      %v304 = vld [vmem:[%s212 + $0x270] sm:$0xff]
      %v305 = vld [vmem:[%s212 + $0x278] sm:$0xff]
      %v306 = vld [vmem:[%s212 + $0x280] sm:$0xff]
      %v307 = vld [vmem:[%s212 + $0x288] sm:$0xff]
      %v308 = vld [vmem:[%s212 + $0x290] sm:$0xff]
      %v309 = vld [vmem:[%s212 + $0x298] sm:$0xff]
      %v310 = vld [vmem:[%s212 + $0x2a0] sm:$0xff]
      %v311 = vld [vmem:[%s212 + $0x2a8] sm:$0xff]
      %v312 = vld [vmem:[%s212 + $0x2b0] sm:$0xff]
      %v313 = vld [vmem:[%s212 + $0x2b8] sm:$0xff]
      %v314 = vld [vmem:[%s212 + $0x2c0] sm:$0xff]
      %v315 = vld [vmem:[%s212 + $0x2c8] sm:$0xff]
      %v316 = vld [vmem:[%s212 + $0x2d0] sm:$0xff]
      %v317 = vld [vmem:[%s212 + $0x2d8] sm:$0xff]
      %v318 = vld [vmem:[%s212 + $0x2e0] sm:$0xff]
      %v319 = vld [vmem:[%s212 + $0x2e8] sm:$0xff]
      %v320 = vld [vmem:[%s212 + $0x2f0] sm:$0xff]
      %v321 = vld [vmem:[%s212 + $0x2f8] sm:$0xff]
      %v322 = vld [vmem:[%s212 + $0x300] sm:$0xff]
      %v323 = vld [vmem:[%s212 + $0x308] sm:$0xff]
      %v324 = vld [vmem:[%s212 + $0x310] sm:$0xff]
      %v325 = vld [vmem:[%s212 + $0x318] sm:$0xff]
      %v326 = vld [vmem:[%s212 + $0x320] sm:$0xff]
      %v327 = vld [vmem:[%s212 + $0x328] sm:$0xff]
      %v328 = vld [vmem:[%s212 + $0x330] sm:$0xff]
      %v329 = vld [vmem:[%s212 + $0x338] sm:$0xff]
      %v330 = vld [vmem:[%s212 + $0x340] sm:$0xff]
      %v331 = vld [vmem:[%s212 + $0x348] sm:$0xff]
      %v332 = vld [vmem:[%s212 + $0x350] sm:$0xff]
      %v333 = vld [vmem:[%s212 + $0x358] sm:$0xff]
      %v334 = vld [vmem:[%s212 + $0x360] sm:$0xff]
      %v335 = vld [vmem:[%s212 + $0x368] sm:$0xff]
      %v336 = vld [vmem:[%s212 + $0x370] sm:$0xff]
      %v337 = vld [vmem:[%s212 + $0x378] sm:$0xff]
      %v338 = vld [vmem:[%s212 + $0x380] sm:$0xff]
      %v339 = vld [vmem:[%s212 + $0x388] sm:$0xff]
      %v340 = vld [vmem:[%s212 + $0x390] sm:$0xff]
      %v341 = vld [vmem:[%s212 + $0x398] sm:$0xff]
      %v342 = vld [vmem:[%s212 + $0x3a0] sm:$0xff]
      %v343 = vld [vmem:[%s212 + $0x3a8] sm:$0xff]
      %v344 = vld [vmem:[%s212 + $0x3b0] sm:$0xff]
      %v345 = vld [vmem:[%s212 + $0x3b8] sm:$0xff]
      %v346 = vld [vmem:[%s212 + $0x3c0] sm:$0xff]
      %v347 = vld [vmem:[%s212 + $0x3c8] sm:$0xff]
      %v348 = vld [vmem:[%s212 + $0x3d0] sm:$0xff]
      %v349 = vld [vmem:[%s212 + $0x3d8] sm:$0xff]
      %v350 = vld [vmem:[%s212 + $0x3e0] sm:$0xff]
      %v351 = vld [vmem:[%s212 + $0x3e8] sm:$0xff]
      %v352 = vld [vmem:[%s212 + $0x3f0] sm:$0xff]
      %v353 = vld [vmem:[%s212 + $0x3f8] sm:$0xff]
      %v354 = vld [vmem:[%s2] sm:$0xff]
      %v355 = vld [vmem:[%s2 + $0x8] sm:$0xff]
      %v356 = vld [vmem:[%s2 + $0x10] sm:$0xff]
      %v357 = vld [vmem:[%s2 + $0x18] sm:$0xff]
      %v358 = vld [vmem:[%s2 + $0x20] sm:$0xff]
      %v359 = vld [vmem:[%s2 + $0x28] sm:$0xff]
      %v360 = vld [vmem:[%s2 + $0x30] sm:$0xff]
      %v361 = vld [vmem:[%s2 + $0x38] sm:$0xff]
      %v362 = vld [vmem:[%s2 + $0x40] sm:$0xff]
      %v363 = vld [vmem:[%s2 + $0x48] sm:$0xff]
      %v364 = vld [vmem:[%s2 + $0x50] sm:$0xff]
      %v365 = vld [vmem:[%s2 + $0x58] sm:$0xff]
      %v366 = vld [vmem:[%s2 + $0x60] sm:$0xff]
      %v367 = vld [vmem:[%s2 + $0x68] sm:$0xff]
      %v368 = vld [vmem:[%s2 + $0x70] sm:$0xff]
      %v369 = vld [vmem:[%s2 + $0x78] sm:$0xff]
      %v370 = vld [vmem:[%s2 + $0x80] sm:$0xff]
      %v371 = vld [vmem:[%s2 + $0x88] sm:$0xff]
      %v372 = vld [vmem:[%s2 + $0x90] sm:$0xff]
      %v373 = vld [vmem:[%s2 + $0x98] sm:$0xff]
      %v374 = vld [vmem:[%s2 + $0xa0] sm:$0xff]
      %v375 = vld [vmem:[%s2 + $0xa8] sm:$0xff]
      %v376 = vld [vmem:[%s2 + $0xb0] sm:$0xff]
      %v377 = vld [vmem:[%s2 + $0xb8] sm:$0xff]
      %v378 = vld [vmem:[%s2 + $0xc0] sm:$0xff]
      %v379 = vld [vmem:[%s2 + $0xc8] sm:$0xff]
      %v380 = vld [vmem:[%s2 + $0xd0] sm:$0xff]
      %v381 = vld [vmem:[%s2 + $0xd8] sm:$0xff]
      %v382 = vld [vmem:[%s2 + $0xe0] sm:$0xff]
      %v383 = vld [vmem:[%s2 + $0xe8] sm:$0xff]
      %v384 = vld [vmem:[%s2 + $0xf0] sm:$0xff]
      %v385 = vld [vmem:[%s2 + $0xf8] sm:$0xff]
      %v386 = vld [vmem:[%s2 + $0x100] sm:$0xff]
      %v387 = vld [vmem:[%s2 + $0x108] sm:$0xff]
      %v388 = vld [vmem:[%s2 + $0x110] sm:$0xff]
      %v389 = vld [vmem:[%s2 + $0x118] sm:$0xff]
      %v390 = vld [vmem:[%s2 + $0x120] sm:$0xff]
      %v391 = vld [vmem:[%s2 + $0x128] sm:$0xff]
      %v392 = vld [vmem:[%s2 + $0x130] sm:$0xff]
      %v393 = vld [vmem:[%s2 + $0x138] sm:$0xff]
      %v394 = vld [vmem:[%s2 + $0x140] sm:$0xff]
      %v395 = vld [vmem:[%s2 + $0x148] sm:$0xff]
      %v396 = vld [vmem:[%s2 + $0x150] sm:$0xff]
      %v397 = vld [vmem:[%s2 + $0x158] sm:$0xff]
      %v398 = vld [vmem:[%s2 + $0x160] sm:$0xff]
      %v399 = vld [vmem:[%s2 + $0x168] sm:$0xff]
      %v400 = vld [vmem:[%s2 + $0x170] sm:$0xff]
      %v401 = vld [vmem:[%s2 + $0x178] sm:$0xff]
      %v402 = vld [vmem:[%s2 + $0x180] sm:$0xff]
      %v403 = vld [vmem:[%s2 + $0x188] sm:$0xff]
      %v404 = vld [vmem:[%s2 + $0x190] sm:$0xff]
      %v405 = vld [vmem:[%s2 + $0x198] sm:$0xff]
      %v406 = vld [vmem:[%s2 + $0x1a0] sm:$0xff]
      %v407 = vld [vmem:[%s2 + $0x1a8] sm:$0xff]
      %v408 = vld [vmem:[%s2 + $0x1b0] sm:$0xff]
      %v409 = vld [vmem:[%s2 + $0x1b8] sm:$0xff]
      %v410 = vld [vmem:[%s2 + $0x1c0] sm:$0xff]
      %v411 = vld [vmem:[%s2 + $0x1c8] sm:$0xff]
      %v412 = vld [vmem:[%s2 + $0x1d0] sm:$0xff]
      %v413 = vld [vmem:[%s2 + $0x1d8] sm:$0xff]
      %v414 = vld [vmem:[%s2 + $0x1e0] sm:$0xff]
      %v415 = vld [vmem:[%s2 + $0x1e8] sm:$0xff]
      %v416 = vld [vmem:[%s2 + $0x1f0] sm:$0xff]
      %v417 = vld [vmem:[%s2 + $0x1f8] sm:$0xff]
      %v418 = vld [vmem:[%s3] sm:$0x1]
      %v420 = vlaneseq
      %v421 = vshrl.u32 %v420, 7
      %v422 = vsub.s32 0, %v421
      %v423 = vrot.slane %v418, %v422
      %425 = vmatprep.subr.mxu0 0.0
      %426 = vmatpush1.msra.mxu0 %v369
      %427 = vmatprep.subr.mxu0 0.0
      %428 = vmatpush1.msra.mxu0 %v368
      %429 = vmatprep.subr.mxu0 0.0
      %430 = vmatpush1.msra.mxu0 %v367
      %431 = vmatprep.subr.mxu0 0.0
      %432 = vmatpush1.msra.mxu0 %v366
      %433 = vmatprep.subr.mxu0 0.0
      %434 = vmatpush1.msra.mxu0 %v365
      %435 = vmatprep.subr.mxu0 0.0
      %436 = vmatpush1.msra.mxu0 %v364
      %437 = vmatprep.subr.mxu0 0.0
      %438 = vmatpush1.msra.mxu0 %v363
      %439 = vmatprep.subr.mxu0 0.0
      %440 = vmatpush1.msra.mxu0 %v362
      %441 = vmatprep.subr.mxu0 0.0
      %442 = vmatpush1.msra.mxu0 %v361
      %443 = vmatprep.subr.mxu0 0.0
      %444 = vmatpush1.msra.mxu0 %v360
      %445 = vmatprep.subr.mxu0 0.0
      %446 = vmatpush1.msra.mxu0 %v359
      %447 = vmatprep.subr.mxu0 0.0
      %448 = vmatpush1.msra.mxu0 %v358
      %449 = vmatprep.subr.mxu0 0.0
      %450 = vmatpush1.msra.mxu0 %v357
      %451 = vmatprep.subr.mxu0 0.0
      %452 = vmatpush1.msra.mxu0 %v356
      %453 = vmatprep.subr.mxu0 0.0
      %454 = vmatpush1.msra.mxu0 %v355
      %455 = vmatprep.subr.mxu0 0.0
      %456 = vmatpush1.msra.mxu0 %v354
      %457 = vmatprep.subr.mxu0 0.0
      %458 = vmatpush2.msra.mxu0 %v385
      %459 = vmatprep.subr.mxu0 0.0
      %460 = vmatpush2.msra.mxu0 %v384
      %461 = vmatprep.subr.mxu0 0.0
      %462 = vmatpush2.msra.mxu0 %v383
      %463 = vmatprep.subr.mxu0 0.0
      %464 = vmatpush2.msra.mxu0 %v382
      %465 = vmatprep.subr.mxu0 0.0
      %466 = vmatpush2.msra.mxu0 %v381
      %467 = vmatprep.subr.mxu0 0.0
      %468 = vmatpush2.msra.mxu0 %v380
      %469 = vmatprep.subr.mxu0 0.0
      %470 = vmatpush2.msra.mxu0 %v379
      %471 = vmatprep.subr.mxu0 0.0
      %472 = vmatpush2.msra.mxu0 %v378
      %473 = vmatprep.subr.mxu0 0.0
      %474 = vmatpush2.msra.mxu0 %v377
      %475 = vmatprep.subr.mxu0 0.0
      %476 = vmatpush2.msra.mxu0 %v376
      %477 = vmatprep.subr.mxu0 0.0
      %478 = vmatpush2.msra.mxu0 %v375
      %479 = vmatprep.subr.mxu0 0.0
      %480 = vmatpush2.msra.mxu0 %v374
      %481 = vmatprep.subr.mxu0 0.0
      %482 = vmatpush2.msra.mxu0 %v373
      %483 = vmatprep.subr.mxu0 0.0
      %484 = vmatpush2.msra.mxu0 %v372
      %485 = vmatprep.subr.mxu0 0.0
      %486 = vmatpush2.msra.mxu0 %v371
      %487 = vmatprep.subr.mxu0 0.0
      %488 = vmatpush2.msra.mxu0 %v370
      %489 = vmatprep.mubr.f32.mxu0 %v227
      %490 = vmatmul.mubr.f32.gmra.mxu0 %v226
      %v491 = vpop.f32.mrf.mxu0
      %v492 = vadd.f32 %v423, %v491
      %v493 = vpop.f32.mrf.mxu0
      %494 = vmatprep.mubr.f32.mxu0 %v231
      %495 = vmatmul.mubr.f32.gmra.mxu0 %v230
      %v496 = vpop.f32.mrf.mxu0
      %v497 = vadd.f32 %v423, %v496
      %v498 = vpop.f32.mrf.mxu0
      %499 = vmatprep.mubr.f32.mxu0 %v235
      %500 = vmatmul.mubr.f32.gmra.mxu0 %v234
      %v501 = vpop.f32.mrf.mxu0
      %v502 = vadd.f32 %v423, %v501
      %v503 = vpop.f32.mrf.mxu0
      %504 = vmatprep.mubr.f32.mxu0 %v239
      %505 = vmatmul.mubr.f32.gmra.mxu0 %v238
      %v506 = vpop.f32.mrf.mxu0
      %v507 = vadd.f32 %v423, %v506
      %v508 = vpop.f32.mrf.mxu0
      %509 = vmatprep.mubr.f32.mxu0 %v243
      %510 = vmatmul.mubr.f32.gmra.mxu0 %v242
      %v511 = vpop.f32.mrf.mxu0
      %v512 = vadd.f32 %v423, %v511
      %v513 = vpop.f32.mrf.mxu0
      %514 = vmatprep.mubr.f32.mxu0 %v247
      %515 = vmatmul.mubr.f32.gmra.mxu0 %v246
      %v516 = vpop.f32.mrf.mxu0
      %v517 = vadd.f32 %v423, %v516
      %v518 = vpop.f32.mrf.mxu0
      %519 = vmatprep.mubr.f32.mxu0 %v251
      %520 = vmatmul.mubr.f32.gmra.mxu0 %v250
      %v521 = vpop.f32.mrf.mxu0
      %v522 = vadd.f32 %v423, %v521
      %v523 = vpop.f32.mrf.mxu0
      %524 = vmatprep.mubr.f32.mxu0 %v255
      %525 = vmatmul.mubr.f32.gmra.mxu0 %v254
      %v526 = vpop.f32.mrf.mxu0
      %v527 = vadd.f32 %v423, %v526
      %v528 = vpop.f32.mrf.mxu0
      %529 = vmatprep.mubr.f32.mxu0 %v259
      %530 = vmatmul.mubr.f32.gmra.mxu0 %v258
      %v531 = vpop.f32.mrf.mxu0
      %v532 = vadd.f32 %v423, %v531
      %v533 = vpop.f32.mrf.mxu0
      %534 = vmatprep.mubr.f32.mxu0 %v263
      %535 = vmatmul.mubr.f32.gmra.mxu0 %v262
      %v536 = vpop.f32.mrf.mxu0
      %v537 = vadd.f32 %v423, %v536
      %v538 = vpop.f32.mrf.mxu0
      %539 = vmatprep.mubr.f32.mxu0 %v267
      %540 = vmatmul.mubr.f32.gmra.mxu0 %v266
      %v541 = vpop.f32.mrf.mxu0
      %v542 = vadd.f32 %v423, %v541
      %v543 = vpop.f32.mrf.mxu0
      %544 = vmatprep.mubr.f32.mxu0 %v271
      %545 = vmatmul.mubr.f32.gmra.mxu0 %v270
      %v546 = vpop.f32.mrf.mxu0
      %v547 = vadd.f32 %v423, %v546
      %v548 = vpop.f32.mrf.mxu0
      %549 = vmatprep.mubr.f32.mxu0 %v275
      %550 = vmatmul.mubr.f32.gmra.mxu0 %v274
      %v551 = vpop.f32.mrf.mxu0
      %v552 = vadd.f32 %v423, %v551
      %v553 = vpop.f32.mrf.mxu0
      %554 = vmatprep.mubr.f32.mxu0 %v279
      %555 = vmatmul.mubr.f32.gmra.mxu0 %v278
      %v556 = vpop.f32.mrf.mxu0
      %v557 = vadd.f32 %v423, %v556
      %v558 = vpop.f32.mrf.mxu0
      %559 = vmatprep.mubr.f32.mxu0 %v283
      %560 = vmatmul.mubr.f32.gmra.mxu0 %v282
      %v561 = vpop.f32.mrf.mxu0
      %v562 = vadd.f32 %v423, %v561
      %v563 = vpop.f32.mrf.mxu0
      %564 = vmatprep.mubr.f32.mxu0 %v287
      %565 = vmatmul.mubr.f32.gmra.mxu0 %v286
      %v566 = vpop.f32.mrf.mxu0
      %v567 = vadd.f32 %v423, %v566
      %v568 = vpop.f32.mrf.mxu0
      %569 = vmatprep.mubr.f32.mxu0 %v291
      %570 = vmatmul.mubr.f32.gmra.mxu0 %v290
      %v571 = vpop.f32.mrf.mxu0
      %v572 = vadd.f32 %v423, %v571
      %v573 = vpop.f32.mrf.mxu0
      %574 = vmatprep.mubr.f32.mxu0 %v295
      %575 = vmatmul.mubr.f32.gmra.mxu0 %v294
      %v576 = vpop.f32.mrf.mxu0
      %v577 = vadd.f32 %v423, %v576
      %v578 = vpop.f32.mrf.mxu0
      %579 = vmatprep.mubr.f32.mxu0 %v299
      %580 = vmatmul.mubr.f32.gmra.mxu0 %v298
      %v581 = vpop.f32.mrf.mxu0
      %v582 = vadd.f32 %v423, %v581
      %v583 = vpop.f32.mrf.mxu0
      %584 = vmatprep.mubr.f32.mxu0 %v303
      %585 = vmatmul.mubr.f32.gmra.mxu0 %v302
      %v586 = vpop.f32.mrf.mxu0
      %v587 = vadd.f32 %v423, %v586
      %v588 = vpop.f32.mrf.mxu0
      %589 = vmatprep.mubr.f32.mxu0 %v307
      %590 = vmatmul.mubr.f32.gmra.mxu0 %v306
      %v591 = vpop.f32.mrf.mxu0
      %v592 = vadd.f32 %v423, %v591
      %v593 = vpop.f32.mrf.mxu0
      %594 = vmatprep.mubr.f32.mxu0 %v311
      %595 = vmatmul.mubr.f32.gmra.mxu0 %v310
      %v596 = vpop.f32.mrf.mxu0
      %v597 = vadd.f32 %v423, %v596
      %v598 = vpop.f32.mrf.mxu0
      %599 = vmatprep.mubr.f32.mxu0 %v315
      %600 = vmatmul.mubr.f32.gmra.mxu0 %v314
      %v601 = vpop.f32.mrf.mxu0
      %v602 = vadd.f32 %v423, %v601
      %v603 = vpop.f32.mrf.mxu0
      %604 = vmatprep.mubr.f32.mxu0 %v319
      %605 = vmatmul.mubr.f32.gmra.mxu0 %v318
      %v606 = vpop.f32.mrf.mxu0
      %v607 = vadd.f32 %v423, %v606
      %v608 = vpop.f32.mrf.mxu0
      %609 = vmatprep.mubr.f32.mxu0 %v323
      %610 = vmatmul.mubr.f32.gmra.mxu0 %v322
      %v611 = vpop.f32.mrf.mxu0
      %v612 = vadd.f32 %v423, %v611
      %v613 = vpop.f32.mrf.mxu0
      %614 = vmatprep.mubr.f32.mxu0 %v327
      %615 = vmatmul.mubr.f32.gmra.mxu0 %v326
      %v616 = vpop.f32.mrf.mxu0
      %v617 = vadd.f32 %v423, %v616
      %v618 = vpop.f32.mrf.mxu0
      %619 = vmatprep.mubr.f32.mxu0 %v331
      %620 = vmatmul.mubr.f32.gmra.mxu0 %v330
      %v621 = vpop.f32.mrf.mxu0
      %v622 = vadd.f32 %v423, %v621
      %v623 = vpop.f32.mrf.mxu0
      %624 = vmatprep.mubr.f32.mxu0 %v335
      %625 = vmatmul.mubr.f32.gmra.mxu0 %v334
      %v626 = vpop.f32.mrf.mxu0
      %v627 = vadd.f32 %v423, %v626
      %v628 = vpop.f32.mrf.mxu0
      %629 = vmatprep.mubr.f32.mxu0 %v339
      %630 = vmatmul.mubr.f32.gmra.mxu0 %v338
      %v631 = vpop.f32.mrf.mxu0
      %v632 = vadd.f32 %v423, %v631
      %v633 = vpop.f32.mrf.mxu0
      %634 = vmatprep.mubr.f32.mxu0 %v343
      %635 = vmatmul.mubr.f32.gmra.mxu0 %v342
      %v636 = vpop.f32.mrf.mxu0
      %v637 = vadd.f32 %v423, %v636
      %v638 = vpop.f32.mrf.mxu0
      %639 = vmatprep.mubr.f32.mxu0 %v347
      %640 = vmatmul.mubr.f32.gmra.mxu0 %v346
      %v641 = vpop.f32.mrf.mxu0
      %v642 = vadd.f32 %v423, %v641
      %v643 = vpop.f32.mrf.mxu0
      %644 = vmatprep.mubr.f32.mxu0 %v351
      %645 = vmatmul.mubr.f32.gmra.mxu0 %v350
      %v646 = vpop.f32.mrf.mxu0
      %v647 = vadd.f32 %v423, %v646
      %v648 = vpop.f32.mrf.mxu0
      %649 = vdwg.mxu0
      %650 = vmatprep.subr.mxu0 0.0
      %651 = vmatpush1.msra.mxu0 %v401
      %652 = vmatprep.subr.mxu0 0.0
      %653 = vmatpush1.msra.mxu0 %v400
      %654 = vmatprep.subr.mxu0 0.0
      %655 = vmatpush1.msra.mxu0 %v399
      %656 = vmatprep.subr.mxu0 0.0
      %657 = vmatpush1.msra.mxu0 %v398
      %658 = vmatprep.subr.mxu0 0.0
      %659 = vmatpush1.msra.mxu0 %v397
      %660 = vmatprep.subr.mxu0 0.0
      %661 = vmatpush1.msra.mxu0 %v396
      %662 = vmatprep.subr.mxu0 0.0
      %663 = vmatpush1.msra.mxu0 %v395
      %664 = vmatprep.subr.mxu0 0.0
      %665 = vmatpush1.msra.mxu0 %v394
      %666 = vmatprep.subr.mxu0 0.0
      %667 = vmatpush1.msra.mxu0 %v393
      %668 = vmatprep.subr.mxu0 0.0
      %669 = vmatpush1.msra.mxu0 %v392
      %670 = vmatprep.subr.mxu0 0.0
      %671 = vmatpush1.msra.mxu0 %v391
      %672 = vmatprep.subr.mxu0 0.0
      %673 = vmatpush1.msra.mxu0 %v390
      %674 = vmatprep.subr.mxu0 0.0
      %675 = vmatpush1.msra.mxu0 %v389
      %676 = vmatprep.subr.mxu0 0.0
      %677 = vmatpush1.msra.mxu0 %v388
      %678 = vmatprep.subr.mxu0 0.0
      %679 = vmatpush1.msra.mxu0 %v387
      %680 = vmatprep.subr.mxu0 0.0
      %681 = vmatpush1.msra.mxu0 %v386
      %682 = vmatprep.subr.mxu0 0.0
      %683 = vmatpush2.msra.mxu0 %v417
      %684 = vmatprep.subr.mxu0 0.0
      %685 = vmatpush2.msra.mxu0 %v416
      %686 = vmatprep.subr.mxu0 0.0
      %687 = vmatpush2.msra.mxu0 %v415
      %688 = vmatprep.subr.mxu0 0.0
      %689 = vmatpush2.msra.mxu0 %v414
      %690 = vmatprep.subr.mxu0 0.0
      %691 = vmatpush2.msra.mxu0 %v413
      %692 = vmatprep.subr.mxu0 0.0
      %693 = vmatpush2.msra.mxu0 %v412
      %694 = vmatprep.subr.mxu0 0.0
      %695 = vmatpush2.msra.mxu0 %v411
      %696 = vmatprep.subr.mxu0 0.0
      %697 = vmatpush2.msra.mxu0 %v410
      %698 = vmatprep.subr.mxu0 0.0
      %699 = vmatpush2.msra.mxu0 %v409
      %700 = vmatprep.subr.mxu0 0.0
      %701 = vmatpush2.msra.mxu0 %v408
      %702 = vmatprep.subr.mxu0 0.0
      %703 = vmatpush2.msra.mxu0 %v407
      %704 = vmatprep.subr.mxu0 0.0
      %705 = vmatpush2.msra.mxu0 %v406
      %706 = vmatprep.subr.mxu0 0.0
      %707 = vmatpush2.msra.mxu0 %v405
      %708 = vmatprep.subr.mxu0 0.0
      %709 = vmatpush2.msra.mxu0 %v404
      %710 = vmatprep.subr.mxu0 0.0
      %711 = vmatpush2.msra.mxu0 %v403
      %712 = vmatprep.subr.mxu0 0.0
      %713 = vmatpush2.msra.mxu0 %v402
      %714 = vmatprep.mubr.f32.mxu0 %v229
      %715 = vmatmul.mubr.f32.gmra.mxu0 %v228
      %v716 = vpop.f32.mrf.mxu0
      %v717 = vadd.f32 %v492, %v716
      %v718 = vpop.f32.mrf.mxu0
      %719 = vmatprep.mubr.f32.mxu0 %v233
      %720 = vmatmul.mubr.f32.gmra.mxu0 %v232
      %v721 = vpop.f32.mrf.mxu0
      %v722 = vadd.f32 %v497, %v721
      %v723 = vpop.f32.mrf.mxu0
      %724 = vmatprep.mubr.f32.mxu0 %v237
      %725 = vmatmul.mubr.f32.gmra.mxu0 %v236
      %v726 = vpop.f32.mrf.mxu0
      %v727 = vadd.f32 %v502, %v726
      %v728 = vpop.f32.mrf.mxu0
      %729 = vmatprep.mubr.f32.mxu0 %v241
      %730 = vmatmul.mubr.f32.gmra.mxu0 %v240
      %v731 = vpop.f32.mrf.mxu0
      %v732 = vadd.f32 %v507, %v731
      %v733 = vpop.f32.mrf.mxu0
      %734 = vmatprep.mubr.f32.mxu0 %v245
      %735 = vmatmul.mubr.f32.gmra.mxu0 %v244
      %v736 = vpop.f32.mrf.mxu0
      %v737 = vadd.f32 %v512, %v736
      %v738 = vpop.f32.mrf.mxu0
      %739 = vmatprep.mubr.f32.mxu0 %v249
      %740 = vmatmul.mubr.f32.gmra.mxu0 %v248
      %v741 = vpop.f32.mrf.mxu0
      %v742 = vadd.f32 %v517, %v741
      %v743 = vpop.f32.mrf.mxu0
      %744 = vmatprep.mubr.f32.mxu0 %v253
      %745 = vmatmul.mubr.f32.gmra.mxu0 %v252
      %v746 = vpop.f32.mrf.mxu0
      %v747 = vadd.f32 %v522, %v746
      %v748 = vpop.f32.mrf.mxu0
      %749 = vmatprep.mubr.f32.mxu0 %v257
      %750 = vmatmul.mubr.f32.gmra.mxu0 %v256
      %v751 = vpop.f32.mrf.mxu0
      %v752 = vadd.f32 %v527, %v751
      %v753 = vpop.f32.mrf.mxu0
      %754 = vmatprep.mubr.f32.mxu0 %v261
      %755 = vmatmul.mubr.f32.gmra.mxu0 %v260
      %v756 = vpop.f32.mrf.mxu0
      %v757 = vadd.f32 %v532, %v756
      %v758 = vpop.f32.mrf.mxu0
      %759 = vmatprep.mubr.f32.mxu0 %v265
      %760 = vmatmul.mubr.f32.gmra.mxu0 %v264
      %v761 = vpop.f32.mrf.mxu0
      %v762 = vadd.f32 %v537, %v761
      %v763 = vpop.f32.mrf.mxu0
      %764 = vmatprep.mubr.f32.mxu0 %v269
      %765 = vmatmul.mubr.f32.gmra.mxu0 %v268
      %v766 = vpop.f32.mrf.mxu0
      %v767 = vadd.f32 %v542, %v766
      %v768 = vpop.f32.mrf.mxu0
      %769 = vmatprep.mubr.f32.mxu0 %v273
      %770 = vmatmul.mubr.f32.gmra.mxu0 %v272
      %v771 = vpop.f32.mrf.mxu0
      %v772 = vadd.f32 %v547, %v771
      %v773 = vpop.f32.mrf.mxu0
      %774 = vmatprep.mubr.f32.mxu0 %v277
      %775 = vmatmul.mubr.f32.gmra.mxu0 %v276
      %v776 = vpop.f32.mrf.mxu0
      %v777 = vadd.f32 %v552, %v776
      %v778 = vpop.f32.mrf.mxu0
      %779 = vmatprep.mubr.f32.mxu0 %v281
      %780 = vmatmul.mubr.f32.gmra.mxu0 %v280
      %v781 = vpop.f32.mrf.mxu0
      %v782 = vadd.f32 %v557, %v781
      %v783 = vpop.f32.mrf.mxu0
      %784 = vmatprep.mubr.f32.mxu0 %v285
      %785 = vmatmul.mubr.f32.gmra.mxu0 %v284
      %v786 = vpop.f32.mrf.mxu0
      %v787 = vadd.f32 %v562, %v786
      %v788 = vpop.f32.mrf.mxu0
      %789 = vmatprep.mubr.f32.mxu0 %v289
      %790 = vmatmul.mubr.f32.gmra.mxu0 %v288
      %v791 = vpop.f32.mrf.mxu0
      %v792 = vadd.f32 %v567, %v791
      %v793 = vpop.f32.mrf.mxu0
      %794 = vmatprep.mubr.f32.mxu0 %v293
      %795 = vmatmul.mubr.f32.gmra.mxu0 %v292
      %v796 = vpop.f32.mrf.mxu0
      %v797 = vadd.f32 %v572, %v796
      %v798 = vpop.f32.mrf.mxu0
      %799 = vmatprep.mubr.f32.mxu0 %v297
      %800 = vmatmul.mubr.f32.gmra.mxu0 %v296
      %v801 = vpop.f32.mrf.mxu0
      %v802 = vadd.f32 %v577, %v801
      %v803 = vpop.f32.mrf.mxu0
      %804 = vmatprep.mubr.f32.mxu0 %v301
      %805 = vmatmul.mubr.f32.gmra.mxu0 %v300
      %v806 = vpop.f32.mrf.mxu0
      %v807 = vadd.f32 %v582, %v806
      %v808 = vpop.f32.mrf.mxu0
      %809 = vmatprep.mubr.f32.mxu0 %v305
      %810 = vmatmul.mubr.f32.gmra.mxu0 %v304
      %v811 = vpop.f32.mrf.mxu0
      %v812 = vadd.f32 %v587, %v811
      %v813 = vpop.f32.mrf.mxu0
      %814 = vmatprep.mubr.f32.mxu0 %v309
      %815 = vmatmul.mubr.f32.gmra.mxu0 %v308
      %v816 = vpop.f32.mrf.mxu0
      %v817 = vadd.f32 %v592, %v816
      %v818 = vpop.f32.mrf.mxu0
      %819 = vmatprep.mubr.f32.mxu0 %v313
      %820 = vmatmul.mubr.f32.gmra.mxu0 %v312
      %v821 = vpop.f32.mrf.mxu0
      %v822 = vadd.f32 %v597, %v821
      %v823 = vpop.f32.mrf.mxu0
      %824 = vmatprep.mubr.f32.mxu0 %v317
      %825 = vmatmul.mubr.f32.gmra.mxu0 %v316
      %v826 = vpop.f32.mrf.mxu0
      %v827 = vadd.f32 %v602, %v826
      %v828 = vpop.f32.mrf.mxu0
      %829 = vmatprep.mubr.f32.mxu0 %v321
      %830 = vmatmul.mubr.f32.gmra.mxu0 %v320
      %v831 = vpop.f32.mrf.mxu0
      %v832 = vadd.f32 %v607, %v831
      %v833 = vpop.f32.mrf.mxu0
      %834 = vmatprep.mubr.f32.mxu0 %v325
      %835 = vmatmul.mubr.f32.gmra.mxu0 %v324
      %v836 = vpop.f32.mrf.mxu0
      %v837 = vadd.f32 %v612, %v836
      %v838 = vpop.f32.mrf.mxu0
      %839 = vmatprep.mubr.f32.mxu0 %v329
      %840 = vmatmul.mubr.f32.gmra.mxu0 %v328
      %v841 = vpop.f32.mrf.mxu0
      %v842 = vadd.f32 %v617, %v841
      %v843 = vpop.f32.mrf.mxu0
      %844 = vmatprep.mubr.f32.mxu0 %v333
      %845 = vmatmul.mubr.f32.gmra.mxu0 %v332
      %v846 = vpop.f32.mrf.mxu0
      %v847 = vadd.f32 %v622, %v846
      %v848 = vpop.f32.mrf.mxu0
      %849 = vmatprep.mubr.f32.mxu0 %v337
      %850 = vmatmul.mubr.f32.gmra.mxu0 %v336
      %v851 = vpop.f32.mrf.mxu0
      %v852 = vadd.f32 %v627, %v851
      %v853 = vpop.f32.mrf.mxu0
      %854 = vmatprep.mubr.f32.mxu0 %v341
      %855 = vmatmul.mubr.f32.gmra.mxu0 %v340
      %v856 = vpop.f32.mrf.mxu0
      %v857 = vadd.f32 %v632, %v856
      %v858 = vpop.f32.mrf.mxu0
      %859 = vmatprep.mubr.f32.mxu0 %v345
      %860 = vmatmul.mubr.f32.gmra.mxu0 %v344
      %v861 = vpop.f32.mrf.mxu0
      %v862 = vadd.f32 %v637, %v861
      %v863 = vpop.f32.mrf.mxu0
      %864 = vmatprep.mubr.f32.mxu0 %v349
      %865 = vmatmul.mubr.f32.gmra.mxu0 %v348
      %v866 = vpop.f32.mrf.mxu0
      %v867 = vadd.f32 %v642, %v866
      %v868 = vpop.f32.mrf.mxu0
      %869 = vmatprep.mubr.f32.mxu0 %v353
      %870 = vmatmul.mubr.f32.gmra.mxu0 %v352
      %v871 = vpop.f32.mrf.mxu0
      %v872 = vadd.f32 %v647, %v871
      %v873 = vpop.f32.mrf.mxu0
      %874 = vdwg.mxu0
      %v875 = vld [vmem:[%s218] sm:$0xff]
      %v876 = vld [vmem:[%s218 + $0x8] sm:$0xff]
      %v877 = vld [vmem:[%s218 + $0x10] sm:$0xff]
      %v878 = vld [vmem:[%s218 + $0x18] sm:$0xff]
      %v879 = vld [vmem:[%s218 + $0x20] sm:$0xff]
      %v880 = vld [vmem:[%s218 + $0x28] sm:$0xff]
      %v881 = vld [vmem:[%s218 + $0x30] sm:$0xff]
      %v882 = vld [vmem:[%s218 + $0x38] sm:$0xff]
      %v883 = vld [vmem:[%s218 + $0x40] sm:$0xff]
      %v884 = vld [vmem:[%s218 + $0x48] sm:$0xff]
      %v885 = vld [vmem:[%s218 + $0x50] sm:$0xff]
      %v886 = vld [vmem:[%s218 + $0x58] sm:$0xff]
      %v887 = vld [vmem:[%s218 + $0x60] sm:$0xff]
      %v888 = vld [vmem:[%s218 + $0x68] sm:$0xff]
      %v889 = vld [vmem:[%s218 + $0x70] sm:$0xff]
      %v890 = vld [vmem:[%s218 + $0x78] sm:$0xff]
      %v891 = vld [vmem:[%s218 + $0x80] sm:$0xff]
      %v892 = vld [vmem:[%s218 + $0x88] sm:$0xff]
      %v893 = vld [vmem:[%s218 + $0x90] sm:$0xff]
      %v894 = vld [vmem:[%s218 + $0x98] sm:$0xff]
      %v895 = vld [vmem:[%s218 + $0xa0] sm:$0xff]
      %v896 = vld [vmem:[%s218 + $0xa8] sm:$0xff]
      %v897 = vld [vmem:[%s218 + $0xb0] sm:$0xff]
      %v898 = vld [vmem:[%s218 + $0xb8] sm:$0xff]
      %v899 = vld [vmem:[%s218 + $0xc0] sm:$0xff]
      %v900 = vld [vmem:[%s218 + $0xc8] sm:$0xff]
      %v901 = vld [vmem:[%s218 + $0xd0] sm:$0xff]
      %v902 = vld [vmem:[%s218 + $0xd8] sm:$0xff]
      %v903 = vld [vmem:[%s218 + $0xe0] sm:$0xff]
      %v904 = vld [vmem:[%s218 + $0xe8] sm:$0xff]
      %v905 = vld [vmem:[%s218 + $0xf0] sm:$0xff]
      %v906 = vld [vmem:[%s218 + $0xf8] sm:$0xff]
      %v907 = vadd.f32 %v875, %v717
      %v908 = vadd.f32 %v876, %v722
      %v909 = vadd.f32 %v877, %v727
      %v910 = vadd.f32 %v878, %v732
      %v911 = vadd.f32 %v879, %v737
      %v912 = vadd.f32 %v880, %v742
      %v913 = vadd.f32 %v881, %v747
      %v914 = vadd.f32 %v882, %v752
      %v915 = vadd.f32 %v883, %v757
      %v916 = vadd.f32 %v884, %v762
      %v917 = vadd.f32 %v885, %v767
      %v918 = vadd.f32 %v886, %v772
      %v919 = vadd.f32 %v887, %v777
      %v920 = vadd.f32 %v888, %v782
      %v921 = vadd.f32 %v889, %v787
      %v922 = vadd.f32 %v890, %v792
      %v923 = vadd.f32 %v891, %v797
      %v924 = vadd.f32 %v892, %v802
      %v925 = vadd.f32 %v893, %v807
      %v926 = vadd.f32 %v894, %v812
      %v927 = vadd.f32 %v895, %v817
      %v928 = vadd.f32 %v896, %v822
      %v929 = vadd.f32 %v897, %v827
      %v930 = vadd.f32 %v898, %v832
      %v931 = vadd.f32 %v899, %v837
      %v932 = vadd.f32 %v900, %v842
      %v933 = vadd.f32 %v901, %v847
      %v934 = vadd.f32 %v902, %v852
      %v935 = vadd.f32 %v903, %v857
      %v936 = vadd.f32 %v904, %v862
      %v937 = vadd.f32 %v905, %v867
      %v938 = vadd.f32 %v906, %v872
      %939 = vst [vmem:[%s224] sm:$0xff] %v907
      %940 = vst [vmem:[%s224 + $0x8] sm:$0xff] %v908
      %941 = vst [vmem:[%s224 + $0x10] sm:$0xff] %v909
      %942 = vst [vmem:[%s224 + $0x18] sm:$0xff] %v910
      %943 = vst [vmem:[%s224 + $0x20] sm:$0xff] %v911
      %944 = vst [vmem:[%s224 + $0x28] sm:$0xff] %v912
      %945 = vst [vmem:[%s224 + $0x30] sm:$0xff] %v913
      %946 = vst [vmem:[%s224 + $0x38] sm:$0xff] %v914
      %947 = vst [vmem:[%s224 + $0x40] sm:$0xff] %v915
      %948 = vst [vmem:[%s224 + $0x48] sm:$0xff] %v916
      %949 = vst [vmem:[%s224 + $0x50] sm:$0xff] %v917
      %950 = vst [vmem:[%s224 + $0x58] sm:$0xff] %v918
      %951 = vst [vmem:[%s224 + $0x60] sm:$0xff] %v919
      %952 = vst [vmem:[%s224 + $0x68] sm:$0xff] %v920
      %953 = vst [vmem:[%s224 + $0x70] sm:$0xff] %v921
      %954 = vst [vmem:[%s224 + $0x78] sm:$0xff] %v922
      %955 = vst [vmem:[%s224 + $0x80] sm:$0xff] %v923
      %956 = vst [vmem:[%s224 + $0x88] sm:$0xff] %v924
      %957 = vst [vmem:[%s224 + $0x90] sm:$0xff] %v925
      %958 = vst [vmem:[%s224 + $0x98] sm:$0xff] %v926
      %959 = vst [vmem:[%s224 + $0xa0] sm:$0xff] %v927
      %960 = vst [vmem:[%s224 + $0xa8] sm:$0xff] %v928
      %961 = vst [vmem:[%s224 + $0xb0] sm:$0xff] %v929
      %962 = vst [vmem:[%s224 + $0xb8] sm:$0xff] %v930
      %963 = vst [vmem:[%s224 + $0xc0] sm:$0xff] %v931
      %964 = vst [vmem:[%s224 + $0xc8] sm:$0xff] %v932
      %965 = vst [vmem:[%s224 + $0xd0] sm:$0xff] %v933
      %966 = vst [vmem:[%s224 + $0xd8] sm:$0xff] %v934
      %967 = vst [vmem:[%s224 + $0xe0] sm:$0xff] %v935
      %968 = vst [vmem:[%s224 + $0xe8] sm:$0xff] %v936
      %969 = vst [vmem:[%s224 + $0xf0] sm:$0xff] %v937
      %970 = vst [vmem:[%s224 + $0xf8] sm:$0xff] %v938
      %s971 = smul.u32 32, %s15
      %p972 = scmp.lt.s32.totalorder %s971, 63
      %s973 = scalar_select %p972, %s971, 63
      %s974 = smul.addr %s973, 8
      %s975 = scalar_lea.vmem %s4, %s974
      // Predicated region
      $region37: #{_lambda_.7} parent=35 // pred_check
        %p976 = pneg %p127
      $region38: #{_lambda_.7} parent=35 // pred_check_branch
        %978 = sbr.rel (%p976) target = $region40
      $region39: #{_lambda_.7} parent=35 // pred_region
        %s979 = smul.u32 32, %s15
      $region40: #{_lambda_.7} parent=35 // pred_fallthru
        _
    $region36: #{_lambda_.7} parent=5 // pred_fallthru
      _
    %p980 = scmp.le.s32.totalorder 2, %s10
    // Predicated region
    $region41: #{_lambda_.7} parent=5 // pred_check
      %p981 = pneg %p980
    $region42: #{_lambda_.7} parent=5 // pred_check_branch
      %983 = sbr.rel (%p981) target = $region44
    $region43: #{_lambda_.7} parent=5 // pred_region
      %s984 = ssub.s32 %s10, 2
      // Predicated region
      $region45: #{_lambda_.7} parent=43 // pred_check
        %p985 = pneg %p133
      $region46: #{_lambda_.7} parent=43 // pred_check_branch
        %987 = sbr.rel (%p985) target = $region48
      $region47: #{_lambda_.7} parent=43 // pred_region
        %s988 = smul.u32 32, %s16
        %p989 = scmp.lt.s32.totalorder %s988, 63
        %s990 = scalar_select %p989, %s988, 63
        %s991 = smul.addr %s990, 8
        %s992 = scalar_lea.vmem %s4, %s991
      $region48: #{_lambda_.7} parent=43 // pred_fallthru
        _
    $region44: #{_lambda_.7} parent=5 // pred_fallthru
      _
  $region6: #{_lambda_.7} parent=0 // loop_footer
    %s14 = sadd.s32 1, %s10
  $region7: #{_lambda_.7} parent=0 // loop_footer_branch
    %9 = sbr.rel target = $region3
  $region8: #{_lambda_.7} parent=0 // loop_exit
    _

// kernel: _lambda_.9
$region0: #{_lambda_.9}
  #allocation0 [shape = 'u32[]', space=smem, size = 0x4, offset = 0x4, fixed_abs, tag = 'smem constant byte address 0x4 - core index']
  #allocation1 [shape = 'u32[144,128]{1,0:T(1,128)}', space=vmem, size = 0x12000, scoped, tag = 'internal scratch']
  %s0 = inlined_call_operand.vmem [shape: f32[512,512], index: 0, kind: input, shape index: {}]
  %s1 = inlined_call_operand.vmem [shape: f32[512,128], index: 1, kind: input, shape index: {}]
  %s2 = inlined_call_operand.vmem [shape: f32[512,128], index: 2, kind: input, shape index: {}]
  %s3 = inlined_call_operand.vmem [shape: f32[1,128], index: 3, kind: input, shape index: {}]
  %s4 = inlined_call_operand.hbm [shape: f32[512,128], index: 4, kind: output, shape index: {}]
  %s5 = sld [smem:[#allocation0]]
  $region49: #{_lambda_.9} parent=0
    _
  %s7 = ssub.s32 1, %s5
  %s8 = scalar_select 0, %s7, %s5
  $region1: #{_lambda_.9} parent=0
    #allocation2 [shape = 'u8[262144]{0}', space=vmem, size = 0x40000, scoped, tag = 'output window, operand 0']
    #allocation3 [shape = 's32[2]{0}', space=sflag, size = 0x8, scoped, tag = 'scoped memory for _lambda_.9']
    %9 = vsyncpa [#allocation3], 0
    %s10 = scalar_lea.sflag [#allocation3], 1
    %11 = vsyncpa %s10, 0
    loop: start=0, step=1, limit=4
    $region2: #{_lambda_.9} parent=1 // loop_pre_header
      _
    $region3: #{_lambda_.9} parent=1 // loop_header
      %s13 = sphi 0, %s17
      %p14 = scmp.ge.s32.totalorder %s13, 4
      %s23 = sphi 0, %s25
      %s26 = sphi 0, %s23
      %s27 = sphi 0, %s26
      %s43 = sphi 0, %s27
      %s49 = sphi 0, %s51
      %s52 = sphi 0, %s49
      %s53 = sphi 0, %s52
      %s69 = sphi 0, %s53
      %s73 = sphi 0, %s73
      %s75 = sphi 0, %s73
      %s76 = sphi 0, %s75
      %s90 = sphi 0, %s76
      %s94 = sphi 0, %s94
      %s96 = sphi 0, %s94
      %s97 = sphi 0, %s96
      %s111 = sphi 0, %s97
      %s117 = sphi 0, %s119
      %s120 = sphi 0, %s117
      %s121 = sphi 0, %s120
      %s137 = sphi 0, %s121
    $region4: #{_lambda_.9} parent=1 // loop_header_branch
      %16 = sbr.rel (%p14) target = $region8
    $region5: #{_lambda_.9} parent=1 // loop_body
      %s18 = ssub.s32 %s13, 1
      %s19 = ssub.s32 %s13, 2
      %s20 = sadd.s32 %s13, 1
      %s21 = ssub.s32 %s13, %s20
      %p22 = scmp.eq.s32.totalorder %s21, 0
      %s24 = sadd.s32 %s23, 1
      %s25 = scalar_select %p22, %s23, %s24
      %p28 = pneg %p22
      %p29 = scmp.eq.s32.totalorder %s13, 1
      %p30 = por %p28, %p29
      %p31 = scmp.ne.s32.totalorder %s23, %s26
      %p32 = scmp.eq.s32.totalorder %s13, 0
      %p33 = por %p31, %p32
      %p34 = scmp.ne.s32.totalorder %s23, %s26
      %p35 = scmp.eq.s32.totalorder %s18, 1
      %p36 = por %p34, %p35
      %p37 = scmp.ne.s32.totalorder %s26, %s27
      %p38 = scmp.eq.s32.totalorder %s18, 0
      %p39 = por %p37, %p38
      %p40 = scmp.ne.s32.totalorder %s26, %s27
      %p41 = scmp.eq.s32.totalorder %s19, 1
      %p42 = por %p40, %p41
      %p44 = scmp.ne.s32.totalorder %s27, %s43
      %p45 = scmp.eq.s32.totalorder %s19, 0
      %p46 = por %p44, %p45
      %s47 = ssub.s32 %s13, %s20
      %p48 = scmp.eq.s32.totalorder %s47, 0
      %s50 = sadd.s32 %s49, 1
      %s51 = scalar_select %p48, %s49, %s50
      %p54 = pneg %p48
      %p55 = scmp.eq.s32.totalorder %s13, 1
      %p56 = por %p54, %p55
      %p57 = scmp.ne.s32.totalorder %s49, %s52
      %p58 = scmp.eq.s32.totalorder %s13, 0
      %p59 = por %p57, %p58
      %p60 = scmp.ne.s32.totalorder %s49, %s52
      %p61 = scmp.eq.s32.totalorder %s18, 1
      %p62 = por %p60, %p61
      %p63 = scmp.ne.s32.totalorder %s52, %s53
      %p64 = scmp.eq.s32.totalorder %s18, 0
      %p65 = por %p63, %p64
      %p66 = scmp.ne.s32.totalorder %s52, %s53
      %p67 = scmp.eq.s32.totalorder %s19, 1
      %p68 = por %p66, %p67
      %p70 = scmp.ne.s32.totalorder %s53, %s69
      %p71 = scmp.eq.s32.totalorder %s19, 0
      %p72 = por %p70, %p71
      %s74 = sadd.s32 %s73, 1
      %p77 = scmp.eq.s32.totalorder %s13, 1
      %p78 = scmp.ne.s32.totalorder %s73, %s75
      %p79 = scmp.eq.s32.totalorder %s13, 0
      %p80 = por %p78, %p79
      %p81 = scmp.ne.s32.totalorder %s73, %s75
      %p82 = scmp.eq.s32.totalorder %s18, 1
      %p83 = por %p81, %p82
      %p84 = scmp.ne.s32.totalorder %s75, %s76
      %p85 = scmp.eq.s32.totalorder %s18, 0
      %p86 = por %p84, %p85
      %p87 = scmp.ne.s32.totalorder %s75, %s76
      %p88 = scmp.eq.s32.totalorder %s19, 1
      %p89 = por %p87, %p88
      %p91 = scmp.ne.s32.totalorder %s76, %s90
      %p92 = scmp.eq.s32.totalorder %s19, 0
      %p93 = por %p91, %p92
      %s95 = sadd.s32 %s94, 1
      %p98 = scmp.eq.s32.totalorder %s13, 1
      %p99 = scmp.ne.s32.totalorder %s94, %s96
      %p100 = scmp.eq.s32.totalorder %s13, 0
      %p101 = por %p99, %p100
      %p102 = scmp.ne.s32.totalorder %s94, %s96
      %p103 = scmp.eq.s32.totalorder %s18, 1
      %p104 = por %p102, %p103
      %p105 = scmp.ne.s32.totalorder %s96, %s97
      %p106 = scmp.eq.s32.totalorder %s18, 0
      %p107 = por %p105, %p106
      %p108 = scmp.ne.s32.totalorder %s96, %s97
      %p109 = scmp.eq.s32.totalorder %s19, 1
      %p110 = por %p108, %p109
      %p112 = scmp.ne.s32.totalorder %s97, %s111
      %p113 = scmp.eq.s32.totalorder %s19, 0
      %p114 = por %p112, %p113
      %s115 = ssub.s32 %s13, %s20
      %p116 = scmp.eq.s32.totalorder %s115, 0
      %s118 = sadd.s32 %s117, 1
      %s119 = scalar_select %p116, %s117, %s118
      %p122 = pneg %p116
      %p123 = scmp.eq.s32.totalorder %s13, 1
      %p124 = por %p122, %p123
      %p125 = scmp.ne.s32.totalorder %s117, %s120
      %p126 = scmp.eq.s32.totalorder %s13, 0
      %p127 = por %p125, %p126
      %p128 = scmp.ne.s32.totalorder %s117, %s120
      %p129 = scmp.eq.s32.totalorder %s18, 1
      %p130 = por %p128, %p129
      %p131 = scmp.ne.s32.totalorder %s120, %s121
      %p132 = scmp.eq.s32.totalorder %s18, 0
      %p133 = por %p131, %p132
      %p134 = scmp.ne.s32.totalorder %s120, %s121
      %p135 = scmp.eq.s32.totalorder %s19, 1
      %p136 = por %p134, %p135
      %p138 = scmp.ne.s32.totalorder %s121, %s137
      %p139 = scmp.eq.s32.totalorder %s19, 0
      %p140 = por %p138, %p139
      %p141 = scmp.le.s32.totalorder 1, %s13
      %p142 = scmp.lt.s32.totalorder %s13, 3
      %p143 = pnand %p141, %p142
      %p144 = pneg %p143
      // Predicated region
      $region9: #{_lambda_.9} parent=5 // pred_check
        _
      $region10: #{_lambda_.9} parent=5 // pred_check_branch
        %146 = sbr.rel (%p143) target = $region12
      $region11: #{_lambda_.9} parent=5 // pred_region
        %s147 = ssub.s32 %s13, 1
        // Predicated region
        $region13: #{_lambda_.9} parent=11 // pred_check
          %p148 = pneg %p86
        $region14: #{_lambda_.9} parent=11 // pred_check_branch
          %150 = sbr.rel (%p148) target = $region16
        $region15: #{_lambda_.9} parent=11 // pred_region
          _
        $region16: #{_lambda_.9} parent=11 // pred_fallthru
          _
        // Predicated region
        $region17: #{_lambda_.9} parent=11 // pred_check
          %p151 = pneg %p107
        $region18: #{_lambda_.9} parent=11 // pred_check_branch
          %153 = sbr.rel (%p151) target = $region20
        $region19: #{_lambda_.9} parent=11 // pred_region
          _
        $region20: #{_lambda_.9} parent=11 // pred_fallthru
          _
      $region12: #{_lambda_.9} parent=5 // pred_fallthru
        _
      %p154 = scmp.lt.s32.totalorder %s13, 2
      // Predicated region
      $region21: #{_lambda_.9} parent=5 // pred_check
        %p155 = pneg %p154
      $region22: #{_lambda_.9} parent=5 // pred_check_branch
        %157 = sbr.rel (%p155) target = $region24
      $region23: #{_lambda_.9} parent=5 // pred_region
        // Predicated region
        $region25: #{_lambda_.9} parent=23 // pred_check
          %p158 = pneg %p33
        $region26: #{_lambda_.9} parent=23 // pred_check_branch
          %160 = sbr.rel (%p158) target = $region28
        $region27: #{_lambda_.9} parent=23 // pred_region
          %s161 = smul.u32 32, %s13
          %p162 = scmp.lt.s32.totalorder %s161, 63
          %s163 = scalar_select %p162, %s161, 63
          %s164 = smul.addr %s163, 4
          %s165 = smul.addr %s164, 8
          %s166 = scalar_lea.vmem %s0, %s165
          %s167 = smul.u32 32, %s13
        $region28: #{_lambda_.9} parent=23 // pred_fallthru
          _
        // Predicated region
        $region29: #{_lambda_.9} parent=23 // pred_check
          %p168 = pneg %p59
        $region30: #{_lambda_.9} parent=23 // pred_check_branch
          %170 = sbr.rel (%p168) target = $region32
        $region31: #{_lambda_.9} parent=23 // pred_region
          %s171 = smul.u32 32, %s13
          %p172 = scmp.lt.s32.totalorder %s171, 63
          %s173 = scalar_select %p172, %s171, 63
          %s174 = smul.addr %s173, 8
          %s175 = scalar_lea.vmem %s1, %s174
          %s176 = smul.u32 32, %s13
        $region32: #{_lambda_.9} parent=23 // pred_fallthru
          _
      $region24: #{_lambda_.9} parent=5 // pred_fallthru
        _
      %p177 = scmp.le.s32.totalorder 1, %s13
      %p178 = scmp.lt.s32.totalorder %s13, 3
      %p179 = pnand %p177, %p178
      %p180 = pneg %p179
      // Predicated region
      $region33: #{_lambda_.9} parent=5 // pred_check
        _
      $region34: #{_lambda_.9} parent=5 // pred_check_branch
        %182 = sbr.rel (%p179) target = $region36
      $region35: #{_lambda_.9} parent=5 // pred_region
        %s183 = ssub.s32 %s13, 1
        %s184 = smul.u32 32, %s18
        %p185 = scmp.lt.s32.totalorder %s184, 63
        %s186 = scalar_select %p185, %s184, 63
        %s187 = smul.addr %s186, 4
        %s188 = smul.addr %s187, 8
        %s189 = scalar_lea.vmem %s0, %s188
        %p190 = pneg %p39
        %p191 = pneg %p36
        %s192 = smul.u32 32, %s18
        %p193 = scmp.lt.s32.totalorder %s192, 63
        %s194 = scalar_select %p193, %s192, 63
        %s195 = smul.addr %s194, 8
        %s196 = scalar_lea.vmem %s1, %s195
        %p197 = pneg %p65
        %p198 = pneg %p62
        %p199 = pneg %p86
        %p200 = pneg %p83
        %p201 = pneg %p107
        %p202 = pneg %p104
        %p203 = pneg %p133
        %p204 = pneg %p130
        %s205 = sand.u32 %s120, 1
        %s206 = scalar_lea.sflag [#allocation3], %s205
        %s207 = sand.u32 %s120, 1
        %s208 = smul.addr %s207, 256
        %s209 = scalar_lea.vmem [#allocation2], %s208
        %s210 = smul.u32 32, %s18
        %p211 = scmp.lt.s32.totalorder %s210, 63
        %s212 = scalar_select %p211, %s210, 63
        %s213 = smul.addr %s212, 4
        %s214 = smul.addr %s213, 8
        %s215 = scalar_lea.vmem %s0, %s214
        %s216 = smul.u32 32, %s18
        %s217 = smul.u32 32, %s18
        %p218 = scmp.lt.s32.totalorder %s217, 63
        %s219 = scalar_select %p218, %s217, 63
        %s220 = smul.addr %s219, 8
        %s221 = scalar_lea.vmem %s1, %s220
        %s222 = smul.u32 32, %s18
        %s223 = smul.u32 32, %s18
        %v224 = vld [vmem:[%s215] sm:$0xff]
        %v225 = vld [vmem:[%s215 + $0x8] sm:$0xff]
        %v226 = vld [vmem:[%s215 + $0x10] sm:$0xff]
        %v227 = vld [vmem:[%s215 + $0x18] sm:$0xff]
        %v228 = vld [vmem:[%s215 + $0x20] sm:$0xff]
        %v229 = vld [vmem:[%s215 + $0x28] sm:$0xff]
        %v230 = vld [vmem:[%s215 + $0x30] sm:$0xff]
        %v231 = vld [vmem:[%s215 + $0x38] sm:$0xff]
        %v232 = vld [vmem:[%s215 + $0x40] sm:$0xff]
        %v233 = vld [vmem:[%s215 + $0x48] sm:$0xff]
        %v234 = vld [vmem:[%s215 + $0x50] sm:$0xff]
        %v235 = vld [vmem:[%s215 + $0x58] sm:$0xff]
        %v236 = vld [vmem:[%s215 + $0x60] sm:$0xff]
        %v237 = vld [vmem:[%s215 + $0x68] sm:$0xff]
        %v238 = vld [vmem:[%s215 + $0x70] sm:$0xff]
        %v239 = vld [vmem:[%s215 + $0x78] sm:$0xff]
        %v240 = vld [vmem:[%s215 + $0x80] sm:$0xff]
        %v241 = vld [vmem:[%s215 + $0x88] sm:$0xff]
        %v242 = vld [vmem:[%s215 + $0x90] sm:$0xff]
        %v243 = vld [vmem:[%s215 + $0x98] sm:$0xff]
        %v244 = vld [vmem:[%s215 + $0xa0] sm:$0xff]
        %v245 = vld [vmem:[%s215 + $0xa8] sm:$0xff]
        %v246 = vld [vmem:[%s215 + $0xb0] sm:$0xff]
        %v247 = vld [vmem:[%s215 + $0xb8] sm:$0xff]
        %v248 = vld [vmem:[%s215 + $0xc0] sm:$0xff]
        %v249 = vld [vmem:[%s215 + $0xc8] sm:$0xff]
        %v250 = vld [vmem:[%s215 + $0xd0] sm:$0xff]
        %v251 = vld [vmem:[%s215 + $0xd8] sm:$0xff]
        %v252 = vld [vmem:[%s215 + $0xe0] sm:$0xff]
        %v253 = vld [vmem:[%s215 + $0xe8] sm:$0xff]
        %v254 = vld [vmem:[%s215 + $0xf0] sm:$0xff]
        %v255 = vld [vmem:[%s215 + $0xf8] sm:$0xff]
        %v256 = vld [vmem:[%s215 + $0x100] sm:$0xff]
        %v257 = vld [vmem:[%s215 + $0x108] sm:$0xff]
        %v258 = vld [vmem:[%s215 + $0x110] sm:$0xff]
        %v259 = vld [vmem:[%s215 + $0x118] sm:$0xff]
        %v260 = vld [vmem:[%s215 + $0x120] sm:$0xff]
        %v261 = vld [vmem:[%s215 + $0x128] sm:$0xff]
        %v262 = vld [vmem:[%s215 + $0x130] sm:$0xff]
        %v263 = vld [vmem:[%s215 + $0x138] sm:$0xff]
        %v264 = vld [vmem:[%s215 + $0x140] sm:$0xff]
        %v265 = vld [vmem:[%s215 + $0x148] sm:$0xff]
        %v266 = vld [vmem:[%s215 + $0x150] sm:$0xff]
        %v267 = vld [vmem:[%s215 + $0x158] sm:$0xff]
        %v268 = vld [vmem:[%s215 + $0x160] sm:$0xff]
        %v269 = vld [vmem:[%s215 + $0x168] sm:$0xff]
        %v270 = vld [vmem:[%s215 + $0x170] sm:$0xff]
        %v271 = vld [vmem:[%s215 + $0x178] sm:$0xff]
        %v272 = vld [vmem:[%s215 + $0x180] sm:$0xff]
        %v273 = vld [vmem:[%s215 + $0x188] sm:$0xff]
        %v274 = vld [vmem:[%s215 + $0x190] sm:$0xff]
        %v275 = vld [vmem:[%s215 + $0x198] sm:$0xff]
        %v276 = vld [vmem:[%s215 + $0x1a0] sm:$0xff]
        %v277 = vld [vmem:[%s215 + $0x1a8] sm:$0xff]
        %v278 = vld [vmem:[%s215 + $0x1b0] sm:$0xff]
        %v279 = vld [vmem:[%s215 + $0x1b8] sm:$0xff]
        %v280 = vld [vmem:[%s215 + $0x1c0] sm:$0xff]
        %v281 = vld [vmem:[%s215 + $0x1c8] sm:$0xff]
        %v282 = vld [vmem:[%s215 + $0x1d0] sm:$0xff]
        %v283 = vld [vmem:[%s215 + $0x1d8] sm:$0xff]
        %v284 = vld [vmem:[%s215 + $0x1e0] sm:$0xff]
        %v285 = vld [vmem:[%s215 + $0x1e8] sm:$0xff]
        %v286 = vld [vmem:[%s215 + $0x1f0] sm:$0xff]
        %v287 = vld [vmem:[%s215 + $0x1f8] sm:$0xff]
        %v288 = vld [vmem:[%s215 + $0x200] sm:$0xff]
        %v289 = vld [vmem:[%s215 + $0x208] sm:$0xff]
        %v290 = vld [vmem:[%s215 + $0x210] sm:$0xff]
        %v291 = vld [vmem:[%s215 + $0x218] sm:$0xff]
        %v292 = vld [vmem:[%s215 + $0x220] sm:$0xff]
        %v293 = vld [vmem:[%s215 + $0x228] sm:$0xff]
        %v294 = vld [vmem:[%s215 + $0x230] sm:$0xff]
        %v295 = vld [vmem:[%s215 + $0x238] sm:$0xff]
        %v296 = vld [vmem:[%s215 + $0x240] sm:$0xff]
        %v297 = vld [vmem:[%s215 + $0x248] sm:$0xff]
        %v298 = vld [vmem:[%s215 + $0x250] sm:$0xff]
        %v299 = vld [vmem:[%s215 + $0x258] sm:$0xff]
        %v300 = vld [vmem:[%s215 + $0x260] sm:$0xff]
        %v301 = vld [vmem:[%s215 + $0x268] sm:$0xff]
        %v302 = vld [vmem:[%s215 + $0x270] sm:$0xff]
        %v303 = vld [vmem:[%s215 + $0x278] sm:$0xff]
        %v304 = vld [vmem:[%s215 + $0x280] sm:$0xff]
        %v305 = vld [vmem:[%s215 + $0x288] sm:$0xff]
        %v306 = vld [vmem:[%s215 + $0x290] sm:$0xff]
        %v307 = vld [vmem:[%s215 + $0x298] sm:$0xff]
        %v308 = vld [vmem:[%s215 + $0x2a0] sm:$0xff]
        %v309 = vld [vmem:[%s215 + $0x2a8] sm:$0xff]
        %v310 = vld [vmem:[%s215 + $0x2b0] sm:$0xff]
        %v311 = vld [vmem:[%s215 + $0x2b8] sm:$0xff]
        %v312 = vld [vmem:[%s215 + $0x2c0] sm:$0xff]
        %v313 = vld [vmem:[%s215 + $0x2c8] sm:$0xff]
        %v314 = vld [vmem:[%s215 + $0x2d0] sm:$0xff]
        %v315 = vld [vmem:[%s215 + $0x2d8] sm:$0xff]
        %v316 = vld [vmem:[%s215 + $0x2e0] sm:$0xff]
        %v317 = vld [vmem:[%s215 + $0x2e8] sm:$0xff]
        %v318 = vld [vmem:[%s215 + $0x2f0] sm:$0xff]
        %v319 = vld [vmem:[%s215 + $0x2f8] sm:$0xff]
        %v320 = vld [vmem:[%s215 + $0x300] sm:$0xff]
        %v321 = vld [vmem:[%s215 + $0x308] sm:$0xff]
        %v322 = vld [vmem:[%s215 + $0x310] sm:$0xff]
        %v323 = vld [vmem:[%s215 + $0x318] sm:$0xff]
        %v324 = vld [vmem:[%s215 + $0x320] sm:$0xff]
        %v325 = vld [vmem:[%s215 + $0x328] sm:$0xff]
        %v326 = vld [vmem:[%s215 + $0x330] sm:$0xff]
        %v327 = vld [vmem:[%s215 + $0x338] sm:$0xff]
        %v328 = vld [vmem:[%s215 + $0x340] sm:$0xff]
        %v329 = vld [vmem:[%s215 + $0x348] sm:$0xff]
        %v330 = vld [vmem:[%s215 + $0x350] sm:$0xff]
        %v331 = vld [vmem:[%s215 + $0x358] sm:$0xff]
        %v332 = vld [vmem:[%s215 + $0x360] sm:$0xff]
        %v333 = vld [vmem:[%s215 + $0x368] sm:$0xff]
        %v334 = vld [vmem:[%s215 + $0x370] sm:$0xff]
        %v335 = vld [vmem:[%s215 + $0x378] sm:$0xff]
        %v336 = vld [vmem:[%s215 + $0x380] sm:$0xff]
        %v337 = vld [vmem:[%s215 + $0x388] sm:$0xff]
        %v338 = vld [vmem:[%s215 + $0x390] sm:$0xff]
        %v339 = vld [vmem:[%s215 + $0x398] sm:$0xff]
        %v340 = vld [vmem:[%s215 + $0x3a0] sm:$0xff]
        %v341 = vld [vmem:[%s215 + $0x3a8] sm:$0xff]
        %v342 = vld [vmem:[%s215 + $0x3b0] sm:$0xff]
        %v343 = vld [vmem:[%s215 + $0x3b8] sm:$0xff]
        %v344 = vld [vmem:[%s215 + $0x3c0] sm:$0xff]
        %v345 = vld [vmem:[%s215 + $0x3c8] sm:$0xff]
        %v346 = vld [vmem:[%s215 + $0x3d0] sm:$0xff]
        %v347 = vld [vmem:[%s215 + $0x3d8] sm:$0xff]
        %v348 = vld [vmem:[%s215 + $0x3e0] sm:$0xff]
        %v349 = vld [vmem:[%s215 + $0x3e8] sm:$0xff]
        %v350 = vld [vmem:[%s215 + $0x3f0] sm:$0xff]
        %v351 = vld [vmem:[%s215 + $0x3f8] sm:$0xff]
        %v352 = vld [vmem:[%s2] sm:$0xff]
        %v353 = vld [vmem:[%s2 + $0x8] sm:$0xff]
        %v354 = vld [vmem:[%s2 + $0x10] sm:$0xff]
        %v355 = vld [vmem:[%s2 + $0x18] sm:$0xff]
        %v356 = vld [vmem:[%s2 + $0x20] sm:$0xff]
        %v357 = vld [vmem:[%s2 + $0x28] sm:$0xff]
        %v358 = vld [vmem:[%s2 + $0x30] sm:$0xff]
        %v359 = vld [vmem:[%s2 + $0x38] sm:$0xff]
        %v360 = vld [vmem:[%s2 + $0x40] sm:$0xff]
        %v361 = vld [vmem:[%s2 + $0x48] sm:$0xff]
        %v362 = vld [vmem:[%s2 + $0x50] sm:$0xff]
        %v363 = vld [vmem:[%s2 + $0x58] sm:$0xff]
        %v364 = vld [vmem:[%s2 + $0x60] sm:$0xff]
        %v365 = vld [vmem:[%s2 + $0x68] sm:$0xff]
        %v366 = vld [vmem:[%s2 + $0x70] sm:$0xff]
        %v367 = vld [vmem:[%s2 + $0x78] sm:$0xff]
        %v368 = vld [vmem:[%s2 + $0x80] sm:$0xff]
        %v369 = vld [vmem:[%s2 + $0x88] sm:$0xff]
        %v370 = vld [vmem:[%s2 + $0x90] sm:$0xff]
        %v371 = vld [vmem:[%s2 + $0x98] sm:$0xff]
        %v372 = vld [vmem:[%s2 + $0xa0] sm:$0xff]
        %v373 = vld [vmem:[%s2 + $0xa8] sm:$0xff]
        %v374 = vld [vmem:[%s2 + $0xb0] sm:$0xff]
        %v375 = vld [vmem:[%s2 + $0xb8] sm:$0xff]
        %v376 = vld [vmem:[%s2 + $0xc0] sm:$0xff]
        %v377 = vld [vmem:[%s2 + $0xc8] sm:$0xff]
        %v378 = vld [vmem:[%s2 + $0xd0] sm:$0xff]
        %v379 = vld [vmem:[%s2 + $0xd8] sm:$0xff]
        %v380 = vld [vmem:[%s2 + $0xe0] sm:$0xff]
        %v381 = vld [vmem:[%s2 + $0xe8] sm:$0xff]
        %v382 = vld [vmem:[%s2 + $0xf0] sm:$0xff]
        %v383 = vld [vmem:[%s2 + $0xf8] sm:$0xff]
        %v384 = vld [vmem:[%s2 + $0x100] sm:$0xff]
        %v385 = vld [vmem:[%s2 + $0x108] sm:$0xff]
        %v386 = vld [vmem:[%s2 + $0x110] sm:$0xff]
        %v387 = vld [vmem:[%s2 + $0x118] sm:$0xff]
        %v388 = vld [vmem:[%s2 + $0x120] sm:$0xff]
        %v389 = vld [vmem:[%s2 + $0x128] sm:$0xff]
        %v390 = vld [vmem:[%s2 + $0x130] sm:$0xff]
        %v391 = vld [vmem:[%s2 + $0x138] sm:$0xff]
        %v392 = vld [vmem:[%s2 + $0x140] sm:$0xff]
        %v393 = vld [vmem:[%s2 + $0x148] sm:$0xff]
        %v394 = vld [vmem:[%s2 + $0x150] sm:$0xff]
        %v395 = vld [vmem:[%s2 + $0x158] sm:$0xff]
        %v396 = vld [vmem:[%s2 + $0x160] sm:$0xff]
        %v397 = vld [vmem:[%s2 + $0x168] sm:$0xff]
        %v398 = vld [vmem:[%s2 + $0x170] sm:$0xff]
        %v399 = vld [vmem:[%s2 + $0x178] sm:$0xff]
        %v400 = vld [vmem:[%s2 + $0x180] sm:$0xff]
        %v401 = vld [vmem:[%s2 + $0x188] sm:$0xff]
        %v402 = vld [vmem:[%s2 + $0x190] sm:$0xff]
        %v403 = vld [vmem:[%s2 + $0x198] sm:$0xff]
        %v404 = vld [vmem:[%s2 + $0x1a0] sm:$0xff]
        %v405 = vld [vmem:[%s2 + $0x1a8] sm:$0xff]
        %v406 = vld [vmem:[%s2 + $0x1b0] sm:$0xff]
        %v407 = vld [vmem:[%s2 + $0x1b8] sm:$0xff]
        %v408 = vld [vmem:[%s2 + $0x1c0] sm:$0xff]
        %v409 = vld [vmem:[%s2 + $0x1c8] sm:$0xff]
        %v410 = vld [vmem:[%s2 + $0x1d0] sm:$0xff]
        %v411 = vld [vmem:[%s2 + $0x1d8] sm:$0xff]
        %v412 = vld [vmem:[%s2 + $0x1e0] sm:$0xff]
        %v413 = vld [vmem:[%s2 + $0x1e8] sm:$0xff]
        %v414 = vld [vmem:[%s2 + $0x1f0] sm:$0xff]
        %v415 = vld [vmem:[%s2 + $0x1f8] sm:$0xff]
        %v416 = vld [vmem:[%s3] sm:$0x1]
        %v418 = vlaneseq
        %v419 = vshrl.u32 %v418, 7
        %v420 = vsub.s32 0, %v419
        %v421 = vrot.slane %v416, %v420
        %423 = vmatprep.subr.mxu0 0.0
        %424 = vmatpush1.msra.mxu0 %v367
        %425 = vmatprep.subr.mxu0 0.0
        %426 = vmatpush1.msra.mxu0 %v366
        %427 = vmatprep.subr.mxu0 0.0
        %428 = vmatpush1.msra.mxu0 %v365
        %429 = vmatprep.subr.mxu0 0.0
        %430 = vmatpush1.msra.mxu0 %v364
        %431 = vmatprep.subr.mxu0 0.0
        %432 = vmatpush1.msra.mxu0 %v363
        %433 = vmatprep.subr.mxu0 0.0
        %434 = vmatpush1.msra.mxu0 %v362
        %435 = vmatprep.subr.mxu0 0.0
        %436 = vmatpush1.msra.mxu0 %v361
        %437 = vmatprep.subr.mxu0 0.0
        %438 = vmatpush1.msra.mxu0 %v360
        %439 = vmatprep.subr.mxu0 0.0
        %440 = vmatpush1.msra.mxu0 %v359
        %441 = vmatprep.subr.mxu0 0.0
        %442 = vmatpush1.msra.mxu0 %v358
        %443 = vmatprep.subr.mxu0 0.0
        %444 = vmatpush1.msra.mxu0 %v357
        %445 = vmatprep.subr.mxu0 0.0
        %446 = vmatpush1.msra.mxu0 %v356
        %447 = vmatprep.subr.mxu0 0.0
        %448 = vmatpush1.msra.mxu0 %v355
        %449 = vmatprep.subr.mxu0 0.0
        %450 = vmatpush1.msra.mxu0 %v354
        %451 = vmatprep.subr.mxu0 0.0
        %452 = vmatpush1.msra.mxu0 %v353
        %453 = vmatprep.subr.mxu0 0.0
        %454 = vmatpush1.msra.mxu0 %v352
        %455 = vmatprep.subr.mxu0 0.0
        %456 = vmatpush2.msra.mxu0 %v383
        %457 = vmatprep.subr.mxu0 0.0
        %458 = vmatpush2.msra.mxu0 %v382
        %459 = vmatprep.subr.mxu0 0.0
        %460 = vmatpush2.msra.mxu0 %v381
        %461 = vmatprep.subr.mxu0 0.0
        %462 = vmatpush2.msra.mxu0 %v380
        %463 = vmatprep.subr.mxu0 0.0
        %464 = vmatpush2.msra.mxu0 %v379
        %465 = vmatprep.subr.mxu0 0.0
        %466 = vmatpush2.msra.mxu0 %v378
        %467 = vmatprep.subr.mxu0 0.0
        %468 = vmatpush2.msra.mxu0 %v377
        %469 = vmatprep.subr.mxu0 0.0
        %470 = vmatpush2.msra.mxu0 %v376
        %471 = vmatprep.subr.mxu0 0.0
        %472 = vmatpush2.msra.mxu0 %v375
        %473 = vmatprep.subr.mxu0 0.0
        %474 = vmatpush2.msra.mxu0 %v374
        %475 = vmatprep.subr.mxu0 0.0
        %476 = vmatpush2.msra.mxu0 %v373
        %477 = vmatprep.subr.mxu0 0.0
        %478 = vmatpush2.msra.mxu0 %v372
        %479 = vmatprep.subr.mxu0 0.0
        %480 = vmatpush2.msra.mxu0 %v371
        %481 = vmatprep.subr.mxu0 0.0
        %482 = vmatpush2.msra.mxu0 %v370
        %483 = vmatprep.subr.mxu0 0.0
        %484 = vmatpush2.msra.mxu0 %v369
        %485 = vmatprep.subr.mxu0 0.0
        %486 = vmatpush2.msra.mxu0 %v368
        %487 = vmatprep.mubr.f32.mxu0 %v225
        %488 = vmatmul.mubr.f32.gmra.mxu0 %v224
        %v489 = vpop.f32.mrf.mxu0
        %v490 = vadd.f32 %v421, %v489
        %v491 = vpop.f32.mrf.mxu0
        %492 = vmatprep.mubr.f32.mxu0 %v229
        %493 = vmatmul.mubr.f32.gmra.mxu0 %v228
        %v494 = vpop.f32.mrf.mxu0
        %v495 = vadd.f32 %v421, %v494
        %v496 = vpop.f32.mrf.mxu0
        %497 = vmatprep.mubr.f32.mxu0 %v233
        %498 = vmatmul.mubr.f32.gmra.mxu0 %v232
        %v499 = vpop.f32.mrf.mxu0
        %v500 = vadd.f32 %v421, %v499
        %v501 = vpop.f32.mrf.mxu0
        %502 = vmatprep.mubr.f32.mxu0 %v237
        %503 = vmatmul.mubr.f32.gmra.mxu0 %v236
        %v504 = vpop.f32.mrf.mxu0
        %v505 = vadd.f32 %v421, %v504
        %v506 = vpop.f32.mrf.mxu0
        %507 = vmatprep.mubr.f32.mxu0 %v241
        %508 = vmatmul.mubr.f32.gmra.mxu0 %v240
        %v509 = vpop.f32.mrf.mxu0
        %v510 = vadd.f32 %v421, %v509
        %v511 = vpop.f32.mrf.mxu0
        %512 = vmatprep.mubr.f32.mxu0 %v245
        %513 = vmatmul.mubr.f32.gmra.mxu0 %v244
        %v514 = vpop.f32.mrf.mxu0
        %v515 = vadd.f32 %v421, %v514
        %v516 = vpop.f32.mrf.mxu0
        %517 = vmatprep.mubr.f32.mxu0 %v249
        %518 = vmatmul.mubr.f32.gmra.mxu0 %v248
        %v519 = vpop.f32.mrf.mxu0
        %v520 = vadd.f32 %v421, %v519
        %v521 = vpop.f32.mrf.mxu0
        %522 = vmatprep.mubr.f32.mxu0 %v253
        %523 = vmatmul.mubr.f32.gmra.mxu0 %v252
        %v524 = vpop.f32.mrf.mxu0
        %v525 = vadd.f32 %v421, %v524
        %v526 = vpop.f32.mrf.mxu0
        %527 = vmatprep.mubr.f32.mxu0 %v257
        %528 = vmatmul.mubr.f32.gmra.mxu0 %v256
        %v529 = vpop.f32.mrf.mxu0
        %v530 = vadd.f32 %v421, %v529
        %v531 = vpop.f32.mrf.mxu0
        %532 = vmatprep.mubr.f32.mxu0 %v261
        %533 = vmatmul.mubr.f32.gmra.mxu0 %v260
        %v534 = vpop.f32.mrf.mxu0
        %v535 = vadd.f32 %v421, %v534
        %v536 = vpop.f32.mrf.mxu0
        %537 = vmatprep.mubr.f32.mxu0 %v265
        %538 = vmatmul.mubr.f32.gmra.mxu0 %v264
        %v539 = vpop.f32.mrf.mxu0
        %v540 = vadd.f32 %v421, %v539
        %v541 = vpop.f32.mrf.mxu0
        %542 = vmatprep.mubr.f32.mxu0 %v269
        %543 = vmatmul.mubr.f32.gmra.mxu0 %v268
        %v544 = vpop.f32.mrf.mxu0
        %v545 = vadd.f32 %v421, %v544
        %v546 = vpop.f32.mrf.mxu0
        %547 = vmatprep.mubr.f32.mxu0 %v273
        %548 = vmatmul.mubr.f32.gmra.mxu0 %v272
        %v549 = vpop.f32.mrf.mxu0
        %v550 = vadd.f32 %v421, %v549
        %v551 = vpop.f32.mrf.mxu0
        %552 = vmatprep.mubr.f32.mxu0 %v277
        %553 = vmatmul.mubr.f32.gmra.mxu0 %v276
        %v554 = vpop.f32.mrf.mxu0
        %v555 = vadd.f32 %v421, %v554
        %v556 = vpop.f32.mrf.mxu0
        %557 = vmatprep.mubr.f32.mxu0 %v281
        %558 = vmatmul.mubr.f32.gmra.mxu0 %v280
        %v559 = vpop.f32.mrf.mxu0
        %v560 = vadd.f32 %v421, %v559
        %v561 = vpop.f32.mrf.mxu0
        %562 = vmatprep.mubr.f32.mxu0 %v285
        %563 = vmatmul.mubr.f32.gmra.mxu0 %v284
        %v564 = vpop.f32.mrf.mxu0
        %v565 = vadd.f32 %v421, %v564
        %v566 = vpop.f32.mrf.mxu0
        %567 = vmatprep.mubr.f32.mxu0 %v289
        %568 = vmatmul.mubr.f32.gmra.mxu0 %v288
        %v569 = vpop.f32.mrf.mxu0
        %v570 = vadd.f32 %v421, %v569
        %v571 = vpop.f32.mrf.mxu0
        %572 = vmatprep.mubr.f32.mxu0 %v293
        %573 = vmatmul.mubr.f32.gmra.mxu0 %v292
        %v574 = vpop.f32.mrf.mxu0
        %v575 = vadd.f32 %v421, %v574
        %v576 = vpop.f32.mrf.mxu0
        %577 = vmatprep.mubr.f32.mxu0 %v297
        %578 = vmatmul.mubr.f32.gmra.mxu0 %v296
        %v579 = vpop.f32.mrf.mxu0
        %v580 = vadd.f32 %v421, %v579
        %v581 = vpop.f32.mrf.mxu0
        %582 = vmatprep.mubr.f32.mxu0 %v301
        %583 = vmatmul.mubr.f32.gmra.mxu0 %v300
        %v584 = vpop.f32.mrf.mxu0
        %v585 = vadd.f32 %v421, %v584
        %v586 = vpop.f32.mrf.mxu0
        %587 = vmatprep.mubr.f32.mxu0 %v305
        %588 = vmatmul.mubr.f32.gmra.mxu0 %v304
        %v589 = vpop.f32.mrf.mxu0
        %v590 = vadd.f32 %v421, %v589
        %v591 = vpop.f32.mrf.mxu0
        %592 = vmatprep.mubr.f32.mxu0 %v309
        %593 = vmatmul.mubr.f32.gmra.mxu0 %v308
        %v594 = vpop.f32.mrf.mxu0
        %v595 = vadd.f32 %v421, %v594
        %v596 = vpop.f32.mrf.mxu0
        %597 = vmatprep.mubr.f32.mxu0 %v313
        %598 = vmatmul.mubr.f32.gmra.mxu0 %v312
        %v599 = vpop.f32.mrf.mxu0
        %v600 = vadd.f32 %v421, %v599
        %v601 = vpop.f32.mrf.mxu0
        %602 = vmatprep.mubr.f32.mxu0 %v317
        %603 = vmatmul.mubr.f32.gmra.mxu0 %v316
        %v604 = vpop.f32.mrf.mxu0
        %v605 = vadd.f32 %v421, %v604
        %v606 = vpop.f32.mrf.mxu0
        %607 = vmatprep.mubr.f32.mxu0 %v321
        %608 = vmatmul.mubr.f32.gmra.mxu0 %v320
        %v609 = vpop.f32.mrf.mxu0
        %v610 = vadd.f32 %v421, %v609
        %v611 = vpop.f32.mrf.mxu0
        %612 = vmatprep.mubr.f32.mxu0 %v325
        %613 = vmatmul.mubr.f32.gmra.mxu0 %v324
        %v614 = vpop.f32.mrf.mxu0
        %v615 = vadd.f32 %v421, %v614
        %v616 = vpop.f32.mrf.mxu0
        %617 = vmatprep.mubr.f32.mxu0 %v329
        %618 = vmatmul.mubr.f32.gmra.mxu0 %v328
        %v619 = vpop.f32.mrf.mxu0
        %v620 = vadd.f32 %v421, %v619
        %v621 = vpop.f32.mrf.mxu0
        %622 = vmatprep.mubr.f32.mxu0 %v333
        %623 = vmatmul.mubr.f32.gmra.mxu0 %v332
        %v624 = vpop.f32.mrf.mxu0
        %v625 = vadd.f32 %v421, %v624
        %v626 = vpop.f32.mrf.mxu0
        %627 = vmatprep.mubr.f32.mxu0 %v337
        %628 = vmatmul.mubr.f32.gmra.mxu0 %v336
        %v629 = vpop.f32.mrf.mxu0
        %v630 = vadd.f32 %v421, %v629
        %v631 = vpop.f32.mrf.mxu0
        %632 = vmatprep.mubr.f32.mxu0 %v341
        %633 = vmatmul.mubr.f32.gmra.mxu0 %v340
        %v634 = vpop.f32.mrf.mxu0
        %v635 = vadd.f32 %v421, %v634
        %v636 = vpop.f32.mrf.mxu0
        %637 = vmatprep.mubr.f32.mxu0 %v345
        %638 = vmatmul.mubr.f32.gmra.mxu0 %v344
        %v639 = vpop.f32.mrf.mxu0
        %v640 = vadd.f32 %v421, %v639
        %v641 = vpop.f32.mrf.mxu0
        %642 = vmatprep.mubr.f32.mxu0 %v349
        %643 = vmatmul.mubr.f32.gmra.mxu0 %v348
        %v644 = vpop.f32.mrf.mxu0
        %v645 = vadd.f32 %v421, %v644
        %v646 = vpop.f32.mrf.mxu0
        %647 = vdwg.mxu0
        %648 = vmatprep.subr.mxu0 0.0
        %649 = vmatpush1.msra.mxu0 %v399
        %650 = vmatprep.subr.mxu0 0.0
        %651 = vmatpush1.msra.mxu0 %v398
        %652 = vmatprep.subr.mxu0 0.0
        %653 = vmatpush1.msra.mxu0 %v397
        %654 = vmatprep.subr.mxu0 0.0
        %655 = vmatpush1.msra.mxu0 %v396
        %656 = vmatprep.subr.mxu0 0.0
        %657 = vmatpush1.msra.mxu0 %v395
        %658 = vmatprep.subr.mxu0 0.0
        %659 = vmatpush1.msra.mxu0 %v394
        %660 = vmatprep.subr.mxu0 0.0
        %661 = vmatpush1.msra.mxu0 %v393
        %662 = vmatprep.subr.mxu0 0.0
        %663 = vmatpush1.msra.mxu0 %v392
        %664 = vmatprep.subr.mxu0 0.0
        %665 = vmatpush1.msra.mxu0 %v391
        %666 = vmatprep.subr.mxu0 0.0
        %667 = vmatpush1.msra.mxu0 %v390
        %668 = vmatprep.subr.mxu0 0.0
        %669 = vmatpush1.msra.mxu0 %v389
        %670 = vmatprep.subr.mxu0 0.0
        %671 = vmatpush1.msra.mxu0 %v388
        %672 = vmatprep.subr.mxu0 0.0
        %673 = vmatpush1.msra.mxu0 %v387
        %674 = vmatprep.subr.mxu0 0.0
        %675 = vmatpush1.msra.mxu0 %v386
        %676 = vmatprep.subr.mxu0 0.0
        %677 = vmatpush1.msra.mxu0 %v385
        %678 = vmatprep.subr.mxu0 0.0
        %679 = vmatpush1.msra.mxu0 %v384
        %680 = vmatprep.subr.mxu0 0.0
        %681 = vmatpush2.msra.mxu0 %v415
        %682 = vmatprep.subr.mxu0 0.0
        %683 = vmatpush2.msra.mxu0 %v414
        %684 = vmatprep.subr.mxu0 0.0
        %685 = vmatpush2.msra.mxu0 %v413
        %686 = vmatprep.subr.mxu0 0.0
        %687 = vmatpush2.msra.mxu0 %v412
        %688 = vmatprep.subr.mxu0 0.0
        %689 = vmatpush2.msra.mxu0 %v411
        %690 = vmatprep.subr.mxu0 0.0
        %691 = vmatpush2.msra.mxu0 %v410
        %692 = vmatprep.subr.mxu0 0.0
        %693 = vmatpush2.msra.mxu0 %v409
        %694 = vmatprep.subr.mxu0 0.0
        %695 = vmatpush2.msra.mxu0 %v408
        %696 = vmatprep.subr.mxu0 0.0
        %697 = vmatpush2.msra.mxu0 %v407
        %698 = vmatprep.subr.mxu0 0.0
        %699 = vmatpush2.msra.mxu0 %v406
        %700 = vmatprep.subr.mxu0 0.0
        %701 = vmatpush2.msra.mxu0 %v405
        %702 = vmatprep.subr.mxu0 0.0
        %703 = vmatpush2.msra.mxu0 %v404
        %704 = vmatprep.subr.mxu0 0.0
        %705 = vmatpush2.msra.mxu0 %v403
        %706 = vmatprep.subr.mxu0 0.0
        %707 = vmatpush2.msra.mxu0 %v402
        %708 = vmatprep.subr.mxu0 0.0
        %709 = vmatpush2.msra.mxu0 %v401
        %710 = vmatprep.subr.mxu0 0.0
        %711 = vmatpush2.msra.mxu0 %v400
        %712 = vmatprep.mubr.f32.mxu0 %v227
        %713 = vmatmul.mubr.f32.gmra.mxu0 %v226
        %v714 = vpop.f32.mrf.mxu0
        %v715 = vadd.f32 %v490, %v714
        %v716 = vpop.f32.mrf.mxu0
        %717 = vmatprep.mubr.f32.mxu0 %v231
        %718 = vmatmul.mubr.f32.gmra.mxu0 %v230
        %v719 = vpop.f32.mrf.mxu0
        %v720 = vadd.f32 %v495, %v719
        %v721 = vpop.f32.mrf.mxu0
        %722 = vmatprep.mubr.f32.mxu0 %v235
        %723 = vmatmul.mubr.f32.gmra.mxu0 %v234
        %v724 = vpop.f32.mrf.mxu0
        %v725 = vadd.f32 %v500, %v724
        %v726 = vpop.f32.mrf.mxu0
        %727 = vmatprep.mubr.f32.mxu0 %v239
        %728 = vmatmul.mubr.f32.gmra.mxu0 %v238
        %v729 = vpop.f32.mrf.mxu0
        %v730 = vadd.f32 %v505, %v729
        %v731 = vpop.f32.mrf.mxu0
        %732 = vmatprep.mubr.f32.mxu0 %v243
        %733 = vmatmul.mubr.f32.gmra.mxu0 %v242
        %v734 = vpop.f32.mrf.mxu0
        %v735 = vadd.f32 %v510, %v734
        %v736 = vpop.f32.mrf.mxu0
        %737 = vmatprep.mubr.f32.mxu0 %v247
        %738 = vmatmul.mubr.f32.gmra.mxu0 %v246
        %v739 = vpop.f32.mrf.mxu0
        %v740 = vadd.f32 %v515, %v739
        %v741 = vpop.f32.mrf.mxu0
        %742 = vmatprep.mubr.f32.mxu0 %v251
        %743 = vmatmul.mubr.f32.gmra.mxu0 %v250
        %v744 = vpop.f32.mrf.mxu0
        %v745 = vadd.f32 %v520, %v744
        %v746 = vpop.f32.mrf.mxu0
        %747 = vmatprep.mubr.f32.mxu0 %v255
        %748 = vmatmul.mubr.f32.gmra.mxu0 %v254
        %v749 = vpop.f32.mrf.mxu0
        %v750 = vadd.f32 %v525, %v749
        %v751 = vpop.f32.mrf.mxu0
        %752 = vmatprep.mubr.f32.mxu0 %v259
        %753 = vmatmul.mubr.f32.gmra.mxu0 %v258
        %v754 = vpop.f32.mrf.mxu0
        %v755 = vadd.f32 %v530, %v754
        %v756 = vpop.f32.mrf.mxu0
        %757 = vmatprep.mubr.f32.mxu0 %v263
        %758 = vmatmul.mubr.f32.gmra.mxu0 %v262
        %v759 = vpop.f32.mrf.mxu0
        %v760 = vadd.f32 %v535, %v759
        %v761 = vpop.f32.mrf.mxu0
        %762 = vmatprep.mubr.f32.mxu0 %v267
        %763 = vmatmul.mubr.f32.gmra.mxu0 %v266
        %v764 = vpop.f32.mrf.mxu0
        %v765 = vadd.f32 %v540, %v764
        %v766 = vpop.f32.mrf.mxu0
        %767 = vmatprep.mubr.f32.mxu0 %v271
        %768 = vmatmul.mubr.f32.gmra.mxu0 %v270
        %v769 = vpop.f32.mrf.mxu0
        %v770 = vadd.f32 %v545, %v769
        %v771 = vpop.f32.mrf.mxu0
        %772 = vmatprep.mubr.f32.mxu0 %v275
        %773 = vmatmul.mubr.f32.gmra.mxu0 %v274
        %v774 = vpop.f32.mrf.mxu0
        %v775 = vadd.f32 %v550, %v774
        %v776 = vpop.f32.mrf.mxu0
        %777 = vmatprep.mubr.f32.mxu0 %v279
        %778 = vmatmul.mubr.f32.gmra.mxu0 %v278
        %v779 = vpop.f32.mrf.mxu0
        %v780 = vadd.f32 %v555, %v779
        %v781 = vpop.f32.mrf.mxu0
        %782 = vmatprep.mubr.f32.mxu0 %v283
        %783 = vmatmul.mubr.f32.gmra.mxu0 %v282
        %v784 = vpop.f32.mrf.mxu0
        %v785 = vadd.f32 %v560, %v784
        %v786 = vpop.f32.mrf.mxu0
        %787 = vmatprep.mubr.f32.mxu0 %v287
        %788 = vmatmul.mubr.f32.gmra.mxu0 %v286
        %v789 = vpop.f32.mrf.mxu0
        %v790 = vadd.f32 %v565, %v789
        %v791 = vpop.f32.mrf.mxu0
        %792 = vmatprep.mubr.f32.mxu0 %v291
        %793 = vmatmul.mubr.f32.gmra.mxu0 %v290
        %v794 = vpop.f32.mrf.mxu0
        %v795 = vadd.f32 %v570, %v794
        %v796 = vpop.f32.mrf.mxu0
        %797 = vmatprep.mubr.f32.mxu0 %v295
        %798 = vmatmul.mubr.f32.gmra.mxu0 %v294
        %v799 = vpop.f32.mrf.mxu0
        %v800 = vadd.f32 %v575, %v799
        %v801 = vpop.f32.mrf.mxu0
        %802 = vmatprep.mubr.f32.mxu0 %v299
        %803 = vmatmul.mubr.f32.gmra.mxu0 %v298
        %v804 = vpop.f32.mrf.mxu0
        %v805 = vadd.f32 %v580, %v804
        %v806 = vpop.f32.mrf.mxu0
        %807 = vmatprep.mubr.f32.mxu0 %v303
        %808 = vmatmul.mubr.f32.gmra.mxu0 %v302
        %v809 = vpop.f32.mrf.mxu0
        %v810 = vadd.f32 %v585, %v809
        %v811 = vpop.f32.mrf.mxu0
        %812 = vmatprep.mubr.f32.mxu0 %v307
        %813 = vmatmul.mubr.f32.gmra.mxu0 %v306
        %v814 = vpop.f32.mrf.mxu0
        %v815 = vadd.f32 %v590, %v814
        %v816 = vpop.f32.mrf.mxu0
        %817 = vmatprep.mubr.f32.mxu0 %v311
        %818 = vmatmul.mubr.f32.gmra.mxu0 %v310
        %v819 = vpop.f32.mrf.mxu0
        %v820 = vadd.f32 %v595, %v819
        %v821 = vpop.f32.mrf.mxu0
        %822 = vmatprep.mubr.f32.mxu0 %v315
        %823 = vmatmul.mubr.f32.gmra.mxu0 %v314
        %v824 = vpop.f32.mrf.mxu0
        %v825 = vadd.f32 %v600, %v824
        %v826 = vpop.f32.mrf.mxu0
        %827 = vmatprep.mubr.f32.mxu0 %v319
        %828 = vmatmul.mubr.f32.gmra.mxu0 %v318
        %v829 = vpop.f32.mrf.mxu0
        %v830 = vadd.f32 %v605, %v829
        %v831 = vpop.f32.mrf.mxu0
        %832 = vmatprep.mubr.f32.mxu0 %v323
        %833 = vmatmul.mubr.f32.gmra.mxu0 %v322
        %v834 = vpop.f32.mrf.mxu0
        %v835 = vadd.f32 %v610, %v834
        %v836 = vpop.f32.mrf.mxu0
        %837 = vmatprep.mubr.f32.mxu0 %v327
        %838 = vmatmul.mubr.f32.gmra.mxu0 %v326
        %v839 = vpop.f32.mrf.mxu0
        %v840 = vadd.f32 %v615, %v839
        %v841 = vpop.f32.mrf.mxu0
        %842 = vmatprep.mubr.f32.mxu0 %v331
        %843 = vmatmul.mubr.f32.gmra.mxu0 %v330
        %v844 = vpop.f32.mrf.mxu0
        %v845 = vadd.f32 %v620, %v844
        %v846 = vpop.f32.mrf.mxu0
        %847 = vmatprep.mubr.f32.mxu0 %v335
        %848 = vmatmul.mubr.f32.gmra.mxu0 %v334
        %v849 = vpop.f32.mrf.mxu0
        %v850 = vadd.f32 %v625, %v849
        %v851 = vpop.f32.mrf.mxu0
        %852 = vmatprep.mubr.f32.mxu0 %v339
        %853 = vmatmul.mubr.f32.gmra.mxu0 %v338
        %v854 = vpop.f32.mrf.mxu0
        %v855 = vadd.f32 %v630, %v854
        %v856 = vpop.f32.mrf.mxu0
        %857 = vmatprep.mubr.f32.mxu0 %v343
        %858 = vmatmul.mubr.f32.gmra.mxu0 %v342
        %v859 = vpop.f32.mrf.mxu0
        %v860 = vadd.f32 %v635, %v859
        %v861 = vpop.f32.mrf.mxu0
        %862 = vmatprep.mubr.f32.mxu0 %v347
        %863 = vmatmul.mubr.f32.gmra.mxu0 %v346
        %v864 = vpop.f32.mrf.mxu0
        %v865 = vadd.f32 %v640, %v864
        %v866 = vpop.f32.mrf.mxu0
        %867 = vmatprep.mubr.f32.mxu0 %v351
        %868 = vmatmul.mubr.f32.gmra.mxu0 %v350
        %v869 = vpop.f32.mrf.mxu0
        %v870 = vadd.f32 %v645, %v869
        %v871 = vpop.f32.mrf.mxu0
        %872 = vdwg.mxu0
        %v873 = vld [vmem:[%s221] sm:$0xff]
        %v874 = vld [vmem:[%s221 + $0x8] sm:$0xff]
        %v875 = vld [vmem:[%s221 + $0x10] sm:$0xff]
        %v876 = vld [vmem:[%s221 + $0x18] sm:$0xff]
        %v877 = vld [vmem:[%s221 + $0x20] sm:$0xff]
        %v878 = vld [vmem:[%s221 + $0x28] sm:$0xff]
        %v879 = vld [vmem:[%s221 + $0x30] sm:$0xff]
        %v880 = vld [vmem:[%s221 + $0x38] sm:$0xff]
        %v881 = vld [vmem:[%s221 + $0x40] sm:$0xff]
        %v882 = vld [vmem:[%s221 + $0x48] sm:$0xff]
        %v883 = vld [vmem:[%s221 + $0x50] sm:$0xff]
        %v884 = vld [vmem:[%s221 + $0x58] sm:$0xff]
        %v885 = vld [vmem:[%s221 + $0x60] sm:$0xff]
        %v886 = vld [vmem:[%s221 + $0x68] sm:$0xff]
        %v887 = vld [vmem:[%s221 + $0x70] sm:$0xff]
        %v888 = vld [vmem:[%s221 + $0x78] sm:$0xff]
        %v889 = vld [vmem:[%s221 + $0x80] sm:$0xff]
        %v890 = vld [vmem:[%s221 + $0x88] sm:$0xff]
        %v891 = vld [vmem:[%s221 + $0x90] sm:$0xff]
        %v892 = vld [vmem:[%s221 + $0x98] sm:$0xff]
        %v893 = vld [vmem:[%s221 + $0xa0] sm:$0xff]
        %v894 = vld [vmem:[%s221 + $0xa8] sm:$0xff]
        %v895 = vld [vmem:[%s221 + $0xb0] sm:$0xff]
        %v896 = vld [vmem:[%s221 + $0xb8] sm:$0xff]
        %v897 = vld [vmem:[%s221 + $0xc0] sm:$0xff]
        %v898 = vld [vmem:[%s221 + $0xc8] sm:$0xff]
        %v899 = vld [vmem:[%s221 + $0xd0] sm:$0xff]
        %v900 = vld [vmem:[%s221 + $0xd8] sm:$0xff]
        %v901 = vld [vmem:[%s221 + $0xe0] sm:$0xff]
        %v902 = vld [vmem:[%s221 + $0xe8] sm:$0xff]
        %v903 = vld [vmem:[%s221 + $0xf0] sm:$0xff]
        %v904 = vld [vmem:[%s221 + $0xf8] sm:$0xff]
        %v905 = vadd.f32 %v873, %v715
        %v906 = vadd.f32 %v874, %v720
        %v907 = vadd.f32 %v875, %v725
        %v908 = vadd.f32 %v876, %v730
        %v909 = vadd.f32 %v877, %v735
        %v910 = vadd.f32 %v878, %v740
        %v911 = vadd.f32 %v879, %v745
        %v912 = vadd.f32 %v880, %v750
        %v913 = vadd.f32 %v881, %v755
        %v914 = vadd.f32 %v882, %v760
        %v915 = vadd.f32 %v883, %v765
        %v916 = vadd.f32 %v884, %v770
        %v917 = vadd.f32 %v885, %v775
        %v918 = vadd.f32 %v886, %v780
        %v919 = vadd.f32 %v887, %v785
        %v920 = vadd.f32 %v888, %v790
        %v921 = vadd.f32 %v889, %v795
        %v922 = vadd.f32 %v890, %v800
        %v923 = vadd.f32 %v891, %v805
        %v924 = vadd.f32 %v892, %v810
        %v925 = vadd.f32 %v893, %v815
        %v926 = vadd.f32 %v894, %v820
        %v927 = vadd.f32 %v895, %v825
        %v928 = vadd.f32 %v896, %v830
        %v929 = vadd.f32 %v897, %v835
        %v930 = vadd.f32 %v898, %v840
        %v931 = vadd.f32 %v899, %v845
        %v932 = vadd.f32 %v900, %v850
        %v933 = vadd.f32 %v901, %v855
        %v934 = vadd.f32 %v902, %v860
        %v935 = vadd.f32 %v903, %v865
        %v936 = vadd.f32 %v904, %v870
        %937 = vst [vmem:[%s209] sm:$0xff] %v905
        %938 = vst [vmem:[%s209 + $0x8] sm:$0xff] %v906
        %939 = vst [vmem:[%s209 + $0x10] sm:$0xff] %v907
        %940 = vst [vmem:[%s209 + $0x18] sm:$0xff] %v908
        %941 = vst [vmem:[%s209 + $0x20] sm:$0xff] %v909
        %942 = vst [vmem:[%s209 + $0x28] sm:$0xff] %v910
        %943 = vst [vmem:[%s209 + $0x30] sm:$0xff] %v911
        %944 = vst [vmem:[%s209 + $0x38] sm:$0xff] %v912
        %945 = vst [vmem:[%s209 + $0x40] sm:$0xff] %v913
        %946 = vst [vmem:[%s209 + $0x48] sm:$0xff] %v914
        %947 = vst [vmem:[%s209 + $0x50] sm:$0xff] %v915
        %948 = vst [vmem:[%s209 + $0x58] sm:$0xff] %v916
        %949 = vst [vmem:[%s209 + $0x60] sm:$0xff] %v917
        %950 = vst [vmem:[%s209 + $0x68] sm:$0xff] %v918
        %951 = vst [vmem:[%s209 + $0x70] sm:$0xff] %v919
        %952 = vst [vmem:[%s209 + $0x78] sm:$0xff] %v920
        %953 = vst [vmem:[%s209 + $0x80] sm:$0xff] %v921
        %954 = vst [vmem:[%s209 + $0x88] sm:$0xff] %v922
        %955 = vst [vmem:[%s209 + $0x90] sm:$0xff] %v923
        %956 = vst [vmem:[%s209 + $0x98] sm:$0xff] %v924
        %957 = vst [vmem:[%s209 + $0xa0] sm:$0xff] %v925
        %958 = vst [vmem:[%s209 + $0xa8] sm:$0xff] %v926
        %959 = vst [vmem:[%s209 + $0xb0] sm:$0xff] %v927
        %960 = vst [vmem:[%s209 + $0xb8] sm:$0xff] %v928
        %961 = vst [vmem:[%s209 + $0xc0] sm:$0xff] %v929
        %962 = vst [vmem:[%s209 + $0xc8] sm:$0xff] %v930
        %963 = vst [vmem:[%s209 + $0xd0] sm:$0xff] %v931
        %964 = vst [vmem:[%s209 + $0xd8] sm:$0xff] %v932
        %965 = vst [vmem:[%s209 + $0xe0] sm:$0xff] %v933
        %966 = vst [vmem:[%s209 + $0xe8] sm:$0xff] %v934
        %967 = vst [vmem:[%s209 + $0xf0] sm:$0xff] %v935
        %968 = vst [vmem:[%s209 + $0xf8] sm:$0xff] %v936
        %s969 = sand.u32 %s120, 1
        %s970 = scalar_lea.sflag [#allocation3], %s969
        %s971 = sand.u32 %s120, 1
        %s972 = smul.addr %s971, 256
        %s973 = scalar_lea.vmem [#allocation2], %s972
        // Predicated region
        $region37: #{_lambda_.9} parent=35 // pred_check
          %p974 = pneg %p130
        $region38: #{_lambda_.9} parent=35 // pred_check_branch
          %976 = sbr.rel (%p974) target = $region40
        $region39: #{_lambda_.9} parent=35 // pred_region
          %s977 = smul.u32 32, %s18
          %s979 = ssub.s32 4096, 4096
          %980 = vsyncadd %s970, %s979
          %s981 = smul.addr %s977, 128
          %s982 = scalar_lea.hbm %s4, %s981
          %s983 = sshll.u32 %s973, 4
          %s984 = int_to_ptr.vmem [resolvable:$true] %s983
          %989 = dma.vmem_to_hbm [thread:$0]  %s984, 4096, %s982, %s970, 128, 128, 8
        $region40: #{_lambda_.9} parent=35 // pred_fallthru
          _
      $region36: #{_lambda_.9} parent=5 // pred_fallthru
        _
      %p990 = scmp.le.s32.totalorder 2, %s13
      // Predicated region
      $region41: #{_lambda_.9} parent=5 // pred_check
        %p991 = pneg %p990
      $region42: #{_lambda_.9} parent=5 // pred_check_branch
        %993 = sbr.rel (%p991) target = $region44
      $region43: #{_lambda_.9} parent=5 // pred_region
        %s994 = ssub.s32 %s13, 2
        // Predicated region
        $region45: #{_lambda_.9} parent=43 // pred_check
          %p995 = pneg %p136
        $region46: #{_lambda_.9} parent=43 // pred_check_branch
          %997 = sbr.rel (%p995) target = $region48
        $region47: #{_lambda_.9} parent=43 // pred_region
          %s998 = sand.u32 %s121, 1
          %s999 = scalar_lea.sflag [#allocation3], %s998
          %s1000 = sand.u32 %s121, 1
          %s1001 = smul.addr %s1000, 256
          %s1002 = scalar_lea.vmem [#allocation2], %s1001
          %1003 = dma.done %s999, 4096
        $region48: #{_lambda_.9} parent=43 // pred_fallthru
          _
      $region44: #{_lambda_.9} parent=5 // pred_fallthru
        _
    $region6: #{_lambda_.9} parent=1 // loop_footer
      %s17 = sadd.s32 1, %s13
    $region7: #{_lambda_.9} parent=1 // loop_footer_branch
      %12 = sbr.rel target = $region3
    $region8: #{_lambda_.9} parent=1 // loop_exit
      _
    %1004 = vsyncpa [#allocation3], 1
    %s1005 = scalar_lea.sflag [#allocation3], 1
    %1006 = vsyncpa %s1005, 1

// kernel: _lambda_.6
$region0: #{_lambda_.6}
  #allocation0 [shape = 'u32[]', space=smem, size = 0x4, offset = 0x4, fixed_abs, tag = 'smem constant byte address 0x4 - core index']
  #allocation1 [shape = 'u32[144,128]{1,0:T(1,128)}', space=vmem, size = 0x12000, scoped, tag = 'internal scratch']
  %s0 = inlined_call_operand.vmem [shape: f32[2,256,128], index: 0, kind: input, shape index: {}]
  %s1 = inlined_call_operand.vmem [shape: f32[64,256], index: 1, kind: input, shape index: {}]
  %s2 = inlined_call_operand.vmem [shape: f32[9,128], index: 2, kind: input, shape index: {}]
  %s3 = inlined_call_operand.vmem [shape: f32[128,128], index: 3, kind: input, shape index: {}]
  %s4 = inlined_call_operand.vmem [shape: f32[128,256], index: 4, kind: input, shape index: {}]
  %s5 = inlined_call_operand.vmem [shape: f32[1,256], index: 5, kind: input, shape index: {}]
  %s6 = inlined_call_operand.vmem [shape: f32[128,128], index: 6, kind: input, shape index: {}]
  %s7 = inlined_call_operand.vmem [shape: f32[128,128], index: 7, kind: input, shape index: {}]
  %s8 = inlined_call_operand.vmem [shape: f32[128,512], index: 8, kind: input, shape index: {}]
  %s9 = inlined_call_operand.vmem [shape: f32[1,512], index: 9, kind: input, shape index: {}]
  %s10 = inlined_call_operand.vmem [shape: f32[2,256,128], index: 10, kind: output, shape index: {0}]
  %s11 = inlined_call_operand.vmem [shape: f32[2,256,512], index: 11, kind: output, shape index: {1}]
  %12 = xla_tuple %s10, %s11
  %s13 = sld [smem:[#allocation0]]
  $region81: #{_lambda_.6} parent=0
    _
  %s15 = ssub.s32 1, %s13
  %s16 = scalar_select 0, %s15, %s13
  loop: start=0, step=1, limit=4
  $region2: #{_lambda_.6} parent=0 // loop_pre_header
    _
  $region3: #{_lambda_.6} parent=0 // loop_header
    %s18 = sphi 0, %s22
    %p19 = scmp.ge.s32.totalorder %s18, 4
    %s28 = sphi 0, %s30
    %s31 = sphi 0, %s28
    %s32 = sphi 0, %s31
    %s48 = sphi 0, %s32
    %s52 = sphi 0, %s52
    %s54 = sphi 0, %s52
    %s55 = sphi 0, %s54
    %s69 = sphi 0, %s55
    %s73 = sphi 0, %s73
    %s75 = sphi 0, %s73
    %s76 = sphi 0, %s75
    %s90 = sphi 0, %s76
    %s94 = sphi 0, %s94
    %s96 = sphi 0, %s94
    %s97 = sphi 0, %s96
    %s111 = sphi 0, %s97
    %s115 = sphi 0, %s115
    %s117 = sphi 0, %s115
    %s118 = sphi 0, %s117
    %s132 = sphi 0, %s118
    %s136 = sphi 0, %s136
    %s138 = sphi 0, %s136
    %s139 = sphi 0, %s138
    %s153 = sphi 0, %s139
    %s157 = sphi 0, %s157
    %s159 = sphi 0, %s157
    %s160 = sphi 0, %s159
    %s174 = sphi 0, %s160
    %s178 = sphi 0, %s178
    %s180 = sphi 0, %s178
    %s181 = sphi 0, %s180
    %s195 = sphi 0, %s181
    %s199 = sphi 0, %s199
    %s201 = sphi 0, %s199
    %s202 = sphi 0, %s201
    %s216 = sphi 0, %s202
    %s220 = sphi 0, %s220
    %s222 = sphi 0, %s220
    %s223 = sphi 0, %s222
    %s237 = sphi 0, %s223
    %s243 = sphi 0, %s245
    %s246 = sphi 0, %s243
    %s247 = sphi 0, %s246
    %s263 = sphi 0, %s247
    %s269 = sphi 0, %s271
    %s272 = sphi 0, %s269
    %s273 = sphi 0, %s272
    %s289 = sphi 0, %s273
  $region4: #{_lambda_.6} parent=0 // loop_header_branch
    %21 = sbr.rel (%p19) target = $region8
  $region5: #{_lambda_.6} parent=0 // loop_body
    %s23 = ssub.s32 %s18, 1
    %s24 = ssub.s32 %s18, 2
    %s25 = sadd.s32 %s18, 1
    %s26 = ssub.s32 %s18, %s25
    %p27 = scmp.eq.s32.totalorder %s26, 0
    %s29 = sadd.s32 %s28, 1
    %s30 = scalar_select %p27, %s28, %s29
    %p33 = pneg %p27
    %p34 = scmp.eq.s32.totalorder %s18, 1
    %p35 = por %p33, %p34
    %p36 = scmp.ne.s32.totalorder %s28, %s31
    %p37 = scmp.eq.s32.totalorder %s18, 0
    %p38 = por %p36, %p37
    %p39 = scmp.ne.s32.totalorder %s28, %s31
    %p40 = scmp.eq.s32.totalorder %s23, 1
    %p41 = por %p39, %p40
    %p42 = scmp.ne.s32.totalorder %s31, %s32
    %p43 = scmp.eq.s32.totalorder %s23, 0
    %p44 = por %p42, %p43
    %p45 = scmp.ne.s32.totalorder %s31, %s32
    %p46 = scmp.eq.s32.totalorder %s24, 1
    %p47 = por %p45, %p46
    %p49 = scmp.ne.s32.totalorder %s32, %s48
    %p50 = scmp.eq.s32.totalorder %s24, 0
    %p51 = por %p49, %p50
    %s53 = sadd.s32 %s52, 1
    %p56 = scmp.eq.s32.totalorder %s18, 1
    %p57 = scmp.ne.s32.totalorder %s52, %s54
    %p58 = scmp.eq.s32.totalorder %s18, 0
    %p59 = por %p57, %p58
    %p60 = scmp.ne.s32.totalorder %s52, %s54
    %p61 = scmp.eq.s32.totalorder %s23, 1
    %p62 = por %p60, %p61
    %p63 = scmp.ne.s32.totalorder %s54, %s55
    %p64 = scmp.eq.s32.totalorder %s23, 0
    %p65 = por %p63, %p64
    %p66 = scmp.ne.s32.totalorder %s54, %s55
    %p67 = scmp.eq.s32.totalorder %s24, 1
    %p68 = por %p66, %p67
    %p70 = scmp.ne.s32.totalorder %s55, %s69
    %p71 = scmp.eq.s32.totalorder %s24, 0
    %p72 = por %p70, %p71
    %s74 = sadd.s32 %s73, 1
    %p77 = scmp.eq.s32.totalorder %s18, 1
    %p78 = scmp.ne.s32.totalorder %s73, %s75
    %p79 = scmp.eq.s32.totalorder %s18, 0
    %p80 = por %p78, %p79
    %p81 = scmp.ne.s32.totalorder %s73, %s75
    %p82 = scmp.eq.s32.totalorder %s23, 1
    %p83 = por %p81, %p82
    %p84 = scmp.ne.s32.totalorder %s75, %s76
    %p85 = scmp.eq.s32.totalorder %s23, 0
    %p86 = por %p84, %p85
    %p87 = scmp.ne.s32.totalorder %s75, %s76
    %p88 = scmp.eq.s32.totalorder %s24, 1
    %p89 = por %p87, %p88
    %p91 = scmp.ne.s32.totalorder %s76, %s90
    %p92 = scmp.eq.s32.totalorder %s24, 0
    %p93 = por %p91, %p92
    %s95 = sadd.s32 %s94, 1
    %p98 = scmp.eq.s32.totalorder %s18, 1
    %p99 = scmp.ne.s32.totalorder %s94, %s96
    %p100 = scmp.eq.s32.totalorder %s18, 0
    %p101 = por %p99, %p100
    %p102 = scmp.ne.s32.totalorder %s94, %s96
    %p103 = scmp.eq.s32.totalorder %s23, 1
    %p104 = por %p102, %p103
    %p105 = scmp.ne.s32.totalorder %s96, %s97
    %p106 = scmp.eq.s32.totalorder %s23, 0
    %p107 = por %p105, %p106
    %p108 = scmp.ne.s32.totalorder %s96, %s97
    %p109 = scmp.eq.s32.totalorder %s24, 1
    %p110 = por %p108, %p109
    %p112 = scmp.ne.s32.totalorder %s97, %s111
    %p113 = scmp.eq.s32.totalorder %s24, 0
    %p114 = por %p112, %p113
    %s116 = sadd.s32 %s115, 1
    %p119 = scmp.eq.s32.totalorder %s18, 1
    %p120 = scmp.ne.s32.totalorder %s115, %s117
    %p121 = scmp.eq.s32.totalorder %s18, 0
    %p122 = por %p120, %p121
    %p123 = scmp.ne.s32.totalorder %s115, %s117
    %p124 = scmp.eq.s32.totalorder %s23, 1
    %p125 = por %p123, %p124
    %p126 = scmp.ne.s32.totalorder %s117, %s118
    %p127 = scmp.eq.s32.totalorder %s23, 0
    %p128 = por %p126, %p127
    %p129 = scmp.ne.s32.totalorder %s117, %s118
    %p130 = scmp.eq.s32.totalorder %s24, 1
    %p131 = por %p129, %p130
    %p133 = scmp.ne.s32.totalorder %s118, %s132
    %p134 = scmp.eq.s32.totalorder %s24, 0
    %p135 = por %p133, %p134
    %s137 = sadd.s32 %s136, 1
    %p140 = scmp.eq.s32.totalorder %s18, 1
    %p141 = scmp.ne.s32.totalorder %s136, %s138
    %p142 = scmp.eq.s32.totalorder %s18, 0
    %p143 = por %p141, %p142
    %p144 = scmp.ne.s32.totalorder %s136, %s138
    %p145 = scmp.eq.s32.totalorder %s23, 1
    %p146 = por %p144, %p145
    %p147 = scmp.ne.s32.totalorder %s138, %s139
    %p148 = scmp.eq.s32.totalorder %s23, 0
    %p149 = por %p147, %p148
    %p150 = scmp.ne.s32.totalorder %s138, %s139
    %p151 = scmp.eq.s32.totalorder %s24, 1
    %p152 = por %p150, %p151
    %p154 = scmp.ne.s32.totalorder %s139, %s153
    %p155 = scmp.eq.s32.totalorder %s24, 0
    %p156 = por %p154, %p155
    %s158 = sadd.s32 %s157, 1
    %p161 = scmp.eq.s32.totalorder %s18, 1
    %p162 = scmp.ne.s32.totalorder %s157, %s159
    %p163 = scmp.eq.s32.totalorder %s18, 0
    %p164 = por %p162, %p163
    %p165 = scmp.ne.s32.totalorder %s157, %s159
    %p166 = scmp.eq.s32.totalorder %s23, 1
    %p167 = por %p165, %p166
    %p168 = scmp.ne.s32.totalorder %s159, %s160
    %p169 = scmp.eq.s32.totalorder %s23, 0
    %p170 = por %p168, %p169
    %p171 = scmp.ne.s32.totalorder %s159, %s160
    %p172 = scmp.eq.s32.totalorder %s24, 1
    %p173 = por %p171, %p172
    %p175 = scmp.ne.s32.totalorder %s160, %s174
    %p176 = scmp.eq.s32.totalorder %s24, 0
    %p177 = por %p175, %p176
    %s179 = sadd.s32 %s178, 1
    %p182 = scmp.eq.s32.totalorder %s18, 1
    %p183 = scmp.ne.s32.totalorder %s178, %s180
    %p184 = scmp.eq.s32.totalorder %s18, 0
    %p185 = por %p183, %p184
    %p186 = scmp.ne.s32.totalorder %s178, %s180
    %p187 = scmp.eq.s32.totalorder %s23, 1
    %p188 = por %p186, %p187
    %p189 = scmp.ne.s32.totalorder %s180, %s181
    %p190 = scmp.eq.s32.totalorder %s23, 0
    %p191 = por %p189, %p190
    %p192 = scmp.ne.s32.totalorder %s180, %s181
    %p193 = scmp.eq.s32.totalorder %s24, 1
    %p194 = por %p192, %p193
    %p196 = scmp.ne.s32.totalorder %s181, %s195
    %p197 = scmp.eq.s32.totalorder %s24, 0
    %p198 = por %p196, %p197
    %s200 = sadd.s32 %s199, 1
    %p203 = scmp.eq.s32.totalorder %s18, 1
    %p204 = scmp.ne.s32.totalorder %s199, %s201
    %p205 = scmp.eq.s32.totalorder %s18, 0
    %p206 = por %p204, %p205
    %p207 = scmp.ne.s32.totalorder %s199, %s201
    %p208 = scmp.eq.s32.totalorder %s23, 1
    %p209 = por %p207, %p208
    %p210 = scmp.ne.s32.totalorder %s201, %s202
    %p211 = scmp.eq.s32.totalorder %s23, 0
    %p212 = por %p210, %p211
    %p213 = scmp.ne.s32.totalorder %s201, %s202
    %p214 = scmp.eq.s32.totalorder %s24, 1
    %p215 = por %p213, %p214
    %p217 = scmp.ne.s32.totalorder %s202, %s216
    %p218 = scmp.eq.s32.totalorder %s24, 0
    %p219 = por %p217, %p218
    %s221 = sadd.s32 %s220, 1
    %p224 = scmp.eq.s32.totalorder %s18, 1
    %p225 = scmp.ne.s32.totalorder %s220, %s222
    %p226 = scmp.eq.s32.totalorder %s18, 0
    %p227 = por %p225, %p226
    %p228 = scmp.ne.s32.totalorder %s220, %s222
    %p229 = scmp.eq.s32.totalorder %s23, 1
    %p230 = por %p228, %p229
    %p231 = scmp.ne.s32.totalorder %s222, %s223
    %p232 = scmp.eq.s32.totalorder %s23, 0
    %p233 = por %p231, %p232
    %p234 = scmp.ne.s32.totalorder %s222, %s223
    %p235 = scmp.eq.s32.totalorder %s24, 1
    %p236 = por %p234, %p235
    %p238 = scmp.ne.s32.totalorder %s223, %s237
    %p239 = scmp.eq.s32.totalorder %s24, 0
    %p240 = por %p238, %p239
    %s241 = ssub.s32 %s18, %s25
    %p242 = scmp.eq.s32.totalorder %s241, 0
    %s244 = sadd.s32 %s243, 1
    %s245 = scalar_select %p242, %s243, %s244
    %p248 = pneg %p242
    %p249 = scmp.eq.s32.totalorder %s18, 1
    %p250 = por %p248, %p249
    %p251 = scmp.ne.s32.totalorder %s243, %s246
    %p252 = scmp.eq.s32.totalorder %s18, 0
    %p253 = por %p251, %p252
    %p254 = scmp.ne.s32.totalorder %s243, %s246
    %p255 = scmp.eq.s32.totalorder %s23, 1
    %p256 = por %p254, %p255
    %p257 = scmp.ne.s32.totalorder %s246, %s247
    %p258 = scmp.eq.s32.totalorder %s23, 0
    %p259 = por %p257, %p258
    %p260 = scmp.ne.s32.totalorder %s246, %s247
    %p261 = scmp.eq.s32.totalorder %s24, 1
    %p262 = por %p260, %p261
    %p264 = scmp.ne.s32.totalorder %s247, %s263
    %p265 = scmp.eq.s32.totalorder %s24, 0
    %p266 = por %p264, %p265
    %s267 = ssub.s32 %s18, %s25
    %p268 = scmp.eq.s32.totalorder %s267, 0
    %s270 = sadd.s32 %s269, 1
    %s271 = scalar_select %p268, %s269, %s270
    %p274 = pneg %p268
    %p275 = scmp.eq.s32.totalorder %s18, 1
    %p276 = por %p274, %p275
    %p277 = scmp.ne.s32.totalorder %s269, %s272
    %p278 = scmp.eq.s32.totalorder %s18, 0
    %p279 = por %p277, %p278
    %p280 = scmp.ne.s32.totalorder %s269, %s272
    %p281 = scmp.eq.s32.totalorder %s23, 1
    %p282 = por %p280, %p281
    %p283 = scmp.ne.s32.totalorder %s272, %s273
    %p284 = scmp.eq.s32.totalorder %s23, 0
    %p285 = por %p283, %p284
    %p286 = scmp.ne.s32.totalorder %s272, %s273
    %p287 = scmp.eq.s32.totalorder %s24, 1
    %p288 = por %p286, %p287
    %p290 = scmp.ne.s32.totalorder %s273, %s289
    %p291 = scmp.eq.s32.totalorder %s24, 0
    %p292 = por %p290, %p291
    %p293 = scmp.le.s32.totalorder 1, %s18
    %p294 = scmp.lt.s32.totalorder %s18, 3
    %p295 = pnand %p293, %p294
    %p296 = pneg %p295
    // Predicated region
    $region9: #{_lambda_.6} parent=5 // pred_check
      _
    $region10: #{_lambda_.6} parent=5 // pred_check_branch
      %298 = sbr.rel (%p295) target = $region12
    $region11: #{_lambda_.6} parent=5 // pred_region
      %s299 = ssub.s32 %s18, 1
      // Predicated region
      $region13: #{_lambda_.6} parent=11 // pred_check
        %p300 = pneg %p65
      $region14: #{_lambda_.6} parent=11 // pred_check_branch
        %302 = sbr.rel (%p300) target = $region16
      $region15: #{_lambda_.6} parent=11 // pred_region
        _
      $region16: #{_lambda_.6} parent=11 // pred_fallthru
        _
      // Predicated region
      $region17: #{_lambda_.6} parent=11 // pred_check
        %p303 = pneg %p86
      $region18: #{_lambda_.6} parent=11 // pred_check_branch
        %305 = sbr.rel (%p303) target = $region20
      $region19: #{_lambda_.6} parent=11 // pred_region
        _
      $region20: #{_lambda_.6} parent=11 // pred_fallthru
        _
      // Predicated region
      $region21: #{_lambda_.6} parent=11 // pred_check
        %p306 = pneg %p107
      $region22: #{_lambda_.6} parent=11 // pred_check_branch
        %308 = sbr.rel (%p306) target = $region24
      $region23: #{_lambda_.6} parent=11 // pred_region
        _
      $region24: #{_lambda_.6} parent=11 // pred_fallthru
        _
      // Predicated region
      $region25: #{_lambda_.6} parent=11 // pred_check
        %p309 = pneg %p128
      $region26: #{_lambda_.6} parent=11 // pred_check_branch
        %311 = sbr.rel (%p309) target = $region28
      $region27: #{_lambda_.6} parent=11 // pred_region
        _
      $region28: #{_lambda_.6} parent=11 // pred_fallthru
        _
      // Predicated region
      $region29: #{_lambda_.6} parent=11 // pred_check
        %p312 = pneg %p149
      $region30: #{_lambda_.6} parent=11 // pred_check_branch
        %314 = sbr.rel (%p312) target = $region32
      $region31: #{_lambda_.6} parent=11 // pred_region
        _
      $region32: #{_lambda_.6} parent=11 // pred_fallthru
        _
      // Predicated region
      $region33: #{_lambda_.6} parent=11 // pred_check
        %p315 = pneg %p170
      $region34: #{_lambda_.6} parent=11 // pred_check_branch
        %317 = sbr.rel (%p315) target = $region36
      $region35: #{_lambda_.6} parent=11 // pred_region
        _
      $region36: #{_lambda_.6} parent=11 // pred_fallthru
        _
      // Predicated region
      $region37: #{_lambda_.6} parent=11 // pred_check
        %p318 = pneg %p191
      $region38: #{_lambda_.6} parent=11 // pred_check_branch
        %320 = sbr.rel (%p318) target = $region40
      $region39: #{_lambda_.6} parent=11 // pred_region
        _
      $region40: #{_lambda_.6} parent=11 // pred_fallthru
        _
      // Predicated region
      $region41: #{_lambda_.6} parent=11 // pred_check
        %p321 = pneg %p212
      $region42: #{_lambda_.6} parent=11 // pred_check_branch
        %323 = sbr.rel (%p321) target = $region44
      $region43: #{_lambda_.6} parent=11 // pred_region
        _
      $region44: #{_lambda_.6} parent=11 // pred_fallthru
        _
      // Predicated region
      $region45: #{_lambda_.6} parent=11 // pred_check
        %p324 = pneg %p233
      $region46: #{_lambda_.6} parent=11 // pred_check_branch
        %326 = sbr.rel (%p324) target = $region48
      $region47: #{_lambda_.6} parent=11 // pred_region
        _
      $region48: #{_lambda_.6} parent=11 // pred_fallthru
        _
    $region12: #{_lambda_.6} parent=5 // pred_fallthru
      _
    %p327 = scmp.lt.s32.totalorder %s18, 2
    // Predicated region
    $region49: #{_lambda_.6} parent=5 // pred_check
      %p328 = pneg %p327
    $region50: #{_lambda_.6} parent=5 // pred_check_branch
      %330 = sbr.rel (%p328) target = $region52
    $region51: #{_lambda_.6} parent=5 // pred_region
      // Predicated region
      $region53: #{_lambda_.6} parent=51 // pred_check
        %p331 = pneg %p38
      $region54: #{_lambda_.6} parent=51 // pred_check_branch
        %333 = sbr.rel (%p331) target = $region56
      $region55: #{_lambda_.6} parent=51 // pred_region
        %p334 = scmp.lt.s32.totalorder %s18, 1
        %s335 = scalar_select %p334, %s18, 1
        %s336 = smul.addr %s335, 32
        %s337 = smul.addr %s336, 8
        %s338 = scalar_lea.vmem %s0, %s337
      $region56: #{_lambda_.6} parent=51 // pred_fallthru
        _
    $region52: #{_lambda_.6} parent=5 // pred_fallthru
      _
    %p339 = scmp.le.s32.totalorder 1, %s18
    %p340 = scmp.lt.s32.totalorder %s18, 3
    %p341 = pnand %p339, %p340
    %p342 = pneg %p341
    // Predicated region
    $region57: #{_lambda_.6} parent=5 // pred_check
      _
    $region58: #{_lambda_.6} parent=5 // pred_check_branch
      %344 = sbr.rel (%p341) target = $region60
    $region59: #{_lambda_.6} parent=5 // pred_region
      %s345 = ssub.s32 %s18, 1
      %p346 = scmp.lt.s32.totalorder %s23, 1
      %s347 = scalar_select %p346, %s23, 1
      %s348 = smul.addr %s347, 32
      %s349 = smul.addr %s348, 8
      %s350 = scalar_lea.vmem %s0, %s349
      %p351 = pneg %p44
      %p352 = pneg %p41
      %p353 = pneg %p65
      %p354 = pneg %p62
      %p355 = pneg %p86
      %p356 = pneg %p83
      %p357 = pneg %p107
      %p358 = pneg %p104
      %p359 = pneg %p128
      %p360 = pneg %p125
      %p361 = pneg %p149
      %p362 = pneg %p146
      %p363 = pneg %p170
      %p364 = pneg %p167
      %p365 = pneg %p191
      %p366 = pneg %p188
      %p367 = pneg %p212
      %p368 = pneg %p209
      %p369 = pneg %p233
      %p370 = pneg %p230
      %p371 = pneg %p259
      %p372 = pneg %p256
      %p373 = scmp.lt.s32.totalorder %s23, 1
      %s374 = scalar_select %p373, %s23, 1
      %s375 = smul.addr %s374, 32
      %s376 = smul.addr %s375, 8
      %s377 = scalar_lea.vmem %s10, %s376
      %p378 = pneg %p285
      %p379 = pneg %p282
      %p380 = scmp.lt.s32.totalorder %s23, 1
      %s381 = scalar_select %p380, %s23, 1
      %s382 = smul.addr %s381, 128
      %s383 = smul.addr %s382, 8
      %s384 = scalar_lea.vmem %s11, %s383
      %p385 = scmp.lt.s32.totalorder %s23, 1
      %s386 = scalar_select %p385, %s23, 1
      %s387 = smul.addr %s386, 32
      %s388 = smul.addr %s387, 8
      %s389 = scalar_lea.vmem %s0, %s388
      %p390 = scmp.lt.s32.totalorder %s23, 1
      %s391 = scalar_select %p390, %s23, 1
      %s392 = smul.addr %s391, 32
      %s393 = smul.addr %s392, 8
      %s394 = scalar_lea.vmem %s10, %s393
      %p395 = scmp.lt.s32.totalorder %s23, 1
      %s396 = scalar_select %p395, %s23, 1
      %s397 = smul.addr %s396, 128
      %s398 = smul.addr %s397, 8
      %s399 = scalar_lea.vmem %s11, %s398
      %v400 = vld [vmem:[%s389] sm:$0xff]
      %v401 = vld [vmem:[%s389 + $0x8] sm:$0xff]
      %v402 = vld [vmem:[%s389 + $0x10] sm:$0xff]
      %v403 = vld [vmem:[%s389 + $0x18] sm:$0xff]
      %v404 = vld [vmem:[%s389 + $0x20] sm:$0xff]
      %v405 = vld [vmem:[%s389 + $0x28] sm:$0xff]
      %v406 = vld [vmem:[%s389 + $0x30] sm:$0xff]
      %v407 = vld [vmem:[%s389 + $0x38] sm:$0xff]
      %v408 = vld [vmem:[%s389 + $0x40] sm:$0xff]
      %v409 = vld [vmem:[%s389 + $0x48] sm:$0xff]
      %v410 = vld [vmem:[%s389 + $0x50] sm:$0xff]
      %v411 = vld [vmem:[%s389 + $0x58] sm:$0xff]
      %v412 = vld [vmem:[%s389 + $0x60] sm:$0xff]
      %v413 = vld [vmem:[%s389 + $0x68] sm:$0xff]
      %v414 = vld [vmem:[%s389 + $0x70] sm:$0xff]
      %v415 = vld [vmem:[%s389 + $0x78] sm:$0xff]
      %v416 = vld [vmem:[%s389 + $0x80] sm:$0xff]
      %v417 = vld [vmem:[%s389 + $0x88] sm:$0xff]
      %v418 = vld [vmem:[%s389 + $0x90] sm:$0xff]
      %v419 = vld [vmem:[%s389 + $0x98] sm:$0xff]
      %v420 = vld [vmem:[%s389 + $0xa0] sm:$0xff]
      %v421 = vld [vmem:[%s389 + $0xa8] sm:$0xff]
      %v422 = vld [vmem:[%s389 + $0xb0] sm:$0xff]
      %v423 = vld [vmem:[%s389 + $0xb8] sm:$0xff]
      %v424 = vld [vmem:[%s389 + $0xc0] sm:$0xff]
      %v425 = vld [vmem:[%s389 + $0xc8] sm:$0xff]
      %v426 = vld [vmem:[%s389 + $0xd0] sm:$0xff]
      %v427 = vld [vmem:[%s389 + $0xd8] sm:$0xff]
      %v428 = vld [vmem:[%s389 + $0xe0] sm:$0xff]
      %v429 = vld [vmem:[%s389 + $0xe8] sm:$0xff]
      %v430 = vld [vmem:[%s389 + $0xf0] sm:$0xff]
      %v431 = vld [vmem:[%s389 + $0xf8] sm:$0xff]
      %v432 = vld [vmem:[%s2] sm:$0x1]
      %v433 = vld [vmem:[%s2 + $0x1] sm:$0x1]
      %434 = vadd.xlane.f32.xlu0 %v400
      %v435 = vpop.xlane.xlu0 %434
      %436 = vadd.xlane.f32.xlu0 %v401
      %v437 = vpop.xlane.xlu0 %436
      %438 = vadd.xlane.f32.xlu0 %v402
      %v439 = vpop.xlane.xlu0 %438
      %440 = vadd.xlane.f32.xlu0 %v403
      %v441 = vpop.xlane.xlu0 %440
      %442 = vadd.xlane.f32.xlu0 %v404
      %v443 = vpop.xlane.xlu0 %442
      %444 = vadd.xlane.f32.xlu0 %v405
      %v445 = vpop.xlane.xlu0 %444
      %446 = vadd.xlane.f32.xlu0 %v406
      %v447 = vpop.xlane.xlu0 %446
      %448 = vadd.xlane.f32.xlu0 %v407
      %v449 = vpop.xlane.xlu0 %448
      %450 = vadd.xlane.f32.xlu0 %v408
      %v451 = vpop.xlane.xlu0 %450
      %452 = vadd.xlane.f32.xlu0 %v409
      %v453 = vpop.xlane.xlu0 %452
      %454 = vadd.xlane.f32.xlu0 %v410
      %v455 = vpop.xlane.xlu0 %454
      %456 = vadd.xlane.f32.xlu0 %v411
      %v457 = vpop.xlane.xlu0 %456
      %458 = vadd.xlane.f32.xlu0 %v412
      %v459 = vpop.xlane.xlu0 %458
      %460 = vadd.xlane.f32.xlu0 %v413
      %v461 = vpop.xlane.xlu0 %460
      %462 = vadd.xlane.f32.xlu0 %v414
      %v463 = vpop.xlane.xlu0 %462
      %464 = vadd.xlane.f32.xlu0 %v415
      %v465 = vpop.xlane.xlu0 %464
      %466 = vadd.xlane.f32.xlu0 %v416
      %v467 = vpop.xlane.xlu0 %466
      %468 = vadd.xlane.f32.xlu0 %v417
      %v469 = vpop.xlane.xlu0 %468
      %470 = vadd.xlane.f32.xlu0 %v418
      %v471 = vpop.xlane.xlu0 %470
      %472 = vadd.xlane.f32.xlu0 %v419
      %v473 = vpop.xlane.xlu0 %472
      %474 = vadd.xlane.f32.xlu0 %v420
      %v475 = vpop.xlane.xlu0 %474
      %476 = vadd.xlane.f32.xlu0 %v421
      %v477 = vpop.xlane.xlu0 %476
      %478 = vadd.xlane.f32.xlu0 %v422
      %v479 = vpop.xlane.xlu0 %478
      %480 = vadd.xlane.f32.xlu0 %v423
      %v481 = vpop.xlane.xlu0 %480
      %482 = vadd.xlane.f32.xlu0 %v424
      %v483 = vpop.xlane.xlu0 %482
      %484 = vadd.xlane.f32.xlu0 %v425
      %v485 = vpop.xlane.xlu0 %484
      %486 = vadd.xlane.f32.xlu0 %v426
      %v487 = vpop.xlane.xlu0 %486
      %488 = vadd.xlane.f32.xlu0 %v427
      %v489 = vpop.xlane.xlu0 %488
      %490 = vadd.xlane.f32.xlu0 %v428
      %v491 = vpop.xlane.xlu0 %490
      %492 = vadd.xlane.f32.xlu0 %v429
      %v493 = vpop.xlane.xlu0 %492
      %494 = vadd.xlane.f32.xlu0 %v430
      %v495 = vpop.xlane.xlu0 %494
      %496 = vadd.xlane.f32.xlu0 %v431
      %v497 = vpop.xlane.xlu0 %496
      %v498 = vrcp.pop 128.0
      %v499 = vmul.f32 %v435, %v498
      %v500 = vmul.f32 %v437, %v498
      %v501 = vmul.f32 %v439, %v498
      %v502 = vmul.f32 %v441, %v498
      %v503 = vmul.f32 %v443, %v498
      %v504 = vmul.f32 %v445, %v498
      %v505 = vmul.f32 %v447, %v498
      %v506 = vmul.f32 %v449, %v498
      %v507 = vmul.f32 %v451, %v498
      %v508 = vmul.f32 %v453, %v498
      %v509 = vmul.f32 %v455, %v498
      %v510 = vmul.f32 %v457, %v498
      %v511 = vmul.f32 %v459, %v498
      %v512 = vmul.f32 %v461, %v498
      %v513 = vmul.f32 %v463, %v498
      %v514 = vmul.f32 %v465, %v498
      %v515 = vmul.f32 %v467, %v498
      %v516 = vmul.f32 %v469, %v498
      %v517 = vmul.f32 %v471, %v498
      %v518 = vmul.f32 %v473, %v498
      %v519 = vmul.f32 %v475, %v498
      %v520 = vmul.f32 %v477, %v498
      %v521 = vmul.f32 %v479, %v498
      %v522 = vmul.f32 %v481, %v498
      %v523 = vmul.f32 %v483, %v498
      %v524 = vmul.f32 %v485, %v498
      %v525 = vmul.f32 %v487, %v498
      %v526 = vmul.f32 %v489, %v498
      %v527 = vmul.f32 %v491, %v498
      %v528 = vmul.f32 %v493, %v498
      %v529 = vmul.f32 %v495, %v498
      %v530 = vmul.f32 %v497, %v498
      %v531 = vsub.f32 %v400, %v499
      %v532 = vsub.f32 %v401, %v500
      %v533 = vsub.f32 %v402, %v501
      %v534 = vsub.f32 %v403, %v502
      %v535 = vsub.f32 %v404, %v503
      %v536 = vsub.f32 %v405, %v504
      %v537 = vsub.f32 %v406, %v505
      %v538 = vsub.f32 %v407, %v506
      %v539 = vsub.f32 %v408, %v507
      %v540 = vsub.f32 %v409, %v508
      %v541 = vsub.f32 %v410, %v509
      %v542 = vsub.f32 %v411, %v510
      %v543 = vsub.f32 %v412, %v511
      %v544 = vsub.f32 %v413, %v512
      %v545 = vsub.f32 %v414, %v513
      %v546 = vsub.f32 %v415, %v514
      %v547 = vsub.f32 %v416, %v515
      %v548 = vsub.f32 %v417, %v516
      %v549 = vsub.f32 %v418, %v517
      %v550 = vsub.f32 %v419, %v518
      %v551 = vsub.f32 %v420, %v519
      %v552 = vsub.f32 %v421, %v520
      %v553 = vsub.f32 %v422, %v521
      %v554 = vsub.f32 %v423, %v522
      %v555 = vsub.f32 %v424, %v523
      %v556 = vsub.f32 %v425, %v524
      %v557 = vsub.f32 %v426, %v525
      %v558 = vsub.f32 %v427, %v526
      %v559 = vsub.f32 %v428, %v527
      %v560 = vsub.f32 %v429, %v528
      %v561 = vsub.f32 %v430, %v529
      %v562 = vsub.f32 %v431, %v530
      %v563 = vmul.f32 %v531, %v531
      %v564 = vmul.f32 %v532, %v532
      %v565 = vmul.f32 %v533, %v533
      %v566 = vmul.f32 %v534, %v534
      %v567 = vmul.f32 %v535, %v535
      %v568 = vmul.f32 %v536, %v536
      %v569 = vmul.f32 %v537, %v537
      %v570 = vmul.f32 %v538, %v538
      %v571 = vmul.f32 %v539, %v539
      %v572 = vmul.f32 %v540, %v540
      %v573 = vmul.f32 %v541, %v541
      %v574 = vmul.f32 %v542, %v542
      %v575 = vmul.f32 %v543, %v543
      %v576 = vmul.f32 %v544, %v544
      %v577 = vmul.f32 %v545, %v545
      %v578 = vmul.f32 %v546, %v546
      %v579 = vmul.f32 %v547, %v547
      %v580 = vmul.f32 %v548, %v548
      %v581 = vmul.f32 %v549, %v549
      %v582 = vmul.f32 %v550, %v550
      %v583 = vmul.f32 %v551, %v551
      %v584 = vmul.f32 %v552, %v552
      %v585 = vmul.f32 %v553, %v553
      %v586 = vmul.f32 %v554, %v554
      %v587 = vmul.f32 %v555, %v555
      %v588 = vmul.f32 %v556, %v556
      %v589 = vmul.f32 %v557, %v557
      %v590 = vmul.f32 %v558, %v558
      %v591 = vmul.f32 %v559, %v559
      %v592 = vmul.f32 %v560, %v560
      %v593 = vmul.f32 %v561, %v561
      %v594 = vmul.f32 %v562, %v562
      %595 = vadd.xlane.f32.xlu0 %v563
      %v596 = vpop.xlane.xlu0 %595
      %597 = vadd.xlane.f32.xlu0 %v564
      %v598 = vpop.xlane.xlu0 %597
      %599 = vadd.xlane.f32.xlu0 %v565
      %v600 = vpop.xlane.xlu0 %599
      %601 = vadd.xlane.f32.xlu0 %v566
      %v602 = vpop.xlane.xlu0 %601
      %603 = vadd.xlane.f32.xlu0 %v567
      %v604 = vpop.xlane.xlu0 %603
      %605 = vadd.xlane.f32.xlu0 %v568
      %v606 = vpop.xlane.xlu0 %605
      %607 = vadd.xlane.f32.xlu0 %v569
      %v608 = vpop.xlane.xlu0 %607
      %609 = vadd.xlane.f32.xlu0 %v570
      %v610 = vpop.xlane.xlu0 %609
      %611 = vadd.xlane.f32.xlu0 %v571
      %v612 = vpop.xlane.xlu0 %611
      %613 = vadd.xlane.f32.xlu0 %v572
      %v614 = vpop.xlane.xlu0 %613
      %615 = vadd.xlane.f32.xlu0 %v573
      %v616 = vpop.xlane.xlu0 %615
      %617 = vadd.xlane.f32.xlu0 %v574
      %v618 = vpop.xlane.xlu0 %617
      %619 = vadd.xlane.f32.xlu0 %v575
      %v620 = vpop.xlane.xlu0 %619
      %621 = vadd.xlane.f32.xlu0 %v576
      %v622 = vpop.xlane.xlu0 %621
      %623 = vadd.xlane.f32.xlu0 %v577
      %v624 = vpop.xlane.xlu0 %623
      %625 = vadd.xlane.f32.xlu0 %v578
      %v626 = vpop.xlane.xlu0 %625
      %627 = vadd.xlane.f32.xlu0 %v579
      %v628 = vpop.xlane.xlu0 %627
      %629 = vadd.xlane.f32.xlu0 %v580
      %v630 = vpop.xlane.xlu0 %629
      %631 = vadd.xlane.f32.xlu0 %v581
      %v632 = vpop.xlane.xlu0 %631
      %633 = vadd.xlane.f32.xlu0 %v582
      %v634 = vpop.xlane.xlu0 %633
      %635 = vadd.xlane.f32.xlu0 %v583
      %v636 = vpop.xlane.xlu0 %635
      %637 = vadd.xlane.f32.xlu0 %v584
      %v638 = vpop.xlane.xlu0 %637
      %639 = vadd.xlane.f32.xlu0 %v585
      %v640 = vpop.xlane.xlu0 %639
      %641 = vadd.xlane.f32.xlu0 %v586
      %v642 = vpop.xlane.xlu0 %641
      %643 = vadd.xlane.f32.xlu0 %v587
      %v644 = vpop.xlane.xlu0 %643
      %645 = vadd.xlane.f32.xlu0 %v588
      %v646 = vpop.xlane.xlu0 %645
      %647 = vadd.xlane.f32.xlu0 %v589
      %v648 = vpop.xlane.xlu0 %647
      %649 = vadd.xlane.f32.xlu0 %v590
      %v650 = vpop.xlane.xlu0 %649
      %651 = vadd.xlane.f32.xlu0 %v591
      %v652 = vpop.xlane.xlu0 %651
      %653 = vadd.xlane.f32.xlu0 %v592
      %v654 = vpop.xlane.xlu0 %653
      %655 = vadd.xlane.f32.xlu0 %v593
      %v656 = vpop.xlane.xlu0 %655
      %657 = vadd.xlane.f32.xlu0 %v594
      %v658 = vpop.xlane.xlu0 %657
      %v659 = vmul.f32 %v596, %v498
      %v660 = vmul.f32 %v598, %v498
      %v661 = vmul.f32 %v600, %v498
      %v662 = vmul.f32 %v602, %v498
      %v663 = vmul.f32 %v604, %v498
      %v664 = vmul.f32 %v606, %v498
      %v665 = vmul.f32 %v608, %v498
      %v666 = vmul.f32 %v610, %v498
      %v667 = vmul.f32 %v612, %v498
      %v668 = vmul.f32 %v614, %v498
      %v669 = vmul.f32 %v616, %v498
      %v670 = vmul.f32 %v618, %v498
      %v671 = vmul.f32 %v620, %v498
      %v672 = vmul.f32 %v622, %v498
      %v673 = vmul.f32 %v624, %v498
      %v674 = vmul.f32 %v626, %v498
      %v675 = vmul.f32 %v628, %v498
      %v676 = vmul.f32 %v630, %v498
      %v677 = vmul.f32 %v632, %v498
      %v678 = vmul.f32 %v634, %v498
      %v679 = vmul.f32 %v636, %v498
      %v680 = vmul.f32 %v638, %v498
      %v681 = vmul.f32 %v640, %v498
      %v682 = vmul.f32 %v642, %v498
      %v683 = vmul.f32 %v644, %v498
      %v684 = vmul.f32 %v646, %v498
      %v685 = vmul.f32 %v648, %v498
      %v686 = vmul.f32 %v650, %v498
      %v687 = vmul.f32 %v652, %v498
      %v688 = vmul.f32 %v654, %v498
      %v689 = vmul.f32 %v656, %v498
      %v690 = vmul.f32 %v658, %v498
      %v691 = vadd.f32 %v659, 1e-05
      %v692 = vadd.f32 %v660, 1e-05
      %v693 = vadd.f32 %v661, 1e-05
      %v694 = vadd.f32 %v662, 1e-05
      %v695 = vadd.f32 %v663, 1e-05
      %v696 = vadd.f32 %v664, 1e-05
      %v697 = vadd.f32 %v665, 1e-05
      %v698 = vadd.f32 %v666, 1e-05
      %v699 = vadd.f32 %v667, 1e-05
      %v700 = vadd.f32 %v668, 1e-05
      %v701 = vadd.f32 %v669, 1e-05
      %v702 = vadd.f32 %v670, 1e-05
      %v703 = vadd.f32 %v671, 1e-05
      %v704 = vadd.f32 %v672, 1e-05
      %v705 = vadd.f32 %v673, 1e-05
      %v706 = vadd.f32 %v674, 1e-05
      %v707 = vadd.f32 %v675, 1e-05
      %v708 = vadd.f32 %v676, 1e-05
      %v709 = vadd.f32 %v677, 1e-05
      %v710 = vadd.f32 %v678, 1e-05
      %v711 = vadd.f32 %v679, 1e-05
      %v712 = vadd.f32 %v680, 1e-05
      %v713 = vadd.f32 %v681, 1e-05
      %v714 = vadd.f32 %v682, 1e-05
      %v715 = vadd.f32 %v683, 1e-05
      %v716 = vadd.f32 %v684, 1e-05
      %v717 = vadd.f32 %v685, 1e-05
      %v718 = vadd.f32 %v686, 1e-05
      %v719 = vadd.f32 %v687, 1e-05
      %v720 = vadd.f32 %v688, 1e-05
      %v721 = vadd.f32 %v689, 1e-05
      %v722 = vadd.f32 %v690, 1e-05
      %v723 = vrsqrt.pop %v691
      %v724 = vrsqrt.pop %v692
      %v725 = vrsqrt.pop %v693
      %v726 = vrsqrt.pop %v694
      %v727 = vrsqrt.pop %v695
      %v728 = vrsqrt.pop %v696
      %v729 = vrsqrt.pop %v697
      %v730 = vrsqrt.pop %v698
      %v731 = vrsqrt.pop %v699
      %v732 = vrsqrt.pop %v700
      %v733 = vrsqrt.pop %v701
      %v734 = vrsqrt.pop %v702
      %v735 = vrsqrt.pop %v703
      %v736 = vrsqrt.pop %v704
      %v737 = vrsqrt.pop %v705
      %v738 = vrsqrt.pop %v706
      %v739 = vrsqrt.pop %v707
      %v740 = vrsqrt.pop %v708
      %v741 = vrsqrt.pop %v709
      %v742 = vrsqrt.pop %v710
      %v743 = vrsqrt.pop %v711
      %v744 = vrsqrt.pop %v712
      %v745 = vrsqrt.pop %v713
      %v746 = vrsqrt.pop %v714
      %v747 = vrsqrt.pop %v715
      %v748 = vrsqrt.pop %v716
      %v749 = vrsqrt.pop %v717
      %v750 = vrsqrt.pop %v718
      %v751 = vrsqrt.pop %v719
      %v752 = vrsqrt.pop %v720
      %v753 = vrsqrt.pop %v721
      %v754 = vrsqrt.pop %v722
      %v755 = vmul.f32 %v531, %v723
      %v756 = vmul.f32 %v532, %v724
      %v757 = vmul.f32 %v533, %v725
      %v758 = vmul.f32 %v534, %v726
      %v759 = vmul.f32 %v535, %v727
      %v760 = vmul.f32 %v536, %v728
      %v761 = vmul.f32 %v537, %v729
      %v762 = vmul.f32 %v538, %v730
      %v763 = vmul.f32 %v539, %v731
      %v764 = vmul.f32 %v540, %v732
      %v765 = vmul.f32 %v541, %v733
      %v766 = vmul.f32 %v542, %v734
      %v767 = vmul.f32 %v543, %v735
      %v768 = vmul.f32 %v544, %v736
      %v769 = vmul.f32 %v545, %v737
      %v770 = vmul.f32 %v546, %v738
      %v771 = vmul.f32 %v547, %v739
      %v772 = vmul.f32 %v548, %v740
      %v773 = vmul.f32 %v549, %v741
      %v774 = vmul.f32 %v550, %v742
      %v775 = vmul.f32 %v551, %v743
      %v776 = vmul.f32 %v552, %v744
      %v777 = vmul.f32 %v553, %v745
      %v778 = vmul.f32 %v554, %v746
      %v779 = vmul.f32 %v555, %v747
      %v780 = vmul.f32 %v556, %v748
      %v781 = vmul.f32 %v557, %v749
      %v782 = vmul.f32 %v558, %v750
      %v783 = vmul.f32 %v559, %v751
      %v784 = vmul.f32 %v560, %v752
      %v785 = vmul.f32 %v561, %v753
      %v786 = vmul.f32 %v562, %v754
      %v787 = vlaneseq
      %v788 = vshrl.u32 %v787, 7
      %v789 = vsub.s32 0, %v788
      %v790 = vrot.slane %v432, %v789
      %v791 = vmul.f32 %v755, %v790
      %v792 = vmul.f32 %v756, %v790
      %v793 = vmul.f32 %v757, %v790
      %v794 = vmul.f32 %v758, %v790
      %v795 = vmul.f32 %v759, %v790
      %v796 = vmul.f32 %v760, %v790
      %v797 = vmul.f32 %v761, %v790
      %v798 = vmul.f32 %v762, %v790
      %v799 = vmul.f32 %v763, %v790
      %v800 = vmul.f32 %v764, %v790
      %v801 = vmul.f32 %v765, %v790
      %v802 = vmul.f32 %v766, %v790
      %v803 = vmul.f32 %v767, %v790
      %v804 = vmul.f32 %v768, %v790
      %v805 = vmul.f32 %v769, %v790
      %v806 = vmul.f32 %v770, %v790
      %v807 = vmul.f32 %v771, %v790
      %v808 = vmul.f32 %v772, %v790
      %v809 = vmul.f32 %v773, %v790
      %v810 = vmul.f32 %v774, %v790
      %v811 = vmul.f32 %v775, %v790
      %v812 = vmul.f32 %v776, %v790
      %v813 = vmul.f32 %v777, %v790
      %v814 = vmul.f32 %v778, %v790
      %v815 = vmul.f32 %v779, %v790
      %v816 = vmul.f32 %v780, %v790
      %v817 = vmul.f32 %v781, %v790
      %v818 = vmul.f32 %v782, %v790
      %v819 = vmul.f32 %v783, %v790
      %v820 = vmul.f32 %v784, %v790
      %v821 = vmul.f32 %v785, %v790
      %v822 = vmul.f32 %v786, %v790
      %v823 = vlaneseq
      %v824 = vshrl.u32 %v823, 7
      %v825 = vsub.s32 0, %v824
      %v826 = vrot.slane %v433, %v825
      %v827 = vadd.f32 %v791, %v826
      %v828 = vadd.f32 %v792, %v826
      %v829 = vadd.f32 %v793, %v826
      %v830 = vadd.f32 %v794, %v826
      %v831 = vadd.f32 %v795, %v826
      %v832 = vadd.f32 %v796, %v826
      %v833 = vadd.f32 %v797, %v826
      %v834 = vadd.f32 %v798, %v826
      %v835 = vadd.f32 %v799, %v826
      %v836 = vadd.f32 %v800, %v826
      %v837 = vadd.f32 %v801, %v826
      %v838 = vadd.f32 %v802, %v826
      %v839 = vadd.f32 %v803, %v826
      %v840 = vadd.f32 %v804, %v826
      %v841 = vadd.f32 %v805, %v826
      %v842 = vadd.f32 %v806, %v826
      %v843 = vadd.f32 %v807, %v826
      %v844 = vadd.f32 %v808, %v826
      %v845 = vadd.f32 %v809, %v826
      %v846 = vadd.f32 %v810, %v826
      %v847 = vadd.f32 %v811, %v826
      %v848 = vadd.f32 %v812, %v826
      %v849 = vadd.f32 %v813, %v826
      %v850 = vadd.f32 %v814, %v826
      %v851 = vadd.f32 %v815, %v826
      %v852 = vadd.f32 %v816, %v826
      %v853 = vadd.f32 %v817, %v826
      %v854 = vadd.f32 %v818, %v826
      %v855 = vadd.f32 %v819, %v826
      %v856 = vadd.f32 %v820, %v826
      %v857 = vadd.f32 %v821, %v826
      %v858 = vadd.f32 %v822, %v826
      %v859 = vld [vmem:[%s3] sm:$0xff]
      %v860 = vld [vmem:[%s3 + $0x8] sm:$0xff]
      %v861 = vld [vmem:[%s3 + $0x10] sm:$0xff]
      %v862 = vld [vmem:[%s3 + $0x18] sm:$0xff]
      %v863 = vld [vmem:[%s3 + $0x20] sm:$0xff]
      %v864 = vld [vmem:[%s3 + $0x28] sm:$0xff]
      %v865 = vld [vmem:[%s3 + $0x30] sm:$0xff]
      %v866 = vld [vmem:[%s3 + $0x38] sm:$0xff]
      %v867 = vld [vmem:[%s3 + $0x40] sm:$0xff]
      %v868 = vld [vmem:[%s3 + $0x48] sm:$0xff]
      %v869 = vld [vmem:[%s3 + $0x50] sm:$0xff]
      %v870 = vld [vmem:[%s3 + $0x58] sm:$0xff]
      %v871 = vld [vmem:[%s3 + $0x60] sm:$0xff]
      %v872 = vld [vmem:[%s3 + $0x68] sm:$0xff]
      %v873 = vld [vmem:[%s3 + $0x70] sm:$0xff]
      %v874 = vld [vmem:[%s3 + $0x78] sm:$0xff]
      %v875 = vld [vmem:[%s2 + $0x2] sm:$0x1]
      %v876 = vlaneseq
      %v877 = vshrl.u32 %v876, 7
      %v878 = vsub.s32 0, %v877
      %v879 = vrot.slane %v875, %v878
      %880 = vmatprep.subr.mxu0 0.0
      %881 = vmatpush1.msra.mxu0 %v874
      %882 = vmatprep.subr.mxu0 0.0
      %883 = vmatpush1.msra.mxu0 %v873
      %884 = vmatprep.subr.mxu0 0.0
      %885 = vmatpush1.msra.mxu0 %v872
      %886 = vmatprep.subr.mxu0 0.0
      %887 = vmatpush1.msra.mxu0 %v871
      %888 = vmatprep.subr.mxu0 0.0
      %889 = vmatpush1.msra.mxu0 %v870
      %890 = vmatprep.subr.mxu0 0.0
      %891 = vmatpush1.msra.mxu0 %v869
      %892 = vmatprep.subr.mxu0 0.0
      %893 = vmatpush1.msra.mxu0 %v868
      %894 = vmatprep.subr.mxu0 0.0
      %895 = vmatpush1.msra.mxu0 %v867
      %896 = vmatprep.subr.mxu0 0.0
      %897 = vmatpush1.msra.mxu0 %v866
      %898 = vmatprep.subr.mxu0 0.0
      %899 = vmatpush1.msra.mxu0 %v865
      %900 = vmatprep.subr.mxu0 0.0
      %901 = vmatpush1.msra.mxu0 %v864
      %902 = vmatprep.subr.mxu0 0.0
      %903 = vmatpush1.msra.mxu0 %v863
      %904 = vmatprep.subr.mxu0 0.0
      %905 = vmatpush1.msra.mxu0 %v862
      %906 = vmatprep.subr.mxu0 0.0
      %907 = vmatpush1.msra.mxu0 %v861
      %908 = vmatprep.subr.mxu0 0.0
      %909 = vmatpush1.msra.mxu0 %v860
      %910 = vmatprep.subr.mxu0 0.0
      %911 = vmatpush1.msra.mxu0 %v859
      %912 = vmatprep.subr.mxu0 0.0
      %913 = vmatpush2.msra.mxu0 0.0
      %914 = vmatprep.subr.mxu0 0.0
      %915 = vmatpush2.msra.mxu0 0.0
      %916 = vmatprep.subr.mxu0 0.0
      %917 = vmatpush2.msra.mxu0 0.0
      %918 = vmatprep.subr.mxu0 0.0
      %919 = vmatpush2.msra.mxu0 0.0
      %920 = vmatprep.subr.mxu0 0.0
      %921 = vmatpush2.msra.mxu0 0.0
      %922 = vmatprep.subr.mxu0 0.0
      %923 = vmatpush2.msra.mxu0 0.0
      %924 = vmatprep.subr.mxu0 0.0
      %925 = vmatpush2.msra.mxu0 0.0
      %926 = vmatprep.subr.mxu0 0.0
      %927 = vmatpush2.msra.mxu0 0.0
      %928 = vmatprep.subr.mxu0 0.0
      %929 = vmatpush2.msra.mxu0 0.0
      %930 = vmatprep.subr.mxu0 0.0
      %931 = vmatpush2.msra.mxu0 0.0
      %932 = vmatprep.subr.mxu0 0.0
      %933 = vmatpush2.msra.mxu0 0.0
      %934 = vmatprep.subr.mxu0 0.0
      %935 = vmatpush2.msra.mxu0 0.0
      %936 = vmatprep.subr.mxu0 0.0
      %937 = vmatpush2.msra.mxu0 0.0
      %938 = vmatprep.subr.mxu0 0.0
      %939 = vmatpush2.msra.mxu0 0.0
      %940 = vmatprep.subr.mxu0 0.0
      %941 = vmatpush2.msra.mxu0 0.0
      %942 = vmatprep.subr.mxu0 0.0
      %943 = vmatpush2.msra.mxu0 0.0
      %944 = vmatprep.mubr.f32.mxu0 0.0
      %945 = vmatmul.mubr.f32.gmra.mxu0 %v827
      %v946 = vpop.f32.mrf.mxu0
      %v947 = vadd.f32 %v879, %v946
      %v948 = vpop.f32.mrf.mxu0
      %949 = vmatprep.mubr.f32.mxu0 0.0
      %950 = vmatmul.mubr.f32.gmra.mxu0 %v828
      %v951 = vpop.f32.mrf.mxu0
      %v952 = vadd.f32 %v879, %v951
      %v953 = vpop.f32.mrf.mxu0
      %954 = vmatprep.mubr.f32.mxu0 0.0
      %955 = vmatmul.mubr.f32.gmra.mxu0 %v829
      %v956 = vpop.f32.mrf.mxu0
      %v957 = vadd.f32 %v879, %v956
      %v958 = vpop.f32.mrf.mxu0
      %959 = vmatprep.mubr.f32.mxu0 0.0
      %960 = vmatmul.mubr.f32.gmra.mxu0 %v830
      %v961 = vpop.f32.mrf.mxu0
      %v962 = vadd.f32 %v879, %v961
      %v963 = vpop.f32.mrf.mxu0
      %964 = vmatprep.mubr.f32.mxu0 0.0
      %965 = vmatmul.mubr.f32.gmra.mxu0 %v831
      %v966 = vpop.f32.mrf.mxu0
      %v967 = vadd.f32 %v879, %v966
      %v968 = vpop.f32.mrf.mxu0
      %969 = vmatprep.mubr.f32.mxu0 0.0
      %970 = vmatmul.mubr.f32.gmra.mxu0 %v832
      %v971 = vpop.f32.mrf.mxu0
      %v972 = vadd.f32 %v879, %v971
      %v973 = vpop.f32.mrf.mxu0
      %974 = vmatprep.mubr.f32.mxu0 0.0
      %975 = vmatmul.mubr.f32.gmra.mxu0 %v833
      %v976 = vpop.f32.mrf.mxu0
      %v977 = vadd.f32 %v879, %v976
      %v978 = vpop.f32.mrf.mxu0
      %979 = vmatprep.mubr.f32.mxu0 0.0
      %980 = vmatmul.mubr.f32.gmra.mxu0 %v834
      %v981 = vpop.f32.mrf.mxu0
      %v982 = vadd.f32 %v879, %v981
      %v983 = vpop.f32.mrf.mxu0
      %984 = vmatprep.mubr.f32.mxu0 0.0
      %985 = vmatmul.mubr.f32.gmra.mxu0 %v835
      %v986 = vpop.f32.mrf.mxu0
      %v987 = vadd.f32 %v879, %v986
      %v988 = vpop.f32.mrf.mxu0
      %989 = vmatprep.mubr.f32.mxu0 0.0
      %990 = vmatmul.mubr.f32.gmra.mxu0 %v836
      %v991 = vpop.f32.mrf.mxu0
      %v992 = vadd.f32 %v879, %v991
      %v993 = vpop.f32.mrf.mxu0
      %994 = vmatprep.mubr.f32.mxu0 0.0
      %995 = vmatmul.mubr.f32.gmra.mxu0 %v837
      %v996 = vpop.f32.mrf.mxu0
      %v997 = vadd.f32 %v879, %v996
      %v998 = vpop.f32.mrf.mxu0
      %999 = vmatprep.mubr.f32.mxu0 0.0
      %1000 = vmatmul.mubr.f32.gmra.mxu0 %v838
      %v1001 = vpop.f32.mrf.mxu0
      %v1002 = vadd.f32 %v879, %v1001
      %v1003 = vpop.f32.mrf.mxu0
      %1004 = vmatprep.mubr.f32.mxu0 0.0
      %1005 = vmatmul.mubr.f32.gmra.mxu0 %v839
      %v1006 = vpop.f32.mrf.mxu0
      %v1007 = vadd.f32 %v879, %v1006
      %v1008 = vpop.f32.mrf.mxu0
      %1009 = vmatprep.mubr.f32.mxu0 0.0
      %1010 = vmatmul.mubr.f32.gmra.mxu0 %v840
      %v1011 = vpop.f32.mrf.mxu0
      %v1012 = vadd.f32 %v879, %v1011
      %v1013 = vpop.f32.mrf.mxu0
      %1014 = vmatprep.mubr.f32.mxu0 0.0
      %1015 = vmatmul.mubr.f32.gmra.mxu0 %v841
      %v1016 = vpop.f32.mrf.mxu0
      %v1017 = vadd.f32 %v879, %v1016
      %v1018 = vpop.f32.mrf.mxu0
      %1019 = vmatprep.mubr.f32.mxu0 0.0
      %1020 = vmatmul.mubr.f32.gmra.mxu0 %v842
      %v1021 = vpop.f32.mrf.mxu0
      %v1022 = vadd.f32 %v879, %v1021
      %v1023 = vpop.f32.mrf.mxu0
      %1024 = vmatprep.mubr.f32.mxu0 0.0
      %1025 = vmatmul.mubr.f32.gmra.mxu0 %v843
      %v1026 = vpop.f32.mrf.mxu0
      %v1027 = vadd.f32 %v879, %v1026
      %v1028 = vpop.f32.mrf.mxu0
      %1029 = vmatprep.mubr.f32.mxu0 0.0
      %1030 = vmatmul.mubr.f32.gmra.mxu0 %v844
      %v1031 = vpop.f32.mrf.mxu0
      %v1032 = vadd.f32 %v879, %v1031
      %v1033 = vpop.f32.mrf.mxu0
      %1034 = vmatprep.mubr.f32.mxu0 0.0
      %1035 = vmatmul.mubr.f32.gmra.mxu0 %v845
      %v1036 = vpop.f32.mrf.mxu0
      %v1037 = vadd.f32 %v879, %v1036
      %v1038 = vpop.f32.mrf.mxu0
      %1039 = vmatprep.mubr.f32.mxu0 0.0
      %1040 = vmatmul.mubr.f32.gmra.mxu0 %v846
      %v1041 = vpop.f32.mrf.mxu0
      %v1042 = vadd.f32 %v879, %v1041
      %v1043 = vpop.f32.mrf.mxu0
      %1044 = vmatprep.mubr.f32.mxu0 0.0
      %1045 = vmatmul.mubr.f32.gmra.mxu0 %v847
      %v1046 = vpop.f32.mrf.mxu0
      %v1047 = vadd.f32 %v879, %v1046
      %v1048 = vpop.f32.mrf.mxu0
      %1049 = vmatprep.mubr.f32.mxu0 0.0
      %1050 = vmatmul.mubr.f32.gmra.mxu0 %v848
      %v1051 = vpop.f32.mrf.mxu0
      %v1052 = vadd.f32 %v879, %v1051
      %v1053 = vpop.f32.mrf.mxu0
      %1054 = vmatprep.mubr.f32.mxu0 0.0
      %1055 = vmatmul.mubr.f32.gmra.mxu0 %v849
      %v1056 = vpop.f32.mrf.mxu0
      %v1057 = vadd.f32 %v879, %v1056
      %v1058 = vpop.f32.mrf.mxu0
      %1059 = vmatprep.mubr.f32.mxu0 0.0
      %1060 = vmatmul.mubr.f32.gmra.mxu0 %v850
      %v1061 = vpop.f32.mrf.mxu0
      %v1062 = vadd.f32 %v879, %v1061
      %v1063 = vpop.f32.mrf.mxu0
      %1064 = vmatprep.mubr.f32.mxu0 0.0
      %1065 = vmatmul.mubr.f32.gmra.mxu0 %v851
      %v1066 = vpop.f32.mrf.mxu0
      %v1067 = vadd.f32 %v879, %v1066
      %v1068 = vpop.f32.mrf.mxu0
      %1069 = vmatprep.mubr.f32.mxu0 0.0
      %1070 = vmatmul.mubr.f32.gmra.mxu0 %v852
      %v1071 = vpop.f32.mrf.mxu0
      %v1072 = vadd.f32 %v879, %v1071
      %v1073 = vpop.f32.mrf.mxu0
      %1074 = vmatprep.mubr.f32.mxu0 0.0
      %1075 = vmatmul.mubr.f32.gmra.mxu0 %v853
      %v1076 = vpop.f32.mrf.mxu0
      %v1077 = vadd.f32 %v879, %v1076
      %v1078 = vpop.f32.mrf.mxu0
      %1079 = vmatprep.mubr.f32.mxu0 0.0
      %1080 = vmatmul.mubr.f32.gmra.mxu0 %v854
      %v1081 = vpop.f32.mrf.mxu0
      %v1082 = vadd.f32 %v879, %v1081
      %v1083 = vpop.f32.mrf.mxu0
      %1084 = vmatprep.mubr.f32.mxu0 0.0
      %1085 = vmatmul.mubr.f32.gmra.mxu0 %v855
      %v1086 = vpop.f32.mrf.mxu0
      %v1087 = vadd.f32 %v879, %v1086
      %v1088 = vpop.f32.mrf.mxu0
      %1089 = vmatprep.mubr.f32.mxu0 0.0
      %1090 = vmatmul.mubr.f32.gmra.mxu0 %v856
      %v1091 = vpop.f32.mrf.mxu0
      %v1092 = vadd.f32 %v879, %v1091
      %v1093 = vpop.f32.mrf.mxu0
      %1094 = vmatprep.mubr.f32.mxu0 0.0
      %1095 = vmatmul.mubr.f32.gmra.mxu0 %v857
      %v1096 = vpop.f32.mrf.mxu0
      %v1097 = vadd.f32 %v879, %v1096
      %v1098 = vpop.f32.mrf.mxu0
      %1099 = vmatprep.mubr.f32.mxu0 0.0
      %1100 = vmatmul.mubr.f32.gmra.mxu0 %v858
      %v1101 = vpop.f32.mrf.mxu0
      %v1102 = vadd.f32 %v879, %v1101
      %v1103 = vpop.f32.mrf.mxu0
      %1104 = vdwg.mxu0
      %v1105 = vld [vmem:[%s1] sm:$0xff]
      %v1106 = vld [vmem:[%s1 + $0x8] sm:$0xff]
      %v1107 = vld [vmem:[%s1 + $0x10] sm:$0xff]
      %v1108 = vld [vmem:[%s1 + $0x18] sm:$0xff]
      %v1109 = vld [vmem:[%s1 + $0x20] sm:$0xff]
      %v1110 = vld [vmem:[%s1 + $0x28] sm:$0xff]
      %v1111 = vld [vmem:[%s1 + $0x30] sm:$0xff]
      %v1112 = vld [vmem:[%s1 + $0x38] sm:$0xff]
      %v1113 = vld [vmem:[%s1 + $0x40] sm:$0xff]
      %v1114 = vld [vmem:[%s1 + $0x48] sm:$0xff]
      %v1115 = vld [vmem:[%s1 + $0x50] sm:$0xff]
      %v1116 = vld [vmem:[%s1 + $0x58] sm:$0xff]
      %v1117 = vld [vmem:[%s1 + $0x60] sm:$0xff]
      %v1118 = vld [vmem:[%s1 + $0x68] sm:$0xff]
      %v1119 = vld [vmem:[%s1 + $0x70] sm:$0xff]
      %v1120 = vld [vmem:[%s1 + $0x78] sm:$0xff]
      %1121 = vmatprep.subr.mxu0 0.0
      %1122 = vmatpush1.msra.mxu0 %v842
      %1123 = vmatprep.subr.mxu0 0.0
      %1124 = vmatpush1.msra.mxu0 %v841
      %1125 = vmatprep.subr.mxu0 0.0
      %1126 = vmatpush1.msra.mxu0 %v840
      %1127 = vmatprep.subr.mxu0 0.0
      %1128 = vmatpush1.msra.mxu0 %v839
      %1129 = vmatprep.subr.mxu0 0.0
      %1130 = vmatpush1.msra.mxu0 %v838
      %1131 = vmatprep.subr.mxu0 0.0
      %1132 = vmatpush1.msra.mxu0 %v837
      %1133 = vmatprep.subr.mxu0 0.0
      %1134 = vmatpush1.msra.mxu0 %v836
      %1135 = vmatprep.subr.mxu0 0.0
      %1136 = vmatpush1.msra.mxu0 %v835
      %1137 = vmatprep.subr.mxu0 0.0
      %1138 = vmatpush1.msra.mxu0 %v834
      %1139 = vmatprep.subr.mxu0 0.0
      %1140 = vmatpush1.msra.mxu0 %v833
      %1141 = vmatprep.subr.mxu0 0.0
      %1142 = vmatpush1.msra.mxu0 %v832
      %1143 = vmatprep.subr.mxu0 0.0
      %1144 = vmatpush1.msra.mxu0 %v831
      %1145 = vmatprep.subr.mxu0 0.0
      %1146 = vmatpush1.msra.mxu0 %v830
      %1147 = vmatprep.subr.mxu0 0.0
      %1148 = vmatpush1.msra.mxu0 %v829
      %1149 = vmatprep.subr.mxu0 0.0
      %1150 = vmatpush1.msra.mxu0 %v828
      %1151 = vmatprep.subr.mxu0 0.0
      %1152 = vmatpush1.msra.mxu0 %v827
      %1153 = vmatprep.subr.mxu0 0.0
      %1154 = vmatpush2.msra.mxu0 %v858
      %1155 = vmatprep.subr.mxu0 0.0
      %1156 = vmatpush2.msra.mxu0 %v857
      %1157 = vmatprep.subr.mxu0 0.0
      %1158 = vmatpush2.msra.mxu0 %v856
      %1159 = vmatprep.subr.mxu0 0.0
      %1160 = vmatpush2.msra.mxu0 %v855
      %1161 = vmatprep.subr.mxu0 0.0
      %1162 = vmatpush2.msra.mxu0 %v854
      %1163 = vmatprep.subr.mxu0 0.0
      %1164 = vmatpush2.msra.mxu0 %v853
      %1165 = vmatprep.subr.mxu0 0.0
      %1166 = vmatpush2.msra.mxu0 %v852
      %1167 = vmatprep.subr.mxu0 0.0
      %1168 = vmatpush2.msra.mxu0 %v851
      %1169 = vmatprep.subr.mxu0 0.0
      %1170 = vmatpush2.msra.mxu0 %v850
      %1171 = vmatprep.subr.mxu0 0.0
      %1172 = vmatpush2.msra.mxu0 %v849
      %1173 = vmatprep.subr.mxu0 0.0
      %1174 = vmatpush2.msra.mxu0 %v848
      %1175 = vmatprep.subr.mxu0 0.0
      %1176 = vmatpush2.msra.mxu0 %v847
      %1177 = vmatprep.subr.mxu0 0.0
      %1178 = vmatpush2.msra.mxu0 %v846
      %1179 = vmatprep.subr.mxu0 0.0
      %1180 = vmatpush2.msra.mxu0 %v845
      %1181 = vmatprep.subr.mxu0 0.0
      %1182 = vmatpush2.msra.mxu0 %v844
      %1183 = vmatprep.subr.mxu0 0.0
      %1184 = vmatpush2.msra.mxu0 %v843
      %1185 = vmatprep.mubr.f32.mxu0 %v1106
      %1186 = vmatmul.mubr.f32.gmra.mxu0 %v1105
      %v1187 = vpop.f32.mrf.mxu0
      %v1188 = vadd.f32 0.0, %v1187
      %v1189 = vpop.f32.mrf.mxu0
      %1190 = vmatprep.mubr.f32.mxu0 %v1108
      %1191 = vmatmul.mubr.f32.gmra.mxu0 %v1107
      %v1192 = vpop.f32.mrf.mxu0
      %v1193 = vadd.f32 0.0, %v1192
      %v1194 = vpop.f32.mrf.mxu0
      %1195 = vmatprep.mubr.f32.mxu0 %v1110
      %1196 = vmatmul.mubr.f32.gmra.mxu0 %v1109
      %v1197 = vpop.f32.mrf.mxu0
      %v1198 = vadd.f32 0.0, %v1197
      %v1199 = vpop.f32.mrf.mxu0
      %1200 = vmatprep.mubr.f32.mxu0 %v1112
      %1201 = vmatmul.mubr.f32.gmra.mxu0 %v1111
      %v1202 = vpop.f32.mrf.mxu0
      %v1203 = vadd.f32 0.0, %v1202
      %v1204 = vpop.f32.mrf.mxu0
      %1205 = vmatprep.mubr.f32.mxu0 %v1114
      %1206 = vmatmul.mubr.f32.gmra.mxu0 %v1113
      %v1207 = vpop.f32.mrf.mxu0
      %v1208 = vadd.f32 0.0, %v1207
      %v1209 = vpop.f32.mrf.mxu0
      %1210 = vmatprep.mubr.f32.mxu0 %v1116
      %1211 = vmatmul.mubr.f32.gmra.mxu0 %v1115
      %v1212 = vpop.f32.mrf.mxu0
      %v1213 = vadd.f32 0.0, %v1212
      %v1214 = vpop.f32.mrf.mxu0
      %1215 = vmatprep.mubr.f32.mxu0 %v1118
      %1216 = vmatmul.mubr.f32.gmra.mxu0 %v1117
      %v1217 = vpop.f32.mrf.mxu0
      %v1218 = vadd.f32 0.0, %v1217
      %v1219 = vpop.f32.mrf.mxu0
      %1220 = vmatprep.mubr.f32.mxu0 %v1120
      %1221 = vmatmul.mubr.f32.gmra.mxu0 %v1119
      %v1222 = vpop.f32.mrf.mxu0
      %v1223 = vadd.f32 0.0, %v1222
      %v1224 = vpop.f32.mrf.mxu0
      %1225 = vdwg.mxu0
      %v1226 = vld [vmem:[%s6] sm:$0xff]
      %v1227 = vld [vmem:[%s6 + $0x8] sm:$0xff]
      %v1228 = vld [vmem:[%s6 + $0x10] sm:$0xff]
      %v1229 = vld [vmem:[%s6 + $0x18] sm:$0xff]
      %v1230 = vld [vmem:[%s6 + $0x20] sm:$0xff]
      %v1231 = vld [vmem:[%s6 + $0x28] sm:$0xff]
      %v1232 = vld [vmem:[%s6 + $0x30] sm:$0xff]
      %v1233 = vld [vmem:[%s6 + $0x38] sm:$0xff]
      %v1234 = vld [vmem:[%s6 + $0x40] sm:$0xff]
      %v1235 = vld [vmem:[%s6 + $0x48] sm:$0xff]
      %v1236 = vld [vmem:[%s6 + $0x50] sm:$0xff]
      %v1237 = vld [vmem:[%s6 + $0x58] sm:$0xff]
      %v1238 = vld [vmem:[%s6 + $0x60] sm:$0xff]
      %v1239 = vld [vmem:[%s6 + $0x68] sm:$0xff]
      %v1240 = vld [vmem:[%s6 + $0x70] sm:$0xff]
      %v1241 = vld [vmem:[%s6 + $0x78] sm:$0xff]
      %v1242 = vld [vmem:[%s2 + $0x3] sm:$0x1]
      %v1243 = vlaneseq
      %v1244 = vshrl.u32 %v1243, 7
      %v1245 = vsub.s32 0, %v1244
      %v1246 = vrot.slane %v1242, %v1245
      %1247 = vmatprep.subr.mxu0 0.0
      %1248 = vmatpush1.msra.mxu0 %v1241
      %1249 = vmatprep.subr.mxu0 0.0
      %1250 = vmatpush1.msra.mxu0 %v1240
      %1251 = vmatprep.subr.mxu0 0.0
      %1252 = vmatpush1.msra.mxu0 %v1239
      %1253 = vmatprep.subr.mxu0 0.0
      %1254 = vmatpush1.msra.mxu0 %v1238
      %1255 = vmatprep.subr.mxu0 0.0
      %1256 = vmatpush1.msra.mxu0 %v1237
      %1257 = vmatprep.subr.mxu0 0.0
      %1258 = vmatpush1.msra.mxu0 %v1236
      %1259 = vmatprep.subr.mxu0 0.0
      %1260 = vmatpush1.msra.mxu0 %v1235
      %1261 = vmatprep.subr.mxu0 0.0
      %1262 = vmatpush1.msra.mxu0 %v1234
      %1263 = vmatprep.subr.mxu0 0.0
      %1264 = vmatpush1.msra.mxu0 %v1233
      %1265 = vmatprep.subr.mxu0 0.0
      %1266 = vmatpush1.msra.mxu0 %v1232
      %1267 = vmatprep.subr.mxu0 0.0
      %1268 = vmatpush1.msra.mxu0 %v1231
      %1269 = vmatprep.subr.mxu0 0.0
      %1270 = vmatpush1.msra.mxu0 %v1230
      %1271 = vmatprep.subr.mxu0 0.0
      %1272 = vmatpush1.msra.mxu0 %v1229
      %1273 = vmatprep.subr.mxu0 0.0
      %1274 = vmatpush1.msra.mxu0 %v1228
      %1275 = vmatprep.subr.mxu0 0.0
      %1276 = vmatpush1.msra.mxu0 %v1227
      %1277 = vmatprep.subr.mxu0 0.0
      %1278 = vmatpush1.msra.mxu0 %v1226
      %1279 = vmatprep.subr.mxu0 0.0
      %1280 = vmatpush2.msra.mxu0 0.0
      %1281 = vmatprep.subr.mxu0 0.0
      %1282 = vmatpush2.msra.mxu0 0.0
      %1283 = vmatprep.subr.mxu0 0.0
      %1284 = vmatpush2.msra.mxu0 0.0
      %1285 = vmatprep.subr.mxu0 0.0
      %1286 = vmatpush2.msra.mxu0 0.0
      %1287 = vmatprep.subr.mxu0 0.0
      %1288 = vmatpush2.msra.mxu0 0.0
      %1289 = vmatprep.subr.mxu0 0.0
      %1290 = vmatpush2.msra.mxu0 0.0
      %1291 = vmatprep.subr.mxu0 0.0
      %1292 = vmatpush2.msra.mxu0 0.0
      %1293 = vmatprep.subr.mxu0 0.0
      %1294 = vmatpush2.msra.mxu0 0.0
      %1295 = vmatprep.subr.mxu0 0.0
      %1296 = vmatpush2.msra.mxu0 0.0
      %1297 = vmatprep.subr.mxu0 0.0
      %1298 = vmatpush2.msra.mxu0 0.0
      %1299 = vmatprep.subr.mxu0 0.0
      %1300 = vmatpush2.msra.mxu0 0.0
      %1301 = vmatprep.subr.mxu0 0.0
      %1302 = vmatpush2.msra.mxu0 0.0
      %1303 = vmatprep.subr.mxu0 0.0
      %1304 = vmatpush2.msra.mxu0 0.0
      %1305 = vmatprep.subr.mxu0 0.0
      %1306 = vmatpush2.msra.mxu0 0.0
      %1307 = vmatprep.subr.mxu0 0.0
      %1308 = vmatpush2.msra.mxu0 0.0
      %1309 = vmatprep.subr.mxu0 0.0
      %1310 = vmatpush2.msra.mxu0 0.0
      %1311 = vmatprep.mubr.f32.mxu0 0.0
      %1312 = vmatmul.mubr.f32.gmra.mxu0 %v1188
      %v1313 = vpop.f32.mrf.mxu0
      %v1314 = vadd.f32 %v1246, %v1313
      %v1315 = vpop.f32.mrf.mxu0
      %1316 = vmatprep.mubr.f32.mxu0 0.0
      %1317 = vmatmul.mubr.f32.gmra.mxu0 %v1193
      %v1318 = vpop.f32.mrf.mxu0
      %v1319 = vadd.f32 %v1246, %v1318
      %v1320 = vpop.f32.mrf.mxu0
      %1321 = vmatprep.mubr.f32.mxu0 0.0
      %1322 = vmatmul.mubr.f32.gmra.mxu0 %v1198
      %v1323 = vpop.f32.mrf.mxu0
      %v1324 = vadd.f32 %v1246, %v1323
      %v1325 = vpop.f32.mrf.mxu0
      %1326 = vmatprep.mubr.f32.mxu0 0.0
      %1327 = vmatmul.mubr.f32.gmra.mxu0 %v1203
      %v1328 = vpop.f32.mrf.mxu0
      %v1329 = vadd.f32 %v1246, %v1328
      %v1330 = vpop.f32.mrf.mxu0
      %1331 = vmatprep.mubr.f32.mxu0 0.0
      %1332 = vmatmul.mubr.f32.gmra.mxu0 %v1208
      %v1333 = vpop.f32.mrf.mxu0
      %v1334 = vadd.f32 %v1246, %v1333
      %v1335 = vpop.f32.mrf.mxu0
      %1336 = vmatprep.mubr.f32.mxu0 0.0
      %1337 = vmatmul.mubr.f32.gmra.mxu0 %v1213
      %v1338 = vpop.f32.mrf.mxu0
      %v1339 = vadd.f32 %v1246, %v1338
      %v1340 = vpop.f32.mrf.mxu0
      %1341 = vmatprep.mubr.f32.mxu0 0.0
      %1342 = vmatmul.mubr.f32.gmra.mxu0 %v1218
      %v1343 = vpop.f32.mrf.mxu0
      %v1344 = vadd.f32 %v1246, %v1343
      %v1345 = vpop.f32.mrf.mxu0
      %1346 = vmatprep.mubr.f32.mxu0 0.0
      %1347 = vmatmul.mubr.f32.gmra.mxu0 %v1223
      %v1348 = vpop.f32.mrf.mxu0
      %v1349 = vadd.f32 %v1246, %v1348
      %v1350 = vpop.f32.mrf.mxu0
      %1351 = vdwg.mxu0
      %v1352 = vld [vmem:[%s2 + $0x4] sm:$0x1]
      %v1353 = vld [vmem:[%s2 + $0x5] sm:$0x1]
      %1354 = vadd.xlane.f32.xlu0 %v1314
      %v1355 = vpop.xlane.xlu0 %1354
      %1356 = vadd.xlane.f32.xlu0 %v1319
      %v1357 = vpop.xlane.xlu0 %1356
      %1358 = vadd.xlane.f32.xlu0 %v1324
      %v1359 = vpop.xlane.xlu0 %1358
      %1360 = vadd.xlane.f32.xlu0 %v1329
      %v1361 = vpop.xlane.xlu0 %1360
      %1362 = vadd.xlane.f32.xlu0 %v1334
      %v1363 = vpop.xlane.xlu0 %1362
      %1364 = vadd.xlane.f32.xlu0 %v1339
      %v1365 = vpop.xlane.xlu0 %1364
      %1366 = vadd.xlane.f32.xlu0 %v1344
      %v1367 = vpop.xlane.xlu0 %1366
      %1368 = vadd.xlane.f32.xlu0 %v1349
      %v1369 = vpop.xlane.xlu0 %1368
      %v1370 = vmul.f32 %v1355, %v498
      %v1371 = vmul.f32 %v1357, %v498
      %v1372 = vmul.f32 %v1359, %v498
      %v1373 = vmul.f32 %v1361, %v498
      %v1374 = vmul.f32 %v1363, %v498
      %v1375 = vmul.f32 %v1365, %v498
      %v1376 = vmul.f32 %v1367, %v498
      %v1377 = vmul.f32 %v1369, %v498
      %v1378 = vsub.f32 %v1314, %v1370
      %v1379 = vsub.f32 %v1319, %v1371
      %v1380 = vsub.f32 %v1324, %v1372
      %v1381 = vsub.f32 %v1329, %v1373
      %v1382 = vsub.f32 %v1334, %v1374
      %v1383 = vsub.f32 %v1339, %v1375
      %v1384 = vsub.f32 %v1344, %v1376
      %v1385 = vsub.f32 %v1349, %v1377
      %v1386 = vmul.f32 %v1378, %v1378
      %v1387 = vmul.f32 %v1379, %v1379
      %v1388 = vmul.f32 %v1380, %v1380
      %v1389 = vmul.f32 %v1381, %v1381
      %v1390 = vmul.f32 %v1382, %v1382
      %v1391 = vmul.f32 %v1383, %v1383
      %v1392 = vmul.f32 %v1384, %v1384
      %v1393 = vmul.f32 %v1385, %v1385
      %1394 = vadd.xlane.f32.xlu0 %v1386
      %v1395 = vpop.xlane.xlu0 %1394
      %1396 = vadd.xlane.f32.xlu0 %v1387
      %v1397 = vpop.xlane.xlu0 %1396
      %1398 = vadd.xlane.f32.xlu0 %v1388
      %v1399 = vpop.xlane.xlu0 %1398
      %1400 = vadd.xlane.f32.xlu0 %v1389
      %v1401 = vpop.xlane.xlu0 %1400
      %1402 = vadd.xlane.f32.xlu0 %v1390
      %v1403 = vpop.xlane.xlu0 %1402
      %1404 = vadd.xlane.f32.xlu0 %v1391
      %v1405 = vpop.xlane.xlu0 %1404
      %1406 = vadd.xlane.f32.xlu0 %v1392
      %v1407 = vpop.xlane.xlu0 %1406
      %1408 = vadd.xlane.f32.xlu0 %v1393
      %v1409 = vpop.xlane.xlu0 %1408
      %v1410 = vmul.f32 %v1395, %v498
      %v1411 = vmul.f32 %v1397, %v498
      %v1412 = vmul.f32 %v1399, %v498
      %v1413 = vmul.f32 %v1401, %v498
      %v1414 = vmul.f32 %v1403, %v498
      %v1415 = vmul.f32 %v1405, %v498
      %v1416 = vmul.f32 %v1407, %v498
      %v1417 = vmul.f32 %v1409, %v498
      %v1418 = vadd.f32 %v1410, 1e-05
      %v1419 = vadd.f32 %v1411, 1e-05
      %v1420 = vadd.f32 %v1412, 1e-05
      %v1421 = vadd.f32 %v1413, 1e-05
      %v1422 = vadd.f32 %v1414, 1e-05
      %v1423 = vadd.f32 %v1415, 1e-05
      %v1424 = vadd.f32 %v1416, 1e-05
      %v1425 = vadd.f32 %v1417, 1e-05
      %v1426 = vrsqrt.pop %v1418
      %v1427 = vrsqrt.pop %v1419
      %v1428 = vrsqrt.pop %v1420
      %v1429 = vrsqrt.pop %v1421
      %v1430 = vrsqrt.pop %v1422
      %v1431 = vrsqrt.pop %v1423
      %v1432 = vrsqrt.pop %v1424
      %v1433 = vrsqrt.pop %v1425
      %v1434 = vmul.f32 %v1378, %v1426
      %v1435 = vmul.f32 %v1379, %v1427
      %v1436 = vmul.f32 %v1380, %v1428
      %v1437 = vmul.f32 %v1381, %v1429
      %v1438 = vmul.f32 %v1382, %v1430
      %v1439 = vmul.f32 %v1383, %v1431
      %v1440 = vmul.f32 %v1384, %v1432
      %v1441 = vmul.f32 %v1385, %v1433
      %v1442 = vlaneseq
      %v1443 = vshrl.u32 %v1442, 7
      %v1444 = vsub.s32 0, %v1443
      %v1445 = vrot.slane %v1352, %v1444
      %v1446 = vmul.f32 %v1434, %v1445
      %v1447 = vmul.f32 %v1435, %v1445
      %v1448 = vmul.f32 %v1436, %v1445
      %v1449 = vmul.f32 %v1437, %v1445
      %v1450 = vmul.f32 %v1438, %v1445
      %v1451 = vmul.f32 %v1439, %v1445
      %v1452 = vmul.f32 %v1440, %v1445
      %v1453 = vmul.f32 %v1441, %v1445
      %v1454 = vlaneseq
      %v1455 = vshrl.u32 %v1454, 7
      %v1456 = vsub.s32 0, %v1455
      %v1457 = vrot.slane %v1353, %v1456
      %v1458 = vadd.f32 %v1446, %v1457
      %v1459 = vadd.f32 %v1447, %v1457
      %v1460 = vadd.f32 %v1448, %v1457
      %v1461 = vadd.f32 %v1449, %v1457
      %v1462 = vadd.f32 %v1450, %v1457
      %v1463 = vadd.f32 %v1451, %v1457
      %v1464 = vadd.f32 %v1452, %v1457
      %v1465 = vadd.f32 %v1453, %v1457
      %v1466 = vld [vmem:[%s4] sm:$0xff]
      %v1467 = vld [vmem:[%s4 + $0x8] sm:$0xff]
      %v1468 = vld [vmem:[%s4 + $0x10] sm:$0xff]
      %v1469 = vld [vmem:[%s4 + $0x18] sm:$0xff]
      %v1470 = vld [vmem:[%s4 + $0x20] sm:$0xff]
      %v1471 = vld [vmem:[%s4 + $0x28] sm:$0xff]
      %v1472 = vld [vmem:[%s4 + $0x30] sm:$0xff]
      %v1473 = vld [vmem:[%s4 + $0x38] sm:$0xff]
      %v1474 = vld [vmem:[%s4 + $0x40] sm:$0xff]
      %v1475 = vld [vmem:[%s4 + $0x48] sm:$0xff]
      %v1476 = vld [vmem:[%s4 + $0x50] sm:$0xff]
      %v1477 = vld [vmem:[%s4 + $0x58] sm:$0xff]
      %v1478 = vld [vmem:[%s4 + $0x60] sm:$0xff]
      %v1479 = vld [vmem:[%s4 + $0x68] sm:$0xff]
      %v1480 = vld [vmem:[%s4 + $0x70] sm:$0xff]
      %v1481 = vld [vmem:[%s4 + $0x78] sm:$0xff]
      %v1482 = vld [vmem:[%s4 + $0x80] sm:$0xff]
      %v1483 = vld [vmem:[%s4 + $0x88] sm:$0xff]
      %v1484 = vld [vmem:[%s4 + $0x90] sm:$0xff]
      %v1485 = vld [vmem:[%s4 + $0x98] sm:$0xff]
      %v1486 = vld [vmem:[%s4 + $0xa0] sm:$0xff]
      %v1487 = vld [vmem:[%s4 + $0xa8] sm:$0xff]
      %v1488 = vld [vmem:[%s4 + $0xb0] sm:$0xff]
      %v1489 = vld [vmem:[%s4 + $0xb8] sm:$0xff]
      %v1490 = vld [vmem:[%s4 + $0xc0] sm:$0xff]
      %v1491 = vld [vmem:[%s4 + $0xc8] sm:$0xff]
      %v1492 = vld [vmem:[%s4 + $0xd0] sm:$0xff]
      %v1493 = vld [vmem:[%s4 + $0xd8] sm:$0xff]
      %v1494 = vld [vmem:[%s4 + $0xe0] sm:$0xff]
      %v1495 = vld [vmem:[%s4 + $0xe8] sm:$0xff]
      %v1496 = vld [vmem:[%s4 + $0xf0] sm:$0xff]
      %v1497 = vld [vmem:[%s4 + $0xf8] sm:$0xff]
      %v1498 = vld [vmem:[%s5] sm:$0x3]
      %v1500 = vlaneseq
      %v1501 = vshrl.u32 %v1500, 7
      %v1502 = vsub.s32 0, %v1501
      %v1503 = vrot.slane %v1498, %v1502
      %v1504 = vlaneseq
      %v1505 = vshrl.u32 %v1504, 7
      %v1506 = vsub.s32 1, %v1505
      %v1507 = vrot.slane %v1498, %v1506
      %1510 = vmatprep.subr.mxu0 %v1497
      %1511 = vmatpush1.msra.mxu0 %v1496
      %1512 = vmatprep.subr.mxu0 %v1495
      %1513 = vmatpush1.msra.mxu0 %v1494
      %1514 = vmatprep.subr.mxu0 %v1493
      %1515 = vmatpush1.msra.mxu0 %v1492
      %1516 = vmatprep.subr.mxu0 %v1491
      %1517 = vmatpush1.msra.mxu0 %v1490
      %1518 = vmatprep.subr.mxu0 %v1489
      %1519 = vmatpush1.msra.mxu0 %v1488
      %1520 = vmatprep.subr.mxu0 %v1487
      %1521 = vmatpush1.msra.mxu0 %v1486
      %1522 = vmatprep.subr.mxu0 %v1485
      %1523 = vmatpush1.msra.mxu0 %v1484
      %1524 = vmatprep.subr.mxu0 %v1483
      %1525 = vmatpush1.msra.mxu0 %v1482
      %1526 = vmatprep.subr.mxu0 %v1481
      %1527 = vmatpush1.msra.mxu0 %v1480
      %1528 = vmatprep.subr.mxu0 %v1479
      %1529 = vmatpush1.msra.mxu0 %v1478
      %1530 = vmatprep.subr.mxu0 %v1477
      %1531 = vmatpush1.msra.mxu0 %v1476
      %1532 = vmatprep.subr.mxu0 %v1475
      %1533 = vmatpush1.msra.mxu0 %v1474
      %1534 = vmatprep.subr.mxu0 %v1473
      %1535 = vmatpush1.msra.mxu0 %v1472
      %1536 = vmatprep.subr.mxu0 %v1471
      %1537 = vmatpush1.msra.mxu0 %v1470
      %1538 = vmatprep.subr.mxu0 %v1469
      %1539 = vmatpush1.msra.mxu0 %v1468
      %1540 = vmatprep.subr.mxu0 %v1467
      %1541 = vmatpush1.msra.mxu0 %v1466
      %1542 = vmatprep.subr.mxu0 0.0
      %1543 = vmatpush2.msra.mxu0 0.0
      %1544 = vmatprep.subr.mxu0 0.0
      %1545 = vmatpush2.msra.mxu0 0.0
      %1546 = vmatprep.subr.mxu0 0.0
      %1547 = vmatpush2.msra.mxu0 0.0
      %1548 = vmatprep.subr.mxu0 0.0
      %1549 = vmatpush2.msra.mxu0 0.0
      %1550 = vmatprep.subr.mxu0 0.0
      %1551 = vmatpush2.msra.mxu0 0.0
      %1552 = vmatprep.subr.mxu0 0.0
      %1553 = vmatpush2.msra.mxu0 0.0
      %1554 = vmatprep.subr.mxu0 0.0
      %1555 = vmatpush2.msra.mxu0 0.0
      %1556 = vmatprep.subr.mxu0 0.0
      %1557 = vmatpush2.msra.mxu0 0.0
      %1558 = vmatprep.subr.mxu0 0.0
      %1559 = vmatpush2.msra.mxu0 0.0
      %1560 = vmatprep.subr.mxu0 0.0
      %1561 = vmatpush2.msra.mxu0 0.0
      %1562 = vmatprep.subr.mxu0 0.0
      %1563 = vmatpush2.msra.mxu0 0.0
      %1564 = vmatprep.subr.mxu0 0.0
      %1565 = vmatpush2.msra.mxu0 0.0
      %1566 = vmatprep.subr.mxu0 0.0
      %1567 = vmatpush2.msra.mxu0 0.0
      %1568 = vmatprep.subr.mxu0 0.0
      %1569 = vmatpush2.msra.mxu0 0.0
      %1570 = vmatprep.subr.mxu0 0.0
      %1571 = vmatpush2.msra.mxu0 0.0
      %1572 = vmatprep.subr.mxu0 0.0
      %1573 = vmatpush2.msra.mxu0 0.0
      %1574 = vmatprep.mubr.f32.mxu0 0.0
      %1575 = vmatmul.mubr.f32.gmra.mxu0 %v1458
      %v1576 = vpop.f32.mrf.mxu0
      %v1577 = vadd.f32 %v1503, %v1576
      %v1578 = vpop.f32.mrf.mxu0
      %v1579 = vadd.f32 %v1507, %v1578
      %1580 = vmatprep.mubr.f32.mxu0 0.0
      %1581 = vmatmul.mubr.f32.gmra.mxu0 %v1459
      %v1582 = vpop.f32.mrf.mxu0
      %v1583 = vadd.f32 %v1503, %v1582
      %v1584 = vpop.f32.mrf.mxu0
      %v1585 = vadd.f32 %v1507, %v1584
      %1586 = vmatprep.mubr.f32.mxu0 0.0
      %1587 = vmatmul.mubr.f32.gmra.mxu0 %v1460
      %v1588 = vpop.f32.mrf.mxu0
      %v1589 = vadd.f32 %v1503, %v1588
      %v1590 = vpop.f32.mrf.mxu0
      %v1591 = vadd.f32 %v1507, %v1590
      %1592 = vmatprep.mubr.f32.mxu0 0.0
      %1593 = vmatmul.mubr.f32.gmra.mxu0 %v1461
      %v1594 = vpop.f32.mrf.mxu0
      %v1595 = vadd.f32 %v1503, %v1594
      %v1596 = vpop.f32.mrf.mxu0
      %v1597 = vadd.f32 %v1507, %v1596
      %1598 = vmatprep.mubr.f32.mxu0 0.0
      %1599 = vmatmul.mubr.f32.gmra.mxu0 %v1462
      %v1600 = vpop.f32.mrf.mxu0
      %v1601 = vadd.f32 %v1503, %v1600
      %v1602 = vpop.f32.mrf.mxu0
      %v1603 = vadd.f32 %v1507, %v1602
      %1604 = vmatprep.mubr.f32.mxu0 0.0
      %1605 = vmatmul.mubr.f32.gmra.mxu0 %v1463
      %v1606 = vpop.f32.mrf.mxu0
      %v1607 = vadd.f32 %v1503, %v1606
      %v1608 = vpop.f32.mrf.mxu0
      %v1609 = vadd.f32 %v1507, %v1608
      %1610 = vmatprep.mubr.f32.mxu0 0.0
      %1611 = vmatmul.mubr.f32.gmra.mxu0 %v1464
      %v1612 = vpop.f32.mrf.mxu0
      %v1613 = vadd.f32 %v1503, %v1612
      %v1614 = vpop.f32.mrf.mxu0
      %v1615 = vadd.f32 %v1507, %v1614
      %1616 = vmatprep.mubr.f32.mxu0 0.0
      %1617 = vmatmul.mubr.f32.gmra.mxu0 %v1465
      %v1618 = vpop.f32.mrf.mxu0
      %v1619 = vadd.f32 %v1503, %v1618
      %v1620 = vpop.f32.mrf.mxu0
      %v1621 = vadd.f32 %v1507, %v1620
      %1622 = vdwg.mxu0
      %vm1623 = vcmask 523264
      %v1625 = vsel %vm1623, %v947, 0
      %v1628 = vsel %vm1623, %v952, 0
      %v1631 = vsel %vm1623, %v957, 0
      %v1634 = vsel %vm1623, %v962, 0
      %v1637 = vsel %vm1623, %v967, 0
      %v1640 = vsel %vm1623, %v972, 0
      %v1643 = vsel %vm1623, %v977, 0
      %v1646 = vsel %vm1623, %v982, 0
      %v1649 = vsel %vm1623, %v987, 0
      %v1652 = vsel %vm1623, %v992, 0
      %v1655 = vsel %vm1623, %v997, 0
      %v1658 = vsel %vm1623, %v1002, 0
      %v1661 = vsel %vm1623, %v1007, 0
      %v1664 = vsel %vm1623, %v1012, 0
      %v1667 = vsel %vm1623, %v1017, 0
      %v1670 = vsel %vm1623, %v1022, 0
      %v1673 = vsel %vm1623, %v1027, 0
      %v1676 = vsel %vm1623, %v1032, 0
      %v1679 = vsel %vm1623, %v1037, 0
      %v1682 = vsel %vm1623, %v1042, 0
      %v1685 = vsel %vm1623, %v1047, 0
      %v1688 = vsel %vm1623, %v1052, 0
      %v1691 = vsel %vm1623, %v1057, 0
      %v1694 = vsel %vm1623, %v1062, 0
      %v1697 = vsel %vm1623, %v1067, 0
      %v1700 = vsel %vm1623, %v1072, 0
      %v1703 = vsel %vm1623, %v1077, 0
      %v1706 = vsel %vm1623, %v1082, 0
      %v1709 = vsel %vm1623, %v1087, 0
      %v1712 = vsel %vm1623, %v1092, 0
      %v1715 = vsel %vm1623, %v1097, 0
      %v1718 = vsel %vm1623, %v1102, 0
      %v1721 = vsel %vm1623, %v1577, 0
      %v1724 = vsel %vm1623, %v1583, 0
      %v1727 = vsel %vm1623, %v1589, 0
      %v1730 = vsel %vm1623, %v1595, 0
      %v1733 = vsel %vm1623, %v1601, 0
      %v1736 = vsel %vm1623, %v1607, 0
      %v1739 = vsel %vm1623, %v1613, 0
      %v1742 = vsel %vm1623, %v1619, 0
      %1744 = vmatprep.subr.mxu0 0.0
      %1745 = vmatpush1.xpose.msra.mxu0 0.0
      %1746 = vmatprep.subr.mxu0 0.0
      %1747 = vmatpush1.xpose.msra.mxu0 0.0
      %1748 = vmatprep.subr.mxu0 0.0
      %1749 = vmatpush1.xpose.msra.mxu0 0.0
      %1750 = vmatprep.subr.mxu0 0.0
      %1751 = vmatpush1.xpose.msra.mxu0 0.0
      %1752 = vmatprep.subr.mxu0 0.0
      %1753 = vmatpush1.xpose.msra.mxu0 0.0
      %1754 = vmatprep.subr.mxu0 0.0
      %1755 = vmatpush1.xpose.msra.mxu0 0.0
      %1756 = vmatprep.subr.mxu0 0.0
      %1757 = vmatpush1.xpose.msra.mxu0 0.0
      %1758 = vmatprep.subr.mxu0 0.0
      %1759 = vmatpush1.xpose.msra.mxu0 0.0
      %1760 = vmatprep.subr.mxu0 0.0
      %1761 = vmatpush1.xpose.msra.mxu0 %v1742
      %1762 = vmatprep.subr.mxu0 0.0
      %1763 = vmatpush1.xpose.msra.mxu0 %v1739
      %1764 = vmatprep.subr.mxu0 0.0
      %1765 = vmatpush1.xpose.msra.mxu0 %v1736
      %1766 = vmatprep.subr.mxu0 0.0
      %1767 = vmatpush1.xpose.msra.mxu0 %v1733
      %1768 = vmatprep.subr.mxu0 0.0
      %1769 = vmatpush1.xpose.msra.mxu0 %v1730
      %1770 = vmatprep.subr.mxu0 0.0
      %1771 = vmatpush1.xpose.msra.mxu0 %v1727
      %1772 = vmatprep.subr.mxu0 0.0
      %1773 = vmatpush1.xpose.msra.mxu0 %v1724
      %1774 = vmatprep.subr.mxu0 0.0
      %1775 = vmatpush1.xpose.msra.mxu0 %v1721
      %1776 = vmatprep.subr.mxu0 0.0
      %1777 = vmatpush2.xpose.msra.mxu0 0.0
      %1778 = vmatprep.subr.mxu0 0.0
      %1779 = vmatpush2.xpose.msra.mxu0 0.0
      %1780 = vmatprep.subr.mxu0 0.0
      %1781 = vmatpush2.xpose.msra.mxu0 0.0
      %1782 = vmatprep.subr.mxu0 0.0
      %1783 = vmatpush2.xpose.msra.mxu0 0.0
      %1784 = vmatprep.subr.mxu0 0.0
      %1785 = vmatpush2.xpose.msra.mxu0 0.0
      %1786 = vmatprep.subr.mxu0 0.0
      %1787 = vmatpush2.xpose.msra.mxu0 0.0
      %1788 = vmatprep.subr.mxu0 0.0
      %1789 = vmatpush2.xpose.msra.mxu0 0.0
      %1790 = vmatprep.subr.mxu0 0.0
      %1791 = vmatpush2.xpose.msra.mxu0 0.0
      %1792 = vmatprep.subr.mxu0 0.0
      %1793 = vmatpush2.xpose.msra.mxu0 0.0
      %1794 = vmatprep.subr.mxu0 0.0
      %1795 = vmatpush2.xpose.msra.mxu0 0.0
      %1796 = vmatprep.subr.mxu0 0.0
      %1797 = vmatpush2.xpose.msra.mxu0 0.0
      %1798 = vmatprep.subr.mxu0 0.0
      %1799 = vmatpush2.xpose.msra.mxu0 0.0
      %1800 = vmatprep.subr.mxu0 0.0
      %1801 = vmatpush2.xpose.msra.mxu0 0.0
      %1802 = vmatprep.subr.mxu0 0.0
      %1803 = vmatpush2.xpose.msra.mxu0 0.0
      %1804 = vmatprep.subr.mxu0 0.0
      %1805 = vmatpush2.xpose.msra.mxu0 0.0
      %1806 = vmatprep.subr.mxu0 0.0
      %1807 = vmatpush2.xpose.msra.mxu0 0.0
      %1808 = vmatprep.mubr.f32.mxu0 0.0
      %1809 = vmatmul.mubr.f32.gmra.mxu0 %v1625
      %v1810 = vpop.f32.mrf.mxu0
      %v1811 = vadd.f32 0.0, %v1810
      %v1812 = vpop.f32.mrf.mxu0
      %1813 = vmatprep.mubr.f32.mxu0 0.0
      %1814 = vmatmul.mubr.f32.gmra.mxu0 %v1628
      %v1815 = vpop.f32.mrf.mxu0
      %v1816 = vadd.f32 0.0, %v1815
      %v1817 = vpop.f32.mrf.mxu0
      %1818 = vmatprep.mubr.f32.mxu0 0.0
      %1819 = vmatmul.mubr.f32.gmra.mxu0 %v1631
      %v1820 = vpop.f32.mrf.mxu0
      %v1821 = vadd.f32 0.0, %v1820
      %v1822 = vpop.f32.mrf.mxu0
      %1823 = vmatprep.mubr.f32.mxu0 0.0
      %1824 = vmatmul.mubr.f32.gmra.mxu0 %v1634
      %v1825 = vpop.f32.mrf.mxu0
      %v1826 = vadd.f32 0.0, %v1825
      %v1827 = vpop.f32.mrf.mxu0
      %1828 = vmatprep.mubr.f32.mxu0 0.0
      %1829 = vmatmul.mubr.f32.gmra.mxu0 %v1637
      %v1830 = vpop.f32.mrf.mxu0
      %v1831 = vadd.f32 0.0, %v1830
      %v1832 = vpop.f32.mrf.mxu0
      %1833 = vmatprep.mubr.f32.mxu0 0.0
      %1834 = vmatmul.mubr.f32.gmra.mxu0 %v1640
      %v1835 = vpop.f32.mrf.mxu0
      %v1836 = vadd.f32 0.0, %v1835
      %v1837 = vpop.f32.mrf.mxu0
      %1838 = vmatprep.mubr.f32.mxu0 0.0
      %1839 = vmatmul.mubr.f32.gmra.mxu0 %v1643
      %v1840 = vpop.f32.mrf.mxu0
      %v1841 = vadd.f32 0.0, %v1840
      %v1842 = vpop.f32.mrf.mxu0
      %1843 = vmatprep.mubr.f32.mxu0 0.0
      %1844 = vmatmul.mubr.f32.gmra.mxu0 %v1646
      %v1845 = vpop.f32.mrf.mxu0
      %v1846 = vadd.f32 0.0, %v1845
      %v1847 = vpop.f32.mrf.mxu0
      %1848 = vmatprep.mubr.f32.mxu0 0.0
      %1849 = vmatmul.mubr.f32.gmra.mxu0 %v1649
      %v1850 = vpop.f32.mrf.mxu0
      %v1851 = vadd.f32 0.0, %v1850
      %v1852 = vpop.f32.mrf.mxu0
      %1853 = vmatprep.mubr.f32.mxu0 0.0
      %1854 = vmatmul.mubr.f32.gmra.mxu0 %v1652
      %v1855 = vpop.f32.mrf.mxu0
      %v1856 = vadd.f32 0.0, %v1855
      %v1857 = vpop.f32.mrf.mxu0
      %1858 = vmatprep.mubr.f32.mxu0 0.0
      %1859 = vmatmul.mubr.f32.gmra.mxu0 %v1655
      %v1860 = vpop.f32.mrf.mxu0
      %v1861 = vadd.f32 0.0, %v1860
      %v1862 = vpop.f32.mrf.mxu0
      %1863 = vmatprep.mubr.f32.mxu0 0.0
      %1864 = vmatmul.mubr.f32.gmra.mxu0 %v1658
      %v1865 = vpop.f32.mrf.mxu0
      %v1866 = vadd.f32 0.0, %v1865
      %v1867 = vpop.f32.mrf.mxu0
      %1868 = vmatprep.mubr.f32.mxu0 0.0
      %1869 = vmatmul.mubr.f32.gmra.mxu0 %v1661
      %v1870 = vpop.f32.mrf.mxu0
      %v1871 = vadd.f32 0.0, %v1870
      %v1872 = vpop.f32.mrf.mxu0
      %1873 = vmatprep.mubr.f32.mxu0 0.0
      %1874 = vmatmul.mubr.f32.gmra.mxu0 %v1664
      %v1875 = vpop.f32.mrf.mxu0
      %v1876 = vadd.f32 0.0, %v1875
      %v1877 = vpop.f32.mrf.mxu0
      %1878 = vmatprep.mubr.f32.mxu0 0.0
      %1879 = vmatmul.mubr.f32.gmra.mxu0 %v1667
      %v1880 = vpop.f32.mrf.mxu0
      %v1881 = vadd.f32 0.0, %v1880
      %v1882 = vpop.f32.mrf.mxu0
      %1883 = vmatprep.mubr.f32.mxu0 0.0
      %1884 = vmatmul.mubr.f32.gmra.mxu0 %v1670
      %v1885 = vpop.f32.mrf.mxu0
      %v1886 = vadd.f32 0.0, %v1885
      %v1887 = vpop.f32.mrf.mxu0
      %1888 = vmatprep.mubr.f32.mxu0 0.0
      %1889 = vmatmul.mubr.f32.gmra.mxu0 %v1673
      %v1890 = vpop.f32.mrf.mxu0
      %v1891 = vadd.f32 0.0, %v1890
      %v1892 = vpop.f32.mrf.mxu0
      %1893 = vmatprep.mubr.f32.mxu0 0.0
      %1894 = vmatmul.mubr.f32.gmra.mxu0 %v1676
      %v1895 = vpop.f32.mrf.mxu0
      %v1896 = vadd.f32 0.0, %v1895
      %v1897 = vpop.f32.mrf.mxu0
      %1898 = vmatprep.mubr.f32.mxu0 0.0
      %1899 = vmatmul.mubr.f32.gmra.mxu0 %v1679
      %v1900 = vpop.f32.mrf.mxu0
      %v1901 = vadd.f32 0.0, %v1900
      %v1902 = vpop.f32.mrf.mxu0
      %1903 = vmatprep.mubr.f32.mxu0 0.0
      %1904 = vmatmul.mubr.f32.gmra.mxu0 %v1682
      %v1905 = vpop.f32.mrf.mxu0
      %v1906 = vadd.f32 0.0, %v1905
      %v1907 = vpop.f32.mrf.mxu0
      %1908 = vmatprep.mubr.f32.mxu0 0.0
      %1909 = vmatmul.mubr.f32.gmra.mxu0 %v1685
      %v1910 = vpop.f32.mrf.mxu0
      %v1911 = vadd.f32 0.0, %v1910
      %v1912 = vpop.f32.mrf.mxu0
      %1913 = vmatprep.mubr.f32.mxu0 0.0
      %1914 = vmatmul.mubr.f32.gmra.mxu0 %v1688
      %v1915 = vpop.f32.mrf.mxu0
      %v1916 = vadd.f32 0.0, %v1915
      %v1917 = vpop.f32.mrf.mxu0
      %1918 = vmatprep.mubr.f32.mxu0 0.0
      %1919 = vmatmul.mubr.f32.gmra.mxu0 %v1691
      %v1920 = vpop.f32.mrf.mxu0
      %v1921 = vadd.f32 0.0, %v1920
      %v1922 = vpop.f32.mrf.mxu0
      %1923 = vmatprep.mubr.f32.mxu0 0.0
      %1924 = vmatmul.mubr.f32.gmra.mxu0 %v1694
      %v1925 = vpop.f32.mrf.mxu0
      %v1926 = vadd.f32 0.0, %v1925
      %v1927 = vpop.f32.mrf.mxu0
      %1928 = vmatprep.mubr.f32.mxu0 0.0
      %1929 = vmatmul.mubr.f32.gmra.mxu0 %v1697
      %v1930 = vpop.f32.mrf.mxu0
      %v1931 = vadd.f32 0.0, %v1930
      %v1932 = vpop.f32.mrf.mxu0
      %1933 = vmatprep.mubr.f32.mxu0 0.0
      %1934 = vmatmul.mubr.f32.gmra.mxu0 %v1700
      %v1935 = vpop.f32.mrf.mxu0
      %v1936 = vadd.f32 0.0, %v1935
      %v1937 = vpop.f32.mrf.mxu0
      %1938 = vmatprep.mubr.f32.mxu0 0.0
      %1939 = vmatmul.mubr.f32.gmra.mxu0 %v1703
      %v1940 = vpop.f32.mrf.mxu0
      %v1941 = vadd.f32 0.0, %v1940
      %v1942 = vpop.f32.mrf.mxu0
      %1943 = vmatprep.mubr.f32.mxu0 0.0
      %1944 = vmatmul.mubr.f32.gmra.mxu0 %v1706
      %v1945 = vpop.f32.mrf.mxu0
      %v1946 = vadd.f32 0.0, %v1945
      %v1947 = vpop.f32.mrf.mxu0
      %1948 = vmatprep.mubr.f32.mxu0 0.0
      %1949 = vmatmul.mubr.f32.gmra.mxu0 %v1709
      %v1950 = vpop.f32.mrf.mxu0
      %v1951 = vadd.f32 0.0, %v1950
      %v1952 = vpop.f32.mrf.mxu0
      %1953 = vmatprep.mubr.f32.mxu0 0.0
      %1954 = vmatmul.mubr.f32.gmra.mxu0 %v1712
      %v1955 = vpop.f32.mrf.mxu0
      %v1956 = vadd.f32 0.0, %v1955
      %v1957 = vpop.f32.mrf.mxu0
      %1958 = vmatprep.mubr.f32.mxu0 0.0
      %1959 = vmatmul.mubr.f32.gmra.mxu0 %v1715
      %v1960 = vpop.f32.mrf.mxu0
      %v1961 = vadd.f32 0.0, %v1960
      %v1962 = vpop.f32.mrf.mxu0
      %1963 = vmatprep.mubr.f32.mxu0 0.0
      %1964 = vmatmul.mubr.f32.gmra.mxu0 %v1718
      %v1965 = vpop.f32.mrf.mxu0
      %v1966 = vadd.f32 0.0, %v1965
      %v1967 = vpop.f32.mrf.mxu0
      %1968 = vdwg.mxu0
      %v1969 = vsel %vm1623, %v1811, -inf
      %1970 = vmax.xlane.f32.xlu0 %v1969
      %v1971 = vpop.xlane.xlu0 %1970
      %v1972 = vsel %vm1623, %v1816, -inf
      %1973 = vmax.xlane.f32.xlu0 %v1972
      %v1974 = vpop.xlane.xlu0 %1973
      %v1975 = vsel %vm1623, %v1821, -inf
      %1976 = vmax.xlane.f32.xlu0 %v1975
      %v1977 = vpop.xlane.xlu0 %1976
      %v1978 = vsel %vm1623, %v1826, -inf
      %1979 = vmax.xlane.f32.xlu0 %v1978
      %v1980 = vpop.xlane.xlu0 %1979
      %v1981 = vsel %vm1623, %v1831, -inf
      %1982 = vmax.xlane.f32.xlu0 %v1981
      %v1983 = vpop.xlane.xlu0 %1982
      %v1984 = vsel %vm1623, %v1836, -inf
      %1985 = vmax.xlane.f32.xlu0 %v1984
      %v1986 = vpop.xlane.xlu0 %1985
      %v1987 = vsel %vm1623, %v1841, -inf
      %1988 = vmax.xlane.f32.xlu0 %v1987
      %v1989 = vpop.xlane.xlu0 %1988
      %v1990 = vsel %vm1623, %v1846, -inf
      %1991 = vmax.xlane.f32.xlu0 %v1990
      %v1992 = vpop.xlane.xlu0 %1991
      %v1993 = vsel %vm1623, %v1851, -inf
      %1994 = vmax.xlane.f32.xlu0 %v1993
      %v1995 = vpop.xlane.xlu0 %1994
      %v1996 = vsel %vm1623, %v1856, -inf
      %1997 = vmax.xlane.f32.xlu0 %v1996
      %v1998 = vpop.xlane.xlu0 %1997
      %v1999 = vsel %vm1623, %v1861, -inf
      %2000 = vmax.xlane.f32.xlu0 %v1999
      %v2001 = vpop.xlane.xlu0 %2000
      %v2002 = vsel %vm1623, %v1866, -inf
      %2003 = vmax.xlane.f32.xlu0 %v2002
      %v2004 = vpop.xlane.xlu0 %2003
      %v2005 = vsel %vm1623, %v1871, -inf
      %2006 = vmax.xlane.f32.xlu0 %v2005
      %v2007 = vpop.xlane.xlu0 %2006
      %v2008 = vsel %vm1623, %v1876, -inf
      %2009 = vmax.xlane.f32.xlu0 %v2008
      %v2010 = vpop.xlane.xlu0 %2009
      %v2011 = vsel %vm1623, %v1881, -inf
      %2012 = vmax.xlane.f32.xlu0 %v2011
      %v2013 = vpop.xlane.xlu0 %2012
      %v2014 = vsel %vm1623, %v1886, -inf
      %2015 = vmax.xlane.f32.xlu0 %v2014
      %v2016 = vpop.xlane.xlu0 %2015
      %v2017 = vsel %vm1623, %v1891, -inf
      %2018 = vmax.xlane.f32.xlu0 %v2017
      %v2019 = vpop.xlane.xlu0 %2018
      %v2020 = vsel %vm1623, %v1896, -inf
      %2021 = vmax.xlane.f32.xlu0 %v2020
      %v2022 = vpop.xlane.xlu0 %2021
      %v2023 = vsel %vm1623, %v1901, -inf
      %2024 = vmax.xlane.f32.xlu0 %v2023
      %v2025 = vpop.xlane.xlu0 %2024
      %v2026 = vsel %vm1623, %v1906, -inf
      %2027 = vmax.xlane.f32.xlu0 %v2026
      %v2028 = vpop.xlane.xlu0 %2027
      %v2029 = vsel %vm1623, %v1911, -inf
      %2030 = vmax.xlane.f32.xlu0 %v2029
      %v2031 = vpop.xlane.xlu0 %2030
      %v2032 = vsel %vm1623, %v1916, -inf
      %2033 = vmax.xlane.f32.xlu0 %v2032
      %v2034 = vpop.xlane.xlu0 %2033
      %v2035 = vsel %vm1623, %v1921, -inf
      %2036 = vmax.xlane.f32.xlu0 %v2035
      %v2037 = vpop.xlane.xlu0 %2036
      %v2038 = vsel %vm1623, %v1926, -inf
      %2039 = vmax.xlane.f32.xlu0 %v2038
      %v2040 = vpop.xlane.xlu0 %2039
      %v2041 = vsel %vm1623, %v1931, -inf
      %2042 = vmax.xlane.f32.xlu0 %v2041
      %v2043 = vpop.xlane.xlu0 %2042
      %v2044 = vsel %vm1623, %v1936, -inf
      %2045 = vmax.xlane.f32.xlu0 %v2044
      %v2046 = vpop.xlane.xlu0 %2045
      %v2047 = vsel %vm1623, %v1941, -inf
      %2048 = vmax.xlane.f32.xlu0 %v2047
      %v2049 = vpop.xlane.xlu0 %2048
      %v2050 = vsel %vm1623, %v1946, -inf
      %2051 = vmax.xlane.f32.xlu0 %v2050
      %v2052 = vpop.xlane.xlu0 %2051
      %v2053 = vsel %vm1623, %v1951, -inf
      %2054 = vmax.xlane.f32.xlu0 %v2053
      %v2055 = vpop.xlane.xlu0 %2054
      %v2056 = vsel %vm1623, %v1956, -inf
      %2057 = vmax.xlane.f32.xlu0 %v2056
      %v2058 = vpop.xlane.xlu0 %2057
      %v2059 = vsel %vm1623, %v1961, -inf
      %2060 = vmax.xlane.f32.xlu0 %v2059
      %v2061 = vpop.xlane.xlu0 %2060
      %v2062 = vsel %vm1623, %v1966, -inf
      %2063 = vmax.xlane.f32.xlu0 %v2062
      %v2064 = vpop.xlane.xlu0 %2063
      %v2065 = vsub.f32 %v1811, %v1971
      %v2066 = vsub.f32 %v1816, %v1974
      %v2067 = vsub.f32 %v1821, %v1977
      %v2068 = vsub.f32 %v1826, %v1980
      %v2069 = vsub.f32 %v1831, %v1983
      %v2070 = vsub.f32 %v1836, %v1986
      %v2071 = vsub.f32 %v1841, %v1989
      %v2072 = vsub.f32 %v1846, %v1992
      %v2073 = vsub.f32 %v1851, %v1995
      %v2074 = vsub.f32 %v1856, %v1998
      %v2075 = vsub.f32 %v1861, %v2001
      %v2076 = vsub.f32 %v1866, %v2004
      %v2077 = vsub.f32 %v1871, %v2007
      %v2078 = vsub.f32 %v1876, %v2010
      %v2079 = vsub.f32 %v1881, %v2013
      %v2080 = vsub.f32 %v1886, %v2016
      %v2081 = vsub.f32 %v1891, %v2019
      %v2082 = vsub.f32 %v1896, %v2022
      %v2083 = vsub.f32 %v1901, %v2025
      %v2084 = vsub.f32 %v1906, %v2028
      %v2085 = vsub.f32 %v1911, %v2031
      %v2086 = vsub.f32 %v1916, %v2034
      %v2087 = vsub.f32 %v1921, %v2037
      %v2088 = vsub.f32 %v1926, %v2040
      %v2089 = vsub.f32 %v1931, %v2043
      %v2090 = vsub.f32 %v1936, %v2046
      %v2091 = vsub.f32 %v1941, %v2049
      %v2092 = vsub.f32 %v1946, %v2052
      %v2093 = vsub.f32 %v1951, %v2055
      %v2094 = vsub.f32 %v1956, %v2058
      %v2095 = vsub.f32 %v1961, %v2061
      %v2096 = vsub.f32 %v1966, %v2064
      %v2097 = vmul.f32 %v2065, 1.442695
      %v2098 = vpow.pop %v2097
      %v2099 = vmul.f32 %v2066, 1.442695
      %v2100 = vpow.pop %v2099
      %v2101 = vmul.f32 %v2067, 1.442695
      %v2102 = vpow.pop %v2101
      %v2103 = vmul.f32 %v2068, 1.442695
      %v2104 = vpow.pop %v2103
      %v2105 = vmul.f32 %v2069, 1.442695
      %v2106 = vpow.pop %v2105
      %v2107 = vmul.f32 %v2070, 1.442695
      %v2108 = vpow.pop %v2107
      %v2109 = vmul.f32 %v2071, 1.442695
      %v2110 = vpow.pop %v2109
      %v2111 = vmul.f32 %v2072, 1.442695
      %v2112 = vpow.pop %v2111
      %v2113 = vmul.f32 %v2073, 1.442695
      %v2114 = vpow.pop %v2113
      %v2115 = vmul.f32 %v2074, 1.442695
      %v2116 = vpow.pop %v2115
      %v2117 = vmul.f32 %v2075, 1.442695
      %v2118 = vpow.pop %v2117
      %v2119 = vmul.f32 %v2076, 1.442695
      %v2120 = vpow.pop %v2119
      %v2121 = vmul.f32 %v2077, 1.442695
      %v2122 = vpow.pop %v2121
      %v2123 = vmul.f32 %v2078, 1.442695
      %v2124 = vpow.pop %v2123
      %v2125 = vmul.f32 %v2079, 1.442695
      %v2126 = vpow.pop %v2125
      %v2127 = vmul.f32 %v2080, 1.442695
      %v2128 = vpow.pop %v2127
      %v2129 = vmul.f32 %v2081, 1.442695
      %v2130 = vpow.pop %v2129
      %v2131 = vmul.f32 %v2082, 1.442695
      %v2132 = vpow.pop %v2131
      %v2133 = vmul.f32 %v2083, 1.442695
      %v2134 = vpow.pop %v2133
      %v2135 = vmul.f32 %v2084, 1.442695
      %v2136 = vpow.pop %v2135
      %v2137 = vmul.f32 %v2085, 1.442695
      %v2138 = vpow.pop %v2137
      %v2139 = vmul.f32 %v2086, 1.442695
      %v2140 = vpow.pop %v2139
      %v2141 = vmul.f32 %v2087, 1.442695
      %v2142 = vpow.pop %v2141
      %v2143 = vmul.f32 %v2088, 1.442695
      %v2144 = vpow.pop %v2143
      %v2145 = vmul.f32 %v2089, 1.442695
      %v2146 = vpow.pop %v2145
      %v2147 = vmul.f32 %v2090, 1.442695
      %v2148 = vpow.pop %v2147
      %v2149 = vmul.f32 %v2091, 1.442695
      %v2150 = vpow.pop %v2149
      %v2151 = vmul.f32 %v2092, 1.442695
      %v2152 = vpow.pop %v2151
      %v2153 = vmul.f32 %v2093, 1.442695
      %v2154 = vpow.pop %v2153
      %v2155 = vmul.f32 %v2094, 1.442695
      %v2156 = vpow.pop %v2155
      %v2157 = vmul.f32 %v2095, 1.442695
      %v2158 = vpow.pop %v2157
      %v2159 = vmul.f32 %v2096, 1.442695
      %v2160 = vpow.pop %v2159
      %v2161 = vsel %vm1623, %v2098, 0.0
      %2162 = vadd.xlane.f32.xlu0 %v2161
      %v2163 = vpop.xlane.xlu0 %2162
      %v2164 = vsel %vm1623, %v2100, 0.0
      %2165 = vadd.xlane.f32.xlu0 %v2164
      %v2166 = vpop.xlane.xlu0 %2165
      %v2167 = vsel %vm1623, %v2102, 0.0
      %2168 = vadd.xlane.f32.xlu0 %v2167
      %v2169 = vpop.xlane.xlu0 %2168
      %v2170 = vsel %vm1623, %v2104, 0.0
      %2171 = vadd.xlane.f32.xlu0 %v2170
      %v2172 = vpop.xlane.xlu0 %2171
      %v2173 = vsel %vm1623, %v2106, 0.0
      %2174 = vadd.xlane.f32.xlu0 %v2173
      %v2175 = vpop.xlane.xlu0 %2174
      %v2176 = vsel %vm1623, %v2108, 0.0
      %2177 = vadd.xlane.f32.xlu0 %v2176
      %v2178 = vpop.xlane.xlu0 %2177
      %v2179 = vsel %vm1623, %v2110, 0.0
      %2180 = vadd.xlane.f32.xlu0 %v2179
      %v2181 = vpop.xlane.xlu0 %2180
      %v2182 = vsel %vm1623, %v2112, 0.0
      %2183 = vadd.xlane.f32.xlu0 %v2182
      %v2184 = vpop.xlane.xlu0 %2183
      %v2185 = vsel %vm1623, %v2114, 0.0
      %2186 = vadd.xlane.f32.xlu0 %v2185
      %v2187 = vpop.xlane.xlu0 %2186
      %v2188 = vsel %vm1623, %v2116, 0.0
      %2189 = vadd.xlane.f32.xlu0 %v2188
      %v2190 = vpop.xlane.xlu0 %2189
      %v2191 = vsel %vm1623, %v2118, 0.0
      %2192 = vadd.xlane.f32.xlu0 %v2191
      %v2193 = vpop.xlane.xlu0 %2192
      %v2194 = vsel %vm1623, %v2120, 0.0
      %2195 = vadd.xlane.f32.xlu0 %v2194
      %v2196 = vpop.xlane.xlu0 %2195
      %v2197 = vsel %vm1623, %v2122, 0.0
      %2198 = vadd.xlane.f32.xlu0 %v2197
      %v2199 = vpop.xlane.xlu0 %2198
      %v2200 = vsel %vm1623, %v2124, 0.0
      %2201 = vadd.xlane.f32.xlu0 %v2200
      %v2202 = vpop.xlane.xlu0 %2201
      %v2203 = vsel %vm1623, %v2126, 0.0
      %2204 = vadd.xlane.f32.xlu0 %v2203
      %v2205 = vpop.xlane.xlu0 %2204
      %v2206 = vsel %vm1623, %v2128, 0.0
      %2207 = vadd.xlane.f32.xlu0 %v2206
      %v2208 = vpop.xlane.xlu0 %2207
      %v2209 = vsel %vm1623, %v2130, 0.0
      %2210 = vadd.xlane.f32.xlu0 %v2209
      %v2211 = vpop.xlane.xlu0 %2210
      %v2212 = vsel %vm1623, %v2132, 0.0
      %2213 = vadd.xlane.f32.xlu0 %v2212
      %v2214 = vpop.xlane.xlu0 %2213
      %v2215 = vsel %vm1623, %v2134, 0.0
      %2216 = vadd.xlane.f32.xlu0 %v2215
      %v2217 = vpop.xlane.xlu0 %2216
      %v2218 = vsel %vm1623, %v2136, 0.0
      %2219 = vadd.xlane.f32.xlu0 %v2218
      %v2220 = vpop.xlane.xlu0 %2219
      %v2221 = vsel %vm1623, %v2138, 0.0
      %2222 = vadd.xlane.f32.xlu0 %v2221
      %v2223 = vpop.xlane.xlu0 %2222
      %v2224 = vsel %vm1623, %v2140, 0.0
      %2225 = vadd.xlane.f32.xlu0 %v2224
      %v2226 = vpop.xlane.xlu0 %2225
      %v2227 = vsel %vm1623, %v2142, 0.0
      %2228 = vadd.xlane.f32.xlu0 %v2227
      %v2229 = vpop.xlane.xlu0 %2228
      %v2230 = vsel %vm1623, %v2144, 0.0
      %2231 = vadd.xlane.f32.xlu0 %v2230
      %v2232 = vpop.xlane.xlu0 %2231
      %v2233 = vsel %vm1623, %v2146, 0.0
      %2234 = vadd.xlane.f32.xlu0 %v2233
      %v2235 = vpop.xlane.xlu0 %2234
      %v2236 = vsel %vm1623, %v2148, 0.0
      %2237 = vadd.xlane.f32.xlu0 %v2236
      %v2238 = vpop.xlane.xlu0 %2237
      %v2239 = vsel %vm1623, %v2150, 0.0
      %2240 = vadd.xlane.f32.xlu0 %v2239
      %v2241 = vpop.xlane.xlu0 %2240
      %v2242 = vsel %vm1623, %v2152, 0.0
      %2243 = vadd.xlane.f32.xlu0 %v2242
      %v2244 = vpop.xlane.xlu0 %2243
      %v2245 = vsel %vm1623, %v2154, 0.0
      %2246 = vadd.xlane.f32.xlu0 %v2245
      %v2247 = vpop.xlane.xlu0 %2246
      %v2248 = vsel %vm1623, %v2156, 0.0
      %2249 = vadd.xlane.f32.xlu0 %v2248
      %v2250 = vpop.xlane.xlu0 %2249
      %v2251 = vsel %vm1623, %v2158, 0.0
      %2252 = vadd.xlane.f32.xlu0 %v2251
      %v2253 = vpop.xlane.xlu0 %2252
      %v2254 = vsel %vm1623, %v2160, 0.0
      %2255 = vadd.xlane.f32.xlu0 %v2254
      %v2256 = vpop.xlane.xlu0 %2255
      %v2257 = vrcp.pop %v2163
      %v2258 = vmul.f32 %v2098, %v2257
      %v2259 = vrcp.pop %v2166
      %v2260 = vmul.f32 %v2100, %v2259
      %v2261 = vrcp.pop %v2169
      %v2262 = vmul.f32 %v2102, %v2261
      %v2263 = vrcp.pop %v2172
      %v2264 = vmul.f32 %v2104, %v2263
      %v2265 = vrcp.pop %v2175
      %v2266 = vmul.f32 %v2106, %v2265
      %v2267 = vrcp.pop %v2178
      %v2268 = vmul.f32 %v2108, %v2267
      %v2269 = vrcp.pop %v2181
      %v2270 = vmul.f32 %v2110, %v2269
      %v2271 = vrcp.pop %v2184
      %v2272 = vmul.f32 %v2112, %v2271
      %v2273 = vrcp.pop %v2187
      %v2274 = vmul.f32 %v2114, %v2273
      %v2275 = vrcp.pop %v2190
      %v2276 = vmul.f32 %v2116, %v2275
      %v2277 = vrcp.pop %v2193
      %v2278 = vmul.f32 %v2118, %v2277
      %v2279 = vrcp.pop %v2196
      %v2280 = vmul.f32 %v2120, %v2279
      %v2281 = vrcp.pop %v2199
      %v2282 = vmul.f32 %v2122, %v2281
      %v2283 = vrcp.pop %v2202
      %v2284 = vmul.f32 %v2124, %v2283
      %v2285 = vrcp.pop %v2205
      %v2286 = vmul.f32 %v2126, %v2285
      %v2287 = vrcp.pop %v2208
      %v2288 = vmul.f32 %v2128, %v2287
      %v2289 = vrcp.pop %v2211
      %v2290 = vmul.f32 %v2130, %v2289
      %v2291 = vrcp.pop %v2214
      %v2292 = vmul.f32 %v2132, %v2291
      %v2293 = vrcp.pop %v2217
      %v2294 = vmul.f32 %v2134, %v2293
      %v2295 = vrcp.pop %v2220
      %v2296 = vmul.f32 %v2136, %v2295
      %v2297 = vrcp.pop %v2223
      %v2298 = vmul.f32 %v2138, %v2297
      %v2299 = vrcp.pop %v2226
      %v2300 = vmul.f32 %v2140, %v2299
      %v2301 = vrcp.pop %v2229
      %v2302 = vmul.f32 %v2142, %v2301
      %v2303 = vrcp.pop %v2232
      %v2304 = vmul.f32 %v2144, %v2303
      %v2305 = vrcp.pop %v2235
      %v2306 = vmul.f32 %v2146, %v2305
      %v2307 = vrcp.pop %v2238
      %v2308 = vmul.f32 %v2148, %v2307
      %v2309 = vrcp.pop %v2241
      %v2310 = vmul.f32 %v2150, %v2309
      %v2311 = vrcp.pop %v2244
      %v2312 = vmul.f32 %v2152, %v2311
      %v2313 = vrcp.pop %v2247
      %v2314 = vmul.f32 %v2154, %v2313
      %v2315 = vrcp.pop %v2250
      %v2316 = vmul.f32 %v2156, %v2315
      %v2317 = vrcp.pop %v2253
      %v2318 = vmul.f32 %v2158, %v2317
      %v2319 = vrcp.pop %v2256
      %v2320 = vmul.f32 %v2160, %v2319
      %v2322 = vsel %vm1623, %v2258, 0
      %v2325 = vsel %vm1623, %v2260, 0
      %v2328 = vsel %vm1623, %v2262, 0
      %v2331 = vsel %vm1623, %v2264, 0
      %v2334 = vsel %vm1623, %v2266, 0
      %v2337 = vsel %vm1623, %v2268, 0
      %v2340 = vsel %vm1623, %v2270, 0
      %v2343 = vsel %vm1623, %v2272, 0
      %v2346 = vsel %vm1623, %v2274, 0
      %v2349 = vsel %vm1623, %v2276, 0
      %v2352 = vsel %vm1623, %v2278, 0
      %v2355 = vsel %vm1623, %v2280, 0
      %v2358 = vsel %vm1623, %v2282, 0
      %v2361 = vsel %vm1623, %v2284, 0
      %v2364 = vsel %vm1623, %v2286, 0
      %v2367 = vsel %vm1623, %v2288, 0
      %v2370 = vsel %vm1623, %v2290, 0
      %v2373 = vsel %vm1623, %v2292, 0
      %v2376 = vsel %vm1623, %v2294, 0
      %v2379 = vsel %vm1623, %v2296, 0
      %v2382 = vsel %vm1623, %v2298, 0
      %v2385 = vsel %vm1623, %v2300, 0
      %v2388 = vsel %vm1623, %v2302, 0
      %v2391 = vsel %vm1623, %v2304, 0
      %v2394 = vsel %vm1623, %v2306, 0
      %v2397 = vsel %vm1623, %v2308, 0
      %v2400 = vsel %vm1623, %v2310, 0
      %v2403 = vsel %vm1623, %v2312, 0
      %v2406 = vsel %vm1623, %v2314, 0
      %v2409 = vsel %vm1623, %v2316, 0
      %v2412 = vsel %vm1623, %v2318, 0
      %v2415 = vsel %vm1623, %v2320, 0
      %2417 = vmatprep.subr.mxu0 0.0
      %2418 = vmatpush1.msra.mxu0 0.0
      %2419 = vmatprep.subr.mxu0 0.0
      %2420 = vmatpush1.msra.mxu0 0.0
      %2421 = vmatprep.subr.mxu0 0.0
      %2422 = vmatpush1.msra.mxu0 0.0
      %2423 = vmatprep.subr.mxu0 0.0
      %2424 = vmatpush1.msra.mxu0 0.0
      %2425 = vmatprep.subr.mxu0 0.0
      %2426 = vmatpush1.msra.mxu0 0.0
      %2427 = vmatprep.subr.mxu0 0.0
      %2428 = vmatpush1.msra.mxu0 0.0
      %2429 = vmatprep.subr.mxu0 0.0
      %2430 = vmatpush1.msra.mxu0 0.0
      %2431 = vmatprep.subr.mxu0 0.0
      %2432 = vmatpush1.msra.mxu0 0.0
      %2433 = vmatprep.subr.mxu0 0.0
      %2434 = vmatpush1.msra.mxu0 %v1621
      %2435 = vmatprep.subr.mxu0 0.0
      %2436 = vmatpush1.msra.mxu0 %v1615
      %2437 = vmatprep.subr.mxu0 0.0
      %2438 = vmatpush1.msra.mxu0 %v1609
      %2439 = vmatprep.subr.mxu0 0.0
      %2440 = vmatpush1.msra.mxu0 %v1603
      %2441 = vmatprep.subr.mxu0 0.0
      %2442 = vmatpush1.msra.mxu0 %v1597
      %2443 = vmatprep.subr.mxu0 0.0
      %2444 = vmatpush1.msra.mxu0 %v1591
      %2445 = vmatprep.subr.mxu0 0.0
      %2446 = vmatpush1.msra.mxu0 %v1585
      %2447 = vmatprep.subr.mxu0 0.0
      %2448 = vmatpush1.msra.mxu0 %v1579
      %2449 = vmatprep.subr.mxu0 0.0
      %2450 = vmatpush2.msra.mxu0 0.0
      %2451 = vmatprep.subr.mxu0 0.0
      %2452 = vmatpush2.msra.mxu0 0.0
      %2453 = vmatprep.subr.mxu0 0.0
      %2454 = vmatpush2.msra.mxu0 0.0
      %2455 = vmatprep.subr.mxu0 0.0
      %2456 = vmatpush2.msra.mxu0 0.0
      %2457 = vmatprep.subr.mxu0 0.0
      %2458 = vmatpush2.msra.mxu0 0.0
      %2459 = vmatprep.subr.mxu0 0.0
      %2460 = vmatpush2.msra.mxu0 0.0
      %2461 = vmatprep.subr.mxu0 0.0
      %2462 = vmatpush2.msra.mxu0 0.0
      %2463 = vmatprep.subr.mxu0 0.0
      %2464 = vmatpush2.msra.mxu0 0.0
      %2465 = vmatprep.subr.mxu0 0.0
      %2466 = vmatpush2.msra.mxu0 0.0
      %2467 = vmatprep.subr.mxu0 0.0
      %2468 = vmatpush2.msra.mxu0 0.0
      %2469 = vmatprep.subr.mxu0 0.0
      %2470 = vmatpush2.msra.mxu0 0.0
      %2471 = vmatprep.subr.mxu0 0.0
      %2472 = vmatpush2.msra.mxu0 0.0
      %2473 = vmatprep.subr.mxu0 0.0
      %2474 = vmatpush2.msra.mxu0 0.0
      %2475 = vmatprep.subr.mxu0 0.0
      %2476 = vmatpush2.msra.mxu0 0.0
      %2477 = vmatprep.subr.mxu0 0.0
      %2478 = vmatpush2.msra.mxu0 0.0
      %2479 = vmatprep.subr.mxu0 0.0
      %2480 = vmatpush2.msra.mxu0 0.0
      %2481 = vmatprep.mubr.f32.mxu0 0.0
      %2482 = vmatmul.mubr.f32.gmra.mxu0 %v2322
      %v2483 = vpop.f32.mrf.mxu0
      %v2484 = vadd.f32 0.0, %v2483
      %v2485 = vpop.f32.mrf.mxu0
      %2486 = vmatprep.mubr.f32.mxu0 0.0
      %2487 = vmatmul.mubr.f32.gmra.mxu0 %v2325
      %v2488 = vpop.f32.mrf.mxu0
      %v2489 = vadd.f32 0.0, %v2488
      %v2490 = vpop.f32.mrf.mxu0
      %2491 = vmatprep.mubr.f32.mxu0 0.0
      %2492 = vmatmul.mubr.f32.gmra.mxu0 %v2328
      %v2493 = vpop.f32.mrf.mxu0
      %v2494 = vadd.f32 0.0, %v2493
      %v2495 = vpop.f32.mrf.mxu0
      %2496 = vmatprep.mubr.f32.mxu0 0.0
      %2497 = vmatmul.mubr.f32.gmra.mxu0 %v2331
      %v2498 = vpop.f32.mrf.mxu0
      %v2499 = vadd.f32 0.0, %v2498
      %v2500 = vpop.f32.mrf.mxu0
      %2501 = vmatprep.mubr.f32.mxu0 0.0
      %2502 = vmatmul.mubr.f32.gmra.mxu0 %v2334
      %v2503 = vpop.f32.mrf.mxu0
      %v2504 = vadd.f32 0.0, %v2503
      %v2505 = vpop.f32.mrf.mxu0
      %2506 = vmatprep.mubr.f32.mxu0 0.0
      %2507 = vmatmul.mubr.f32.gmra.mxu0 %v2337
      %v2508 = vpop.f32.mrf.mxu0
      %v2509 = vadd.f32 0.0, %v2508
      %v2510 = vpop.f32.mrf.mxu0
      %2511 = vmatprep.mubr.f32.mxu0 0.0
      %2512 = vmatmul.mubr.f32.gmra.mxu0 %v2340
      %v2513 = vpop.f32.mrf.mxu0
      %v2514 = vadd.f32 0.0, %v2513
      %v2515 = vpop.f32.mrf.mxu0
      %2516 = vmatprep.mubr.f32.mxu0 0.0
      %2517 = vmatmul.mubr.f32.gmra.mxu0 %v2343
      %v2518 = vpop.f32.mrf.mxu0
      %v2519 = vadd.f32 0.0, %v2518
      %v2520 = vpop.f32.mrf.mxu0
      %2521 = vmatprep.mubr.f32.mxu0 0.0
      %2522 = vmatmul.mubr.f32.gmra.mxu0 %v2346
      %v2523 = vpop.f32.mrf.mxu0
      %v2524 = vadd.f32 0.0, %v2523
      %v2525 = vpop.f32.mrf.mxu0
      %2526 = vmatprep.mubr.f32.mxu0 0.0
      %2527 = vmatmul.mubr.f32.gmra.mxu0 %v2349
      %v2528 = vpop.f32.mrf.mxu0
      %v2529 = vadd.f32 0.0, %v2528
      %v2530 = vpop.f32.mrf.mxu0
      %2531 = vmatprep.mubr.f32.mxu0 0.0
      %2532 = vmatmul.mubr.f32.gmra.mxu0 %v2352
      %v2533 = vpop.f32.mrf.mxu0
      %v2534 = vadd.f32 0.0, %v2533
      %v2535 = vpop.f32.mrf.mxu0
      %2536 = vmatprep.mubr.f32.mxu0 0.0
      %2537 = vmatmul.mubr.f32.gmra.mxu0 %v2355
      %v2538 = vpop.f32.mrf.mxu0
      %v2539 = vadd.f32 0.0, %v2538
      %v2540 = vpop.f32.mrf.mxu0
      %2541 = vmatprep.mubr.f32.mxu0 0.0
      %2542 = vmatmul.mubr.f32.gmra.mxu0 %v2358
      %v2543 = vpop.f32.mrf.mxu0
      %v2544 = vadd.f32 0.0, %v2543
      %v2545 = vpop.f32.mrf.mxu0
      %2546 = vmatprep.mubr.f32.mxu0 0.0
      %2547 = vmatmul.mubr.f32.gmra.mxu0 %v2361
      %v2548 = vpop.f32.mrf.mxu0
      %v2549 = vadd.f32 0.0, %v2548
      %v2550 = vpop.f32.mrf.mxu0
      %2551 = vmatprep.mubr.f32.mxu0 0.0
      %2552 = vmatmul.mubr.f32.gmra.mxu0 %v2364
      %v2553 = vpop.f32.mrf.mxu0
      %v2554 = vadd.f32 0.0, %v2553
      %v2555 = vpop.f32.mrf.mxu0
      %2556 = vmatprep.mubr.f32.mxu0 0.0
      %2557 = vmatmul.mubr.f32.gmra.mxu0 %v2367
      %v2558 = vpop.f32.mrf.mxu0
      %v2559 = vadd.f32 0.0, %v2558
      %v2560 = vpop.f32.mrf.mxu0
      %2561 = vmatprep.mubr.f32.mxu0 0.0
      %2562 = vmatmul.mubr.f32.gmra.mxu0 %v2370
      %v2563 = vpop.f32.mrf.mxu0
      %v2564 = vadd.f32 0.0, %v2563
      %v2565 = vpop.f32.mrf.mxu0
      %2566 = vmatprep.mubr.f32.mxu0 0.0
      %2567 = vmatmul.mubr.f32.gmra.mxu0 %v2373
      %v2568 = vpop.f32.mrf.mxu0
      %v2569 = vadd.f32 0.0, %v2568
      %v2570 = vpop.f32.mrf.mxu0
      %2571 = vmatprep.mubr.f32.mxu0 0.0
      %2572 = vmatmul.mubr.f32.gmra.mxu0 %v2376
      %v2573 = vpop.f32.mrf.mxu0
      %v2574 = vadd.f32 0.0, %v2573
      %v2575 = vpop.f32.mrf.mxu0
      %2576 = vmatprep.mubr.f32.mxu0 0.0
      %2577 = vmatmul.mubr.f32.gmra.mxu0 %v2379
      %v2578 = vpop.f32.mrf.mxu0
      %v2579 = vadd.f32 0.0, %v2578
      %v2580 = vpop.f32.mrf.mxu0
      %2581 = vmatprep.mubr.f32.mxu0 0.0
      %2582 = vmatmul.mubr.f32.gmra.mxu0 %v2382
      %v2583 = vpop.f32.mrf.mxu0
      %v2584 = vadd.f32 0.0, %v2583
      %v2585 = vpop.f32.mrf.mxu0
      %2586 = vmatprep.mubr.f32.mxu0 0.0
      %2587 = vmatmul.mubr.f32.gmra.mxu0 %v2385
      %v2588 = vpop.f32.mrf.mxu0
      %v2589 = vadd.f32 0.0, %v2588
      %v2590 = vpop.f32.mrf.mxu0
      %2591 = vmatprep.mubr.f32.mxu0 0.0
      %2592 = vmatmul.mubr.f32.gmra.mxu0 %v2388
      %v2593 = vpop.f32.mrf.mxu0
      %v2594 = vadd.f32 0.0, %v2593
      %v2595 = vpop.f32.mrf.mxu0
      %2596 = vmatprep.mubr.f32.mxu0 0.0
      %2597 = vmatmul.mubr.f32.gmra.mxu0 %v2391
      %v2598 = vpop.f32.mrf.mxu0
      %v2599 = vadd.f32 0.0, %v2598
      %v2600 = vpop.f32.mrf.mxu0
      %2601 = vmatprep.mubr.f32.mxu0 0.0
      %2602 = vmatmul.mubr.f32.gmra.mxu0 %v2394
      %v2603 = vpop.f32.mrf.mxu0
      %v2604 = vadd.f32 0.0, %v2603
      %v2605 = vpop.f32.mrf.mxu0
      %2606 = vmatprep.mubr.f32.mxu0 0.0
      %2607 = vmatmul.mubr.f32.gmra.mxu0 %v2397
      %v2608 = vpop.f32.mrf.mxu0
      %v2609 = vadd.f32 0.0, %v2608
      %v2610 = vpop.f32.mrf.mxu0
      %2611 = vmatprep.mubr.f32.mxu0 0.0
      %2612 = vmatmul.mubr.f32.gmra.mxu0 %v2400
      %v2613 = vpop.f32.mrf.mxu0
      %v2614 = vadd.f32 0.0, %v2613
      %v2615 = vpop.f32.mrf.mxu0
      %2616 = vmatprep.mubr.f32.mxu0 0.0
      %2617 = vmatmul.mubr.f32.gmra.mxu0 %v2403
      %v2618 = vpop.f32.mrf.mxu0
      %v2619 = vadd.f32 0.0, %v2618
      %v2620 = vpop.f32.mrf.mxu0
      %2621 = vmatprep.mubr.f32.mxu0 0.0
      %2622 = vmatmul.mubr.f32.gmra.mxu0 %v2406
      %v2623 = vpop.f32.mrf.mxu0
      %v2624 = vadd.f32 0.0, %v2623
      %v2625 = vpop.f32.mrf.mxu0
      %2626 = vmatprep.mubr.f32.mxu0 0.0
      %2627 = vmatmul.mubr.f32.gmra.mxu0 %v2409
      %v2628 = vpop.f32.mrf.mxu0
      %v2629 = vadd.f32 0.0, %v2628
      %v2630 = vpop.f32.mrf.mxu0
      %2631 = vmatprep.mubr.f32.mxu0 0.0
      %2632 = vmatmul.mubr.f32.gmra.mxu0 %v2412
      %v2633 = vpop.f32.mrf.mxu0
      %v2634 = vadd.f32 0.0, %v2633
      %v2635 = vpop.f32.mrf.mxu0
      %2636 = vmatprep.mubr.f32.mxu0 0.0
      %2637 = vmatmul.mubr.f32.gmra.mxu0 %v2415
      %v2638 = vpop.f32.mrf.mxu0
      %v2639 = vadd.f32 0.0, %v2638
      %v2640 = vpop.f32.mrf.mxu0
      %2641 = vdwg.mxu0
      %2642 = vrot.lane.b32.xlu0 %v947, 64
      %v2643 = vpop.permute.xlu0 %2642
      %2644 = vrot.lane.b32.xlu0 %v952, 64
      %v2645 = vpop.permute.xlu0 %2644
      %2646 = vrot.lane.b32.xlu0 %v957, 64
      %v2647 = vpop.permute.xlu0 %2646
      %2648 = vrot.lane.b32.xlu0 %v962, 64
      %v2649 = vpop.permute.xlu0 %2648
      %2650 = vrot.lane.b32.xlu0 %v967, 64
      %v2651 = vpop.permute.xlu0 %2650
      %2652 = vrot.lane.b32.xlu0 %v972, 64
      %v2653 = vpop.permute.xlu0 %2652
      %2654 = vrot.lane.b32.xlu0 %v977, 64
      %v2655 = vpop.permute.xlu0 %2654
      %2656 = vrot.lane.b32.xlu0 %v982, 64
      %v2657 = vpop.permute.xlu0 %2656
      %2658 = vrot.lane.b32.xlu0 %v987, 64
      %v2659 = vpop.permute.xlu0 %2658
      %2660 = vrot.lane.b32.xlu0 %v992, 64
      %v2661 = vpop.permute.xlu0 %2660
      %2662 = vrot.lane.b32.xlu0 %v997, 64
      %v2663 = vpop.permute.xlu0 %2662
      %2664 = vrot.lane.b32.xlu0 %v1002, 64
      %v2665 = vpop.permute.xlu0 %2664
      %2666 = vrot.lane.b32.xlu0 %v1007, 64
      %v2667 = vpop.permute.xlu0 %2666
      %2668 = vrot.lane.b32.xlu0 %v1012, 64
      %v2669 = vpop.permute.xlu0 %2668
      %2670 = vrot.lane.b32.xlu0 %v1017, 64
      %v2671 = vpop.permute.xlu0 %2670
      %2672 = vrot.lane.b32.xlu0 %v1022, 64
      %v2673 = vpop.permute.xlu0 %2672
      %2674 = vrot.lane.b32.xlu0 %v1027, 64
      %v2675 = vpop.permute.xlu0 %2674
      %2676 = vrot.lane.b32.xlu0 %v1032, 64
      %v2677 = vpop.permute.xlu0 %2676
      %2678 = vrot.lane.b32.xlu0 %v1037, 64
      %v2679 = vpop.permute.xlu0 %2678
      %2680 = vrot.lane.b32.xlu0 %v1042, 64
      %v2681 = vpop.permute.xlu0 %2680
      %2682 = vrot.lane.b32.xlu0 %v1047, 64
      %v2683 = vpop.permute.xlu0 %2682
      %2684 = vrot.lane.b32.xlu0 %v1052, 64
      %v2685 = vpop.permute.xlu0 %2684
      %2686 = vrot.lane.b32.xlu0 %v1057, 64
      %v2687 = vpop.permute.xlu0 %2686
      %2688 = vrot.lane.b32.xlu0 %v1062, 64
      %v2689 = vpop.permute.xlu0 %2688
      %2690 = vrot.lane.b32.xlu0 %v1067, 64
      %v2691 = vpop.permute.xlu0 %2690
      %2692 = vrot.lane.b32.xlu0 %v1072, 64
      %v2693 = vpop.permute.xlu0 %2692
      %2694 = vrot.lane.b32.xlu0 %v1077, 64
      %v2695 = vpop.permute.xlu0 %2694
      %2696 = vrot.lane.b32.xlu0 %v1082, 64
      %v2697 = vpop.permute.xlu0 %2696
      %2698 = vrot.lane.b32.xlu0 %v1087, 64
      %v2699 = vpop.permute.xlu0 %2698
      %2700 = vrot.lane.b32.xlu0 %v1092, 64
      %v2701 = vpop.permute.xlu0 %2700
      %2702 = vrot.lane.b32.xlu0 %v1097, 64
      %v2703 = vpop.permute.xlu0 %2702
      %2704 = vrot.lane.b32.xlu0 %v1102, 64
      %v2705 = vpop.permute.xlu0 %2704
      %2706 = vrot.lane.b32.xlu0 %v1577, 64
      %v2707 = vpop.permute.xlu0 %2706
      %2708 = vrot.lane.b32.xlu0 %v1583, 64
      %v2709 = vpop.permute.xlu0 %2708
      %2710 = vrot.lane.b32.xlu0 %v1589, 64
      %v2711 = vpop.permute.xlu0 %2710
      %2712 = vrot.lane.b32.xlu0 %v1595, 64
      %v2713 = vpop.permute.xlu0 %2712
      %2714 = vrot.lane.b32.xlu0 %v1601, 64
      %v2715 = vpop.permute.xlu0 %2714
      %2716 = vrot.lane.b32.xlu0 %v1607, 64
      %v2717 = vpop.permute.xlu0 %2716
      %2718 = vrot.lane.b32.xlu0 %v1613, 64
      %v2719 = vpop.permute.xlu0 %2718
      %2720 = vrot.lane.b32.xlu0 %v1619, 64
      %v2721 = vpop.permute.xlu0 %2720
      %v2722 = vsel %vm1623, %v2643, 0
      %v2724 = vsel %vm1623, %v2645, 0
      %v2726 = vsel %vm1623, %v2647, 0
      %v2728 = vsel %vm1623, %v2649, 0
      %v2730 = vsel %vm1623, %v2651, 0
      %v2732 = vsel %vm1623, %v2653, 0
      %v2734 = vsel %vm1623, %v2655, 0
      %v2736 = vsel %vm1623, %v2657, 0
      %v2738 = vsel %vm1623, %v2659, 0
      %v2740 = vsel %vm1623, %v2661, 0
      %v2742 = vsel %vm1623, %v2663, 0
      %v2744 = vsel %vm1623, %v2665, 0
      %v2746 = vsel %vm1623, %v2667, 0
      %v2748 = vsel %vm1623, %v2669, 0
      %v2750 = vsel %vm1623, %v2671, 0
      %v2752 = vsel %vm1623, %v2673, 0
      %v2754 = vsel %vm1623, %v2675, 0
      %v2756 = vsel %vm1623, %v2677, 0
      %v2758 = vsel %vm1623, %v2679, 0
      %v2760 = vsel %vm1623, %v2681, 0
      %v2762 = vsel %vm1623, %v2683, 0
      %v2764 = vsel %vm1623, %v2685, 0
      %v2766 = vsel %vm1623, %v2687, 0
      %v2768 = vsel %vm1623, %v2689, 0
      %v2770 = vsel %vm1623, %v2691, 0
      %v2772 = vsel %vm1623, %v2693, 0
      %v2774 = vsel %vm1623, %v2695, 0
      %v2776 = vsel %vm1623, %v2697, 0
      %v2778 = vsel %vm1623, %v2699, 0
      %v2780 = vsel %vm1623, %v2701, 0
      %v2782 = vsel %vm1623, %v2703, 0
      %v2784 = vsel %vm1623, %v2705, 0
      %v2786 = vsel %vm1623, %v2707, 0
      %v2788 = vsel %vm1623, %v2709, 0
      %v2790 = vsel %vm1623, %v2711, 0
      %v2792 = vsel %vm1623, %v2713, 0
      %v2794 = vsel %vm1623, %v2715, 0
      %v2796 = vsel %vm1623, %v2717, 0
      %v2798 = vsel %vm1623, %v2719, 0
      %v2800 = vsel %vm1623, %v2721, 0
      %2802 = vmatprep.subr.mxu0 0.0
      %2803 = vmatpush1.xpose.msra.mxu0 0.0
      %2804 = vmatprep.subr.mxu0 0.0
      %2805 = vmatpush1.xpose.msra.mxu0 0.0
      %2806 = vmatprep.subr.mxu0 0.0
      %2807 = vmatpush1.xpose.msra.mxu0 0.0
      %2808 = vmatprep.subr.mxu0 0.0
      %2809 = vmatpush1.xpose.msra.mxu0 0.0
      %2810 = vmatprep.subr.mxu0 0.0
      %2811 = vmatpush1.xpose.msra.mxu0 0.0
      %2812 = vmatprep.subr.mxu0 0.0
      %2813 = vmatpush1.xpose.msra.mxu0 0.0
      %2814 = vmatprep.subr.mxu0 0.0
      %2815 = vmatpush1.xpose.msra.mxu0 0.0
      %2816 = vmatprep.subr.mxu0 0.0
      %2817 = vmatpush1.xpose.msra.mxu0 0.0
      %2818 = vmatprep.subr.mxu0 0.0
      %2819 = vmatpush1.xpose.msra.mxu0 %v2800
      %2820 = vmatprep.subr.mxu0 0.0
      %2821 = vmatpush1.xpose.msra.mxu0 %v2798
      %2822 = vmatprep.subr.mxu0 0.0
      %2823 = vmatpush1.xpose.msra.mxu0 %v2796
      %2824 = vmatprep.subr.mxu0 0.0
      %2825 = vmatpush1.xpose.msra.mxu0 %v2794
      %2826 = vmatprep.subr.mxu0 0.0
      %2827 = vmatpush1.xpose.msra.mxu0 %v2792
      %2828 = vmatprep.subr.mxu0 0.0
      %2829 = vmatpush1.xpose.msra.mxu0 %v2790
      %2830 = vmatprep.subr.mxu0 0.0
      %2831 = vmatpush1.xpose.msra.mxu0 %v2788
      %2832 = vmatprep.subr.mxu0 0.0
      %2833 = vmatpush1.xpose.msra.mxu0 %v2786
      %2834 = vmatprep.subr.mxu0 0.0
      %2835 = vmatpush2.xpose.msra.mxu0 0.0
      %2836 = vmatprep.subr.mxu0 0.0
      %2837 = vmatpush2.xpose.msra.mxu0 0.0
      %2838 = vmatprep.subr.mxu0 0.0
      %2839 = vmatpush2.xpose.msra.mxu0 0.0
      %2840 = vmatprep.subr.mxu0 0.0
      %2841 = vmatpush2.xpose.msra.mxu0 0.0
      %2842 = vmatprep.subr.mxu0 0.0
      %2843 = vmatpush2.xpose.msra.mxu0 0.0
      %2844 = vmatprep.subr.mxu0 0.0
      %2845 = vmatpush2.xpose.msra.mxu0 0.0
      %2846 = vmatprep.subr.mxu0 0.0
      %2847 = vmatpush2.xpose.msra.mxu0 0.0
      %2848 = vmatprep.subr.mxu0 0.0
      %2849 = vmatpush2.xpose.msra.mxu0 0.0
      %2850 = vmatprep.subr.mxu0 0.0
      %2851 = vmatpush2.xpose.msra.mxu0 0.0
      %2852 = vmatprep.subr.mxu0 0.0
      %2853 = vmatpush2.xpose.msra.mxu0 0.0
      %2854 = vmatprep.subr.mxu0 0.0
      %2855 = vmatpush2.xpose.msra.mxu0 0.0
      %2856 = vmatprep.subr.mxu0 0.0
      %2857 = vmatpush2.xpose.msra.mxu0 0.0
      %2858 = vmatprep.subr.mxu0 0.0
      %2859 = vmatpush2.xpose.msra.mxu0 0.0
      %2860 = vmatprep.subr.mxu0 0.0
      %2861 = vmatpush2.xpose.msra.mxu0 0.0
      %2862 = vmatprep.subr.mxu0 0.0
      %2863 = vmatpush2.xpose.msra.mxu0 0.0
      %2864 = vmatprep.subr.mxu0 0.0
      %2865 = vmatpush2.xpose.msra.mxu0 0.0
      %2866 = vmatprep.mubr.f32.mxu0 0.0
      %2867 = vmatmul.mubr.f32.gmra.mxu0 %v2722
      %v2868 = vpop.f32.mrf.mxu0
      %v2869 = vadd.f32 0.0, %v2868
      %v2870 = vpop.f32.mrf.mxu0
      %2871 = vmatprep.mubr.f32.mxu0 0.0
      %2872 = vmatmul.mubr.f32.gmra.mxu0 %v2724
      %v2873 = vpop.f32.mrf.mxu0
      %v2874 = vadd.f32 0.0, %v2873
      %v2875 = vpop.f32.mrf.mxu0
      %2876 = vmatprep.mubr.f32.mxu0 0.0
      %2877 = vmatmul.mubr.f32.gmra.mxu0 %v2726
      %v2878 = vpop.f32.mrf.mxu0
      %v2879 = vadd.f32 0.0, %v2878
      %v2880 = vpop.f32.mrf.mxu0
      %2881 = vmatprep.mubr.f32.mxu0 0.0
      %2882 = vmatmul.mubr.f32.gmra.mxu0 %v2728
      %v2883 = vpop.f32.mrf.mxu0
      %v2884 = vadd.f32 0.0, %v2883
      %v2885 = vpop.f32.mrf.mxu0
      %2886 = vmatprep.mubr.f32.mxu0 0.0
      %2887 = vmatmul.mubr.f32.gmra.mxu0 %v2730
      %v2888 = vpop.f32.mrf.mxu0
      %v2889 = vadd.f32 0.0, %v2888
      %v2890 = vpop.f32.mrf.mxu0
      %2891 = vmatprep.mubr.f32.mxu0 0.0
      %2892 = vmatmul.mubr.f32.gmra.mxu0 %v2732
      %v2893 = vpop.f32.mrf.mxu0
      %v2894 = vadd.f32 0.0, %v2893
      %v2895 = vpop.f32.mrf.mxu0
      %2896 = vmatprep.mubr.f32.mxu0 0.0
      %2897 = vmatmul.mubr.f32.gmra.mxu0 %v2734
      %v2898 = vpop.f32.mrf.mxu0
      %v2899 = vadd.f32 0.0, %v2898
      %v2900 = vpop.f32.mrf.mxu0
      %2901 = vmatprep.mubr.f32.mxu0 0.0
      %2902 = vmatmul.mubr.f32.gmra.mxu0 %v2736
      %v2903 = vpop.f32.mrf.mxu0
      %v2904 = vadd.f32 0.0, %v2903
      %v2905 = vpop.f32.mrf.mxu0
      %2906 = vmatprep.mubr.f32.mxu0 0.0
      %2907 = vmatmul.mubr.f32.gmra.mxu0 %v2738
      %v2908 = vpop.f32.mrf.mxu0
      %v2909 = vadd.f32 0.0, %v2908
      %v2910 = vpop.f32.mrf.mxu0
      %2911 = vmatprep.mubr.f32.mxu0 0.0
      %2912 = vmatmul.mubr.f32.gmra.mxu0 %v2740
      %v2913 = vpop.f32.mrf.mxu0
      %v2914 = vadd.f32 0.0, %v2913
      %v2915 = vpop.f32.mrf.mxu0
      %2916 = vmatprep.mubr.f32.mxu0 0.0
      %2917 = vmatmul.mubr.f32.gmra.mxu0 %v2742
      %v2918 = vpop.f32.mrf.mxu0
      %v2919 = vadd.f32 0.0, %v2918
      %v2920 = vpop.f32.mrf.mxu0
      %2921 = vmatprep.mubr.f32.mxu0 0.0
      %2922 = vmatmul.mubr.f32.gmra.mxu0 %v2744
      %v2923 = vpop.f32.mrf.mxu0
      %v2924 = vadd.f32 0.0, %v2923
      %v2925 = vpop.f32.mrf.mxu0
      %2926 = vmatprep.mubr.f32.mxu0 0.0
      %2927 = vmatmul.mubr.f32.gmra.mxu0 %v2746
      %v2928 = vpop.f32.mrf.mxu0
      %v2929 = vadd.f32 0.0, %v2928
      %v2930 = vpop.f32.mrf.mxu0
      %2931 = vmatprep.mubr.f32.mxu0 0.0
      %2932 = vmatmul.mubr.f32.gmra.mxu0 %v2748
      %v2933 = vpop.f32.mrf.mxu0
      %v2934 = vadd.f32 0.0, %v2933
      %v2935 = vpop.f32.mrf.mxu0
      %2936 = vmatprep.mubr.f32.mxu0 0.0
      %2937 = vmatmul.mubr.f32.gmra.mxu0 %v2750
      %v2938 = vpop.f32.mrf.mxu0
      %v2939 = vadd.f32 0.0, %v2938
      %v2940 = vpop.f32.mrf.mxu0
      %2941 = vmatprep.mubr.f32.mxu0 0.0
      %2942 = vmatmul.mubr.f32.gmra.mxu0 %v2752
      %v2943 = vpop.f32.mrf.mxu0
      %v2944 = vadd.f32 0.0, %v2943
      %v2945 = vpop.f32.mrf.mxu0
      %2946 = vmatprep.mubr.f32.mxu0 0.0
      %2947 = vmatmul.mubr.f32.gmra.mxu0 %v2754
      %v2948 = vpop.f32.mrf.mxu0
      %v2949 = vadd.f32 0.0, %v2948
      %v2950 = vpop.f32.mrf.mxu0
      %2951 = vmatprep.mubr.f32.mxu0 0.0
      %2952 = vmatmul.mubr.f32.gmra.mxu0 %v2756
      %v2953 = vpop.f32.mrf.mxu0
      %v2954 = vadd.f32 0.0, %v2953
      %v2955 = vpop.f32.mrf.mxu0
      %2956 = vmatprep.mubr.f32.mxu0 0.0
      %2957 = vmatmul.mubr.f32.gmra.mxu0 %v2758
      %v2958 = vpop.f32.mrf.mxu0
      %v2959 = vadd.f32 0.0, %v2958
      %v2960 = vpop.f32.mrf.mxu0
      %2961 = vmatprep.mubr.f32.mxu0 0.0
      %2962 = vmatmul.mubr.f32.gmra.mxu0 %v2760
      %v2963 = vpop.f32.mrf.mxu0
      %v2964 = vadd.f32 0.0, %v2963
      %v2965 = vpop.f32.mrf.mxu0
      %2966 = vmatprep.mubr.f32.mxu0 0.0
      %2967 = vmatmul.mubr.f32.gmra.mxu0 %v2762
      %v2968 = vpop.f32.mrf.mxu0
      %v2969 = vadd.f32 0.0, %v2968
      %v2970 = vpop.f32.mrf.mxu0
      %2971 = vmatprep.mubr.f32.mxu0 0.0
      %2972 = vmatmul.mubr.f32.gmra.mxu0 %v2764
      %v2973 = vpop.f32.mrf.mxu0
      %v2974 = vadd.f32 0.0, %v2973
      %v2975 = vpop.f32.mrf.mxu0
      %2976 = vmatprep.mubr.f32.mxu0 0.0
      %2977 = vmatmul.mubr.f32.gmra.mxu0 %v2766
      %v2978 = vpop.f32.mrf.mxu0
      %v2979 = vadd.f32 0.0, %v2978
      %v2980 = vpop.f32.mrf.mxu0
      %2981 = vmatprep.mubr.f32.mxu0 0.0
      %2982 = vmatmul.mubr.f32.gmra.mxu0 %v2768
      %v2983 = vpop.f32.mrf.mxu0
      %v2984 = vadd.f32 0.0, %v2983
      %v2985 = vpop.f32.mrf.mxu0
      %2986 = vmatprep.mubr.f32.mxu0 0.0
      %2987 = vmatmul.mubr.f32.gmra.mxu0 %v2770
      %v2988 = vpop.f32.mrf.mxu0
      %v2989 = vadd.f32 0.0, %v2988
      %v2990 = vpop.f32.mrf.mxu0
      %2991 = vmatprep.mubr.f32.mxu0 0.0
      %2992 = vmatmul.mubr.f32.gmra.mxu0 %v2772
      %v2993 = vpop.f32.mrf.mxu0
      %v2994 = vadd.f32 0.0, %v2993
      %v2995 = vpop.f32.mrf.mxu0
      %2996 = vmatprep.mubr.f32.mxu0 0.0
      %2997 = vmatmul.mubr.f32.gmra.mxu0 %v2774
      %v2998 = vpop.f32.mrf.mxu0
      %v2999 = vadd.f32 0.0, %v2998
      %v3000 = vpop.f32.mrf.mxu0
      %3001 = vmatprep.mubr.f32.mxu0 0.0
      %3002 = vmatmul.mubr.f32.gmra.mxu0 %v2776
      %v3003 = vpop.f32.mrf.mxu0
      %v3004 = vadd.f32 0.0, %v3003
      %v3005 = vpop.f32.mrf.mxu0
      %3006 = vmatprep.mubr.f32.mxu0 0.0
      %3007 = vmatmul.mubr.f32.gmra.mxu0 %v2778
      %v3008 = vpop.f32.mrf.mxu0
      %v3009 = vadd.f32 0.0, %v3008
      %v3010 = vpop.f32.mrf.mxu0
      %3011 = vmatprep.mubr.f32.mxu0 0.0
      %3012 = vmatmul.mubr.f32.gmra.mxu0 %v2780
      %v3013 = vpop.f32.mrf.mxu0
      %v3014 = vadd.f32 0.0, %v3013
      %v3015 = vpop.f32.mrf.mxu0
      %3016 = vmatprep.mubr.f32.mxu0 0.0
      %3017 = vmatmul.mubr.f32.gmra.mxu0 %v2782
      %v3018 = vpop.f32.mrf.mxu0
      %v3019 = vadd.f32 0.0, %v3018
      %v3020 = vpop.f32.mrf.mxu0
      %3021 = vmatprep.mubr.f32.mxu0 0.0
      %3022 = vmatmul.mubr.f32.gmra.mxu0 %v2784
      %v3023 = vpop.f32.mrf.mxu0
      %v3024 = vadd.f32 0.0, %v3023
      %v3025 = vpop.f32.mrf.mxu0
      %3026 = vdwg.mxu0
      %v3027 = vsel %vm1623, %v2869, -inf
      %3028 = vmax.xlane.f32.xlu0 %v3027
      %v3029 = vpop.xlane.xlu0 %3028
      %v3030 = vsel %vm1623, %v2874, -inf
      %3031 = vmax.xlane.f32.xlu0 %v3030
      %v3032 = vpop.xlane.xlu0 %3031
      %v3033 = vsel %vm1623, %v2879, -inf
      %3034 = vmax.xlane.f32.xlu0 %v3033
      %v3035 = vpop.xlane.xlu0 %3034
      %v3036 = vsel %vm1623, %v2884, -inf
      %3037 = vmax.xlane.f32.xlu0 %v3036
      %v3038 = vpop.xlane.xlu0 %3037
      %v3039 = vsel %vm1623, %v2889, -inf
      %3040 = vmax.xlane.f32.xlu0 %v3039
      %v3041 = vpop.xlane.xlu0 %3040
      %v3042 = vsel %vm1623, %v2894, -inf
      %3043 = vmax.xlane.f32.xlu0 %v3042
      %v3044 = vpop.xlane.xlu0 %3043
      %v3045 = vsel %vm1623, %v2899, -inf
      %3046 = vmax.xlane.f32.xlu0 %v3045
      %v3047 = vpop.xlane.xlu0 %3046
      %v3048 = vsel %vm1623, %v2904, -inf
      %3049 = vmax.xlane.f32.xlu0 %v3048
      %v3050 = vpop.xlane.xlu0 %3049
      %v3051 = vsel %vm1623, %v2909, -inf
      %3052 = vmax.xlane.f32.xlu0 %v3051
      %v3053 = vpop.xlane.xlu0 %3052
      %v3054 = vsel %vm1623, %v2914, -inf
      %3055 = vmax.xlane.f32.xlu0 %v3054
      %v3056 = vpop.xlane.xlu0 %3055
      %v3057 = vsel %vm1623, %v2919, -inf
      %3058 = vmax.xlane.f32.xlu0 %v3057
      %v3059 = vpop.xlane.xlu0 %3058
      %v3060 = vsel %vm1623, %v2924, -inf
      %3061 = vmax.xlane.f32.xlu0 %v3060
      %v3062 = vpop.xlane.xlu0 %3061
      %v3063 = vsel %vm1623, %v2929, -inf
      %3064 = vmax.xlane.f32.xlu0 %v3063
      %v3065 = vpop.xlane.xlu0 %3064
      %v3066 = vsel %vm1623, %v2934, -inf
      %3067 = vmax.xlane.f32.xlu0 %v3066
      %v3068 = vpop.xlane.xlu0 %3067
      %v3069 = vsel %vm1623, %v2939, -inf
      %3070 = vmax.xlane.f32.xlu0 %v3069
      %v3071 = vpop.xlane.xlu0 %3070
      %v3072 = vsel %vm1623, %v2944, -inf
      %3073 = vmax.xlane.f32.xlu0 %v3072
      %v3074 = vpop.xlane.xlu0 %3073
      %v3075 = vsel %vm1623, %v2949, -inf
      %3076 = vmax.xlane.f32.xlu0 %v3075
      %v3077 = vpop.xlane.xlu0 %3076
      %v3078 = vsel %vm1623, %v2954, -inf
      %3079 = vmax.xlane.f32.xlu0 %v3078
      %v3080 = vpop.xlane.xlu0 %3079
      %v3081 = vsel %vm1623, %v2959, -inf
      %3082 = vmax.xlane.f32.xlu0 %v3081
      %v3083 = vpop.xlane.xlu0 %3082
      %v3084 = vsel %vm1623, %v2964, -inf
      %3085 = vmax.xlane.f32.xlu0 %v3084
      %v3086 = vpop.xlane.xlu0 %3085
      %v3087 = vsel %vm1623, %v2969, -inf
      %3088 = vmax.xlane.f32.xlu0 %v3087
      %v3089 = vpop.xlane.xlu0 %3088
      %v3090 = vsel %vm1623, %v2974, -inf
      %3091 = vmax.xlane.f32.xlu0 %v3090
      %v3092 = vpop.xlane.xlu0 %3091
      %v3093 = vsel %vm1623, %v2979, -inf
      %3094 = vmax.xlane.f32.xlu0 %v3093
      %v3095 = vpop.xlane.xlu0 %3094
      %v3096 = vsel %vm1623, %v2984, -inf
      %3097 = vmax.xlane.f32.xlu0 %v3096
      %v3098 = vpop.xlane.xlu0 %3097
      %v3099 = vsel %vm1623, %v2989, -inf
      %3100 = vmax.xlane.f32.xlu0 %v3099
      %v3101 = vpop.xlane.xlu0 %3100
      %v3102 = vsel %vm1623, %v2994, -inf
      %3103 = vmax.xlane.f32.xlu0 %v3102
      %v3104 = vpop.xlane.xlu0 %3103
      %v3105 = vsel %vm1623, %v2999, -inf
      %3106 = vmax.xlane.f32.xlu0 %v3105
      %v3107 = vpop.xlane.xlu0 %3106
      %v3108 = vsel %vm1623, %v3004, -inf
      %3109 = vmax.xlane.f32.xlu0 %v3108
      %v3110 = vpop.xlane.xlu0 %3109
      %v3111 = vsel %vm1623, %v3009, -inf
      %3112 = vmax.xlane.f32.xlu0 %v3111
      %v3113 = vpop.xlane.xlu0 %3112
      %v3114 = vsel %vm1623, %v3014, -inf
      %3115 = vmax.xlane.f32.xlu0 %v3114
      %v3116 = vpop.xlane.xlu0 %3115
      %v3117 = vsel %vm1623, %v3019, -inf
      %3118 = vmax.xlane.f32.xlu0 %v3117
      %v3119 = vpop.xlane.xlu0 %3118
      %v3120 = vsel %vm1623, %v3024, -inf
      %3121 = vmax.xlane.f32.xlu0 %v3120
      %v3122 = vpop.xlane.xlu0 %3121
      %v3123 = vsub.f32 %v2869, %v3029
      %v3124 = vsub.f32 %v2874, %v3032
      %v3125 = vsub.f32 %v2879, %v3035
      %v3126 = vsub.f32 %v2884, %v3038
      %v3127 = vsub.f32 %v2889, %v3041
      %v3128 = vsub.f32 %v2894, %v3044
      %v3129 = vsub.f32 %v2899, %v3047
      %v3130 = vsub.f32 %v2904, %v3050
      %v3131 = vsub.f32 %v2909, %v3053
      %v3132 = vsub.f32 %v2914, %v3056
      %v3133 = vsub.f32 %v2919, %v3059
      %v3134 = vsub.f32 %v2924, %v3062
      %v3135 = vsub.f32 %v2929, %v3065
      %v3136 = vsub.f32 %v2934, %v3068
      %v3137 = vsub.f32 %v2939, %v3071
      %v3138 = vsub.f32 %v2944, %v3074
      %v3139 = vsub.f32 %v2949, %v3077
      %v3140 = vsub.f32 %v2954, %v3080
      %v3141 = vsub.f32 %v2959, %v3083
      %v3142 = vsub.f32 %v2964, %v3086
      %v3143 = vsub.f32 %v2969, %v3089
      %v3144 = vsub.f32 %v2974, %v3092
      %v3145 = vsub.f32 %v2979, %v3095
      %v3146 = vsub.f32 %v2984, %v3098
      %v3147 = vsub.f32 %v2989, %v3101
      %v3148 = vsub.f32 %v2994, %v3104
      %v3149 = vsub.f32 %v2999, %v3107
      %v3150 = vsub.f32 %v3004, %v3110
      %v3151 = vsub.f32 %v3009, %v3113
      %v3152 = vsub.f32 %v3014, %v3116
      %v3153 = vsub.f32 %v3019, %v3119
      %v3154 = vsub.f32 %v3024, %v3122
      %v3155 = vmul.f32 %v3123, 1.442695
      %v3156 = vpow.pop %v3155
      %v3157 = vmul.f32 %v3124, 1.442695
      %v3158 = vpow.pop %v3157
      %v3159 = vmul.f32 %v3125, 1.442695
      %v3160 = vpow.pop %v3159
      %v3161 = vmul.f32 %v3126, 1.442695
      %v3162 = vpow.pop %v3161
      %v3163 = vmul.f32 %v3127, 1.442695
      %v3164 = vpow.pop %v3163
      %v3165 = vmul.f32 %v3128, 1.442695
      %v3166 = vpow.pop %v3165
      %v3167 = vmul.f32 %v3129, 1.442695
      %v3168 = vpow.pop %v3167
      %v3169 = vmul.f32 %v3130, 1.442695
      %v3170 = vpow.pop %v3169
      %v3171 = vmul.f32 %v3131, 1.442695
      %v3172 = vpow.pop %v3171
      %v3173 = vmul.f32 %v3132, 1.442695
      %v3174 = vpow.pop %v3173
      %v3175 = vmul.f32 %v3133, 1.442695
      %v3176 = vpow.pop %v3175
      %v3177 = vmul.f32 %v3134, 1.442695
      %v3178 = vpow.pop %v3177
      %v3179 = vmul.f32 %v3135, 1.442695
      %v3180 = vpow.pop %v3179
      %v3181 = vmul.f32 %v3136, 1.442695
      %v3182 = vpow.pop %v3181
      %v3183 = vmul.f32 %v3137, 1.442695
      %v3184 = vpow.pop %v3183
      %v3185 = vmul.f32 %v3138, 1.442695
      %v3186 = vpow.pop %v3185
      %v3187 = vmul.f32 %v3139, 1.442695
      %v3188 = vpow.pop %v3187
      %v3189 = vmul.f32 %v3140, 1.442695
      %v3190 = vpow.pop %v3189
      %v3191 = vmul.f32 %v3141, 1.442695
      %v3192 = vpow.pop %v3191
      %v3193 = vmul.f32 %v3142, 1.442695
      %v3194 = vpow.pop %v3193
      %v3195 = vmul.f32 %v3143, 1.442695
      %v3196 = vpow.pop %v3195
      %v3197 = vmul.f32 %v3144, 1.442695
      %v3198 = vpow.pop %v3197
      %v3199 = vmul.f32 %v3145, 1.442695
      %v3200 = vpow.pop %v3199
      %v3201 = vmul.f32 %v3146, 1.442695
      %v3202 = vpow.pop %v3201
      %v3203 = vmul.f32 %v3147, 1.442695
      %v3204 = vpow.pop %v3203
      %v3205 = vmul.f32 %v3148, 1.442695
      %v3206 = vpow.pop %v3205
      %v3207 = vmul.f32 %v3149, 1.442695
      %v3208 = vpow.pop %v3207
      %v3209 = vmul.f32 %v3150, 1.442695
      %v3210 = vpow.pop %v3209
      %v3211 = vmul.f32 %v3151, 1.442695
      %v3212 = vpow.pop %v3211
      %v3213 = vmul.f32 %v3152, 1.442695
      %v3214 = vpow.pop %v3213
      %v3215 = vmul.f32 %v3153, 1.442695
      %v3216 = vpow.pop %v3215
      %v3217 = vmul.f32 %v3154, 1.442695
      %v3218 = vpow.pop %v3217
      %v3219 = vsel %vm1623, %v3156, 0.0
      %3220 = vadd.xlane.f32.xlu0 %v3219
      %v3221 = vpop.xlane.xlu0 %3220
      %v3222 = vsel %vm1623, %v3158, 0.0
      %3223 = vadd.xlane.f32.xlu0 %v3222
      %v3224 = vpop.xlane.xlu0 %3223
      %v3225 = vsel %vm1623, %v3160, 0.0
      %3226 = vadd.xlane.f32.xlu0 %v3225
      %v3227 = vpop.xlane.xlu0 %3226
      %v3228 = vsel %vm1623, %v3162, 0.0
      %3229 = vadd.xlane.f32.xlu0 %v3228
      %v3230 = vpop.xlane.xlu0 %3229
      %v3231 = vsel %vm1623, %v3164, 0.0
      %3232 = vadd.xlane.f32.xlu0 %v3231
      %v3233 = vpop.xlane.xlu0 %3232
      %v3234 = vsel %vm1623, %v3166, 0.0
      %3235 = vadd.xlane.f32.xlu0 %v3234
      %v3236 = vpop.xlane.xlu0 %3235
      %v3237 = vsel %vm1623, %v3168, 0.0
      %3238 = vadd.xlane.f32.xlu0 %v3237
      %v3239 = vpop.xlane.xlu0 %3238
      %v3240 = vsel %vm1623, %v3170, 0.0
      %3241 = vadd.xlane.f32.xlu0 %v3240
      %v3242 = vpop.xlane.xlu0 %3241
      %v3243 = vsel %vm1623, %v3172, 0.0
      %3244 = vadd.xlane.f32.xlu0 %v3243
      %v3245 = vpop.xlane.xlu0 %3244
      %v3246 = vsel %vm1623, %v3174, 0.0
      %3247 = vadd.xlane.f32.xlu0 %v3246
      %v3248 = vpop.xlane.xlu0 %3247
      %v3249 = vsel %vm1623, %v3176, 0.0
      %3250 = vadd.xlane.f32.xlu0 %v3249
      %v3251 = vpop.xlane.xlu0 %3250
      %v3252 = vsel %vm1623, %v3178, 0.0
      %3253 = vadd.xlane.f32.xlu0 %v3252
      %v3254 = vpop.xlane.xlu0 %3253
      %v3255 = vsel %vm1623, %v3180, 0.0
      %3256 = vadd.xlane.f32.xlu0 %v3255
      %v3257 = vpop.xlane.xlu0 %3256
      %v3258 = vsel %vm1623, %v3182, 0.0
      %3259 = vadd.xlane.f32.xlu0 %v3258
      %v3260 = vpop.xlane.xlu0 %3259
      %v3261 = vsel %vm1623, %v3184, 0.0
      %3262 = vadd.xlane.f32.xlu0 %v3261
      %v3263 = vpop.xlane.xlu0 %3262
      %v3264 = vsel %vm1623, %v3186, 0.0
      %3265 = vadd.xlane.f32.xlu0 %v3264
      %v3266 = vpop.xlane.xlu0 %3265
      %v3267 = vsel %vm1623, %v3188, 0.0
      %3268 = vadd.xlane.f32.xlu0 %v3267
      %v3269 = vpop.xlane.xlu0 %3268
      %v3270 = vsel %vm1623, %v3190, 0.0
      %3271 = vadd.xlane.f32.xlu0 %v3270
      %v3272 = vpop.xlane.xlu0 %3271
      %v3273 = vsel %vm1623, %v3192, 0.0
      %3274 = vadd.xlane.f32.xlu0 %v3273
      %v3275 = vpop.xlane.xlu0 %3274
      %v3276 = vsel %vm1623, %v3194, 0.0
      %3277 = vadd.xlane.f32.xlu0 %v3276
      %v3278 = vpop.xlane.xlu0 %3277
      %v3279 = vsel %vm1623, %v3196, 0.0
      %3280 = vadd.xlane.f32.xlu0 %v3279
      %v3281 = vpop.xlane.xlu0 %3280
      %v3282 = vsel %vm1623, %v3198, 0.0
      %3283 = vadd.xlane.f32.xlu0 %v3282
      %v3284 = vpop.xlane.xlu0 %3283
      %v3285 = vsel %vm1623, %v3200, 0.0
      %3286 = vadd.xlane.f32.xlu0 %v3285
      %v3287 = vpop.xlane.xlu0 %3286
      %v3288 = vsel %vm1623, %v3202, 0.0
      %3289 = vadd.xlane.f32.xlu0 %v3288
      %v3290 = vpop.xlane.xlu0 %3289
      %v3291 = vsel %vm1623, %v3204, 0.0
      %3292 = vadd.xlane.f32.xlu0 %v3291
      %v3293 = vpop.xlane.xlu0 %3292
      %v3294 = vsel %vm1623, %v3206, 0.0
      %3295 = vadd.xlane.f32.xlu0 %v3294
      %v3296 = vpop.xlane.xlu0 %3295
      %v3297 = vsel %vm1623, %v3208, 0.0
      %3298 = vadd.xlane.f32.xlu0 %v3297
      %v3299 = vpop.xlane.xlu0 %3298
      %v3300 = vsel %vm1623, %v3210, 0.0
      %3301 = vadd.xlane.f32.xlu0 %v3300
      %v3302 = vpop.xlane.xlu0 %3301
      %v3303 = vsel %vm1623, %v3212, 0.0
      %3304 = vadd.xlane.f32.xlu0 %v3303
      %v3305 = vpop.xlane.xlu0 %3304
      %v3306 = vsel %vm1623, %v3214, 0.0
      %3307 = vadd.xlane.f32.xlu0 %v3306
      %v3308 = vpop.xlane.xlu0 %3307
      %v3309 = vsel %vm1623, %v3216, 0.0
      %3310 = vadd.xlane.f32.xlu0 %v3309
      %v3311 = vpop.xlane.xlu0 %3310
      %v3312 = vsel %vm1623, %v3218, 0.0
      %3313 = vadd.xlane.f32.xlu0 %v3312
      %v3314 = vpop.xlane.xlu0 %3313
      %v3315 = vrcp.pop %v3221
      %v3316 = vmul.f32 %v3156, %v3315
      %v3317 = vrcp.pop %v3224
      %v3318 = vmul.f32 %v3158, %v3317
      %v3319 = vrcp.pop %v3227
      %v3320 = vmul.f32 %v3160, %v3319
      %v3321 = vrcp.pop %v3230
      %v3322 = vmul.f32 %v3162, %v3321
      %v3323 = vrcp.pop %v3233
      %v3324 = vmul.f32 %v3164, %v3323
      %v3325 = vrcp.pop %v3236
      %v3326 = vmul.f32 %v3166, %v3325
      %v3327 = vrcp.pop %v3239
      %v3328 = vmul.f32 %v3168, %v3327
      %v3329 = vrcp.pop %v3242
      %v3330 = vmul.f32 %v3170, %v3329
      %v3331 = vrcp.pop %v3245
      %v3332 = vmul.f32 %v3172, %v3331
      %v3333 = vrcp.pop %v3248
      %v3334 = vmul.f32 %v3174, %v3333
      %v3335 = vrcp.pop %v3251
      %v3336 = vmul.f32 %v3176, %v3335
      %v3337 = vrcp.pop %v3254
      %v3338 = vmul.f32 %v3178, %v3337
      %v3339 = vrcp.pop %v3257
      %v3340 = vmul.f32 %v3180, %v3339
      %v3341 = vrcp.pop %v3260
      %v3342 = vmul.f32 %v3182, %v3341
      %v3343 = vrcp.pop %v3263
      %v3344 = vmul.f32 %v3184, %v3343
      %v3345 = vrcp.pop %v3266
      %v3346 = vmul.f32 %v3186, %v3345
      %v3347 = vrcp.pop %v3269
      %v3348 = vmul.f32 %v3188, %v3347
      %v3349 = vrcp.pop %v3272
      %v3350 = vmul.f32 %v3190, %v3349
      %v3351 = vrcp.pop %v3275
      %v3352 = vmul.f32 %v3192, %v3351
      %v3353 = vrcp.pop %v3278
      %v3354 = vmul.f32 %v3194, %v3353
      %v3355 = vrcp.pop %v3281
      %v3356 = vmul.f32 %v3196, %v3355
      %v3357 = vrcp.pop %v3284
      %v3358 = vmul.f32 %v3198, %v3357
      %v3359 = vrcp.pop %v3287
      %v3360 = vmul.f32 %v3200, %v3359
      %v3361 = vrcp.pop %v3290
      %v3362 = vmul.f32 %v3202, %v3361
      %v3363 = vrcp.pop %v3293
      %v3364 = vmul.f32 %v3204, %v3363
      %v3365 = vrcp.pop %v3296
      %v3366 = vmul.f32 %v3206, %v3365
      %v3367 = vrcp.pop %v3299
      %v3368 = vmul.f32 %v3208, %v3367
      %v3369 = vrcp.pop %v3302
      %v3370 = vmul.f32 %v3210, %v3369
      %v3371 = vrcp.pop %v3305
      %v3372 = vmul.f32 %v3212, %v3371
      %v3373 = vrcp.pop %v3308
      %v3374 = vmul.f32 %v3214, %v3373
      %v3375 = vrcp.pop %v3311
      %v3376 = vmul.f32 %v3216, %v3375
      %v3377 = vrcp.pop %v3314
      %v3378 = vmul.f32 %v3218, %v3377
      %3387 = vrot.lane.b32.xlu0 %v1579, 64
      %v3388 = vpop.permute.xlu0 %3387
      %3389 = vrot.lane.b32.xlu0 %v1585, 64
      %v3390 = vpop.permute.xlu0 %3389
      %3391 = vrot.lane.b32.xlu0 %v1591, 64
      %v3392 = vpop.permute.xlu0 %3391
      %3393 = vrot.lane.b32.xlu0 %v1597, 64
      %v3394 = vpop.permute.xlu0 %3393
      %3395 = vrot.lane.b32.xlu0 %v1603, 64
      %v3396 = vpop.permute.xlu0 %3395
      %3397 = vrot.lane.b32.xlu0 %v1609, 64
      %v3398 = vpop.permute.xlu0 %3397
      %3399 = vrot.lane.b32.xlu0 %v1615, 64
      %v3400 = vpop.permute.xlu0 %3399
      %3401 = vrot.lane.b32.xlu0 %v1621, 64
      %v3402 = vpop.permute.xlu0 %3401
      %v3412 = vsel %vm1623, %v3316, 0
      %v3415 = vsel %vm1623, %v3318, 0
      %v3418 = vsel %vm1623, %v3320, 0
      %v3421 = vsel %vm1623, %v3322, 0
      %v3424 = vsel %vm1623, %v3324, 0
      %v3427 = vsel %vm1623, %v3326, 0
      %v3430 = vsel %vm1623, %v3328, 0
      %v3433 = vsel %vm1623, %v3330, 0
      %v3436 = vsel %vm1623, %v3332, 0
      %v3439 = vsel %vm1623, %v3334, 0
      %v3442 = vsel %vm1623, %v3336, 0
      %v3445 = vsel %vm1623, %v3338, 0
      %v3448 = vsel %vm1623, %v3340, 0
      %v3451 = vsel %vm1623, %v3342, 0
      %v3454 = vsel %vm1623, %v3344, 0
      %v3457 = vsel %vm1623, %v3346, 0
      %v3460 = vsel %vm1623, %v3348, 0
      %v3463 = vsel %vm1623, %v3350, 0
      %v3466 = vsel %vm1623, %v3352, 0
      %v3469 = vsel %vm1623, %v3354, 0
      %v3472 = vsel %vm1623, %v3356, 0
      %v3475 = vsel %vm1623, %v3358, 0
      %v3478 = vsel %vm1623, %v3360, 0
      %v3481 = vsel %vm1623, %v3362, 0
      %v3484 = vsel %vm1623, %v3364, 0
      %v3487 = vsel %vm1623, %v3366, 0
      %v3490 = vsel %vm1623, %v3368, 0
      %v3493 = vsel %vm1623, %v3370, 0
      %v3496 = vsel %vm1623, %v3372, 0
      %v3499 = vsel %vm1623, %v3374, 0
      %v3502 = vsel %vm1623, %v3376, 0
      %v3505 = vsel %vm1623, %v3378, 0
      %3507 = vmatprep.subr.mxu0 0.0
      %3508 = vmatpush1.msra.mxu0 0.0
      %3509 = vmatprep.subr.mxu0 0.0
      %3510 = vmatpush1.msra.mxu0 0.0
      %3511 = vmatprep.subr.mxu0 0.0
      %3512 = vmatpush1.msra.mxu0 0.0
      %3513 = vmatprep.subr.mxu0 0.0
      %3514 = vmatpush1.msra.mxu0 0.0
      %3515 = vmatprep.subr.mxu0 0.0
      %3516 = vmatpush1.msra.mxu0 0.0
      %3517 = vmatprep.subr.mxu0 0.0
      %3518 = vmatpush1.msra.mxu0 0.0
      %3519 = vmatprep.subr.mxu0 0.0
      %3520 = vmatpush1.msra.mxu0 0.0
      %3521 = vmatprep.subr.mxu0 0.0
      %3522 = vmatpush1.msra.mxu0 0.0
      %3523 = vmatprep.subr.mxu0 0.0
      %3524 = vmatpush1.msra.mxu0 %v3402
      %3525 = vmatprep.subr.mxu0 0.0
      %3526 = vmatpush1.msra.mxu0 %v3400
      %3527 = vmatprep.subr.mxu0 0.0
      %3528 = vmatpush1.msra.mxu0 %v3398
      %3529 = vmatprep.subr.mxu0 0.0
      %3530 = vmatpush1.msra.mxu0 %v3396
      %3531 = vmatprep.subr.mxu0 0.0
      %3532 = vmatpush1.msra.mxu0 %v3394
      %3533 = vmatprep.subr.mxu0 0.0
      %3534 = vmatpush1.msra.mxu0 %v3392
      %3535 = vmatprep.subr.mxu0 0.0
      %3536 = vmatpush1.msra.mxu0 %v3390
      %3537 = vmatprep.subr.mxu0 0.0
      %3538 = vmatpush1.msra.mxu0 %v3388
      %3539 = vmatprep.subr.mxu0 0.0
      %3540 = vmatpush2.msra.mxu0 0.0
      %3541 = vmatprep.subr.mxu0 0.0
      %3542 = vmatpush2.msra.mxu0 0.0
      %3543 = vmatprep.subr.mxu0 0.0
      %3544 = vmatpush2.msra.mxu0 0.0
      %3545 = vmatprep.subr.mxu0 0.0
      %3546 = vmatpush2.msra.mxu0 0.0
      %3547 = vmatprep.subr.mxu0 0.0
      %3548 = vmatpush2.msra.mxu0 0.0
      %3549 = vmatprep.subr.mxu0 0.0
      %3550 = vmatpush2.msra.mxu0 0.0
      %3551 = vmatprep.subr.mxu0 0.0
      %3552 = vmatpush2.msra.mxu0 0.0
      %3553 = vmatprep.subr.mxu0 0.0
      %3554 = vmatpush2.msra.mxu0 0.0
      %3555 = vmatprep.subr.mxu0 0.0
      %3556 = vmatpush2.msra.mxu0 0.0
      %3557 = vmatprep.subr.mxu0 0.0
      %3558 = vmatpush2.msra.mxu0 0.0
      %3559 = vmatprep.subr.mxu0 0.0
      %3560 = vmatpush2.msra.mxu0 0.0
      %3561 = vmatprep.subr.mxu0 0.0
      %3562 = vmatpush2.msra.mxu0 0.0
      %3563 = vmatprep.subr.mxu0 0.0
      %3564 = vmatpush2.msra.mxu0 0.0
      %3565 = vmatprep.subr.mxu0 0.0
      %3566 = vmatpush2.msra.mxu0 0.0
      %3567 = vmatprep.subr.mxu0 0.0
      %3568 = vmatpush2.msra.mxu0 0.0
      %3569 = vmatprep.subr.mxu0 0.0
      %3570 = vmatpush2.msra.mxu0 0.0
      %3571 = vmatprep.mubr.f32.mxu0 0.0
      %3572 = vmatmul.mubr.f32.gmra.mxu0 %v3412
      %v3573 = vpop.f32.mrf.mxu0
      %v3574 = vadd.f32 0.0, %v3573
      %v3575 = vpop.f32.mrf.mxu0
      %3576 = vmatprep.mubr.f32.mxu0 0.0
      %3577 = vmatmul.mubr.f32.gmra.mxu0 %v3415
      %v3578 = vpop.f32.mrf.mxu0
      %v3579 = vadd.f32 0.0, %v3578
      %v3580 = vpop.f32.mrf.mxu0
      %3581 = vmatprep.mubr.f32.mxu0 0.0
      %3582 = vmatmul.mubr.f32.gmra.mxu0 %v3418
      %v3583 = vpop.f32.mrf.mxu0
      %v3584 = vadd.f32 0.0, %v3583
      %v3585 = vpop.f32.mrf.mxu0
      %3586 = vmatprep.mubr.f32.mxu0 0.0
      %3587 = vmatmul.mubr.f32.gmra.mxu0 %v3421
      %v3588 = vpop.f32.mrf.mxu0
      %v3589 = vadd.f32 0.0, %v3588
      %v3590 = vpop.f32.mrf.mxu0
      %3591 = vmatprep.mubr.f32.mxu0 0.0
      %3592 = vmatmul.mubr.f32.gmra.mxu0 %v3424
      %v3593 = vpop.f32.mrf.mxu0
      %v3594 = vadd.f32 0.0, %v3593
      %v3595 = vpop.f32.mrf.mxu0
      %3596 = vmatprep.mubr.f32.mxu0 0.0
      %3597 = vmatmul.mubr.f32.gmra.mxu0 %v3427
      %v3598 = vpop.f32.mrf.mxu0
      %v3599 = vadd.f32 0.0, %v3598
      %v3600 = vpop.f32.mrf.mxu0
      %3601 = vmatprep.mubr.f32.mxu0 0.0
      %3602 = vmatmul.mubr.f32.gmra.mxu0 %v3430
      %v3603 = vpop.f32.mrf.mxu0
      %v3604 = vadd.f32 0.0, %v3603
      %v3605 = vpop.f32.mrf.mxu0
      %3606 = vmatprep.mubr.f32.mxu0 0.0
      %3607 = vmatmul.mubr.f32.gmra.mxu0 %v3433
      %v3608 = vpop.f32.mrf.mxu0
      %v3609 = vadd.f32 0.0, %v3608
      %v3610 = vpop.f32.mrf.mxu0
      %3611 = vmatprep.mubr.f32.mxu0 0.0
      %3612 = vmatmul.mubr.f32.gmra.mxu0 %v3436
      %v3613 = vpop.f32.mrf.mxu0
      %v3614 = vadd.f32 0.0, %v3613
      %v3615 = vpop.f32.mrf.mxu0
      %3616 = vmatprep.mubr.f32.mxu0 0.0
      %3617 = vmatmul.mubr.f32.gmra.mxu0 %v3439
      %v3618 = vpop.f32.mrf.mxu0
      %v3619 = vadd.f32 0.0, %v3618
      %v3620 = vpop.f32.mrf.mxu0
      %3621 = vmatprep.mubr.f32.mxu0 0.0
      %3622 = vmatmul.mubr.f32.gmra.mxu0 %v3442
      %v3623 = vpop.f32.mrf.mxu0
      %v3624 = vadd.f32 0.0, %v3623
      %v3625 = vpop.f32.mrf.mxu0
      %3626 = vmatprep.mubr.f32.mxu0 0.0
      %3627 = vmatmul.mubr.f32.gmra.mxu0 %v3445
      %v3628 = vpop.f32.mrf.mxu0
      %v3629 = vadd.f32 0.0, %v3628
      %v3630 = vpop.f32.mrf.mxu0
      %3631 = vmatprep.mubr.f32.mxu0 0.0
      %3632 = vmatmul.mubr.f32.gmra.mxu0 %v3448
      %v3633 = vpop.f32.mrf.mxu0
      %v3634 = vadd.f32 0.0, %v3633
      %v3635 = vpop.f32.mrf.mxu0
      %3636 = vmatprep.mubr.f32.mxu0 0.0
      %3637 = vmatmul.mubr.f32.gmra.mxu0 %v3451
      %v3638 = vpop.f32.mrf.mxu0
      %v3639 = vadd.f32 0.0, %v3638
      %v3640 = vpop.f32.mrf.mxu0
      %3641 = vmatprep.mubr.f32.mxu0 0.0
      %3642 = vmatmul.mubr.f32.gmra.mxu0 %v3454
      %v3643 = vpop.f32.mrf.mxu0
      %v3644 = vadd.f32 0.0, %v3643
      %v3645 = vpop.f32.mrf.mxu0
      %3646 = vmatprep.mubr.f32.mxu0 0.0
      %3647 = vmatmul.mubr.f32.gmra.mxu0 %v3457
      %v3648 = vpop.f32.mrf.mxu0
      %v3649 = vadd.f32 0.0, %v3648
      %v3650 = vpop.f32.mrf.mxu0
      %3651 = vmatprep.mubr.f32.mxu0 0.0
      %3652 = vmatmul.mubr.f32.gmra.mxu0 %v3460
      %v3653 = vpop.f32.mrf.mxu0
      %v3654 = vadd.f32 0.0, %v3653
      %v3655 = vpop.f32.mrf.mxu0
      %3656 = vmatprep.mubr.f32.mxu0 0.0
      %3657 = vmatmul.mubr.f32.gmra.mxu0 %v3463
      %v3658 = vpop.f32.mrf.mxu0
      %v3659 = vadd.f32 0.0, %v3658
      %v3660 = vpop.f32.mrf.mxu0
      %3661 = vmatprep.mubr.f32.mxu0 0.0
      %3662 = vmatmul.mubr.f32.gmra.mxu0 %v3466
      %v3663 = vpop.f32.mrf.mxu0
      %v3664 = vadd.f32 0.0, %v3663
      %v3665 = vpop.f32.mrf.mxu0
      %3666 = vmatprep.mubr.f32.mxu0 0.0
      %3667 = vmatmul.mubr.f32.gmra.mxu0 %v3469
      %v3668 = vpop.f32.mrf.mxu0
      %v3669 = vadd.f32 0.0, %v3668
      %v3670 = vpop.f32.mrf.mxu0
      %3671 = vmatprep.mubr.f32.mxu0 0.0
      %3672 = vmatmul.mubr.f32.gmra.mxu0 %v3472
      %v3673 = vpop.f32.mrf.mxu0
      %v3674 = vadd.f32 0.0, %v3673
      %v3675 = vpop.f32.mrf.mxu0
      %3676 = vmatprep.mubr.f32.mxu0 0.0
      %3677 = vmatmul.mubr.f32.gmra.mxu0 %v3475
      %v3678 = vpop.f32.mrf.mxu0
      %v3679 = vadd.f32 0.0, %v3678
      %v3680 = vpop.f32.mrf.mxu0
      %3681 = vmatprep.mubr.f32.mxu0 0.0
      %3682 = vmatmul.mubr.f32.gmra.mxu0 %v3478
      %v3683 = vpop.f32.mrf.mxu0
      %v3684 = vadd.f32 0.0, %v3683
      %v3685 = vpop.f32.mrf.mxu0
      %3686 = vmatprep.mubr.f32.mxu0 0.0
      %3687 = vmatmul.mubr.f32.gmra.mxu0 %v3481
      %v3688 = vpop.f32.mrf.mxu0
      %v3689 = vadd.f32 0.0, %v3688
      %v3690 = vpop.f32.mrf.mxu0
      %3691 = vmatprep.mubr.f32.mxu0 0.0
      %3692 = vmatmul.mubr.f32.gmra.mxu0 %v3484
      %v3693 = vpop.f32.mrf.mxu0
      %v3694 = vadd.f32 0.0, %v3693
      %v3695 = vpop.f32.mrf.mxu0
      %3696 = vmatprep.mubr.f32.mxu0 0.0
      %3697 = vmatmul.mubr.f32.gmra.mxu0 %v3487
      %v3698 = vpop.f32.mrf.mxu0
      %v3699 = vadd.f32 0.0, %v3698
      %v3700 = vpop.f32.mrf.mxu0
      %3701 = vmatprep.mubr.f32.mxu0 0.0
      %3702 = vmatmul.mubr.f32.gmra.mxu0 %v3490
      %v3703 = vpop.f32.mrf.mxu0
      %v3704 = vadd.f32 0.0, %v3703
      %v3705 = vpop.f32.mrf.mxu0
      %3706 = vmatprep.mubr.f32.mxu0 0.0
      %3707 = vmatmul.mubr.f32.gmra.mxu0 %v3493
      %v3708 = vpop.f32.mrf.mxu0
      %v3709 = vadd.f32 0.0, %v3708
      %v3710 = vpop.f32.mrf.mxu0
      %3711 = vmatprep.mubr.f32.mxu0 0.0
      %3712 = vmatmul.mubr.f32.gmra.mxu0 %v3496
      %v3713 = vpop.f32.mrf.mxu0
      %v3714 = vadd.f32 0.0, %v3713
      %v3715 = vpop.f32.mrf.mxu0
      %3716 = vmatprep.mubr.f32.mxu0 0.0
      %3717 = vmatmul.mubr.f32.gmra.mxu0 %v3499
      %v3718 = vpop.f32.mrf.mxu0
      %v3719 = vadd.f32 0.0, %v3718
      %v3720 = vpop.f32.mrf.mxu0
      %3721 = vmatprep.mubr.f32.mxu0 0.0
      %3722 = vmatmul.mubr.f32.gmra.mxu0 %v3502
      %v3723 = vpop.f32.mrf.mxu0
      %v3724 = vadd.f32 0.0, %v3723
      %v3725 = vpop.f32.mrf.mxu0
      %3726 = vmatprep.mubr.f32.mxu0 0.0
      %3727 = vmatmul.mubr.f32.gmra.mxu0 %v3505
      %v3728 = vpop.f32.mrf.mxu0
      %v3729 = vadd.f32 0.0, %v3728
      %v3730 = vpop.f32.mrf.mxu0
      %3731 = vdwg.mxu0
      %3764 = vrot.lane.b32.xlu0 %v3574, 64
      %v3765 = vpop.permute.xlu0 %3764
      %3766 = vrot.lane.b32.xlu0 %v3579, 64
      %v3767 = vpop.permute.xlu0 %3766
      %3768 = vrot.lane.b32.xlu0 %v3584, 64
      %v3769 = vpop.permute.xlu0 %3768
      %3770 = vrot.lane.b32.xlu0 %v3589, 64
      %v3771 = vpop.permute.xlu0 %3770
      %3772 = vrot.lane.b32.xlu0 %v3594, 64
      %v3773 = vpop.permute.xlu0 %3772
      %3774 = vrot.lane.b32.xlu0 %v3599, 64
      %v3775 = vpop.permute.xlu0 %3774
      %3776 = vrot.lane.b32.xlu0 %v3604, 64
      %v3777 = vpop.permute.xlu0 %3776
      %3778 = vrot.lane.b32.xlu0 %v3609, 64
      %v3779 = vpop.permute.xlu0 %3778
      %3780 = vrot.lane.b32.xlu0 %v3614, 64
      %v3781 = vpop.permute.xlu0 %3780
      %3782 = vrot.lane.b32.xlu0 %v3619, 64
      %v3783 = vpop.permute.xlu0 %3782
      %3784 = vrot.lane.b32.xlu0 %v3624, 64
      %v3785 = vpop.permute.xlu0 %3784
      %3786 = vrot.lane.b32.xlu0 %v3629, 64
      %v3787 = vpop.permute.xlu0 %3786
      %3788 = vrot.lane.b32.xlu0 %v3634, 64
      %v3789 = vpop.permute.xlu0 %3788
      %3790 = vrot.lane.b32.xlu0 %v3639, 64
      %v3791 = vpop.permute.xlu0 %3790
      %3792 = vrot.lane.b32.xlu0 %v3644, 64
      %v3793 = vpop.permute.xlu0 %3792
      %3794 = vrot.lane.b32.xlu0 %v3649, 64
      %v3795 = vpop.permute.xlu0 %3794
      %3796 = vrot.lane.b32.xlu0 %v3654, 64
      %v3797 = vpop.permute.xlu0 %3796
      %3798 = vrot.lane.b32.xlu0 %v3659, 64
      %v3799 = vpop.permute.xlu0 %3798
      %3800 = vrot.lane.b32.xlu0 %v3664, 64
      %v3801 = vpop.permute.xlu0 %3800
      %3802 = vrot.lane.b32.xlu0 %v3669, 64
      %v3803 = vpop.permute.xlu0 %3802
      %3804 = vrot.lane.b32.xlu0 %v3674, 64
      %v3805 = vpop.permute.xlu0 %3804
      %3806 = vrot.lane.b32.xlu0 %v3679, 64
      %v3807 = vpop.permute.xlu0 %3806
      %3808 = vrot.lane.b32.xlu0 %v3684, 64
      %v3809 = vpop.permute.xlu0 %3808
      %3810 = vrot.lane.b32.xlu0 %v3689, 64
      %v3811 = vpop.permute.xlu0 %3810
      %3812 = vrot.lane.b32.xlu0 %v3694, 64
      %v3813 = vpop.permute.xlu0 %3812
      %3814 = vrot.lane.b32.xlu0 %v3699, 64
      %v3815 = vpop.permute.xlu0 %3814
      %3816 = vrot.lane.b32.xlu0 %v3704, 64
      %v3817 = vpop.permute.xlu0 %3816
      %3818 = vrot.lane.b32.xlu0 %v3709, 64
      %v3819 = vpop.permute.xlu0 %3818
      %3820 = vrot.lane.b32.xlu0 %v3714, 64
      %v3821 = vpop.permute.xlu0 %3820
      %3822 = vrot.lane.b32.xlu0 %v3719, 64
      %v3823 = vpop.permute.xlu0 %3822
      %3824 = vrot.lane.b32.xlu0 %v3724, 64
      %v3825 = vpop.permute.xlu0 %3824
      %3826 = vrot.lane.b32.xlu0 %v3729, 64
      %v3827 = vpop.permute.xlu0 %3826
      %v3860 = vsel %vm1623, %v2484, %v3765
      %v3861 = vsel %vm1623, %v2489, %v3767
      %v3862 = vsel %vm1623, %v2494, %v3769
      %v3863 = vsel %vm1623, %v2499, %v3771
      %v3864 = vsel %vm1623, %v2504, %v3773
      %v3865 = vsel %vm1623, %v2509, %v3775
      %v3866 = vsel %vm1623, %v2514, %v3777
      %v3867 = vsel %vm1623, %v2519, %v3779
      %v3868 = vsel %vm1623, %v2524, %v3781
      %v3869 = vsel %vm1623, %v2529, %v3783
      %v3870 = vsel %vm1623, %v2534, %v3785
      %v3871 = vsel %vm1623, %v2539, %v3787
      %v3872 = vsel %vm1623, %v2544, %v3789
      %v3873 = vsel %vm1623, %v2549, %v3791
      %v3874 = vsel %vm1623, %v2554, %v3793
      %v3875 = vsel %vm1623, %v2559, %v3795
      %v3876 = vsel %vm1623, %v2564, %v3797
      %v3877 = vsel %vm1623, %v2569, %v3799
      %v3878 = vsel %vm1623, %v2574, %v3801
      %v3879 = vsel %vm1623, %v2579, %v3803
      %v3880 = vsel %vm1623, %v2584, %v3805
      %v3881 = vsel %vm1623, %v2589, %v3807
      %v3882 = vsel %vm1623, %v2594, %v3809
      %v3883 = vsel %vm1623, %v2599, %v3811
      %v3884 = vsel %vm1623, %v2604, %v3813
      %v3885 = vsel %vm1623, %v2609, %v3815
      %v3886 = vsel %vm1623, %v2614, %v3817
      %v3887 = vsel %vm1623, %v2619, %v3819
      %v3888 = vsel %vm1623, %v2624, %v3821
      %v3889 = vsel %vm1623, %v2629, %v3823
      %v3890 = vsel %vm1623, %v2634, %v3825
      %v3891 = vsel %vm1623, %v2639, %v3827
      %v3892 = vld [vmem:[%s7] sm:$0xff]
      %v3893 = vld [vmem:[%s7 + $0x8] sm:$0xff]
      %v3894 = vld [vmem:[%s7 + $0x10] sm:$0xff]
      %v3895 = vld [vmem:[%s7 + $0x18] sm:$0xff]
      %v3896 = vld [vmem:[%s7 + $0x20] sm:$0xff]
      %v3897 = vld [vmem:[%s7 + $0x28] sm:$0xff]
      %v3898 = vld [vmem:[%s7 + $0x30] sm:$0xff]
      %v3899 = vld [vmem:[%s7 + $0x38] sm:$0xff]
      %v3900 = vld [vmem:[%s7 + $0x40] sm:$0xff]
      %v3901 = vld [vmem:[%s7 + $0x48] sm:$0xff]
      %v3902 = vld [vmem:[%s7 + $0x50] sm:$0xff]
      %v3903 = vld [vmem:[%s7 + $0x58] sm:$0xff]
      %v3904 = vld [vmem:[%s7 + $0x60] sm:$0xff]
      %v3905 = vld [vmem:[%s7 + $0x68] sm:$0xff]
      %v3906 = vld [vmem:[%s7 + $0x70] sm:$0xff]
      %v3907 = vld [vmem:[%s7 + $0x78] sm:$0xff]
      %3908 = vmatprep.subr.mxu0 0.0
      %3909 = vmatpush1.msra.mxu0 %v3907
      %3910 = vmatprep.subr.mxu0 0.0
      %3911 = vmatpush1.msra.mxu0 %v3906
      %3912 = vmatprep.subr.mxu0 0.0
      %3913 = vmatpush1.msra.mxu0 %v3905
      %3914 = vmatprep.subr.mxu0 0.0
      %3915 = vmatpush1.msra.mxu0 %v3904
      %3916 = vmatprep.subr.mxu0 0.0
      %3917 = vmatpush1.msra.mxu0 %v3903
      %3918 = vmatprep.subr.mxu0 0.0
      %3919 = vmatpush1.msra.mxu0 %v3902
      %3920 = vmatprep.subr.mxu0 0.0
      %3921 = vmatpush1.msra.mxu0 %v3901
      %3922 = vmatprep.subr.mxu0 0.0
      %3923 = vmatpush1.msra.mxu0 %v3900
      %3924 = vmatprep.subr.mxu0 0.0
      %3925 = vmatpush1.msra.mxu0 %v3899
      %3926 = vmatprep.subr.mxu0 0.0
      %3927 = vmatpush1.msra.mxu0 %v3898
      %3928 = vmatprep.subr.mxu0 0.0
      %3929 = vmatpush1.msra.mxu0 %v3897
      %3930 = vmatprep.subr.mxu0 0.0
      %3931 = vmatpush1.msra.mxu0 %v3896
      %3932 = vmatprep.subr.mxu0 0.0
      %3933 = vmatpush1.msra.mxu0 %v3895
      %3934 = vmatprep.subr.mxu0 0.0
      %3935 = vmatpush1.msra.mxu0 %v3894
      %3936 = vmatprep.subr.mxu0 0.0
      %3937 = vmatpush1.msra.mxu0 %v3893
      %3938 = vmatprep.subr.mxu0 0.0
      %3939 = vmatpush1.msra.mxu0 %v3892
      %3940 = vmatprep.subr.mxu0 0.0
      %3941 = vmatpush2.msra.mxu0 0.0
      %3942 = vmatprep.subr.mxu0 0.0
      %3943 = vmatpush2.msra.mxu0 0.0
      %3944 = vmatprep.subr.mxu0 0.0
      %3945 = vmatpush2.msra.mxu0 0.0
      %3946 = vmatprep.subr.mxu0 0.0
      %3947 = vmatpush2.msra.mxu0 0.0
      %3948 = vmatprep.subr.mxu0 0.0
      %3949 = vmatpush2.msra.mxu0 0.0
      %3950 = vmatprep.subr.mxu0 0.0
      %3951 = vmatpush2.msra.mxu0 0.0
      %3952 = vmatprep.subr.mxu0 0.0
      %3953 = vmatpush2.msra.mxu0 0.0
      %3954 = vmatprep.subr.mxu0 0.0
      %3955 = vmatpush2.msra.mxu0 0.0
      %3956 = vmatprep.subr.mxu0 0.0
      %3957 = vmatpush2.msra.mxu0 0.0
      %3958 = vmatprep.subr.mxu0 0.0
      %3959 = vmatpush2.msra.mxu0 0.0
      %3960 = vmatprep.subr.mxu0 0.0
      %3961 = vmatpush2.msra.mxu0 0.0
      %3962 = vmatprep.subr.mxu0 0.0
      %3963 = vmatpush2.msra.mxu0 0.0
      %3964 = vmatprep.subr.mxu0 0.0
      %3965 = vmatpush2.msra.mxu0 0.0
      %3966 = vmatprep.subr.mxu0 0.0
      %3967 = vmatpush2.msra.mxu0 0.0
      %3968 = vmatprep.subr.mxu0 0.0
      %3969 = vmatpush2.msra.mxu0 0.0
      %3970 = vmatprep.subr.mxu0 0.0
      %3971 = vmatpush2.msra.mxu0 0.0
      %3972 = vmatprep.mubr.f32.mxu0 0.0
      %3973 = vmatmul.mubr.f32.gmra.mxu0 %v3860
      %v3974 = vpop.f32.mrf.mxu0
      %v3975 = vadd.f32 0.0, %v3974
      %v3976 = vpop.f32.mrf.mxu0
      %3977 = vmatprep.mubr.f32.mxu0 0.0
      %3978 = vmatmul.mubr.f32.gmra.mxu0 %v3861
      %v3979 = vpop.f32.mrf.mxu0
      %v3980 = vadd.f32 0.0, %v3979
      %v3981 = vpop.f32.mrf.mxu0
      %3982 = vmatprep.mubr.f32.mxu0 0.0
      %3983 = vmatmul.mubr.f32.gmra.mxu0 %v3862
      %v3984 = vpop.f32.mrf.mxu0
      %v3985 = vadd.f32 0.0, %v3984
      %v3986 = vpop.f32.mrf.mxu0
      %3987 = vmatprep.mubr.f32.mxu0 0.0
      %3988 = vmatmul.mubr.f32.gmra.mxu0 %v3863
      %v3989 = vpop.f32.mrf.mxu0
      %v3990 = vadd.f32 0.0, %v3989
      %v3991 = vpop.f32.mrf.mxu0
      %3992 = vmatprep.mubr.f32.mxu0 0.0
      %3993 = vmatmul.mubr.f32.gmra.mxu0 %v3864
      %v3994 = vpop.f32.mrf.mxu0
      %v3995 = vadd.f32 0.0, %v3994
      %v3996 = vpop.f32.mrf.mxu0
      %3997 = vmatprep.mubr.f32.mxu0 0.0
      %3998 = vmatmul.mubr.f32.gmra.mxu0 %v3865
      %v3999 = vpop.f32.mrf.mxu0
      %v4000 = vadd.f32 0.0, %v3999
      %v4001 = vpop.f32.mrf.mxu0
      %4002 = vmatprep.mubr.f32.mxu0 0.0
      %4003 = vmatmul.mubr.f32.gmra.mxu0 %v3866
      %v4004 = vpop.f32.mrf.mxu0
      %v4005 = vadd.f32 0.0, %v4004
      %v4006 = vpop.f32.mrf.mxu0
      %4007 = vmatprep.mubr.f32.mxu0 0.0
      %4008 = vmatmul.mubr.f32.gmra.mxu0 %v3867
      %v4009 = vpop.f32.mrf.mxu0
      %v4010 = vadd.f32 0.0, %v4009
      %v4011 = vpop.f32.mrf.mxu0
      %4012 = vmatprep.mubr.f32.mxu0 0.0
      %4013 = vmatmul.mubr.f32.gmra.mxu0 %v3868
      %v4014 = vpop.f32.mrf.mxu0
      %v4015 = vadd.f32 0.0, %v4014
      %v4016 = vpop.f32.mrf.mxu0
      %4017 = vmatprep.mubr.f32.mxu0 0.0
      %4018 = vmatmul.mubr.f32.gmra.mxu0 %v3869
      %v4019 = vpop.f32.mrf.mxu0
      %v4020 = vadd.f32 0.0, %v4019
      %v4021 = vpop.f32.mrf.mxu0
      %4022 = vmatprep.mubr.f32.mxu0 0.0
      %4023 = vmatmul.mubr.f32.gmra.mxu0 %v3870
      %v4024 = vpop.f32.mrf.mxu0
      %v4025 = vadd.f32 0.0, %v4024
      %v4026 = vpop.f32.mrf.mxu0
      %4027 = vmatprep.mubr.f32.mxu0 0.0
      %4028 = vmatmul.mubr.f32.gmra.mxu0 %v3871
      %v4029 = vpop.f32.mrf.mxu0
      %v4030 = vadd.f32 0.0, %v4029
      %v4031 = vpop.f32.mrf.mxu0
      %4032 = vmatprep.mubr.f32.mxu0 0.0
      %4033 = vmatmul.mubr.f32.gmra.mxu0 %v3872
      %v4034 = vpop.f32.mrf.mxu0
      %v4035 = vadd.f32 0.0, %v4034
      %v4036 = vpop.f32.mrf.mxu0
      %4037 = vmatprep.mubr.f32.mxu0 0.0
      %4038 = vmatmul.mubr.f32.gmra.mxu0 %v3873
      %v4039 = vpop.f32.mrf.mxu0
      %v4040 = vadd.f32 0.0, %v4039
      %v4041 = vpop.f32.mrf.mxu0
      %4042 = vmatprep.mubr.f32.mxu0 0.0
      %4043 = vmatmul.mubr.f32.gmra.mxu0 %v3874
      %v4044 = vpop.f32.mrf.mxu0
      %v4045 = vadd.f32 0.0, %v4044
      %v4046 = vpop.f32.mrf.mxu0
      %4047 = vmatprep.mubr.f32.mxu0 0.0
      %4048 = vmatmul.mubr.f32.gmra.mxu0 %v3875
      %v4049 = vpop.f32.mrf.mxu0
      %v4050 = vadd.f32 0.0, %v4049
      %v4051 = vpop.f32.mrf.mxu0
      %4052 = vmatprep.mubr.f32.mxu0 0.0
      %4053 = vmatmul.mubr.f32.gmra.mxu0 %v3876
      %v4054 = vpop.f32.mrf.mxu0
      %v4055 = vadd.f32 0.0, %v4054
      %v4056 = vpop.f32.mrf.mxu0
      %4057 = vmatprep.mubr.f32.mxu0 0.0
      %4058 = vmatmul.mubr.f32.gmra.mxu0 %v3877
      %v4059 = vpop.f32.mrf.mxu0
      %v4060 = vadd.f32 0.0, %v4059
      %v4061 = vpop.f32.mrf.mxu0
      %4062 = vmatprep.mubr.f32.mxu0 0.0
      %4063 = vmatmul.mubr.f32.gmra.mxu0 %v3878
      %v4064 = vpop.f32.mrf.mxu0
      %v4065 = vadd.f32 0.0, %v4064
      %v4066 = vpop.f32.mrf.mxu0
      %4067 = vmatprep.mubr.f32.mxu0 0.0
      %4068 = vmatmul.mubr.f32.gmra.mxu0 %v3879
      %v4069 = vpop.f32.mrf.mxu0
      %v4070 = vadd.f32 0.0, %v4069
      %v4071 = vpop.f32.mrf.mxu0
      %4072 = vmatprep.mubr.f32.mxu0 0.0
      %4073 = vmatmul.mubr.f32.gmra.mxu0 %v3880
      %v4074 = vpop.f32.mrf.mxu0
      %v4075 = vadd.f32 0.0, %v4074
      %v4076 = vpop.f32.mrf.mxu0
      %4077 = vmatprep.mubr.f32.mxu0 0.0
      %4078 = vmatmul.mubr.f32.gmra.mxu0 %v3881
      %v4079 = vpop.f32.mrf.mxu0
      %v4080 = vadd.f32 0.0, %v4079
      %v4081 = vpop.f32.mrf.mxu0
      %4082 = vmatprep.mubr.f32.mxu0 0.0
      %4083 = vmatmul.mubr.f32.gmra.mxu0 %v3882
      %v4084 = vpop.f32.mrf.mxu0
      %v4085 = vadd.f32 0.0, %v4084
      %v4086 = vpop.f32.mrf.mxu0
      %4087 = vmatprep.mubr.f32.mxu0 0.0
      %4088 = vmatmul.mubr.f32.gmra.mxu0 %v3883
      %v4089 = vpop.f32.mrf.mxu0
      %v4090 = vadd.f32 0.0, %v4089
      %v4091 = vpop.f32.mrf.mxu0
      %4092 = vmatprep.mubr.f32.mxu0 0.0
      %4093 = vmatmul.mubr.f32.gmra.mxu0 %v3884
      %v4094 = vpop.f32.mrf.mxu0
      %v4095 = vadd.f32 0.0, %v4094
      %v4096 = vpop.f32.mrf.mxu0
      %4097 = vmatprep.mubr.f32.mxu0 0.0
      %4098 = vmatmul.mubr.f32.gmra.mxu0 %v3885
      %v4099 = vpop.f32.mrf.mxu0
      %v4100 = vadd.f32 0.0, %v4099
      %v4101 = vpop.f32.mrf.mxu0
      %4102 = vmatprep.mubr.f32.mxu0 0.0
      %4103 = vmatmul.mubr.f32.gmra.mxu0 %v3886
      %v4104 = vpop.f32.mrf.mxu0
      %v4105 = vadd.f32 0.0, %v4104
      %v4106 = vpop.f32.mrf.mxu0
      %4107 = vmatprep.mubr.f32.mxu0 0.0
      %4108 = vmatmul.mubr.f32.gmra.mxu0 %v3887
      %v4109 = vpop.f32.mrf.mxu0
      %v4110 = vadd.f32 0.0, %v4109
      %v4111 = vpop.f32.mrf.mxu0
      %4112 = vmatprep.mubr.f32.mxu0 0.0
      %4113 = vmatmul.mubr.f32.gmra.mxu0 %v3888
      %v4114 = vpop.f32.mrf.mxu0
      %v4115 = vadd.f32 0.0, %v4114
      %v4116 = vpop.f32.mrf.mxu0
      %4117 = vmatprep.mubr.f32.mxu0 0.0
      %4118 = vmatmul.mubr.f32.gmra.mxu0 %v3889
      %v4119 = vpop.f32.mrf.mxu0
      %v4120 = vadd.f32 0.0, %v4119
      %v4121 = vpop.f32.mrf.mxu0
      %4122 = vmatprep.mubr.f32.mxu0 0.0
      %4123 = vmatmul.mubr.f32.gmra.mxu0 %v3890
      %v4124 = vpop.f32.mrf.mxu0
      %v4125 = vadd.f32 0.0, %v4124
      %v4126 = vpop.f32.mrf.mxu0
      %4127 = vmatprep.mubr.f32.mxu0 0.0
      %4128 = vmatmul.mubr.f32.gmra.mxu0 %v3891
      %v4129 = vpop.f32.mrf.mxu0
      %v4130 = vadd.f32 0.0, %v4129
      %v4131 = vpop.f32.mrf.mxu0
      %4132 = vdwg.mxu0
      %v4133 = vadd.f32 %v400, %v3975
      %v4134 = vadd.f32 %v401, %v3980
      %v4135 = vadd.f32 %v402, %v3985
      %v4136 = vadd.f32 %v403, %v3990
      %v4137 = vadd.f32 %v404, %v3995
      %v4138 = vadd.f32 %v405, %v4000
      %v4139 = vadd.f32 %v406, %v4005
      %v4140 = vadd.f32 %v407, %v4010
      %v4141 = vadd.f32 %v408, %v4015
      %v4142 = vadd.f32 %v409, %v4020
      %v4143 = vadd.f32 %v410, %v4025
      %v4144 = vadd.f32 %v411, %v4030
      %v4145 = vadd.f32 %v412, %v4035
      %v4146 = vadd.f32 %v413, %v4040
      %v4147 = vadd.f32 %v414, %v4045
      %v4148 = vadd.f32 %v415, %v4050
      %v4149 = vadd.f32 %v416, %v4055
      %v4150 = vadd.f32 %v417, %v4060
      %v4151 = vadd.f32 %v418, %v4065
      %v4152 = vadd.f32 %v419, %v4070
      %v4153 = vadd.f32 %v420, %v4075
      %v4154 = vadd.f32 %v421, %v4080
      %v4155 = vadd.f32 %v422, %v4085
      %v4156 = vadd.f32 %v423, %v4090
      %v4157 = vadd.f32 %v424, %v4095
      %v4158 = vadd.f32 %v425, %v4100
      %v4159 = vadd.f32 %v426, %v4105
      %v4160 = vadd.f32 %v427, %v4110
      %v4161 = vadd.f32 %v428, %v4115
      %v4162 = vadd.f32 %v429, %v4120
      %v4163 = vadd.f32 %v430, %v4125
      %v4164 = vadd.f32 %v431, %v4130
      %v4165 = vld [vmem:[%s2 + $0x6] sm:$0x1]
      %v4166 = vlaneseq
      %v4167 = vshrl.u32 %v4166, 7
      %v4168 = vsub.s32 0, %v4167
      %v4169 = vrot.slane %v4165, %v4168
      %v4170 = vadd.f32 %v4133, %v4169
      %v4171 = vadd.f32 %v4134, %v4169
      %v4172 = vadd.f32 %v4135, %v4169
      %v4173 = vadd.f32 %v4136, %v4169
      %v4174 = vadd.f32 %v4137, %v4169
      %v4175 = vadd.f32 %v4138, %v4169
      %v4176 = vadd.f32 %v4139, %v4169
      %v4177 = vadd.f32 %v4140, %v4169
      %v4178 = vadd.f32 %v4141, %v4169
      %v4179 = vadd.f32 %v4142, %v4169
      %v4180 = vadd.f32 %v4143, %v4169
      %v4181 = vadd.f32 %v4144, %v4169
      %v4182 = vadd.f32 %v4145, %v4169
      %v4183 = vadd.f32 %v4146, %v4169
      %v4184 = vadd.f32 %v4147, %v4169
      %v4185 = vadd.f32 %v4148, %v4169
      %v4186 = vadd.f32 %v4149, %v4169
      %v4187 = vadd.f32 %v4150, %v4169
      %v4188 = vadd.f32 %v4151, %v4169
      %v4189 = vadd.f32 %v4152, %v4169
      %v4190 = vadd.f32 %v4153, %v4169
      %v4191 = vadd.f32 %v4154, %v4169
      %v4192 = vadd.f32 %v4155, %v4169
      %v4193 = vadd.f32 %v4156, %v4169
      %v4194 = vadd.f32 %v4157, %v4169
      %v4195 = vadd.f32 %v4158, %v4169
      %v4196 = vadd.f32 %v4159, %v4169
      %v4197 = vadd.f32 %v4160, %v4169
      %v4198 = vadd.f32 %v4161, %v4169
      %v4199 = vadd.f32 %v4162, %v4169
      %v4200 = vadd.f32 %v4163, %v4169
      %v4201 = vadd.f32 %v4164, %v4169
      %4202 = vst [vmem:[%s394] sm:$0xff] %v4170
      %4203 = vst [vmem:[%s394 + $0x8] sm:$0xff] %v4171
      %4204 = vst [vmem:[%s394 + $0x10] sm:$0xff] %v4172
      %4205 = vst [vmem:[%s394 + $0x18] sm:$0xff] %v4173
      %4206 = vst [vmem:[%s394 + $0x20] sm:$0xff] %v4174
      %4207 = vst [vmem:[%s394 + $0x28] sm:$0xff] %v4175
      %4208 = vst [vmem:[%s394 + $0x30] sm:$0xff] %v4176
      %4209 = vst [vmem:[%s394 + $0x38] sm:$0xff] %v4177
      %4210 = vst [vmem:[%s394 + $0x40] sm:$0xff] %v4178
      %4211 = vst [vmem:[%s394 + $0x48] sm:$0xff] %v4179
      %4212 = vst [vmem:[%s394 + $0x50] sm:$0xff] %v4180
      %4213 = vst [vmem:[%s394 + $0x58] sm:$0xff] %v4181
      %4214 = vst [vmem:[%s394 + $0x60] sm:$0xff] %v4182
      %4215 = vst [vmem:[%s394 + $0x68] sm:$0xff] %v4183
      %4216 = vst [vmem:[%s394 + $0x70] sm:$0xff] %v4184
      %4217 = vst [vmem:[%s394 + $0x78] sm:$0xff] %v4185
      %4218 = vst [vmem:[%s394 + $0x80] sm:$0xff] %v4186
      %4219 = vst [vmem:[%s394 + $0x88] sm:$0xff] %v4187
      %4220 = vst [vmem:[%s394 + $0x90] sm:$0xff] %v4188
      %4221 = vst [vmem:[%s394 + $0x98] sm:$0xff] %v4189
      %4222 = vst [vmem:[%s394 + $0xa0] sm:$0xff] %v4190
      %4223 = vst [vmem:[%s394 + $0xa8] sm:$0xff] %v4191
      %4224 = vst [vmem:[%s394 + $0xb0] sm:$0xff] %v4192
      %4225 = vst [vmem:[%s394 + $0xb8] sm:$0xff] %v4193
      %4226 = vst [vmem:[%s394 + $0xc0] sm:$0xff] %v4194
      %4227 = vst [vmem:[%s394 + $0xc8] sm:$0xff] %v4195
      %4228 = vst [vmem:[%s394 + $0xd0] sm:$0xff] %v4196
      %4229 = vst [vmem:[%s394 + $0xd8] sm:$0xff] %v4197
      %4230 = vst [vmem:[%s394 + $0xe0] sm:$0xff] %v4198
      %4231 = vst [vmem:[%s394 + $0xe8] sm:$0xff] %v4199
      %4232 = vst [vmem:[%s394 + $0xf0] sm:$0xff] %v4200
      %4233 = vst [vmem:[%s394 + $0xf8] sm:$0xff] %v4201
      %v4234 = vld [vmem:[%s2 + $0x7] sm:$0x1]
      %v4235 = vld [vmem:[%s2 + $0x8] sm:$0x1]
      %4236 = vadd.xlane.f32.xlu0 %v4170
      %v4237 = vpop.xlane.xlu0 %4236
      %4238 = vadd.xlane.f32.xlu0 %v4171
      %v4239 = vpop.xlane.xlu0 %4238
      %4240 = vadd.xlane.f32.xlu0 %v4172
      %v4241 = vpop.xlane.xlu0 %4240
      %4242 = vadd.xlane.f32.xlu0 %v4173
      %v4243 = vpop.xlane.xlu0 %4242
      %4244 = vadd.xlane.f32.xlu0 %v4174
      %v4245 = vpop.xlane.xlu0 %4244
      %4246 = vadd.xlane.f32.xlu0 %v4175
      %v4247 = vpop.xlane.xlu0 %4246
      %4248 = vadd.xlane.f32.xlu0 %v4176
      %v4249 = vpop.xlane.xlu0 %4248
      %4250 = vadd.xlane.f32.xlu0 %v4177
      %v4251 = vpop.xlane.xlu0 %4250
      %4252 = vadd.xlane.f32.xlu0 %v4178
      %v4253 = vpop.xlane.xlu0 %4252
      %4254 = vadd.xlane.f32.xlu0 %v4179
      %v4255 = vpop.xlane.xlu0 %4254
      %4256 = vadd.xlane.f32.xlu0 %v4180
      %v4257 = vpop.xlane.xlu0 %4256
      %4258 = vadd.xlane.f32.xlu0 %v4181
      %v4259 = vpop.xlane.xlu0 %4258
      %4260 = vadd.xlane.f32.xlu0 %v4182
      %v4261 = vpop.xlane.xlu0 %4260
      %4262 = vadd.xlane.f32.xlu0 %v4183
      %v4263 = vpop.xlane.xlu0 %4262
      %4264 = vadd.xlane.f32.xlu0 %v4184
      %v4265 = vpop.xlane.xlu0 %4264
      %4266 = vadd.xlane.f32.xlu0 %v4185
      %v4267 = vpop.xlane.xlu0 %4266
      %4268 = vadd.xlane.f32.xlu0 %v4186
      %v4269 = vpop.xlane.xlu0 %4268
      %4270 = vadd.xlane.f32.xlu0 %v4187
      %v4271 = vpop.xlane.xlu0 %4270
      %4272 = vadd.xlane.f32.xlu0 %v4188
      %v4273 = vpop.xlane.xlu0 %4272
      %4274 = vadd.xlane.f32.xlu0 %v4189
      %v4275 = vpop.xlane.xlu0 %4274
      %4276 = vadd.xlane.f32.xlu0 %v4190
      %v4277 = vpop.xlane.xlu0 %4276
      %4278 = vadd.xlane.f32.xlu0 %v4191
      %v4279 = vpop.xlane.xlu0 %4278
      %4280 = vadd.xlane.f32.xlu0 %v4192
      %v4281 = vpop.xlane.xlu0 %4280
      %4282 = vadd.xlane.f32.xlu0 %v4193
      %v4283 = vpop.xlane.xlu0 %4282
      %4284 = vadd.xlane.f32.xlu0 %v4194
      %v4285 = vpop.xlane.xlu0 %4284
      %4286 = vadd.xlane.f32.xlu0 %v4195
      %v4287 = vpop.xlane.xlu0 %4286
      %4288 = vadd.xlane.f32.xlu0 %v4196
      %v4289 = vpop.xlane.xlu0 %4288
      %4290 = vadd.xlane.f32.xlu0 %v4197
      %v4291 = vpop.xlane.xlu0 %4290
      %4292 = vadd.xlane.f32.xlu0 %v4198
      %v4293 = vpop.xlane.xlu0 %4292
      %4294 = vadd.xlane.f32.xlu0 %v4199
      %v4295 = vpop.xlane.xlu0 %4294
      %4296 = vadd.xlane.f32.xlu0 %v4200
      %v4297 = vpop.xlane.xlu0 %4296
      %4298 = vadd.xlane.f32.xlu0 %v4201
      %v4299 = vpop.xlane.xlu0 %4298
      %v4300 = vmul.f32 %v4237, %v498
      %v4301 = vmul.f32 %v4239, %v498
      %v4302 = vmul.f32 %v4241, %v498
      %v4303 = vmul.f32 %v4243, %v498
      %v4304 = vmul.f32 %v4245, %v498
      %v4305 = vmul.f32 %v4247, %v498
      %v4306 = vmul.f32 %v4249, %v498
      %v4307 = vmul.f32 %v4251, %v498
      %v4308 = vmul.f32 %v4253, %v498
      %v4309 = vmul.f32 %v4255, %v498
      %v4310 = vmul.f32 %v4257, %v498
      %v4311 = vmul.f32 %v4259, %v498
      %v4312 = vmul.f32 %v4261, %v498
      %v4313 = vmul.f32 %v4263, %v498
      %v4314 = vmul.f32 %v4265, %v498
      %v4315 = vmul.f32 %v4267, %v498
      %v4316 = vmul.f32 %v4269, %v498
      %v4317 = vmul.f32 %v4271, %v498
      %v4318 = vmul.f32 %v4273, %v498
      %v4319 = vmul.f32 %v4275, %v498
      %v4320 = vmul.f32 %v4277, %v498
      %v4321 = vmul.f32 %v4279, %v498
      %v4322 = vmul.f32 %v4281, %v498
      %v4323 = vmul.f32 %v4283, %v498
      %v4324 = vmul.f32 %v4285, %v498
      %v4325 = vmul.f32 %v4287, %v498
      %v4326 = vmul.f32 %v4289, %v498
      %v4327 = vmul.f32 %v4291, %v498
      %v4328 = vmul.f32 %v4293, %v498
      %v4329 = vmul.f32 %v4295, %v498
      %v4330 = vmul.f32 %v4297, %v498
      %v4331 = vmul.f32 %v4299, %v498
      %v4332 = vsub.f32 %v4170, %v4300
      %v4333 = vsub.f32 %v4171, %v4301
      %v4334 = vsub.f32 %v4172, %v4302
      %v4335 = vsub.f32 %v4173, %v4303
      %v4336 = vsub.f32 %v4174, %v4304
      %v4337 = vsub.f32 %v4175, %v4305
      %v4338 = vsub.f32 %v4176, %v4306
      %v4339 = vsub.f32 %v4177, %v4307
      %v4340 = vsub.f32 %v4178, %v4308
      %v4341 = vsub.f32 %v4179, %v4309
      %v4342 = vsub.f32 %v4180, %v4310
      %v4343 = vsub.f32 %v4181, %v4311
      %v4344 = vsub.f32 %v4182, %v4312
      %v4345 = vsub.f32 %v4183, %v4313
      %v4346 = vsub.f32 %v4184, %v4314
      %v4347 = vsub.f32 %v4185, %v4315
      %v4348 = vsub.f32 %v4186, %v4316
      %v4349 = vsub.f32 %v4187, %v4317
      %v4350 = vsub.f32 %v4188, %v4318
      %v4351 = vsub.f32 %v4189, %v4319
      %v4352 = vsub.f32 %v4190, %v4320
      %v4353 = vsub.f32 %v4191, %v4321
      %v4354 = vsub.f32 %v4192, %v4322
      %v4355 = vsub.f32 %v4193, %v4323
      %v4356 = vsub.f32 %v4194, %v4324
      %v4357 = vsub.f32 %v4195, %v4325
      %v4358 = vsub.f32 %v4196, %v4326
      %v4359 = vsub.f32 %v4197, %v4327
      %v4360 = vsub.f32 %v4198, %v4328
      %v4361 = vsub.f32 %v4199, %v4329
      %v4362 = vsub.f32 %v4200, %v4330
      %v4363 = vsub.f32 %v4201, %v4331
      %v4364 = vmul.f32 %v4332, %v4332
      %v4365 = vmul.f32 %v4333, %v4333
      %v4366 = vmul.f32 %v4334, %v4334
      %v4367 = vmul.f32 %v4335, %v4335
      %v4368 = vmul.f32 %v4336, %v4336
      %v4369 = vmul.f32 %v4337, %v4337
      %v4370 = vmul.f32 %v4338, %v4338
      %v4371 = vmul.f32 %v4339, %v4339
      %v4372 = vmul.f32 %v4340, %v4340
      %v4373 = vmul.f32 %v4341, %v4341
      %v4374 = vmul.f32 %v4342, %v4342
      %v4375 = vmul.f32 %v4343, %v4343
      %v4376 = vmul.f32 %v4344, %v4344
      %v4377 = vmul.f32 %v4345, %v4345
      %v4378 = vmul.f32 %v4346, %v4346
      %v4379 = vmul.f32 %v4347, %v4347
      %v4380 = vmul.f32 %v4348, %v4348
      %v4381 = vmul.f32 %v4349, %v4349
      %v4382 = vmul.f32 %v4350, %v4350
      %v4383 = vmul.f32 %v4351, %v4351
      %v4384 = vmul.f32 %v4352, %v4352
      %v4385 = vmul.f32 %v4353, %v4353
      %v4386 = vmul.f32 %v4354, %v4354
      %v4387 = vmul.f32 %v4355, %v4355
      %v4388 = vmul.f32 %v4356, %v4356
      %v4389 = vmul.f32 %v4357, %v4357
      %v4390 = vmul.f32 %v4358, %v4358
      %v4391 = vmul.f32 %v4359, %v4359
      %v4392 = vmul.f32 %v4360, %v4360
      %v4393 = vmul.f32 %v4361, %v4361
      %v4394 = vmul.f32 %v4362, %v4362
      %v4395 = vmul.f32 %v4363, %v4363
      %4396 = vadd.xlane.f32.xlu0 %v4364
      %v4397 = vpop.xlane.xlu0 %4396
      %4398 = vadd.xlane.f32.xlu0 %v4365
      %v4399 = vpop.xlane.xlu0 %4398
      %4400 = vadd.xlane.f32.xlu0 %v4366
      %v4401 = vpop.xlane.xlu0 %4400
      %4402 = vadd.xlane.f32.xlu0 %v4367
      %v4403 = vpop.xlane.xlu0 %4402
      %4404 = vadd.xlane.f32.xlu0 %v4368
      %v4405 = vpop.xlane.xlu0 %4404
      %4406 = vadd.xlane.f32.xlu0 %v4369
      %v4407 = vpop.xlane.xlu0 %4406
      %4408 = vadd.xlane.f32.xlu0 %v4370
      %v4409 = vpop.xlane.xlu0 %4408
      %4410 = vadd.xlane.f32.xlu0 %v4371
      %v4411 = vpop.xlane.xlu0 %4410
      %4412 = vadd.xlane.f32.xlu0 %v4372
      %v4413 = vpop.xlane.xlu0 %4412
      %4414 = vadd.xlane.f32.xlu0 %v4373
      %v4415 = vpop.xlane.xlu0 %4414
      %4416 = vadd.xlane.f32.xlu0 %v4374
      %v4417 = vpop.xlane.xlu0 %4416
      %4418 = vadd.xlane.f32.xlu0 %v4375
      %v4419 = vpop.xlane.xlu0 %4418
      %4420 = vadd.xlane.f32.xlu0 %v4376
      %v4421 = vpop.xlane.xlu0 %4420
      %4422 = vadd.xlane.f32.xlu0 %v4377
      %v4423 = vpop.xlane.xlu0 %4422
      %4424 = vadd.xlane.f32.xlu0 %v4378
      %v4425 = vpop.xlane.xlu0 %4424
      %4426 = vadd.xlane.f32.xlu0 %v4379
      %v4427 = vpop.xlane.xlu0 %4426
      %4428 = vadd.xlane.f32.xlu0 %v4380
      %v4429 = vpop.xlane.xlu0 %4428
      %4430 = vadd.xlane.f32.xlu0 %v4381
      %v4431 = vpop.xlane.xlu0 %4430
      %4432 = vadd.xlane.f32.xlu0 %v4382
      %v4433 = vpop.xlane.xlu0 %4432
      %4434 = vadd.xlane.f32.xlu0 %v4383
      %v4435 = vpop.xlane.xlu0 %4434
      %4436 = vadd.xlane.f32.xlu0 %v4384
      %v4437 = vpop.xlane.xlu0 %4436
      %4438 = vadd.xlane.f32.xlu0 %v4385
      %v4439 = vpop.xlane.xlu0 %4438
      %4440 = vadd.xlane.f32.xlu0 %v4386
      %v4441 = vpop.xlane.xlu0 %4440
      %4442 = vadd.xlane.f32.xlu0 %v4387
      %v4443 = vpop.xlane.xlu0 %4442
      %4444 = vadd.xlane.f32.xlu0 %v4388
      %v4445 = vpop.xlane.xlu0 %4444
      %4446 = vadd.xlane.f32.xlu0 %v4389
      %v4447 = vpop.xlane.xlu0 %4446
      %4448 = vadd.xlane.f32.xlu0 %v4390
      %v4449 = vpop.xlane.xlu0 %4448
      %4450 = vadd.xlane.f32.xlu0 %v4391
      %v4451 = vpop.xlane.xlu0 %4450
      %4452 = vadd.xlane.f32.xlu0 %v4392
      %v4453 = vpop.xlane.xlu0 %4452
      %4454 = vadd.xlane.f32.xlu0 %v4393
      %v4455 = vpop.xlane.xlu0 %4454
      %4456 = vadd.xlane.f32.xlu0 %v4394
      %v4457 = vpop.xlane.xlu0 %4456
      %4458 = vadd.xlane.f32.xlu0 %v4395
      %v4459 = vpop.xlane.xlu0 %4458
      %v4460 = vmul.f32 %v4397, %v498
      %v4461 = vmul.f32 %v4399, %v498
      %v4462 = vmul.f32 %v4401, %v498
      %v4463 = vmul.f32 %v4403, %v498
      %v4464 = vmul.f32 %v4405, %v498
      %v4465 = vmul.f32 %v4407, %v498
      %v4466 = vmul.f32 %v4409, %v498
      %v4467 = vmul.f32 %v4411, %v498
      %v4468 = vmul.f32 %v4413, %v498
      %v4469 = vmul.f32 %v4415, %v498
      %v4470 = vmul.f32 %v4417, %v498
      %v4471 = vmul.f32 %v4419, %v498
      %v4472 = vmul.f32 %v4421, %v498
      %v4473 = vmul.f32 %v4423, %v498
      %v4474 = vmul.f32 %v4425, %v498
      %v4475 = vmul.f32 %v4427, %v498
      %v4476 = vmul.f32 %v4429, %v498
      %v4477 = vmul.f32 %v4431, %v498
      %v4478 = vmul.f32 %v4433, %v498
      %v4479 = vmul.f32 %v4435, %v498
      %v4480 = vmul.f32 %v4437, %v498
      %v4481 = vmul.f32 %v4439, %v498
      %v4482 = vmul.f32 %v4441, %v498
      %v4483 = vmul.f32 %v4443, %v498
      %v4484 = vmul.f32 %v4445, %v498
      %v4485 = vmul.f32 %v4447, %v498
      %v4486 = vmul.f32 %v4449, %v498
      %v4487 = vmul.f32 %v4451, %v498
      %v4488 = vmul.f32 %v4453, %v498
      %v4489 = vmul.f32 %v4455, %v498
      %v4490 = vmul.f32 %v4457, %v498
      %v4491 = vmul.f32 %v4459, %v498
      %v4492 = vadd.f32 %v4460, 1e-05
      %v4493 = vadd.f32 %v4461, 1e-05
      %v4494 = vadd.f32 %v4462, 1e-05
      %v4495 = vadd.f32 %v4463, 1e-05
      %v4496 = vadd.f32 %v4464, 1e-05
      %v4497 = vadd.f32 %v4465, 1e-05
      %v4498 = vadd.f32 %v4466, 1e-05
      %v4499 = vadd.f32 %v4467, 1e-05
      %v4500 = vadd.f32 %v4468, 1e-05
      %v4501 = vadd.f32 %v4469, 1e-05
      %v4502 = vadd.f32 %v4470, 1e-05
      %v4503 = vadd.f32 %v4471, 1e-05
      %v4504 = vadd.f32 %v4472, 1e-05
      %v4505 = vadd.f32 %v4473, 1e-05
      %v4506 = vadd.f32 %v4474, 1e-05
      %v4507 = vadd.f32 %v4475, 1e-05
      %v4508 = vadd.f32 %v4476, 1e-05
      %v4509 = vadd.f32 %v4477, 1e-05
      %v4510 = vadd.f32 %v4478, 1e-05
      %v4511 = vadd.f32 %v4479, 1e-05
      %v4512 = vadd.f32 %v4480, 1e-05
      %v4513 = vadd.f32 %v4481, 1e-05
      %v4514 = vadd.f32 %v4482, 1e-05
      %v4515 = vadd.f32 %v4483, 1e-05
      %v4516 = vadd.f32 %v4484, 1e-05
      %v4517 = vadd.f32 %v4485, 1e-05
      %v4518 = vadd.f32 %v4486, 1e-05
      %v4519 = vadd.f32 %v4487, 1e-05
      %v4520 = vadd.f32 %v4488, 1e-05
      %v4521 = vadd.f32 %v4489, 1e-05
      %v4522 = vadd.f32 %v4490, 1e-05
      %v4523 = vadd.f32 %v4491, 1e-05
      %v4524 = vrsqrt.pop %v4492
      %v4525 = vrsqrt.pop %v4493
      %v4526 = vrsqrt.pop %v4494
      %v4527 = vrsqrt.pop %v4495
      %v4528 = vrsqrt.pop %v4496
      %v4529 = vrsqrt.pop %v4497
      %v4530 = vrsqrt.pop %v4498
      %v4531 = vrsqrt.pop %v4499
      %v4532 = vrsqrt.pop %v4500
      %v4533 = vrsqrt.pop %v4501
      %v4534 = vrsqrt.pop %v4502
      %v4535 = vrsqrt.pop %v4503
      %v4536 = vrsqrt.pop %v4504
      %v4537 = vrsqrt.pop %v4505
      %v4538 = vrsqrt.pop %v4506
      %v4539 = vrsqrt.pop %v4507
      %v4540 = vrsqrt.pop %v4508
      %v4541 = vrsqrt.pop %v4509
      %v4542 = vrsqrt.pop %v4510
      %v4543 = vrsqrt.pop %v4511
      %v4544 = vrsqrt.pop %v4512
      %v4545 = vrsqrt.pop %v4513
      %v4546 = vrsqrt.pop %v4514
      %v4547 = vrsqrt.pop %v4515
      %v4548 = vrsqrt.pop %v4516
      %v4549 = vrsqrt.pop %v4517
      %v4550 = vrsqrt.pop %v4518
      %v4551 = vrsqrt.pop %v4519
      %v4552 = vrsqrt.pop %v4520
      %v4553 = vrsqrt.pop %v4521
      %v4554 = vrsqrt.pop %v4522
      %v4555 = vrsqrt.pop %v4523
      %v4556 = vmul.f32 %v4332, %v4524
      %v4557 = vmul.f32 %v4333, %v4525
      %v4558 = vmul.f32 %v4334, %v4526
      %v4559 = vmul.f32 %v4335, %v4527
      %v4560 = vmul.f32 %v4336, %v4528
      %v4561 = vmul.f32 %v4337, %v4529
      %v4562 = vmul.f32 %v4338, %v4530
      %v4563 = vmul.f32 %v4339, %v4531
      %v4564 = vmul.f32 %v4340, %v4532
      %v4565 = vmul.f32 %v4341, %v4533
      %v4566 = vmul.f32 %v4342, %v4534
      %v4567 = vmul.f32 %v4343, %v4535
      %v4568 = vmul.f32 %v4344, %v4536
      %v4569 = vmul.f32 %v4345, %v4537
      %v4570 = vmul.f32 %v4346, %v4538
      %v4571 = vmul.f32 %v4347, %v4539
      %v4572 = vmul.f32 %v4348, %v4540
      %v4573 = vmul.f32 %v4349, %v4541
      %v4574 = vmul.f32 %v4350, %v4542
      %v4575 = vmul.f32 %v4351, %v4543
      %v4576 = vmul.f32 %v4352, %v4544
      %v4577 = vmul.f32 %v4353, %v4545
      %v4578 = vmul.f32 %v4354, %v4546
      %v4579 = vmul.f32 %v4355, %v4547
      %v4580 = vmul.f32 %v4356, %v4548
      %v4581 = vmul.f32 %v4357, %v4549
      %v4582 = vmul.f32 %v4358, %v4550
      %v4583 = vmul.f32 %v4359, %v4551
      %v4584 = vmul.f32 %v4360, %v4552
      %v4585 = vmul.f32 %v4361, %v4553
      %v4586 = vmul.f32 %v4362, %v4554
      %v4587 = vmul.f32 %v4363, %v4555
      %v4588 = vlaneseq
      %v4589 = vshrl.u32 %v4588, 7
      %v4590 = vsub.s32 0, %v4589
      %v4591 = vrot.slane %v4234, %v4590
      %v4592 = vmul.f32 %v4556, %v4591
      %v4593 = vmul.f32 %v4557, %v4591
      %v4594 = vmul.f32 %v4558, %v4591
      %v4595 = vmul.f32 %v4559, %v4591
      %v4596 = vmul.f32 %v4560, %v4591
      %v4597 = vmul.f32 %v4561, %v4591
      %v4598 = vmul.f32 %v4562, %v4591
      %v4599 = vmul.f32 %v4563, %v4591
      %v4600 = vmul.f32 %v4564, %v4591
      %v4601 = vmul.f32 %v4565, %v4591
      %v4602 = vmul.f32 %v4566, %v4591
      %v4603 = vmul.f32 %v4567, %v4591
      %v4604 = vmul.f32 %v4568, %v4591
      %v4605 = vmul.f32 %v4569, %v4591
      %v4606 = vmul.f32 %v4570, %v4591
      %v4607 = vmul.f32 %v4571, %v4591
      %v4608 = vmul.f32 %v4572, %v4591
      %v4609 = vmul.f32 %v4573, %v4591
      %v4610 = vmul.f32 %v4574, %v4591
      %v4611 = vmul.f32 %v4575, %v4591
      %v4612 = vmul.f32 %v4576, %v4591
      %v4613 = vmul.f32 %v4577, %v4591
      %v4614 = vmul.f32 %v4578, %v4591
      %v4615 = vmul.f32 %v4579, %v4591
      %v4616 = vmul.f32 %v4580, %v4591
      %v4617 = vmul.f32 %v4581, %v4591
      %v4618 = vmul.f32 %v4582, %v4591
      %v4619 = vmul.f32 %v4583, %v4591
      %v4620 = vmul.f32 %v4584, %v4591
      %v4621 = vmul.f32 %v4585, %v4591
      %v4622 = vmul.f32 %v4586, %v4591
      %v4623 = vmul.f32 %v4587, %v4591
      %v4624 = vlaneseq
      %v4625 = vshrl.u32 %v4624, 7
      %v4626 = vsub.s32 0, %v4625
      %v4627 = vrot.slane %v4235, %v4626
      %v4628 = vadd.f32 %v4592, %v4627
      %v4629 = vadd.f32 %v4593, %v4627
      %v4630 = vadd.f32 %v4594, %v4627
      %v4631 = vadd.f32 %v4595, %v4627
      %v4632 = vadd.f32 %v4596, %v4627
      %v4633 = vadd.f32 %v4597, %v4627
      %v4634 = vadd.f32 %v4598, %v4627
      %v4635 = vadd.f32 %v4599, %v4627
      %v4636 = vadd.f32 %v4600, %v4627
      %v4637 = vadd.f32 %v4601, %v4627
      %v4638 = vadd.f32 %v4602, %v4627
      %v4639 = vadd.f32 %v4603, %v4627
      %v4640 = vadd.f32 %v4604, %v4627
      %v4641 = vadd.f32 %v4605, %v4627
      %v4642 = vadd.f32 %v4606, %v4627
      %v4643 = vadd.f32 %v4607, %v4627
      %v4644 = vadd.f32 %v4608, %v4627
      %v4645 = vadd.f32 %v4609, %v4627
      %v4646 = vadd.f32 %v4610, %v4627
      %v4647 = vadd.f32 %v4611, %v4627
      %v4648 = vadd.f32 %v4612, %v4627
      %v4649 = vadd.f32 %v4613, %v4627
      %v4650 = vadd.f32 %v4614, %v4627
      %v4651 = vadd.f32 %v4615, %v4627
      %v4652 = vadd.f32 %v4616, %v4627
      %v4653 = vadd.f32 %v4617, %v4627
      %v4654 = vadd.f32 %v4618, %v4627
      %v4655 = vadd.f32 %v4619, %v4627
      %v4656 = vadd.f32 %v4620, %v4627
      %v4657 = vadd.f32 %v4621, %v4627
      %v4658 = vadd.f32 %v4622, %v4627
      %v4659 = vadd.f32 %v4623, %v4627
      %v4660 = vld [vmem:[%s8] sm:$0xff]
      %v4661 = vld [vmem:[%s8 + $0x8] sm:$0xff]
      %v4662 = vld [vmem:[%s8 + $0x10] sm:$0xff]
      %v4663 = vld [vmem:[%s8 + $0x18] sm:$0xff]
      %v4664 = vld [vmem:[%s8 + $0x20] sm:$0xff]
      %v4665 = vld [vmem:[%s8 + $0x28] sm:$0xff]
      %v4666 = vld [vmem:[%s8 + $0x30] sm:$0xff]
      %v4667 = vld [vmem:[%s8 + $0x38] sm:$0xff]
      %v4668 = vld [vmem:[%s8 + $0x40] sm:$0xff]
      %v4669 = vld [vmem:[%s8 + $0x48] sm:$0xff]
      %v4670 = vld [vmem:[%s8 + $0x50] sm:$0xff]
      %v4671 = vld [vmem:[%s8 + $0x58] sm:$0xff]
      %v4672 = vld [vmem:[%s8 + $0x60] sm:$0xff]
      %v4673 = vld [vmem:[%s8 + $0x68] sm:$0xff]
      %v4674 = vld [vmem:[%s8 + $0x70] sm:$0xff]
      %v4675 = vld [vmem:[%s8 + $0x78] sm:$0xff]
      %v4676 = vld [vmem:[%s8 + $0x80] sm:$0xff]
      %v4677 = vld [vmem:[%s8 + $0x88] sm:$0xff]
      %v4678 = vld [vmem:[%s8 + $0x90] sm:$0xff]
      %v4679 = vld [vmem:[%s8 + $0x98] sm:$0xff]
      %v4680 = vld [vmem:[%s8 + $0xa0] sm:$0xff]
      %v4681 = vld [vmem:[%s8 + $0xa8] sm:$0xff]
      %v4682 = vld [vmem:[%s8 + $0xb0] sm:$0xff]
      %v4683 = vld [vmem:[%s8 + $0xb8] sm:$0xff]
      %v4684 = vld [vmem:[%s8 + $0xc0] sm:$0xff]
      %v4685 = vld [vmem:[%s8 + $0xc8] sm:$0xff]
      %v4686 = vld [vmem:[%s8 + $0xd0] sm:$0xff]
      %v4687 = vld [vmem:[%s8 + $0xd8] sm:$0xff]
      %v4688 = vld [vmem:[%s8 + $0xe0] sm:$0xff]
      %v4689 = vld [vmem:[%s8 + $0xe8] sm:$0xff]
      %v4690 = vld [vmem:[%s8 + $0xf0] sm:$0xff]
      %v4691 = vld [vmem:[%s8 + $0xf8] sm:$0xff]
      %v4692 = vld [vmem:[%s8 + $0x100] sm:$0xff]
      %v4693 = vld [vmem:[%s8 + $0x108] sm:$0xff]
      %v4694 = vld [vmem:[%s8 + $0x110] sm:$0xff]
      %v4695 = vld [vmem:[%s8 + $0x118] sm:$0xff]
      %v4696 = vld [vmem:[%s8 + $0x120] sm:$0xff]
      %v4697 = vld [vmem:[%s8 + $0x128] sm:$0xff]
      %v4698 = vld [vmem:[%s8 + $0x130] sm:$0xff]
      %v4699 = vld [vmem:[%s8 + $0x138] sm:$0xff]
      %v4700 = vld [vmem:[%s8 + $0x140] sm:$0xff]
      %v4701 = vld [vmem:[%s8 + $0x148] sm:$0xff]
      %v4702 = vld [vmem:[%s8 + $0x150] sm:$0xff]
      %v4703 = vld [vmem:[%s8 + $0x158] sm:$0xff]
      %v4704 = vld [vmem:[%s8 + $0x160] sm:$0xff]
      %v4705 = vld [vmem:[%s8 + $0x168] sm:$0xff]
      %v4706 = vld [vmem:[%s8 + $0x170] sm:$0xff]
      %v4707 = vld [vmem:[%s8 + $0x178] sm:$0xff]
      %v4708 = vld [vmem:[%s8 + $0x180] sm:$0xff]
      %v4709 = vld [vmem:[%s8 + $0x188] sm:$0xff]
      %v4710 = vld [vmem:[%s8 + $0x190] sm:$0xff]
      %v4711 = vld [vmem:[%s8 + $0x198] sm:$0xff]
      %v4712 = vld [vmem:[%s8 + $0x1a0] sm:$0xff]
      %v4713 = vld [vmem:[%s8 + $0x1a8] sm:$0xff]
      %v4714 = vld [vmem:[%s8 + $0x1b0] sm:$0xff]
      %v4715 = vld [vmem:[%s8 + $0x1b8] sm:$0xff]
      %v4716 = vld [vmem:[%s8 + $0x1c0] sm:$0xff]
      %v4717 = vld [vmem:[%s8 + $0x1c8] sm:$0xff]
      %v4718 = vld [vmem:[%s8 + $0x1d0] sm:$0xff]
      %v4719 = vld [vmem:[%s8 + $0x1d8] sm:$0xff]
      %v4720 = vld [vmem:[%s8 + $0x1e0] sm:$0xff]
      %v4721 = vld [vmem:[%s8 + $0x1e8] sm:$0xff]
      %v4722 = vld [vmem:[%s8 + $0x1f0] sm:$0xff]
      %v4723 = vld [vmem:[%s8 + $0x1f8] sm:$0xff]
      %v4724 = vld [vmem:[%s9] sm:$0xf]
      %v4726 = vlaneseq
      %v4727 = vshrl.u32 %v4726, 7
      %v4728 = vsub.s32 0, %v4727
      %v4729 = vrot.slane %v4724, %v4728
      %v4730 = vlaneseq
      %v4731 = vshrl.u32 %v4730, 7
      %v4732 = vsub.s32 1, %v4731
      %v4733 = vrot.slane %v4724, %v4732
      %v4734 = vlaneseq
      %v4735 = vshrl.u32 %v4734, 7
      %v4736 = vsub.s32 2, %v4735
      %v4737 = vrot.slane %v4724, %v4736
      %v4738 = vlaneseq
      %v4739 = vshrl.u32 %v4738, 7
      %v4740 = vsub.s32 3, %v4739
      %v4741 = vrot.slane %v4724, %v4740
      %4746 = vmatprep.subr.mxu0 %v4721
      %4747 = vmatpush1.msra.mxu0 %v4720
      %4748 = vmatprep.subr.mxu0 %v4717
      %4749 = vmatpush1.msra.mxu0 %v4716
      %4750 = vmatprep.subr.mxu0 %v4713
      %4751 = vmatpush1.msra.mxu0 %v4712
      %4752 = vmatprep.subr.mxu0 %v4709
      %4753 = vmatpush1.msra.mxu0 %v4708
      %4754 = vmatprep.subr.mxu0 %v4705
      %4755 = vmatpush1.msra.mxu0 %v4704
      %4756 = vmatprep.subr.mxu0 %v4701
      %4757 = vmatpush1.msra.mxu0 %v4700
      %4758 = vmatprep.subr.mxu0 %v4697
      %4759 = vmatpush1.msra.mxu0 %v4696
      %4760 = vmatprep.subr.mxu0 %v4693
      %4761 = vmatpush1.msra.mxu0 %v4692
      %4762 = vmatprep.subr.mxu0 %v4689
      %4763 = vmatpush1.msra.mxu0 %v4688
      %4764 = vmatprep.subr.mxu0 %v4685
      %4765 = vmatpush1.msra.mxu0 %v4684
      %4766 = vmatprep.subr.mxu0 %v4681
      %4767 = vmatpush1.msra.mxu0 %v4680
      %4768 = vmatprep.subr.mxu0 %v4677
      %4769 = vmatpush1.msra.mxu0 %v4676
      %4770 = vmatprep.subr.mxu0 %v4673
      %4771 = vmatpush1.msra.mxu0 %v4672
      %4772 = vmatprep.subr.mxu0 %v4669
      %4773 = vmatpush1.msra.mxu0 %v4668
      %4774 = vmatprep.subr.mxu0 %v4665
      %4775 = vmatpush1.msra.mxu0 %v4664
      %4776 = vmatprep.subr.mxu0 %v4661
      %4777 = vmatpush1.msra.mxu0 %v4660
      %4778 = vmatprep.subr.mxu0 0.0
      %4779 = vmatpush2.msra.mxu0 0.0
      %4780 = vmatprep.subr.mxu0 0.0
      %4781 = vmatpush2.msra.mxu0 0.0
      %4782 = vmatprep.subr.mxu0 0.0
      %4783 = vmatpush2.msra.mxu0 0.0
      %4784 = vmatprep.subr.mxu0 0.0
      %4785 = vmatpush2.msra.mxu0 0.0
      %4786 = vmatprep.subr.mxu0 0.0
      %4787 = vmatpush2.msra.mxu0 0.0
      %4788 = vmatprep.subr.mxu0 0.0
      %4789 = vmatpush2.msra.mxu0 0.0
      %4790 = vmatprep.subr.mxu0 0.0
      %4791 = vmatpush2.msra.mxu0 0.0
      %4792 = vmatprep.subr.mxu0 0.0
      %4793 = vmatpush2.msra.mxu0 0.0
      %4794 = vmatprep.subr.mxu0 0.0
      %4795 = vmatpush2.msra.mxu0 0.0
      %4796 = vmatprep.subr.mxu0 0.0
      %4797 = vmatpush2.msra.mxu0 0.0
      %4798 = vmatprep.subr.mxu0 0.0
      %4799 = vmatpush2.msra.mxu0 0.0
      %4800 = vmatprep.subr.mxu0 0.0
      %4801 = vmatpush2.msra.mxu0 0.0
      %4802 = vmatprep.subr.mxu0 0.0
      %4803 = vmatpush2.msra.mxu0 0.0
      %4804 = vmatprep.subr.mxu0 0.0
      %4805 = vmatpush2.msra.mxu0 0.0
      %4806 = vmatprep.subr.mxu0 0.0
      %4807 = vmatpush2.msra.mxu0 0.0
      %4808 = vmatprep.subr.mxu0 0.0
      %4809 = vmatpush2.msra.mxu0 0.0
      %4810 = vmatprep.mubr.f32.mxu0 0.0
      %4811 = vmatmul.mubr.f32.gmra.mxu0 %v4628
      %v4812 = vpop.f32.mrf.mxu0
      %v4813 = vadd.f32 %v4729, %v4812
      %v4814 = vpop.f32.mrf.mxu0
      %v4815 = vadd.f32 %v4733, %v4814
      %4816 = vmatprep.mubr.f32.mxu0 0.0
      %4817 = vmatmul.mubr.f32.gmra.mxu0 %v4629
      %v4818 = vpop.f32.mrf.mxu0
      %v4819 = vadd.f32 %v4729, %v4818
      %v4820 = vpop.f32.mrf.mxu0
      %v4821 = vadd.f32 %v4733, %v4820
      %4822 = vmatprep.mubr.f32.mxu0 0.0
      %4823 = vmatmul.mubr.f32.gmra.mxu0 %v4630
      %v4824 = vpop.f32.mrf.mxu0
      %v4825 = vadd.f32 %v4729, %v4824
      %v4826 = vpop.f32.mrf.mxu0
      %v4827 = vadd.f32 %v4733, %v4826
      %4828 = vmatprep.mubr.f32.mxu0 0.0
      %4829 = vmatmul.mubr.f32.gmra.mxu0 %v4631
      %v4830 = vpop.f32.mrf.mxu0
      %v4831 = vadd.f32 %v4729, %v4830
      %v4832 = vpop.f32.mrf.mxu0
      %v4833 = vadd.f32 %v4733, %v4832
      %4834 = vmatprep.mubr.f32.mxu0 0.0
      %4835 = vmatmul.mubr.f32.gmra.mxu0 %v4632
      %v4836 = vpop.f32.mrf.mxu0
      %v4837 = vadd.f32 %v4729, %v4836
      %v4838 = vpop.f32.mrf.mxu0
      %v4839 = vadd.f32 %v4733, %v4838
      %4840 = vmatprep.mubr.f32.mxu0 0.0
      %4841 = vmatmul.mubr.f32.gmra.mxu0 %v4633
      %v4842 = vpop.f32.mrf.mxu0
      %v4843 = vadd.f32 %v4729, %v4842
      %v4844 = vpop.f32.mrf.mxu0
      %v4845 = vadd.f32 %v4733, %v4844
      %4846 = vmatprep.mubr.f32.mxu0 0.0
      %4847 = vmatmul.mubr.f32.gmra.mxu0 %v4634
      %v4848 = vpop.f32.mrf.mxu0
      %v4849 = vadd.f32 %v4729, %v4848
      %v4850 = vpop.f32.mrf.mxu0
      %v4851 = vadd.f32 %v4733, %v4850
      %4852 = vmatprep.mubr.f32.mxu0 0.0
      %4853 = vmatmul.mubr.f32.gmra.mxu0 %v4635
      %v4854 = vpop.f32.mrf.mxu0
      %v4855 = vadd.f32 %v4729, %v4854
      %v4856 = vpop.f32.mrf.mxu0
      %v4857 = vadd.f32 %v4733, %v4856
      %4858 = vmatprep.mubr.f32.mxu0 0.0
      %4859 = vmatmul.mubr.f32.gmra.mxu0 %v4636
      %v4860 = vpop.f32.mrf.mxu0
      %v4861 = vadd.f32 %v4729, %v4860
      %v4862 = vpop.f32.mrf.mxu0
      %v4863 = vadd.f32 %v4733, %v4862
      %4864 = vmatprep.mubr.f32.mxu0 0.0
      %4865 = vmatmul.mubr.f32.gmra.mxu0 %v4637
      %v4866 = vpop.f32.mrf.mxu0
      %v4867 = vadd.f32 %v4729, %v4866
      %v4868 = vpop.f32.mrf.mxu0
      %v4869 = vadd.f32 %v4733, %v4868
      %4870 = vmatprep.mubr.f32.mxu0 0.0
      %4871 = vmatmul.mubr.f32.gmra.mxu0 %v4638
      %v4872 = vpop.f32.mrf.mxu0
      %v4873 = vadd.f32 %v4729, %v4872
      %v4874 = vpop.f32.mrf.mxu0
      %v4875 = vadd.f32 %v4733, %v4874
      %4876 = vmatprep.mubr.f32.mxu0 0.0
      %4877 = vmatmul.mubr.f32.gmra.mxu0 %v4639
      %v4878 = vpop.f32.mrf.mxu0
      %v4879 = vadd.f32 %v4729, %v4878
      %v4880 = vpop.f32.mrf.mxu0
      %v4881 = vadd.f32 %v4733, %v4880
      %4882 = vmatprep.mubr.f32.mxu0 0.0
      %4883 = vmatmul.mubr.f32.gmra.mxu0 %v4640
      %v4884 = vpop.f32.mrf.mxu0
      %v4885 = vadd.f32 %v4729, %v4884
      %v4886 = vpop.f32.mrf.mxu0
      %v4887 = vadd.f32 %v4733, %v4886
      %4888 = vmatprep.mubr.f32.mxu0 0.0
      %4889 = vmatmul.mubr.f32.gmra.mxu0 %v4641
      %v4890 = vpop.f32.mrf.mxu0
      %v4891 = vadd.f32 %v4729, %v4890
      %v4892 = vpop.f32.mrf.mxu0
      %v4893 = vadd.f32 %v4733, %v4892
      %4894 = vmatprep.mubr.f32.mxu0 0.0
      %4895 = vmatmul.mubr.f32.gmra.mxu0 %v4642
      %v4896 = vpop.f32.mrf.mxu0
      %v4897 = vadd.f32 %v4729, %v4896
      %v4898 = vpop.f32.mrf.mxu0
      %v4899 = vadd.f32 %v4733, %v4898
      %4900 = vmatprep.mubr.f32.mxu0 0.0
      %4901 = vmatmul.mubr.f32.gmra.mxu0 %v4643
      %v4902 = vpop.f32.mrf.mxu0
      %v4903 = vadd.f32 %v4729, %v4902
      %v4904 = vpop.f32.mrf.mxu0
      %v4905 = vadd.f32 %v4733, %v4904
      %4906 = vmatprep.mubr.f32.mxu0 0.0
      %4907 = vmatmul.mubr.f32.gmra.mxu0 %v4644
      %v4908 = vpop.f32.mrf.mxu0
      %v4909 = vadd.f32 %v4729, %v4908
      %v4910 = vpop.f32.mrf.mxu0
      %v4911 = vadd.f32 %v4733, %v4910
      %4912 = vmatprep.mubr.f32.mxu0 0.0
      %4913 = vmatmul.mubr.f32.gmra.mxu0 %v4645
      %v4914 = vpop.f32.mrf.mxu0
      %v4915 = vadd.f32 %v4729, %v4914
      %v4916 = vpop.f32.mrf.mxu0
      %v4917 = vadd.f32 %v4733, %v4916
      %4918 = vmatprep.mubr.f32.mxu0 0.0
      %4919 = vmatmul.mubr.f32.gmra.mxu0 %v4646
      %v4920 = vpop.f32.mrf.mxu0
      %v4921 = vadd.f32 %v4729, %v4920
      %v4922 = vpop.f32.mrf.mxu0
      %v4923 = vadd.f32 %v4733, %v4922
      %4924 = vmatprep.mubr.f32.mxu0 0.0
      %4925 = vmatmul.mubr.f32.gmra.mxu0 %v4647
      %v4926 = vpop.f32.mrf.mxu0
      %v4927 = vadd.f32 %v4729, %v4926
      %v4928 = vpop.f32.mrf.mxu0
      %v4929 = vadd.f32 %v4733, %v4928
      %4930 = vmatprep.mubr.f32.mxu0 0.0
      %4931 = vmatmul.mubr.f32.gmra.mxu0 %v4648
      %v4932 = vpop.f32.mrf.mxu0
      %v4933 = vadd.f32 %v4729, %v4932
      %v4934 = vpop.f32.mrf.mxu0
      %v4935 = vadd.f32 %v4733, %v4934
      %4936 = vmatprep.mubr.f32.mxu0 0.0
      %4937 = vmatmul.mubr.f32.gmra.mxu0 %v4649
      %v4938 = vpop.f32.mrf.mxu0
      %v4939 = vadd.f32 %v4729, %v4938
      %v4940 = vpop.f32.mrf.mxu0
      %v4941 = vadd.f32 %v4733, %v4940
      %4942 = vmatprep.mubr.f32.mxu0 0.0
      %4943 = vmatmul.mubr.f32.gmra.mxu0 %v4650
      %v4944 = vpop.f32.mrf.mxu0
      %v4945 = vadd.f32 %v4729, %v4944
      %v4946 = vpop.f32.mrf.mxu0
      %v4947 = vadd.f32 %v4733, %v4946
      %4948 = vmatprep.mubr.f32.mxu0 0.0
      %4949 = vmatmul.mubr.f32.gmra.mxu0 %v4651
      %v4950 = vpop.f32.mrf.mxu0
      %v4951 = vadd.f32 %v4729, %v4950
      %v4952 = vpop.f32.mrf.mxu0
      %v4953 = vadd.f32 %v4733, %v4952
      %4954 = vmatprep.mubr.f32.mxu0 0.0
      %4955 = vmatmul.mubr.f32.gmra.mxu0 %v4652
      %v4956 = vpop.f32.mrf.mxu0
      %v4957 = vadd.f32 %v4729, %v4956
      %v4958 = vpop.f32.mrf.mxu0
      %v4959 = vadd.f32 %v4733, %v4958
      %4960 = vmatprep.mubr.f32.mxu0 0.0
      %4961 = vmatmul.mubr.f32.gmra.mxu0 %v4653
      %v4962 = vpop.f32.mrf.mxu0
      %v4963 = vadd.f32 %v4729, %v4962
      %v4964 = vpop.f32.mrf.mxu0
      %v4965 = vadd.f32 %v4733, %v4964
      %4966 = vmatprep.mubr.f32.mxu0 0.0
      %4967 = vmatmul.mubr.f32.gmra.mxu0 %v4654
      %v4968 = vpop.f32.mrf.mxu0
      %v4969 = vadd.f32 %v4729, %v4968
      %v4970 = vpop.f32.mrf.mxu0
      %v4971 = vadd.f32 %v4733, %v4970
      %4972 = vmatprep.mubr.f32.mxu0 0.0
      %4973 = vmatmul.mubr.f32.gmra.mxu0 %v4655
      %v4974 = vpop.f32.mrf.mxu0
      %v4975 = vadd.f32 %v4729, %v4974
      %v4976 = vpop.f32.mrf.mxu0
      %v4977 = vadd.f32 %v4733, %v4976
      %4978 = vmatprep.mubr.f32.mxu0 0.0
      %4979 = vmatmul.mubr.f32.gmra.mxu0 %v4656
      %v4980 = vpop.f32.mrf.mxu0
      %v4981 = vadd.f32 %v4729, %v4980
      %v4982 = vpop.f32.mrf.mxu0
      %v4983 = vadd.f32 %v4733, %v4982
      %4984 = vmatprep.mubr.f32.mxu0 0.0
      %4985 = vmatmul.mubr.f32.gmra.mxu0 %v4657
      %v4986 = vpop.f32.mrf.mxu0
      %v4987 = vadd.f32 %v4729, %v4986
      %v4988 = vpop.f32.mrf.mxu0
      %v4989 = vadd.f32 %v4733, %v4988
      %4990 = vmatprep.mubr.f32.mxu0 0.0
      %4991 = vmatmul.mubr.f32.gmra.mxu0 %v4658
      %v4992 = vpop.f32.mrf.mxu0
      %v4993 = vadd.f32 %v4729, %v4992
      %v4994 = vpop.f32.mrf.mxu0
      %v4995 = vadd.f32 %v4733, %v4994
      %4996 = vmatprep.mubr.f32.mxu0 0.0
      %4997 = vmatmul.mubr.f32.gmra.mxu0 %v4659
      %v4998 = vpop.f32.mrf.mxu0
      %v4999 = vadd.f32 %v4729, %v4998
      %v5000 = vpop.f32.mrf.mxu0
      %v5001 = vadd.f32 %v4733, %v5000
      %5002 = vdwg.mxu0
      %5003 = vmatprep.subr.mxu0 %v4723
      %5004 = vmatpush1.msra.mxu0 %v4722
      %5005 = vmatprep.subr.mxu0 %v4719
      %5006 = vmatpush1.msra.mxu0 %v4718
      %5007 = vmatprep.subr.mxu0 %v4715
      %5008 = vmatpush1.msra.mxu0 %v4714
      %5009 = vmatprep.subr.mxu0 %v4711
      %5010 = vmatpush1.msra.mxu0 %v4710
      %5011 = vmatprep.subr.mxu0 %v4707
      %5012 = vmatpush1.msra.mxu0 %v4706
      %5013 = vmatprep.subr.mxu0 %v4703
      %5014 = vmatpush1.msra.mxu0 %v4702
      %5015 = vmatprep.subr.mxu0 %v4699
      %5016 = vmatpush1.msra.mxu0 %v4698
      %5017 = vmatprep.subr.mxu0 %v4695
      %5018 = vmatpush1.msra.mxu0 %v4694
      %5019 = vmatprep.subr.mxu0 %v4691
      %5020 = vmatpush1.msra.mxu0 %v4690
      %5021 = vmatprep.subr.mxu0 %v4687
      %5022 = vmatpush1.msra.mxu0 %v4686
      %5023 = vmatprep.subr.mxu0 %v4683
      %5024 = vmatpush1.msra.mxu0 %v4682
      %5025 = vmatprep.subr.mxu0 %v4679
      %5026 = vmatpush1.msra.mxu0 %v4678
      %5027 = vmatprep.subr.mxu0 %v4675
      %5028 = vmatpush1.msra.mxu0 %v4674
      %5029 = vmatprep.subr.mxu0 %v4671
      %5030 = vmatpush1.msra.mxu0 %v4670
      %5031 = vmatprep.subr.mxu0 %v4667
      %5032 = vmatpush1.msra.mxu0 %v4666
      %5033 = vmatprep.subr.mxu0 %v4663
      %5034 = vmatpush1.msra.mxu0 %v4662
      %5035 = vmatprep.subr.mxu0 0.0
      %5036 = vmatpush2.msra.mxu0 0.0
      %5037 = vmatprep.subr.mxu0 0.0
      %5038 = vmatpush2.msra.mxu0 0.0
      %5039 = vmatprep.subr.mxu0 0.0
      %5040 = vmatpush2.msra.mxu0 0.0
      %5041 = vmatprep.subr.mxu0 0.0
      %5042 = vmatpush2.msra.mxu0 0.0
      %5043 = vmatprep.subr.mxu0 0.0
      %5044 = vmatpush2.msra.mxu0 0.0
      %5045 = vmatprep.subr.mxu0 0.0
      %5046 = vmatpush2.msra.mxu0 0.0
      %5047 = vmatprep.subr.mxu0 0.0
      %5048 = vmatpush2.msra.mxu0 0.0
      %5049 = vmatprep.subr.mxu0 0.0
      %5050 = vmatpush2.msra.mxu0 0.0
      %5051 = vmatprep.subr.mxu0 0.0
      %5052 = vmatpush2.msra.mxu0 0.0
      %5053 = vmatprep.subr.mxu0 0.0
      %5054 = vmatpush2.msra.mxu0 0.0
      %5055 = vmatprep.subr.mxu0 0.0
      %5056 = vmatpush2.msra.mxu0 0.0
      %5057 = vmatprep.subr.mxu0 0.0
      %5058 = vmatpush2.msra.mxu0 0.0
      %5059 = vmatprep.subr.mxu0 0.0
      %5060 = vmatpush2.msra.mxu0 0.0
      %5061 = vmatprep.subr.mxu0 0.0
      %5062 = vmatpush2.msra.mxu0 0.0
      %5063 = vmatprep.subr.mxu0 0.0
      %5064 = vmatpush2.msra.mxu0 0.0
      %5065 = vmatprep.subr.mxu0 0.0
      %5066 = vmatpush2.msra.mxu0 0.0
      %5067 = vmatprep.mubr.f32.mxu0 0.0
      %5068 = vmatmul.mubr.f32.gmra.mxu0 %v4628
      %v5069 = vpop.f32.mrf.mxu0
      %v5070 = vadd.f32 %v4737, %v5069
      %v5071 = vpop.f32.mrf.mxu0
      %v5072 = vadd.f32 %v4741, %v5071
      %5073 = vmatprep.mubr.f32.mxu0 0.0
      %5074 = vmatmul.mubr.f32.gmra.mxu0 %v4629
      %v5075 = vpop.f32.mrf.mxu0
      %v5076 = vadd.f32 %v4737, %v5075
      %v5077 = vpop.f32.mrf.mxu0
      %v5078 = vadd.f32 %v4741, %v5077
      %5079 = vmatprep.mubr.f32.mxu0 0.0
      %5080 = vmatmul.mubr.f32.gmra.mxu0 %v4630
      %v5081 = vpop.f32.mrf.mxu0
      %v5082 = vadd.f32 %v4737, %v5081
      %v5083 = vpop.f32.mrf.mxu0
      %v5084 = vadd.f32 %v4741, %v5083
      %5085 = vmatprep.mubr.f32.mxu0 0.0
      %5086 = vmatmul.mubr.f32.gmra.mxu0 %v4631
      %v5087 = vpop.f32.mrf.mxu0
      %v5088 = vadd.f32 %v4737, %v5087
      %v5089 = vpop.f32.mrf.mxu0
      %v5090 = vadd.f32 %v4741, %v5089
      %5091 = vmatprep.mubr.f32.mxu0 0.0
      %5092 = vmatmul.mubr.f32.gmra.mxu0 %v4632
      %v5093 = vpop.f32.mrf.mxu0
      %v5094 = vadd.f32 %v4737, %v5093
      %v5095 = vpop.f32.mrf.mxu0
      %v5096 = vadd.f32 %v4741, %v5095
      %5097 = vmatprep.mubr.f32.mxu0 0.0
      %5098 = vmatmul.mubr.f32.gmra.mxu0 %v4633
      %v5099 = vpop.f32.mrf.mxu0
      %v5100 = vadd.f32 %v4737, %v5099
      %v5101 = vpop.f32.mrf.mxu0
      %v5102 = vadd.f32 %v4741, %v5101
      %5103 = vmatprep.mubr.f32.mxu0 0.0
      %5104 = vmatmul.mubr.f32.gmra.mxu0 %v4634
      %v5105 = vpop.f32.mrf.mxu0
      %v5106 = vadd.f32 %v4737, %v5105
      %v5107 = vpop.f32.mrf.mxu0
      %v5108 = vadd.f32 %v4741, %v5107
      %5109 = vmatprep.mubr.f32.mxu0 0.0
      %5110 = vmatmul.mubr.f32.gmra.mxu0 %v4635
      %v5111 = vpop.f32.mrf.mxu0
      %v5112 = vadd.f32 %v4737, %v5111
      %v5113 = vpop.f32.mrf.mxu0
      %v5114 = vadd.f32 %v4741, %v5113
      %5115 = vmatprep.mubr.f32.mxu0 0.0
      %5116 = vmatmul.mubr.f32.gmra.mxu0 %v4636
      %v5117 = vpop.f32.mrf.mxu0
      %v5118 = vadd.f32 %v4737, %v5117
      %v5119 = vpop.f32.mrf.mxu0
      %v5120 = vadd.f32 %v4741, %v5119
      %5121 = vmatprep.mubr.f32.mxu0 0.0
      %5122 = vmatmul.mubr.f32.gmra.mxu0 %v4637
      %v5123 = vpop.f32.mrf.mxu0
      %v5124 = vadd.f32 %v4737, %v5123
      %v5125 = vpop.f32.mrf.mxu0
      %v5126 = vadd.f32 %v4741, %v5125
      %5127 = vmatprep.mubr.f32.mxu0 0.0
      %5128 = vmatmul.mubr.f32.gmra.mxu0 %v4638
      %v5129 = vpop.f32.mrf.mxu0
      %v5130 = vadd.f32 %v4737, %v5129
      %v5131 = vpop.f32.mrf.mxu0
      %v5132 = vadd.f32 %v4741, %v5131
      %5133 = vmatprep.mubr.f32.mxu0 0.0
      %5134 = vmatmul.mubr.f32.gmra.mxu0 %v4639
      %v5135 = vpop.f32.mrf.mxu0
      %v5136 = vadd.f32 %v4737, %v5135
      %v5137 = vpop.f32.mrf.mxu0
      %v5138 = vadd.f32 %v4741, %v5137
      %5139 = vmatprep.mubr.f32.mxu0 0.0
      %5140 = vmatmul.mubr.f32.gmra.mxu0 %v4640
      %v5141 = vpop.f32.mrf.mxu0
      %v5142 = vadd.f32 %v4737, %v5141
      %v5143 = vpop.f32.mrf.mxu0
      %v5144 = vadd.f32 %v4741, %v5143
      %5145 = vmatprep.mubr.f32.mxu0 0.0
      %5146 = vmatmul.mubr.f32.gmra.mxu0 %v4641
      %v5147 = vpop.f32.mrf.mxu0
      %v5148 = vadd.f32 %v4737, %v5147
      %v5149 = vpop.f32.mrf.mxu0
      %v5150 = vadd.f32 %v4741, %v5149
      %5151 = vmatprep.mubr.f32.mxu0 0.0
      %5152 = vmatmul.mubr.f32.gmra.mxu0 %v4642
      %v5153 = vpop.f32.mrf.mxu0
      %v5154 = vadd.f32 %v4737, %v5153
      %v5155 = vpop.f32.mrf.mxu0
      %v5156 = vadd.f32 %v4741, %v5155
      %5157 = vmatprep.mubr.f32.mxu0 0.0
      %5158 = vmatmul.mubr.f32.gmra.mxu0 %v4643
      %v5159 = vpop.f32.mrf.mxu0
      %v5160 = vadd.f32 %v4737, %v5159
      %v5161 = vpop.f32.mrf.mxu0
      %v5162 = vadd.f32 %v4741, %v5161
      %5163 = vmatprep.mubr.f32.mxu0 0.0
      %5164 = vmatmul.mubr.f32.gmra.mxu0 %v4644
      %v5165 = vpop.f32.mrf.mxu0
      %v5166 = vadd.f32 %v4737, %v5165
      %v5167 = vpop.f32.mrf.mxu0
      %v5168 = vadd.f32 %v4741, %v5167
      %5169 = vmatprep.mubr.f32.mxu0 0.0
      %5170 = vmatmul.mubr.f32.gmra.mxu0 %v4645
      %v5171 = vpop.f32.mrf.mxu0
      %v5172 = vadd.f32 %v4737, %v5171
      %v5173 = vpop.f32.mrf.mxu0
      %v5174 = vadd.f32 %v4741, %v5173
      %5175 = vmatprep.mubr.f32.mxu0 0.0
      %5176 = vmatmul.mubr.f32.gmra.mxu0 %v4646
      %v5177 = vpop.f32.mrf.mxu0
      %v5178 = vadd.f32 %v4737, %v5177
      %v5179 = vpop.f32.mrf.mxu0
      %v5180 = vadd.f32 %v4741, %v5179
      %5181 = vmatprep.mubr.f32.mxu0 0.0
      %5182 = vmatmul.mubr.f32.gmra.mxu0 %v4647
      %v5183 = vpop.f32.mrf.mxu0
      %v5184 = vadd.f32 %v4737, %v5183
      %v5185 = vpop.f32.mrf.mxu0
      %v5186 = vadd.f32 %v4741, %v5185
      %5187 = vmatprep.mubr.f32.mxu0 0.0
      %5188 = vmatmul.mubr.f32.gmra.mxu0 %v4648
      %v5189 = vpop.f32.mrf.mxu0
      %v5190 = vadd.f32 %v4737, %v5189
      %v5191 = vpop.f32.mrf.mxu0
      %v5192 = vadd.f32 %v4741, %v5191
      %5193 = vmatprep.mubr.f32.mxu0 0.0
      %5194 = vmatmul.mubr.f32.gmra.mxu0 %v4649
      %v5195 = vpop.f32.mrf.mxu0
      %v5196 = vadd.f32 %v4737, %v5195
      %v5197 = vpop.f32.mrf.mxu0
      %v5198 = vadd.f32 %v4741, %v5197
      %5199 = vmatprep.mubr.f32.mxu0 0.0
      %5200 = vmatmul.mubr.f32.gmra.mxu0 %v4650
      %v5201 = vpop.f32.mrf.mxu0
      %v5202 = vadd.f32 %v4737, %v5201
      %v5203 = vpop.f32.mrf.mxu0
      %v5204 = vadd.f32 %v4741, %v5203
      %5205 = vmatprep.mubr.f32.mxu0 0.0
      %5206 = vmatmul.mubr.f32.gmra.mxu0 %v4651
      %v5207 = vpop.f32.mrf.mxu0
      %v5208 = vadd.f32 %v4737, %v5207
      %v5209 = vpop.f32.mrf.mxu0
      %v5210 = vadd.f32 %v4741, %v5209
      %5211 = vmatprep.mubr.f32.mxu0 0.0
      %5212 = vmatmul.mubr.f32.gmra.mxu0 %v4652
      %v5213 = vpop.f32.mrf.mxu0
      %v5214 = vadd.f32 %v4737, %v5213
      %v5215 = vpop.f32.mrf.mxu0
      %v5216 = vadd.f32 %v4741, %v5215
      %5217 = vmatprep.mubr.f32.mxu0 0.0
      %5218 = vmatmul.mubr.f32.gmra.mxu0 %v4653
      %v5219 = vpop.f32.mrf.mxu0
      %v5220 = vadd.f32 %v4737, %v5219
      %v5221 = vpop.f32.mrf.mxu0
      %v5222 = vadd.f32 %v4741, %v5221
      %5223 = vmatprep.mubr.f32.mxu0 0.0
      %5224 = vmatmul.mubr.f32.gmra.mxu0 %v4654
      %v5225 = vpop.f32.mrf.mxu0
      %v5226 = vadd.f32 %v4737, %v5225
      %v5227 = vpop.f32.mrf.mxu0
      %v5228 = vadd.f32 %v4741, %v5227
      %5229 = vmatprep.mubr.f32.mxu0 0.0
      %5230 = vmatmul.mubr.f32.gmra.mxu0 %v4655
      %v5231 = vpop.f32.mrf.mxu0
      %v5232 = vadd.f32 %v4737, %v5231
      %v5233 = vpop.f32.mrf.mxu0
      %v5234 = vadd.f32 %v4741, %v5233
      %5235 = vmatprep.mubr.f32.mxu0 0.0
      %5236 = vmatmul.mubr.f32.gmra.mxu0 %v4656
      %v5237 = vpop.f32.mrf.mxu0
      %v5238 = vadd.f32 %v4737, %v5237
      %v5239 = vpop.f32.mrf.mxu0
      %v5240 = vadd.f32 %v4741, %v5239
      %5241 = vmatprep.mubr.f32.mxu0 0.0
      %5242 = vmatmul.mubr.f32.gmra.mxu0 %v4657
      %v5243 = vpop.f32.mrf.mxu0
      %v5244 = vadd.f32 %v4737, %v5243
      %v5245 = vpop.f32.mrf.mxu0
      %v5246 = vadd.f32 %v4741, %v5245
      %5247 = vmatprep.mubr.f32.mxu0 0.0
      %5248 = vmatmul.mubr.f32.gmra.mxu0 %v4658
      %v5249 = vpop.f32.mrf.mxu0
      %v5250 = vadd.f32 %v4737, %v5249
      %v5251 = vpop.f32.mrf.mxu0
      %v5252 = vadd.f32 %v4741, %v5251
      %5253 = vmatprep.mubr.f32.mxu0 0.0
      %5254 = vmatmul.mubr.f32.gmra.mxu0 %v4659
      %v5255 = vpop.f32.mrf.mxu0
      %v5256 = vadd.f32 %v4737, %v5255
      %v5257 = vpop.f32.mrf.mxu0
      %v5258 = vadd.f32 %v4741, %v5257
      %5259 = vdwg.mxu0
      %5260 = vst [vmem:[%s399] sm:$0xff] %v4813
      %5261 = vst [vmem:[%s399 + $0x8] sm:$0xff] %v4815
      %5262 = vst [vmem:[%s399 + $0x10] sm:$0xff] %v5070
      %5263 = vst [vmem:[%s399 + $0x18] sm:$0xff] %v5072
      %5264 = vst [vmem:[%s399 + $0x20] sm:$0xff] %v4819
      %5265 = vst [vmem:[%s399 + $0x28] sm:$0xff] %v4821
      %5266 = vst [vmem:[%s399 + $0x30] sm:$0xff] %v5076
      %5267 = vst [vmem:[%s399 + $0x38] sm:$0xff] %v5078
      %5268 = vst [vmem:[%s399 + $0x40] sm:$0xff] %v4825
      %5269 = vst [vmem:[%s399 + $0x48] sm:$0xff] %v4827
      %5270 = vst [vmem:[%s399 + $0x50] sm:$0xff] %v5082
      %5271 = vst [vmem:[%s399 + $0x58] sm:$0xff] %v5084
      %5272 = vst [vmem:[%s399 + $0x60] sm:$0xff] %v4831
      %5273 = vst [vmem:[%s399 + $0x68] sm:$0xff] %v4833
      %5274 = vst [vmem:[%s399 + $0x70] sm:$0xff] %v5088
      %5275 = vst [vmem:[%s399 + $0x78] sm:$0xff] %v5090
      %5276 = vst [vmem:[%s399 + $0x80] sm:$0xff] %v4837
      %5277 = vst [vmem:[%s399 + $0x88] sm:$0xff] %v4839
      %5278 = vst [vmem:[%s399 + $0x90] sm:$0xff] %v5094
      %5279 = vst [vmem:[%s399 + $0x98] sm:$0xff] %v5096
      %5280 = vst [vmem:[%s399 + $0xa0] sm:$0xff] %v4843
      %5281 = vst [vmem:[%s399 + $0xa8] sm:$0xff] %v4845
      %5282 = vst [vmem:[%s399 + $0xb0] sm:$0xff] %v5100
      %5283 = vst [vmem:[%s399 + $0xb8] sm:$0xff] %v5102
      %5284 = vst [vmem:[%s399 + $0xc0] sm:$0xff] %v4849
      %5285 = vst [vmem:[%s399 + $0xc8] sm:$0xff] %v4851
      %5286 = vst [vmem:[%s399 + $0xd0] sm:$0xff] %v5106
      %5287 = vst [vmem:[%s399 + $0xd8] sm:$0xff] %v5108
      %5288 = vst [vmem:[%s399 + $0xe0] sm:$0xff] %v4855
      %5289 = vst [vmem:[%s399 + $0xe8] sm:$0xff] %v4857
      %5290 = vst [vmem:[%s399 + $0xf0] sm:$0xff] %v5112
      %5291 = vst [vmem:[%s399 + $0xf8] sm:$0xff] %v5114
      %5292 = vst [vmem:[%s399 + $0x100] sm:$0xff] %v4861
      %5293 = vst [vmem:[%s399 + $0x108] sm:$0xff] %v4863
      %5294 = vst [vmem:[%s399 + $0x110] sm:$0xff] %v5118
      %5295 = vst [vmem:[%s399 + $0x118] sm:$0xff] %v5120
      %5296 = vst [vmem:[%s399 + $0x120] sm:$0xff] %v4867
      %5297 = vst [vmem:[%s399 + $0x128] sm:$0xff] %v4869
      %5298 = vst [vmem:[%s399 + $0x130] sm:$0xff] %v5124
      %5299 = vst [vmem:[%s399 + $0x138] sm:$0xff] %v5126
      %5300 = vst [vmem:[%s399 + $0x140] sm:$0xff] %v4873
      %5301 = vst [vmem:[%s399 + $0x148] sm:$0xff] %v4875
      %5302 = vst [vmem:[%s399 + $0x150] sm:$0xff] %v5130
      %5303 = vst [vmem:[%s399 + $0x158] sm:$0xff] %v5132
      %5304 = vst [vmem:[%s399 + $0x160] sm:$0xff] %v4879
      %5305 = vst [vmem:[%s399 + $0x168] sm:$0xff] %v4881
      %5306 = vst [vmem:[%s399 + $0x170] sm:$0xff] %v5136
      %5307 = vst [vmem:[%s399 + $0x178] sm:$0xff] %v5138
      %5308 = vst [vmem:[%s399 + $0x180] sm:$0xff] %v4885
      %5309 = vst [vmem:[%s399 + $0x188] sm:$0xff] %v4887
      %5310 = vst [vmem:[%s399 + $0x190] sm:$0xff] %v5142
      %5311 = vst [vmem:[%s399 + $0x198] sm:$0xff] %v5144
      %5312 = vst [vmem:[%s399 + $0x1a0] sm:$0xff] %v4891
      %5313 = vst [vmem:[%s399 + $0x1a8] sm:$0xff] %v4893
      %5314 = vst [vmem:[%s399 + $0x1b0] sm:$0xff] %v5148
      %5315 = vst [vmem:[%s399 + $0x1b8] sm:$0xff] %v5150
      %5316 = vst [vmem:[%s399 + $0x1c0] sm:$0xff] %v4897
      %5317 = vst [vmem:[%s399 + $0x1c8] sm:$0xff] %v4899
      %5318 = vst [vmem:[%s399 + $0x1d0] sm:$0xff] %v5154
      %5319 = vst [vmem:[%s399 + $0x1d8] sm:$0xff] %v5156
      %5320 = vst [vmem:[%s399 + $0x1e0] sm:$0xff] %v4903
      %5321 = vst [vmem:[%s399 + $0x1e8] sm:$0xff] %v4905
      %5322 = vst [vmem:[%s399 + $0x1f0] sm:$0xff] %v5160
      %5323 = vst [vmem:[%s399 + $0x1f8] sm:$0xff] %v5162
      %5324 = vst [vmem:[%s399 + $0x200] sm:$0xff] %v4909
      %5325 = vst [vmem:[%s399 + $0x208] sm:$0xff] %v4911
      %5326 = vst [vmem:[%s399 + $0x210] sm:$0xff] %v5166
      %5327 = vst [vmem:[%s399 + $0x218] sm:$0xff] %v5168
      %5328 = vst [vmem:[%s399 + $0x220] sm:$0xff] %v4915
      %5329 = vst [vmem:[%s399 + $0x228] sm:$0xff] %v4917
      %5330 = vst [vmem:[%s399 + $0x230] sm:$0xff] %v5172
      %5331 = vst [vmem:[%s399 + $0x238] sm:$0xff] %v5174
      %5332 = vst [vmem:[%s399 + $0x240] sm:$0xff] %v4921
      %5333 = vst [vmem:[%s399 + $0x248] sm:$0xff] %v4923
      %5334 = vst [vmem:[%s399 + $0x250] sm:$0xff] %v5178
      %5335 = vst [vmem:[%s399 + $0x258] sm:$0xff] %v5180
      %5336 = vst [vmem:[%s399 + $0x260] sm:$0xff] %v4927
      %5337 = vst [vmem:[%s399 + $0x268] sm:$0xff] %v4929
      %5338 = vst [vmem:[%s399 + $0x270] sm:$0xff] %v5184
      %5339 = vst [vmem:[%s399 + $0x278] sm:$0xff] %v5186
      %5340 = vst [vmem:[%s399 + $0x280] sm:$0xff] %v4933
      %5341 = vst [vmem:[%s399 + $0x288] sm:$0xff] %v4935
      %5342 = vst [vmem:[%s399 + $0x290] sm:$0xff] %v5190
      %5343 = vst [vmem:[%s399 + $0x298] sm:$0xff] %v5192
      %5344 = vst [vmem:[%s399 + $0x2a0] sm:$0xff] %v4939
      %5345 = vst [vmem:[%s399 + $0x2a8] sm:$0xff] %v4941
      %5346 = vst [vmem:[%s399 + $0x2b0] sm:$0xff] %v5196
      %5347 = vst [vmem:[%s399 + $0x2b8] sm:$0xff] %v5198
      %5348 = vst [vmem:[%s399 + $0x2c0] sm:$0xff] %v4945
      %5349 = vst [vmem:[%s399 + $0x2c8] sm:$0xff] %v4947
      %5350 = vst [vmem:[%s399 + $0x2d0] sm:$0xff] %v5202
      %5351 = vst [vmem:[%s399 + $0x2d8] sm:$0xff] %v5204
      %5352 = vst [vmem:[%s399 + $0x2e0] sm:$0xff] %v4951
      %5353 = vst [vmem:[%s399 + $0x2e8] sm:$0xff] %v4953
      %5354 = vst [vmem:[%s399 + $0x2f0] sm:$0xff] %v5208
      %5355 = vst [vmem:[%s399 + $0x2f8] sm:$0xff] %v5210
      %5356 = vst [vmem:[%s399 + $0x300] sm:$0xff] %v4957
      %5357 = vst [vmem:[%s399 + $0x308] sm:$0xff] %v4959
      %5358 = vst [vmem:[%s399 + $0x310] sm:$0xff] %v5214
      %5359 = vst [vmem:[%s399 + $0x318] sm:$0xff] %v5216
      %5360 = vst [vmem:[%s399 + $0x320] sm:$0xff] %v4963
      %5361 = vst [vmem:[%s399 + $0x328] sm:$0xff] %v4965
      %5362 = vst [vmem:[%s399 + $0x330] sm:$0xff] %v5220
      %5363 = vst [vmem:[%s399 + $0x338] sm:$0xff] %v5222
      %5364 = vst [vmem:[%s399 + $0x340] sm:$0xff] %v4969
      %5365 = vst [vmem:[%s399 + $0x348] sm:$0xff] %v4971
      %5366 = vst [vmem:[%s399 + $0x350] sm:$0xff] %v5226
      %5367 = vst [vmem:[%s399 + $0x358] sm:$0xff] %v5228
      %5368 = vst [vmem:[%s399 + $0x360] sm:$0xff] %v4975
      %5369 = vst [vmem:[%s399 + $0x368] sm:$0xff] %v4977
      %5370 = vst [vmem:[%s399 + $0x370] sm:$0xff] %v5232
      %5371 = vst [vmem:[%s399 + $0x378] sm:$0xff] %v5234
      %5372 = vst [vmem:[%s399 + $0x380] sm:$0xff] %v4981
      %5373 = vst [vmem:[%s399 + $0x388] sm:$0xff] %v4983
      %5374 = vst [vmem:[%s399 + $0x390] sm:$0xff] %v5238
      %5375 = vst [vmem:[%s399 + $0x398] sm:$0xff] %v5240
      %5376 = vst [vmem:[%s399 + $0x3a0] sm:$0xff] %v4987
      %5377 = vst [vmem:[%s399 + $0x3a8] sm:$0xff] %v4989
      %5378 = vst [vmem:[%s399 + $0x3b0] sm:$0xff] %v5244
      %5379 = vst [vmem:[%s399 + $0x3b8] sm:$0xff] %v5246
      %5380 = vst [vmem:[%s399 + $0x3c0] sm:$0xff] %v4993
      %5381 = vst [vmem:[%s399 + $0x3c8] sm:$0xff] %v4995
      %5382 = vst [vmem:[%s399 + $0x3d0] sm:$0xff] %v5250
      %5383 = vst [vmem:[%s399 + $0x3d8] sm:$0xff] %v5252
      %5384 = vst [vmem:[%s399 + $0x3e0] sm:$0xff] %v4999
      %5385 = vst [vmem:[%s399 + $0x3e8] sm:$0xff] %v5001
      %5386 = vst [vmem:[%s399 + $0x3f0] sm:$0xff] %v5256
      %5387 = vst [vmem:[%s399 + $0x3f8] sm:$0xff] %v5258
      %p5388 = scmp.lt.s32.totalorder %s23, 1
      %s5389 = scalar_select %p5388, %s23, 1
      %s5390 = smul.addr %s5389, 32
      %s5391 = smul.addr %s5390, 8
      %s5392 = scalar_lea.vmem %s10, %s5391
      %p5393 = scmp.lt.s32.totalorder %s23, 1
      %s5394 = scalar_select %p5393, %s23, 1
      %s5395 = smul.addr %s5394, 128
      %s5396 = smul.addr %s5395, 8
      %s5397 = scalar_lea.vmem %s11, %s5396
      // Predicated region
      $region61: #{_lambda_.6} parent=59 // pred_check
        %p5398 = pneg %p256
      $region62: #{_lambda_.6} parent=59 // pred_check_branch
        %5400 = sbr.rel (%p5398) target = $region64
      $region63: #{_lambda_.6} parent=59 // pred_region
        _
      $region64: #{_lambda_.6} parent=59 // pred_fallthru
        _
      // Predicated region
      $region65: #{_lambda_.6} parent=59 // pred_check
        %p5401 = pneg %p282
      $region66: #{_lambda_.6} parent=59 // pred_check_branch
        %5403 = sbr.rel (%p5401) target = $region68
      $region67: #{_lambda_.6} parent=59 // pred_region
        _
      $region68: #{_lambda_.6} parent=59 // pred_fallthru
        _
    $region60: #{_lambda_.6} parent=5 // pred_fallthru
      _
    %p5404 = scmp.le.s32.totalorder 2, %s18
    // Predicated region
    $region69: #{_lambda_.6} parent=5 // pred_check
      %p5405 = pneg %p5404
    $region70: #{_lambda_.6} parent=5 // pred_check_branch
      %5407 = sbr.rel (%p5405) target = $region72
    $region71: #{_lambda_.6} parent=5 // pred_region
      %s5408 = ssub.s32 %s18, 2
      // Predicated region
      $region73: #{_lambda_.6} parent=71 // pred_check
        %p5409 = pneg %p262
      $region74: #{_lambda_.6} parent=71 // pred_check_branch
        %5411 = sbr.rel (%p5409) target = $region76
      $region75: #{_lambda_.6} parent=71 // pred_region
        %p5412 = scmp.lt.s32.totalorder %s24, 1
        %s5413 = scalar_select %p5412, %s24, 1
        %s5414 = smul.addr %s5413, 32
        %s5415 = smul.addr %s5414, 8
        %s5416 = scalar_lea.vmem %s10, %s5415
      $region76: #{_lambda_.6} parent=71 // pred_fallthru
        _
      // Predicated region
      $region77: #{_lambda_.6} parent=71 // pred_check
        %p5417 = pneg %p288
      $region78: #{_lambda_.6} parent=71 // pred_check_branch
        %5419 = sbr.rel (%p5417) target = $region80
      $region79: #{_lambda_.6} parent=71 // pred_region
        %p5420 = scmp.lt.s32.totalorder %s24, 1
        %s5421 = scalar_select %p5420, %s24, 1
        %s5422 = smul.addr %s5421, 128
        %s5423 = smul.addr %s5422, 8
        %s5424 = scalar_lea.vmem %s11, %s5423
      $region80: #{_lambda_.6} parent=71 // pred_fallthru
        _
    $region72: #{_lambda_.6} parent=5 // pred_fallthru
      _
  $region6: #{_lambda_.6} parent=0 // loop_footer
    %s22 = sadd.s32 1, %s18
  $region7: #{_lambda_.6} parent=0 // loop_footer_branch
    %17 = sbr.rel target = $region3
  $region8: #{_lambda_.6} parent=0 // loop_exit
    _

</llo_original>
